<compile_context>
chip_gen: v6e
topology: v6e:2x2x1
jax: 0.10.0
libtpu: 0.0.40
codegen_flags: <defaults>
</compile_context>

<pallas_src>
import functools
import math

import jax
import jax.numpy as jnp
import numpy as np
from jax import lax
from jax.experimental import pallas as pl
from jax.experimental.pallas import tpu as pltpu

KSIZE = 5          # conv kernel size fixed by the module
NUM_CLASSES = 2    # fc2 = nn.Linear(50, 2)
C1 = 10            # conv1 out channels
C2 = 20            # conv2 out channels
C1P = 16           # conv1 channels padded per pooled-column lane group
C2P = 128          # conv2 channels padded per pooled-column lane group
HIDP = 128         # fc hidden / class lane padding

_COMPILER_PARAMS = pltpu.CompilerParams(
    dimension_semantics=("parallel",),          # batch grid -> megacore-shardable on v7x
    vmem_limit_bytes=32 * 1024 * 1024,          # ~10.5 MiB actually used; safe on v5e/v6e/v7x
)


# ------------------------------- fused kernel --------------------------------

def _net_fused_kernel(x_ref, w1t_ref, b1_ref, pe1_ref, po1_ref,
                      w2t_ref, b2_ref, pe2_ref, po2_ref,
                      wf1_ref, bf1_ref, wf2_ref, bf2_ref,
                      o_ref, *, dims):
    """One batch element end-to-end: conv1+pool+relu, conv2+pool+relu, fc1+relu, fc2, log_softmax."""
    oh1, ph1, oh2, ph2 = dims
    k = KSIZE

    def conv_pool_relu(inp, wt_ref, b_ref, pe_ref, po_ref, n_rows):
        # inp: (rows_in, K_lanes). wt_ref: (2*k, K_lanes, N) Toeplitz weights; index = parity*k + kh.
        # Parity 0/1 of the conv output column is precomputed into the weights, so the 2x2
        # pool's width-pair max is an elementwise max of the two accumulated matmul results.
        acc_e = None
        acc_o = None
        for kh in range(k):
            a = inp[kh:kh + n_rows, :]
            pe = jnp.dot(a, wt_ref[0 * k + kh], preferred_element_type=jnp.float32)
            po = jnp.dot(a, wt_ref[1 * k + kh], preferred_element_type=jnp.float32)
            acc_e = pe if acc_e is None else acc_e + pe
            acc_o = po if acc_o is None else acc_o + po
        wmax = jnp.maximum(acc_e, acc_o) + b_ref[...]           # width-pair max + bias
        # height-pair max via two 0/1 row-selection matmuls (avoids strided sublane slicing)
        he = jnp.dot(pe_ref[...], wmax, preferred_element_type=jnp.float32)
        ho = jnp.dot(po_ref[...], wmax, preferred_element_type=jnp.float32)
        return jnp.maximum(jnp.maximum(he, ho), 0.0)            # ReLU

    x = x_ref[0]                                                # (H, W), single input channel

    # conv block 1:  (H, W) -> pooled (ph1, pw1*C1P)
    p1 = conv_pool_relu(x, w1t_ref, b1_ref, pe1_ref, po1_ref, oh1)
    # TODO(synk): training-mode Dropout2d / F.dropout not implemented (eval semantics: identity).

    # conv block 2:  (ph1, pw1*C1P) -> pooled (ph2, pw2*C2P)
    p2 = conv_pool_relu(p1, w2t_ref, b2_ref, pe2_ref, po2_ref, oh2)

    # flatten (lane-concat of the pooled rows) + fc1 + ReLU + fc2 + log_softmax
    flat = jnp.concatenate([p2[h:h + 1, :] for h in range(ph2)], axis=1)   # (1, ph2*pw2*C2P)
    h1 = jnp.dot(flat, wf1_ref[...], preferred_element_type=jnp.float32) + bf1_ref[...]
    h1 = jnp.maximum(h1, 0.0)                                              # (1, HIDP)
    z = jnp.dot(h1, wf2_ref[...], preferred_element_type=jnp.float32) + bf2_ref[...]

    col = lax.broadcasted_iota(jnp.int32, z.shape, 1)
    z = jnp.where(col < NUM_CLASSES, z, -1e30)                  # mask padded class lanes
    zmax = jnp.max(z, axis=1, keepdims=True)
    s = z - zmax
    lse = jnp.log(jnp.sum(jnp.exp(s), axis=1, keepdims=True))
    res = (s - lse).astype(o_ref.dtype)                         # (1, HIDP)
    o_ref[0] = jnp.broadcast_to(res, o_ref.shape[1:])           # lane-dense (8,128) store


# ------------------------------- forward wrapper -----------------------------

def net_forward(x, prep):
    """x: (B, 1, H, W) float32.  prep: prepare_params() output (resident-weight layouts)."""
    B, C, H, W = x.shape
    assert C == 1, "module fixes CHANNELS = 1"
    xs = x.reshape(B, H, W)                                     # drop the unit channel axis

    oh1 = H - KSIZE + 1
    ph1 = oh1 // 2
    oh2 = ph1 - KSIZE + 1
    ph2 = oh2 // 2
    dims = (oh1, ph1, oh2, ph2)

    full2 = lambda a: pl.BlockSpec(a.shape, lambda b: (0, 0))
    full3 = lambda a: pl.BlockSpec(a.shape, lambda b: (0, 0, 0))

    out = pl.pallas_call(
        functools.partial(_net_fused_kernel, dims=dims),
        out_shape=jax.ShapeDtypeStruct((B, 8, HIDP), jnp.float32),
        grid=(B,),
        in_specs=[
            pl.BlockSpec((1, H, W), lambda b: (b, 0, 0)),       # per-image input tile
            full3(prep["w1t"]), full2(prep["b1"]),
            full2(prep["pe1"]), full2(prep["po1"]),
            full3(prep["w2t"]), full2(prep["b2"]),
            full2(prep["pe2"]), full2(prep["po2"]),
            full2(prep["wf1"]), full2(prep["bf1"]),
            full2(prep["wf2"]), full2(prep["bf2"]),
        ],
        out_specs=pl.BlockSpec((1, 8, HIDP), lambda b: (b, 0, 0)),
        compiler_params=_COMPILER_PARAMS,
    )(xs, prep["w1t"], prep["b1"], prep["pe1"], prep["po1"],
      prep["w2t"], prep["b2"], prep["pe2"], prep["po2"],
      prep["wf1"], prep["bf1"], prep["wf2"], prep["bf2"])
    return out[:, 0, :NUM_CLASSES]


# ------------------------------ parameter init -------------------------------

def init_params(key, height, width):
    """Raw PyTorch-layout parameters with U(-1/sqrt(fan_in), 1/sqrt(fan_in)) init."""
    def uinit(k, shape, fan_in):
        bound = 1.0 / math.sqrt(fan_in)
        return jax.random.uniform(k, shape, jnp.float32, -bound, bound)

    h1, w1 = (height - 4) // 2, (width - 4) // 2
    h2, w2 = (h1 - 4) // 2, (w1 - 4) // 2
    linear_size = C2 * h2 * w2                       # exactly Net.getLinearSize()

    ks = jax.random.split(key, 8)
    return {
        "conv1_w": uinit(ks[0], (C1, 1, KSIZE, KSIZE), 1 * KSIZE * KSIZE),
        "conv1_b": uinit(ks[1], (C1,), 1 * KSIZE * KSIZE),
        "conv2_w": uinit(ks[2], (C2, C1, KSIZE, KSIZE), C1 * KSIZE * KSIZE),
        "conv2_b": uinit(ks[3], (C2,), C1 * KSIZE * KSIZE),
        "fc1_w": uinit(ks[4], (50, linear_size), linear_size),
        "fc1_b": uinit(ks[5], (50,), linear_size),
        "fc2_w": uinit(ks[6], (NUM_CLASSES, 50), 50),
        "fc2_b": uinit(ks[7], (NUM_CLASSES,), 50),
    }


def prepare_params(params, height, width):
    """One-time offline weight re-layout into the kernel's Toeplitz / lane-padded layouts."""
    k = KSIZE
    oh1, ow1 = height - k + 1, width - k + 1
    ph1, pw1 = oh1 // 2, ow1 // 2
    oh2, ow2 = ph1 - k + 1, pw1 - k + 1
    ph2, pw2 = oh2 // 2, ow2 // 2
    n1 = pw1 * C1P
    n2 = pw2 * C2P

    w1 = np.asarray(params["conv1_w"], np.float32)   # (C1, 1, k, k)
    b1 = np.asarray(params["conv1_b"], np.float32)
    w2 = np.asarray(params["conv2_w"], np.float32)   # (C2, C1, k, k)
    b2 = np.asarray(params["conv2_b"], np.float32)
    f1w = np.asarray(params["fc1_w"], np.float32)    # (hidden, C2*ph2*pw2)
    f1b = np.asarray(params["fc1_b"], np.float32)
    f2w = np.asarray(params["fc2_w"], np.float32)    # (NUM_CLASSES, hidden)
    f2b = np.asarray(params["fc2_b"], np.float32)
    hidden = f1w.shape[0]

    # conv1 Toeplitz over image columns; output lane = pooled_col*C1P + channel; split by col parity.
    w1t = np.zeros((2 * k, width, n1), np.float32)
    for p in range(2):
        for kh in range(k):
            for pw in range(pw1):
                ow = 2 * pw + p
                for kw in range(k):
                    w1t[p * k + kh, ow + kw, pw * C1P: pw * C1P + C1] = w1[:, 0, kh, kw]
    b1r = np.zeros((1, n1), np.float32)
    for pw in range(pw1):
        b1r[0, pw * C1P: pw * C1P + C1] = b1

    # conv2 block-Toeplitz over the (pooled_col, channel) lane axis of the pool-1 output.
    w2t = np.zeros((2 * k, n1, n2), np.float32)
    for p in range(2):
        for kh in range(k):
            for q in range(pw2):
                ow = 2 * q + p
                for kw in range(k):
                    pw = ow + kw
                    w2t[p * k + kh,
                        pw * C1P: pw * C1P + C1,
                        q * C2P: q * C2P + C2] = w2[:, :, kh, kw].T      # (ci, co)
    b2r = np.zeros((1, n2), np.float32)
    for q in range(pw2):
        b2r[0, q * C2P: q * C2P + C2] = b2

    # 0/1 row-selection matrices for the height-pair max of the 2x2 pools.
    def sel(pout, pin, parity):
        m = np.zeros((pout, pin), np.float32)
        for i in range(pout):
            m[i, 2 * i + parity] = 1.0
        return m
    pe1, po1 = sel(ph1, oh1, 0), sel(ph1, oh1, 1)
    pe2, po2 = sel(ph2, oh2, 0), sel(ph2, oh2, 1)

    # fc1 consumes the lane-concat of pooled-2 rows: kernel col h*n2 + w*C2P + c
    # maps to the PyTorch flatten column c*(ph2*pw2) + h*pw2 + w.
    wf1 = np.zeros((ph2 * n2, HIDP), np.float32)
    for h in range(ph2):
        for w in range(pw2):
            for c in range(C2):
                wf1[h * n2 + w * C2P + c, :hidden] = f1w[:, c * ph2 * pw2 + h * pw2 + w]
    bf1 = np.zeros((1, HIDP), np.float32)
    bf1[0, :hidden] = f1b

    wf2 = np.zeros((HIDP, HIDP), np.float32)
    wf2[:hidden, :NUM_CLASSES] = f2w.T
    bf2 = np.zeros((1, HIDP), np.float32)
    bf2[0, :NUM_CLASSES] = f2b

    to = jnp.asarray
    return {"w1t": to(w1t), "b1": to(b1r), "pe1": to(pe1), "po1": to(po1),
            "w2t": to(w2t), "b2": to(b2r), "pe2": to(pe2), "po2": to(po2),
            "wf1": to(wf1), "bf1": to(bf1), "wf2": to(wf2), "bf2": to(bf2)}


# ------------------------------ plain-JAX reference --------------------------

def net_forward_reference(x, params):
    def conv(x, w, b):
        y = lax.conv_general_dilated(x, w, (1, 1), "VALID",
                                     dimension_numbers=("NCHW", "OIHW", "NCHW"))
        return y + b[None, :, None, None]

    def pool_relu(x):
        m = lax.reduce_window(x, -jnp.inf, lax.max, (1, 1, 2, 2), (1, 1, 2, 2), "VALID")
        return jnp.maximum(m, 0.0)

    x = pool_relu(conv(x, params["conv1_w"], params["conv1_b"]))
    x = pool_relu(conv(x, params["conv2_w"], params["conv2_b"]))
    x = x.reshape(x.shape[0], -1)
    x = jnp.maximum(x @ params["fc1_w"].T + params["fc1_b"], 0.0)
    z = x @ params["fc2_w"].T + params["fc2_b"]
    return jax.nn.log_softmax(z, axis=1)


# ---------------------------------- main --------------------------------------

if __name__ == "__main__":
    B, C, H, W = 2, 1, 28, 28      # CHANNELS=1; small MNIST-like spatial size
    key = jax.random.PRNGKey(0)
    pkey, xkey = jax.random.split(key)
    params = init_params(pkey, H, W)
    prep = prepare_params(params, H, W)      # one-time weight re-layout, outside the fwd path
    x = jax.random.normal(xkey, (B, C, H, W), dtype=jnp.float32)

    out = jax.block_until_ready(jax.jit(net_forward)(x, prep))

    assert out.shape == (B, NUM_CLASSES), out.shape
    assert bool(jnp.all(jnp.isfinite(out)))
    # log_softmax rows must exp-sum to 1
    assert bool(jnp.allclose(jnp.sum(jnp.exp(out), axis=1), 1.0, atol=1e-5))
    # numerics vs. plain-JAX reference (eval-mode PyTorch semantics)
    ref = net_forward_reference(x, params)
    assert bool(jnp.allclose(out, ref, atol=1e-2, rtol=0.0)), (out, ref)
    print("KERNEL_OK")
</pallas_src>

<mosaic_0001>
module attributes {stable_mosaic.version = 11 : i64} {
  func.func @_net_fused_kernel(%arg0: i32, %arg1: memref<1x28x28xf32, #tpu.memory_space<vmem>>, %arg2: memref<10x28x192xf32, #tpu.memory_space<vmem>>, %arg3: memref<1x192xf32, #tpu.memory_space<vmem>>, %arg4: memref<12x24xf32, #tpu.memory_space<vmem>>, %arg5: memref<12x24xf32, #tpu.memory_space<vmem>>, %arg6: memref<10x192x512xf32, #tpu.memory_space<vmem>>, %arg7: memref<1x512xf32, #tpu.memory_space<vmem>>, %arg8: memref<4x8xf32, #tpu.memory_space<vmem>>, %arg9: memref<4x8xf32, #tpu.memory_space<vmem>>, %arg10: memref<2048x128xf32, #tpu.memory_space<vmem>>, %arg11: memref<1x128xf32, #tpu.memory_space<vmem>>, %arg12: memref<128x128xf32, #tpu.memory_space<vmem>>, %arg13: memref<1x128xf32, #tpu.memory_space<vmem>>, %arg14: memref<1x8x128xf32, #tpu.memory_space<vmem>>) attributes {dimension_semantics = [#tpu.dimension_semantics<parallel>], iteration_bounds = array<i64: 2>, scalar_prefetch = 0 : i64, scratch_operands = 0 : i64, tpu.core_type = #tpu.core_type<tc>, window_params = [{transform_indices = @transform_0, window_bounds = array<i64: 1, 28, 28>}, {pipeline_mode = #tpu.pipeline_mode<synchronous>, transform_indices = @transform_1, window_bounds = array<i64: 10, 28, 192>}, {pipeline_mode = #tpu.pipeline_mode<synchronous>, transform_indices = @transform_2, window_bounds = array<i64: 1, 192>}, {pipeline_mode = #tpu.pipeline_mode<synchronous>, transform_indices = @transform_3, window_bounds = array<i64: 12, 24>}, {pipeline_mode = #tpu.pipeline_mode<synchronous>, transform_indices = @transform_4, window_bounds = array<i64: 12, 24>}, {pipeline_mode = #tpu.pipeline_mode<synchronous>, transform_indices = @transform_5, window_bounds = array<i64: 10, 192, 512>}, {pipeline_mode = #tpu.pipeline_mode<synchronous>, transform_indices = @transform_6, window_bounds = array<i64: 1, 512>}, {pipeline_mode = #tpu.pipeline_mode<synchronous>, transform_indices = @transform_7, window_bounds = array<i64: 4, 8>}, {pipeline_mode = #tpu.pipeline_mode<synchronous>, transform_indices = @transform_8, window_bounds = array<i64: 4, 8>}, {pipeline_mode = #tpu.pipeline_mode<synchronous>, transform_indices = @transform_9, window_bounds = array<i64: 2048, 128>}, {pipeline_mode = #tpu.pipeline_mode<synchronous>, transform_indices = @transform_10, window_bounds = array<i64: 1, 128>}, {pipeline_mode = #tpu.pipeline_mode<synchronous>, transform_indices = @transform_11, window_bounds = array<i64: 128, 128>}, {pipeline_mode = #tpu.pipeline_mode<synchronous>, transform_indices = @transform_12, window_bounds = array<i64: 1, 128>}, {transform_indices = @transform_13, window_bounds = array<i64: 1, 8, 128>}]} {
    %c0 = arith.constant 0 : index
    %c0_0 = arith.constant 0 : index
    %c0_1 = arith.constant 0 : index
    %0 = vector.load %arg1[%c0, %c0_0, %c0_1] : memref<1x28x28xf32, #tpu.memory_space<vmem>>, vector<1x28x28xf32>
    %1 = vector.shape_cast %0 : vector<1x28x28xf32> to vector<28x28xf32>
    %2 = vector.extract_strided_slice %1 {offsets = [0, 0], sizes = [24, 28], strides = [1, 1]} : vector<28x28xf32> to vector<24x28xf32>
    %c0_2 = arith.constant 0 : index
    %c0_3 = arith.constant 0 : index
    %c0_4 = arith.constant 0 : index
    %3 = vector.load %arg2[%c0_2, %c0_3, %c0_4] : memref<10x28x192xf32, #tpu.memory_space<vmem>>, vector<1x28x192xf32>
    %4 = vector.shape_cast %3 : vector<1x28x192xf32> to vector<28x192xf32>
    %cst = arith.constant dense<0.000000e+00> : vector<24x192xf32>
    %5 = tpu.matmul %2, %4, %cst {dimension_numbers = #tpu.dot_dimension_numbers<[1], [0], [0], [1], [0, 0, 1, 1], [], []>} : vector<24x28xf32>, vector<28x192xf32>, vector<24x192xf32> -> vector<24x192xf32>
    %c5 = arith.constant 5 : index
    %c0_5 = arith.constant 0 : index
    %c0_6 = arith.constant 0 : index
    %6 = vector.load %arg2[%c5, %c0_5, %c0_6] : memref<10x28x192xf32, #tpu.memory_space<vmem>>, vector<1x28x192xf32>
    %7 = vector.shape_cast %6 : vector<1x28x192xf32> to vector<28x192xf32>
    %cst_7 = arith.constant dense<0.000000e+00> : vector<24x192xf32>
    %8 = tpu.matmul %2, %7, %cst_7 {dimension_numbers = #tpu.dot_dimension_numbers<[1], [0], [0], [1], [0, 0, 1, 1], [], []>} : vector<24x28xf32>, vector<28x192xf32>, vector<24x192xf32> -> vector<24x192xf32>
    %9 = vector.extract_strided_slice %1 {offsets = [1, 0], sizes = [24, 28], strides = [1, 1]} : vector<28x28xf32> to vector<24x28xf32>
    %c1 = arith.constant 1 : index
    %c0_8 = arith.constant 0 : index
    %c0_9 = arith.constant 0 : index
    %10 = vector.load %arg2[%c1, %c0_8, %c0_9] : memref<10x28x192xf32, #tpu.memory_space<vmem>>, vector<1x28x192xf32>
    %11 = vector.shape_cast %10 : vector<1x28x192xf32> to vector<28x192xf32>
    %cst_10 = arith.constant dense<0.000000e+00> : vector<24x192xf32>
    %12 = tpu.matmul %9, %11, %cst_10 {dimension_numbers = #tpu.dot_dimension_numbers<[1], [0], [0], [1], [0, 0, 1, 1], [], []>} : vector<24x28xf32>, vector<28x192xf32>, vector<24x192xf32> -> vector<24x192xf32>
    %c6 = arith.constant 6 : index
    %c0_11 = arith.constant 0 : index
    %c0_12 = arith.constant 0 : index
    %13 = vector.load %arg2[%c6, %c0_11, %c0_12] : memref<10x28x192xf32, #tpu.memory_space<vmem>>, vector<1x28x192xf32>
    %14 = vector.shape_cast %13 : vector<1x28x192xf32> to vector<28x192xf32>
    %cst_13 = arith.constant dense<0.000000e+00> : vector<24x192xf32>
    %15 = tpu.matmul %9, %14, %cst_13 {dimension_numbers = #tpu.dot_dimension_numbers<[1], [0], [0], [1], [0, 0, 1, 1], [], []>} : vector<24x28xf32>, vector<28x192xf32>, vector<24x192xf32> -> vector<24x192xf32>
    %16 = arith.addf %5, %12 : vector<24x192xf32>
    %17 = arith.addf %8, %15 : vector<24x192xf32>
    %18 = vector.extract_strided_slice %1 {offsets = [2, 0], sizes = [24, 28], strides = [1, 1]} : vector<28x28xf32> to vector<24x28xf32>
    %c2 = arith.constant 2 : index
    %c0_14 = arith.constant 0 : index
    %c0_15 = arith.constant 0 : index
    %19 = vector.load %arg2[%c2, %c0_14, %c0_15] : memref<10x28x192xf32, #tpu.memory_space<vmem>>, vector<1x28x192xf32>
    %20 = vector.shape_cast %19 : vector<1x28x192xf32> to vector<28x192xf32>
    %cst_16 = arith.constant dense<0.000000e+00> : vector<24x192xf32>
    %21 = tpu.matmul %18, %20, %cst_16 {dimension_numbers = #tpu.dot_dimension_numbers<[1], [0], [0], [1], [0, 0, 1, 1], [], []>} : vector<24x28xf32>, vector<28x192xf32>, vector<24x192xf32> -> vector<24x192xf32>
    %c7 = arith.constant 7 : index
    %c0_17 = arith.constant 0 : index
    %c0_18 = arith.constant 0 : index
    %22 = vector.load %arg2[%c7, %c0_17, %c0_18] : memref<10x28x192xf32, #tpu.memory_space<vmem>>, vector<1x28x192xf32>
    %23 = vector.shape_cast %22 : vector<1x28x192xf32> to vector<28x192xf32>
    %cst_19 = arith.constant dense<0.000000e+00> : vector<24x192xf32>
    %24 = tpu.matmul %18, %23, %cst_19 {dimension_numbers = #tpu.dot_dimension_numbers<[1], [0], [0], [1], [0, 0, 1, 1], [], []>} : vector<24x28xf32>, vector<28x192xf32>, vector<24x192xf32> -> vector<24x192xf32>
    %25 = arith.addf %16, %21 : vector<24x192xf32>
    %26 = arith.addf %17, %24 : vector<24x192xf32>
    %27 = vector.extract_strided_slice %1 {offsets = [3, 0], sizes = [24, 28], strides = [1, 1]} : vector<28x28xf32> to vector<24x28xf32>
    %c3 = arith.constant 3 : index
    %c0_20 = arith.constant 0 : index
    %c0_21 = arith.constant 0 : index
    %28 = vector.load %arg2[%c3, %c0_20, %c0_21] : memref<10x28x192xf32, #tpu.memory_space<vmem>>, vector<1x28x192xf32>
    %29 = vector.shape_cast %28 : vector<1x28x192xf32> to vector<28x192xf32>
    %cst_22 = arith.constant dense<0.000000e+00> : vector<24x192xf32>
    %30 = tpu.matmul %27, %29, %cst_22 {dimension_numbers = #tpu.dot_dimension_numbers<[1], [0], [0], [1], [0, 0, 1, 1], [], []>} : vector<24x28xf32>, vector<28x192xf32>, vector<24x192xf32> -> vector<24x192xf32>
    %c8 = arith.constant 8 : index
    %c0_23 = arith.constant 0 : index
    %c0_24 = arith.constant 0 : index
    %31 = vector.load %arg2[%c8, %c0_23, %c0_24] : memref<10x28x192xf32, #tpu.memory_space<vmem>>, vector<1x28x192xf32>
    %32 = vector.shape_cast %31 : vector<1x28x192xf32> to vector<28x192xf32>
    %cst_25 = arith.constant dense<0.000000e+00> : vector<24x192xf32>
    %33 = tpu.matmul %27, %32, %cst_25 {dimension_numbers = #tpu.dot_dimension_numbers<[1], [0], [0], [1], [0, 0, 1, 1], [], []>} : vector<24x28xf32>, vector<28x192xf32>, vector<24x192xf32> -> vector<24x192xf32>
    %34 = arith.addf %25, %30 : vector<24x192xf32>
    %35 = arith.addf %26, %33 : vector<24x192xf32>
    %36 = vector.extract_strided_slice %1 {offsets = [4, 0], sizes = [24, 28], strides = [1, 1]} : vector<28x28xf32> to vector<24x28xf32>
    %c4 = arith.constant 4 : index
    %c0_26 = arith.constant 0 : index
    %c0_27 = arith.constant 0 : index
    %37 = vector.load %arg2[%c4, %c0_26, %c0_27] : memref<10x28x192xf32, #tpu.memory_space<vmem>>, vector<1x28x192xf32>
    %38 = vector.shape_cast %37 : vector<1x28x192xf32> to vector<28x192xf32>
    %cst_28 = arith.constant dense<0.000000e+00> : vector<24x192xf32>
    %39 = tpu.matmul %36, %38, %cst_28 {dimension_numbers = #tpu.dot_dimension_numbers<[1], [0], [0], [1], [0, 0, 1, 1], [], []>} : vector<24x28xf32>, vector<28x192xf32>, vector<24x192xf32> -> vector<24x192xf32>
    %c9 = arith.constant 9 : index
    %c0_29 = arith.constant 0 : index
    %c0_30 = arith.constant 0 : index
    %40 = vector.load %arg2[%c9, %c0_29, %c0_30] : memref<10x28x192xf32, #tpu.memory_space<vmem>>, vector<1x28x192xf32>
    %41 = vector.shape_cast %40 : vector<1x28x192xf32> to vector<28x192xf32>
    %cst_31 = arith.constant dense<0.000000e+00> : vector<24x192xf32>
    %42 = tpu.matmul %36, %41, %cst_31 {dimension_numbers = #tpu.dot_dimension_numbers<[1], [0], [0], [1], [0, 0, 1, 1], [], []>} : vector<24x28xf32>, vector<28x192xf32>, vector<24x192xf32> -> vector<24x192xf32>
    %43 = arith.addf %34, %39 : vector<24x192xf32>
    %44 = arith.addf %35, %42 : vector<24x192xf32>
    %45 = arith.maximumf %43, %44 : vector<24x192xf32>
    %c0_32 = arith.constant 0 : index
    %c0_33 = arith.constant 0 : index
    %46 = vector.load %arg3[%c0_32, %c0_33] : memref<1x192xf32, #tpu.memory_space<vmem>>, vector<1x192xf32>
    %47 = vector.broadcast %46 : vector<1x192xf32> to vector<24x192xf32>
    %48 = arith.addf %45, %47 : vector<24x192xf32>
    %c0_34 = arith.constant 0 : index
    %c0_35 = arith.constant 0 : index
    %49 = vector.load %arg4[%c0_34, %c0_35] : memref<12x24xf32, #tpu.memory_space<vmem>>, vector<12x24xf32>
    %cst_36 = arith.constant dense<0.000000e+00> : vector<12x192xf32>
    %50 = tpu.matmul %49, %48, %cst_36 {dimension_numbers = #tpu.dot_dimension_numbers<[1], [0], [0], [1], [0, 0, 1, 1], [], []>} : vector<12x24xf32>, vector<24x192xf32>, vector<12x192xf32> -> vector<12x192xf32>
    %c0_37 = arith.constant 0 : index
    %c0_38 = arith.constant 0 : index
    %51 = vector.load %arg5[%c0_37, %c0_38] : memref<12x24xf32, #tpu.memory_space<vmem>>, vector<12x24xf32>
    %cst_39 = arith.constant dense<0.000000e+00> : vector<12x192xf32>
    %52 = tpu.matmul %51, %48, %cst_39 {dimension_numbers = #tpu.dot_dimension_numbers<[1], [0], [0], [1], [0, 0, 1, 1], [], []>} : vector<12x24xf32>, vector<24x192xf32>, vector<12x192xf32> -> vector<12x192xf32>
    %53 = arith.maximumf %50, %52 : vector<12x192xf32>
    %cst_40 = arith.constant 0.000000e+00 : f32
    %54 = vector.broadcast %cst_40 : f32 to vector<12x192xf32>
    %55 = arith.maximumf %53, %54 : vector<12x192xf32>
    %56 = vector.extract_strided_slice %55 {offsets = [0, 0], sizes = [8, 192], strides = [1, 1]} : vector<12x192xf32> to vector<8x192xf32>
    %c0_41 = arith.constant 0 : index
    %c0_42 = arith.constant 0 : index
    %c0_43 = arith.constant 0 : index
    %57 = vector.load %arg6[%c0_41, %c0_42, %c0_43] : memref<10x192x512xf32, #tpu.memory_space<vmem>>, vector<1x192x512xf32>
    %58 = vector.shape_cast %57 : vector<1x192x512xf32> to vector<192x512xf32>
    %cst_44 = arith.constant dense<0.000000e+00> : vector<8x512xf32>
    %59 = tpu.matmul %56, %58, %cst_44 {dimension_numbers = #tpu.dot_dimension_numbers<[1], [0], [0], [1], [0, 0, 1, 1], [], []>} : vector<8x192xf32>, vector<192x512xf32>, vector<8x512xf32> -> vector<8x512xf32>
    %c5_45 = arith.constant 5 : index
    %c0_46 = arith.constant 0 : index
    %c0_47 = arith.constant 0 : index
    %60 = vector.load %arg6[%c5_45, %c0_46, %c0_47] : memref<10x192x512xf32, #tpu.memory_space<vmem>>, vector<1x192x512xf32>
    %61 = vector.shape_cast %60 : vector<1x192x512xf32> to vector<192x512xf32>
    %cst_48 = arith.constant dense<0.000000e+00> : vector<8x512xf32>
    %62 = tpu.matmul %56, %61, %cst_48 {dimension_numbers = #tpu.dot_dimension_numbers<[1], [0], [0], [1], [0, 0, 1, 1], [], []>} : vector<8x192xf32>, vector<192x512xf32>, vector<8x512xf32> -> vector<8x512xf32>
    %63 = vector.extract_strided_slice %55 {offsets = [1, 0], sizes = [8, 192], strides = [1, 1]} : vector<12x192xf32> to vector<8x192xf32>
    %c1_49 = arith.constant 1 : index
    %c0_50 = arith.constant 0 : index
    %c0_51 = arith.constant 0 : index
    %64 = vector.load %arg6[%c1_49, %c0_50, %c0_51] : memref<10x192x512xf32, #tpu.memory_space<vmem>>, vector<1x192x512xf32>
    %65 = vector.shape_cast %64 : vector<1x192x512xf32> to vector<192x512xf32>
    %cst_52 = arith.constant dense<0.000000e+00> : vector<8x512xf32>
    %66 = tpu.matmul %63, %65, %cst_52 {dimension_numbers = #tpu.dot_dimension_numbers<[1], [0], [0], [1], [0, 0, 1, 1], [], []>} : vector<8x192xf32>, vector<192x512xf32>, vector<8x512xf32> -> vector<8x512xf32>
    %c6_53 = arith.constant 6 : index
    %c0_54 = arith.constant 0 : index
    %c0_55 = arith.constant 0 : index
    %67 = vector.load %arg6[%c6_53, %c0_54, %c0_55] : memref<10x192x512xf32, #tpu.memory_space<vmem>>, vector<1x192x512xf32>
    %68 = vector.shape_cast %67 : vector<1x192x512xf32> to vector<192x512xf32>
    %cst_56 = arith.constant dense<0.000000e+00> : vector<8x512xf32>
    %69 = tpu.matmul %63, %68, %cst_56 {dimension_numbers = #tpu.dot_dimension_numbers<[1], [0], [0], [1], [0, 0, 1, 1], [], []>} : vector<8x192xf32>, vector<192x512xf32>, vector<8x512xf32> -> vector<8x512xf32>
    %70 = arith.addf %59, %66 : vector<8x512xf32>
    %71 = arith.addf %62, %69 : vector<8x512xf32>
    %72 = vector.extract_strided_slice %55 {offsets = [2, 0], sizes = [8, 192], strides = [1, 1]} : vector<12x192xf32> to vector<8x192xf32>
    %c2_57 = arith.constant 2 : index
    %c0_58 = arith.constant 0 : index
    %c0_59 = arith.constant 0 : index
    %73 = vector.load %arg6[%c2_57, %c0_58, %c0_59] : memref<10x192x512xf32, #tpu.memory_space<vmem>>, vector<1x192x512xf32>
    %74 = vector.shape_cast %73 : vector<1x192x512xf32> to vector<192x512xf32>
    %cst_60 = arith.constant dense<0.000000e+00> : vector<8x512xf32>
    %75 = tpu.matmul %72, %74, %cst_60 {dimension_numbers = #tpu.dot_dimension_numbers<[1], [0], [0], [1], [0, 0, 1, 1], [], []>} : vector<8x192xf32>, vector<192x512xf32>, vector<8x512xf32> -> vector<8x512xf32>
    %c7_61 = arith.constant 7 : index
    %c0_62 = arith.constant 0 : index
    %c0_63 = arith.constant 0 : index
    %76 = vector.load %arg6[%c7_61, %c0_62, %c0_63] : memref<10x192x512xf32, #tpu.memory_space<vmem>>, vector<1x192x512xf32>
    %77 = vector.shape_cast %76 : vector<1x192x512xf32> to vector<192x512xf32>
    %cst_64 = arith.constant dense<0.000000e+00> : vector<8x512xf32>
    %78 = tpu.matmul %72, %77, %cst_64 {dimension_numbers = #tpu.dot_dimension_numbers<[1], [0], [0], [1], [0, 0, 1, 1], [], []>} : vector<8x192xf32>, vector<192x512xf32>, vector<8x512xf32> -> vector<8x512xf32>
    %79 = arith.addf %70, %75 : vector<8x512xf32>
    %80 = arith.addf %71, %78 : vector<8x512xf32>
    %81 = vector.extract_strided_slice %55 {offsets = [3, 0], sizes = [8, 192], strides = [1, 1]} : vector<12x192xf32> to vector<8x192xf32>
    %c3_65 = arith.constant 3 : index
    %c0_66 = arith.constant 0 : index
    %c0_67 = arith.constant 0 : index
    %82 = vector.load %arg6[%c3_65, %c0_66, %c0_67] : memref<10x192x512xf32, #tpu.memory_space<vmem>>, vector<1x192x512xf32>
    %83 = vector.shape_cast %82 : vector<1x192x512xf32> to vector<192x512xf32>
    %cst_68 = arith.constant dense<0.000000e+00> : vector<8x512xf32>
    %84 = tpu.matmul %81, %83, %cst_68 {dimension_numbers = #tpu.dot_dimension_numbers<[1], [0], [0], [1], [0, 0, 1, 1], [], []>} : vector<8x192xf32>, vector<192x512xf32>, vector<8x512xf32> -> vector<8x512xf32>
    %c8_69 = arith.constant 8 : index
    %c0_70 = arith.constant 0 : index
    %c0_71 = arith.constant 0 : index
    %85 = vector.load %arg6[%c8_69, %c0_70, %c0_71] : memref<10x192x512xf32, #tpu.memory_space<vmem>>, vector<1x192x512xf32>
    %86 = vector.shape_cast %85 : vector<1x192x512xf32> to vector<192x512xf32>
    %cst_72 = arith.constant dense<0.000000e+00> : vector<8x512xf32>
    %87 = tpu.matmul %81, %86, %cst_72 {dimension_numbers = #tpu.dot_dimension_numbers<[1], [0], [0], [1], [0, 0, 1, 1], [], []>} : vector<8x192xf32>, vector<192x512xf32>, vector<8x512xf32> -> vector<8x512xf32>
    %88 = arith.addf %79, %84 : vector<8x512xf32>
    %89 = arith.addf %80, %87 : vector<8x512xf32>
    %90 = vector.extract_strided_slice %55 {offsets = [4, 0], sizes = [8, 192], strides = [1, 1]} : vector<12x192xf32> to vector<8x192xf32>
    %c4_73 = arith.constant 4 : index
    %c0_74 = arith.constant 0 : index
    %c0_75 = arith.constant 0 : index
    %91 = vector.load %arg6[%c4_73, %c0_74, %c0_75] : memref<10x192x512xf32, #tpu.memory_space<vmem>>, vector<1x192x512xf32>
    %92 = vector.shape_cast %91 : vector<1x192x512xf32> to vector<192x512xf32>
    %cst_76 = arith.constant dense<0.000000e+00> : vector<8x512xf32>
    %93 = tpu.matmul %90, %92, %cst_76 {dimension_numbers = #tpu.dot_dimension_numbers<[1], [0], [0], [1], [0, 0, 1, 1], [], []>} : vector<8x192xf32>, vector<192x512xf32>, vector<8x512xf32> -> vector<8x512xf32>
    %c9_77 = arith.constant 9 : index
    %c0_78 = arith.constant 0 : index
    %c0_79 = arith.constant 0 : index
    %94 = vector.load %arg6[%c9_77, %c0_78, %c0_79] : memref<10x192x512xf32, #tpu.memory_space<vmem>>, vector<1x192x512xf32>
    %95 = vector.shape_cast %94 : vector<1x192x512xf32> to vector<192x512xf32>
    %cst_80 = arith.constant dense<0.000000e+00> : vector<8x512xf32>
    %96 = tpu.matmul %90, %95, %cst_80 {dimension_numbers = #tpu.dot_dimension_numbers<[1], [0], [0], [1], [0, 0, 1, 1], [], []>} : vector<8x192xf32>, vector<192x512xf32>, vector<8x512xf32> -> vector<8x512xf32>
    %97 = arith.addf %88, %93 : vector<8x512xf32>
    %98 = arith.addf %89, %96 : vector<8x512xf32>
    %99 = arith.maximumf %97, %98 : vector<8x512xf32>
    %c0_81 = arith.constant 0 : index
    %c0_82 = arith.constant 0 : index
    %100 = vector.load %arg7[%c0_81, %c0_82] : memref<1x512xf32, #tpu.memory_space<vmem>>, vector<1x512xf32>
    %101 = vector.broadcast %100 : vector<1x512xf32> to vector<8x512xf32>
    %102 = arith.addf %99, %101 : vector<8x512xf32>
    %c0_83 = arith.constant 0 : index
    %c0_84 = arith.constant 0 : index
    %103 = vector.load %arg8[%c0_83, %c0_84] : memref<4x8xf32, #tpu.memory_space<vmem>>, vector<4x8xf32>
    %cst_85 = arith.constant dense<0.000000e+00> : vector<4x512xf32>
    %104 = tpu.matmul %103, %102, %cst_85 {dimension_numbers = #tpu.dot_dimension_numbers<[1], [0], [0], [1], [0, 0, 1, 1], [], []>} : vector<4x8xf32>, vector<8x512xf32>, vector<4x512xf32> -> vector<4x512xf32>
    %c0_86 = arith.constant 0 : index
    %c0_87 = arith.constant 0 : index
    %105 = vector.load %arg9[%c0_86, %c0_87] : memref<4x8xf32, #tpu.memory_space<vmem>>, vector<4x8xf32>
    %cst_88 = arith.constant dense<0.000000e+00> : vector<4x512xf32>
    %106 = tpu.matmul %105, %102, %cst_88 {dimension_numbers = #tpu.dot_dimension_numbers<[1], [0], [0], [1], [0, 0, 1, 1], [], []>} : vector<4x8xf32>, vector<8x512xf32>, vector<4x512xf32> -> vector<4x512xf32>
    %107 = arith.maximumf %104, %106 : vector<4x512xf32>
    %cst_89 = arith.constant 0.000000e+00 : f32
    %108 = vector.broadcast %cst_89 : f32 to vector<4x512xf32>
    %109 = arith.maximumf %107, %108 : vector<4x512xf32>
    %110 = vector.extract_strided_slice %109 {offsets = [0, 0], sizes = [1, 512], strides = [1, 1]} : vector<4x512xf32> to vector<1x512xf32>
    %111 = vector.extract_strided_slice %109 {offsets = [1, 0], sizes = [1, 512], strides = [1, 1]} : vector<4x512xf32> to vector<1x512xf32>
    %112 = vector.extract_strided_slice %109 {offsets = [2, 0], sizes = [1, 512], strides = [1, 1]} : vector<4x512xf32> to vector<1x512xf32>
    %113 = vector.extract_strided_slice %109 {offsets = [3, 0], sizes = [1, 512], strides = [1, 1]} : vector<4x512xf32> to vector<1x512xf32>
    %114 = tpu.concatenate %110, %111, %112, %113 in 1 : vector<1x512xf32>, vector<1x512xf32>, vector<1x512xf32>, vector<1x512xf32> -> vector<1x2048xf32>
    %c0_90 = arith.constant 0 : index
    %c0_91 = arith.constant 0 : index
    %115 = vector.load %arg10[%c0_90, %c0_91] : memref<2048x128xf32, #tpu.memory_space<vmem>>, vector<2048x128xf32>
    %cst_92 = arith.constant dense<0.000000e+00> : vector<1x128xf32>
    %116 = tpu.matmul %114, %115, %cst_92 {dimension_numbers = #tpu.dot_dimension_numbers<[1], [0], [0], [1], [0, 0, 1, 1], [], []>} : vector<1x2048xf32>, vector<2048x128xf32>, vector<1x128xf32> -> vector<1x128xf32>
    %c0_93 = arith.constant 0 : index
    %c0_94 = arith.constant 0 : index
    %117 = vector.load %arg11[%c0_93, %c0_94] : memref<1x128xf32, #tpu.memory_space<vmem>>, vector<1x128xf32>
    %118 = arith.addf %116, %117 : vector<1x128xf32>
    %cst_95 = arith.constant 0.000000e+00 : f32
    %119 = vector.broadcast %cst_95 : f32 to vector<1x128xf32>
    %120 = arith.maximumf %118, %119 : vector<1x128xf32>
    %c0_96 = arith.constant 0 : index
    %c0_97 = arith.constant 0 : index
    %121 = vector.load %arg12[%c0_96, %c0_97] : memref<128x128xf32, #tpu.memory_space<vmem>>, vector<128x128xf32>
    %cst_98 = arith.constant dense<0.000000e+00> : vector<1x128xf32>
    %122 = tpu.matmul %120, %121, %cst_98 {dimension_numbers = #tpu.dot_dimension_numbers<[1], [0], [0], [1], [0, 0, 1, 1], [], []>} : vector<1x128xf32>, vector<128x128xf32>, vector<1x128xf32> -> vector<1x128xf32>
    %c0_99 = arith.constant 0 : index
    %c0_100 = arith.constant 0 : index
    %123 = vector.load %arg13[%c0_99, %c0_100] : memref<1x128xf32, #tpu.memory_space<vmem>>, vector<1x128xf32>
    %124 = arith.addf %122, %123 : vector<1x128xf32>
    %125 = tpu.iota {dimensions = array<i32: 1>} : vector<1x128xi32>
    %c2_i32 = arith.constant 2 : i32
    %126 = vector.broadcast %c2_i32 : i32 to vector<1x128xi32>
    %127 = arith.cmpi slt, %125, %126 : vector<1x128xi32>
    %cst_101 = arith.constant -1.000000e+30 : f32
    %128 = vector.broadcast %cst_101 : f32 to vector<1x128xf32>
    %129 = arith.select %127, %124, %128 : vector<1x128xi1>, vector<1x128xf32>
    %cst_102 = arith.constant dense<0xFF800000> : vector<1xf32>
    %130 = vector.multi_reduction <maximumf>, %129, %cst_102 [1] : vector<1x128xf32> to vector<1xf32>
    %131 = vector.shape_cast %130 : vector<1xf32> to vector<1x1xf32>
    %132 = vector.broadcast %131 : vector<1x1xf32> to vector<1x128xf32>
    %133 = arith.subf %129, %132 : vector<1x128xf32>
    %134 = math.exp %133 : vector<1x128xf32>
    %cst_103 = arith.constant dense<0.000000e+00> : vector<1xf32>
    %135 = vector.multi_reduction <add>, %134, %cst_103 [1] : vector<1x128xf32> to vector<1xf32>
    %136 = vector.shape_cast %135 : vector<1xf32> to vector<1x1xf32>
    %137 = math.log %136 : vector<1x1xf32>
    %138 = vector.broadcast %137 : vector<1x1xf32> to vector<1x128xf32>
    %139 = arith.subf %133, %138 : vector<1x128xf32>
    %140 = vector.shape_cast %139 : vector<1x128xf32> to vector<1x128xf32>
    %141 = vector.broadcast %140 : vector<1x128xf32> to vector<8x128xf32>
    %c0_104 = arith.constant 0 : index
    %c0_105 = arith.constant 0 : index
    %c0_106 = arith.constant 0 : index
    %142 = vector.load %arg14[%c0_104, %c0_105, %c0_106] : memref<1x8x128xf32, #tpu.memory_space<vmem>>, vector<1x8x128xf32>
    %143 = vector.shape_cast %142 : vector<1x8x128xf32> to vector<8x128xf32>
    %144 = vector.shape_cast %141 : vector<8x128xf32> to vector<1x8x128xf32>
    tpu.vector_store %arg14[%c0_104, %c0_105, %c0_106], %144 {strides = array<i32>} : memref<1x8x128xf32, #tpu.memory_space<vmem>>, vector<1x8x128xf32>,
    return
  }
  func.func @transform_0(%arg0: i32) -> (i32, i32, i32) {
    %c0_i32 = arith.constant 0 : i32
    %c0_i32_0 = arith.constant 0 : i32
    %c0_i32_1 = arith.constant 0 : i32
    return %arg0, %c0_i32, %c0_i32_0 : i32, i32, i32
  }
  func.func @transform_1(%arg0: i32) -> (i32, i32, i32) {
    %c0_i32 = arith.constant 0 : i32
    %c0_i32_0 = arith.constant 0 : i32
    %c0_i32_1 = arith.constant 0 : i32
    %c0_i32_2 = arith.constant 0 : i32
    return %c0_i32, %c0_i32_0, %c0_i32_1 : i32, i32, i32
  }
  func.func @transform_2(%arg0: i32) -> (i32, i32) {
    %c0_i32 = arith.constant 0 : i32
    %c0_i32_0 = arith.constant 0 : i32
    %c0_i32_1 = arith.constant 0 : i32
    return %c0_i32, %c0_i32_0 : i32, i32
  }
  func.func @transform_3(%arg0: i32) -> (i32, i32) {
    %c0_i32 = arith.constant 0 : i32
    %c0_i32_0 = arith.constant 0 : i32
    %c0_i32_1 = arith.constant 0 : i32
    return %c0_i32, %c0_i32_0 : i32, i32
  }
  func.func @transform_4(%arg0: i32) -> (i32, i32) {
    %c0_i32 = arith.constant 0 : i32
    %c0_i32_0 = arith.constant 0 : i32
    %c0_i32_1 = arith.constant 0 : i32
    return %c0_i32, %c0_i32_0 : i32, i32
  }
  func.func @transform_5(%arg0: i32) -> (i32, i32, i32) {
    %c0_i32 = arith.constant 0 : i32
    %c0_i32_0 = arith.constant 0 : i32
    %c0_i32_1 = arith.constant 0 : i32
    %c0_i32_2 = arith.constant 0 : i32
    return %c0_i32, %c0_i32_0, %c0_i32_1 : i32, i32, i32
  }
  func.func @transform_6(%arg0: i32) -> (i32, i32) {
    %c0_i32 = arith.constant 0 : i32
    %c0_i32_0 = arith.constant 0 : i32
    %c0_i32_1 = arith.constant 0 : i32
    return %c0_i32, %c0_i32_0 : i32, i32
  }
  func.func @transform_7(%arg0: i32) -> (i32, i32) {
    %c0_i32 = arith.constant 0 : i32
    %c0_i32_0 = arith.constant 0 : i32
    %c0_i32_1 = arith.constant 0 : i32
    return %c0_i32, %c0_i32_0 : i32, i32
  }
  func.func @transform_8(%arg0: i32) -> (i32, i32) {
    %c0_i32 = arith.constant 0 : i32
    %c0_i32_0 = arith.constant 0 : i32
    %c0_i32_1 = arith.constant 0 : i32
    return %c0_i32, %c0_i32_0 : i32, i32
  }
  func.func @transform_9(%arg0: i32) -> (i32, i32) {
    %c0_i32 = arith.constant 0 : i32
    %c0_i32_0 = arith.constant 0 : i32
    %c0_i32_1 = arith.constant 0 : i32
    return %c0_i32, %c0_i32_0 : i32, i32
  }
  func.func @transform_10(%arg0: i32) -> (i32, i32) {
    %c0_i32 = arith.constant 0 : i32
    %c0_i32_0 = arith.constant 0 : i32
    %c0_i32_1 = arith.constant 0 : i32
    return %c0_i32, %c0_i32_0 : i32, i32
  }
  func.func @transform_11(%arg0: i32) -> (i32, i32) {
    %c0_i32 = arith.constant 0 : i32
    %c0_i32_0 = arith.constant 0 : i32
    %c0_i32_1 = arith.constant 0 : i32
    return %c0_i32, %c0_i32_0 : i32, i32
  }
  func.func @transform_12(%arg0: i32) -> (i32, i32) {
    %c0_i32 = arith.constant 0 : i32
    %c0_i32_0 = arith.constant 0 : i32
    %c0_i32_1 = arith.constant 0 : i32
    return %c0_i32, %c0_i32_0 : i32, i32
  }
  func.func @transform_13(%arg0: i32) -> (i32, i32, i32) {
    %c0_i32 = arith.constant 0 : i32
    %c0_i32_0 = arith.constant 0 : i32
    %c0_i32_1 = arith.constant 0 : i32
    return %arg0, %c0_i32, %c0_i32_0 : i32, i32, i32
  }
}

</mosaic_0001>

<llo_original>
// kernel: net_forward.1
$region0: #{net_forward.1}
  #allocation0 [shape = 'u32[]', space=smem, size = 0x4, offset = 0x4, fixed_abs, tag = 'smem constant byte address 0x4 - core index']
  #allocation1 [shape = 'u32[144,128]{1,0:T(1,128)}', space=vmem, size = 0x12000, scoped, tag = 'internal scratch']
  %s0 = inlined_call_operand.vmem [shape: f32[2,28,28], index: 0, kind: input, shape index: {}]
  %s1 = inlined_call_operand.hbm [shape: f32[10,28,192], index: 1, kind: input, shape index: {}]
  %s2 = inlined_call_operand.hbm [shape: f32[1,192], index: 2, kind: input, shape index: {}]
  %s3 = inlined_call_operand.hbm [shape: f32[12,24], index: 3, kind: input, shape index: {}]
  %s4 = inlined_call_operand.hbm [shape: f32[12,24], index: 4, kind: input, shape index: {}]
  %s5 = inlined_call_operand.hbm [shape: f32[10,192,512], index: 5, kind: input, shape index: {}]
  %s6 = inlined_call_operand.hbm [shape: f32[1,512], index: 6, kind: input, shape index: {}]
  %s7 = inlined_call_operand.hbm [shape: f32[4,8], index: 7, kind: input, shape index: {}]
  %s8 = inlined_call_operand.hbm [shape: f32[4,8], index: 8, kind: input, shape index: {}]
  %s9 = inlined_call_operand.hbm [shape: f32[2048,128], index: 9, kind: input, shape index: {}]
  %s10 = inlined_call_operand.hbm [shape: f32[1,128], index: 10, kind: input, shape index: {}]
  %s11 = inlined_call_operand.hbm [shape: f32[128,128], index: 11, kind: input, shape index: {}]
  %s12 = inlined_call_operand.hbm [shape: f32[1,128], index: 12, kind: input, shape index: {}]
  %s13 = inlined_call_operand.vmem [shape: f32[2,8,128], index: 13, kind: output, shape index: {}]
  %s14 = sld [smem:[#allocation0]]
  $region133: #{net_forward.1} parent=0
    _
  %s16 = ssub.s32 1, %s14
  %s17 = scalar_select 0, %s16, %s14
  $region1: #{net_forward.1} parent=0
    #allocation2 [shape = 'u8[327680]{0}', space=vmem, size = 0x50000, scoped, tag = 'input window, operand 1, single buffered']
    #allocation3 [shape = 's32[2]{0}', space=sflag, size = 0x8, scoped, tag = 'scoped memory for net_forward.1']
    #allocation4 [shape = 'u8[1024]{0}', space=vmem, size = 0x400, scoped, tag = 'input window, operand 2, single buffered']
    #allocation5 [shape = 's32[1]{0}', space=sflag, size = 0x4, scoped, tag = 'scoped memory for net_forward.1']
    #allocation6 [shape = 'u8[8192]{0}', space=vmem, size = 0x2000, scoped, tag = 'input window, operand 3, single buffered']
    #allocation7 [shape = 'u8[8192]{0}', space=vmem, size = 0x2000, scoped, tag = 'input window, operand 4, single buffered']
    #allocation8 [shape = 's32[1]{0}', space=sflag, size = 0x4, scoped, tag = 'scoped memory for net_forward.1']
    #allocation9 [shape = 'u8[3932160]{0}', space=vmem, size = 0x3c0000, scoped, tag = 'input window, operand 5, single buffered']
    #allocation10 [shape = 'u8[2048]{0}', space=vmem, size = 0x800, scoped, tag = 'input window, operand 6, single buffered']
    #allocation11 [shape = 's32[1]{0}', space=sflag, size = 0x4, scoped, tag = 'scoped memory for net_forward.1']
    #allocation12 [shape = 'u8[2048]{0}', space=vmem, size = 0x800, scoped, tag = 'input window, operand 7, single buffered']
    #allocation13 [shape = 'u8[2048]{0}', space=vmem, size = 0x800, scoped, tag = 'input window, operand 8, single buffered']
    #allocation14 [shape = 's32[1]{0}', space=sflag, size = 0x4, scoped, tag = 'scoped memory for net_forward.1']
    #allocation15 [shape = 'u8[1048576]{0}', space=vmem, size = 0x100000, scoped, tag = 'input window, operand 9, single buffered']
    #allocation16 [shape = 'u8[512]{0}', space=vmem, size = 0x400, scoped, tag = 'input window, operand 10, single buffered']
    #allocation17 [shape = 's32[1]{0}', space=sflag, size = 0x4, scoped, tag = 'scoped memory for net_forward.1']
    #allocation18 [shape = 'u8[65536]{0}', space=vmem, size = 0x10000, scoped, tag = 'input window, operand 11, single buffered']
    #allocation19 [shape = 'u8[512]{0}', space=vmem, size = 0x400, scoped, tag = 'input window, operand 12, single buffered']
    #allocation20 [shape = 's32[1]{0}', space=sflag, size = 0x4, scoped, tag = 'scoped memory for net_forward.1']
    %18 = vsyncpa [#allocation3], 0
    %19 = vsyncpa [#allocation5], 0
    %20 = vsyncpa [#allocation8], 0
    %21 = vsyncpa [#allocation11], 0
    %22 = vsyncpa [#allocation14], 0
    %23 = vsyncpa [#allocation17], 0
    %24 = vsyncpa [#allocation20], 0
    loop: start=0, step=1, limit=4
    $region2: #{net_forward.1} parent=1 // loop_pre_header
      _
    $region3: #{net_forward.1} parent=1 // loop_header
      %s26 = sphi 0, %s30
      %p27 = scmp.ge.s32.totalorder %s26, 4
      %s36 = sphi 0, %s38
      %s39 = sphi 0, %s36
      %s40 = sphi 0, %s39
      %s56 = sphi 0, %s40
      %s60 = sphi 0, %s60
      %s62 = sphi 0, %s60
      %s63 = sphi 0, %s62
      %s77 = sphi 0, %s63
      %s81 = sphi 0, %s81
      %s83 = sphi 0, %s81
      %s84 = sphi 0, %s83
      %s98 = sphi 0, %s84
      %s102 = sphi 0, %s102
      %s104 = sphi 0, %s102
      %s105 = sphi 0, %s104
      %s119 = sphi 0, %s105
      %s123 = sphi 0, %s123
      %s125 = sphi 0, %s123
      %s126 = sphi 0, %s125
      %s140 = sphi 0, %s126
      %s144 = sphi 0, %s144
      %s146 = sphi 0, %s144
      %s147 = sphi 0, %s146
      %s161 = sphi 0, %s147
      %s165 = sphi 0, %s165
      %s167 = sphi 0, %s165
      %s168 = sphi 0, %s167
      %s182 = sphi 0, %s168
      %s186 = sphi 0, %s186
      %s188 = sphi 0, %s186
      %s189 = sphi 0, %s188
      %s203 = sphi 0, %s189
      %s207 = sphi 0, %s207
      %s209 = sphi 0, %s207
      %s210 = sphi 0, %s209
      %s224 = sphi 0, %s210
      %s228 = sphi 0, %s228
      %s230 = sphi 0, %s228
      %s231 = sphi 0, %s230
      %s245 = sphi 0, %s231
      %s249 = sphi 0, %s249
      %s251 = sphi 0, %s249
      %s252 = sphi 0, %s251
      %s266 = sphi 0, %s252
      %s270 = sphi 0, %s270
      %s272 = sphi 0, %s270
      %s273 = sphi 0, %s272
      %s287 = sphi 0, %s273
      %s291 = sphi 0, %s291
      %s293 = sphi 0, %s291
      %s294 = sphi 0, %s293
      %s308 = sphi 0, %s294
      %s314 = sphi 0, %s316
      %s317 = sphi 0, %s314
      %s318 = sphi 0, %s317
      %s334 = sphi 0, %s318
    $region4: #{net_forward.1} parent=1 // loop_header_branch
      %29 = sbr.rel (%p27) target = $region8
    $region5: #{net_forward.1} parent=1 // loop_body
      %s31 = ssub.s32 %s26, 1
      %s32 = ssub.s32 %s26, 2
      %s33 = sadd.s32 %s26, 1
      %s34 = ssub.s32 %s26, %s33
      %p35 = scmp.eq.s32.totalorder %s34, 0
      %s37 = sadd.s32 %s36, 1
      %s38 = scalar_select %p35, %s36, %s37
      %p41 = pneg %p35
      %p42 = scmp.eq.s32.totalorder %s26, 1
      %p43 = por %p41, %p42
      %p44 = scmp.ne.s32.totalorder %s36, %s39
      %p45 = scmp.eq.s32.totalorder %s26, 0
      %p46 = por %p44, %p45
      %p47 = scmp.ne.s32.totalorder %s36, %s39
      %p48 = scmp.eq.s32.totalorder %s31, 1
      %p49 = por %p47, %p48
      %p50 = scmp.ne.s32.totalorder %s39, %s40
      %p51 = scmp.eq.s32.totalorder %s31, 0
      %p52 = por %p50, %p51
      %p53 = scmp.ne.s32.totalorder %s39, %s40
      %p54 = scmp.eq.s32.totalorder %s32, 1
      %p55 = por %p53, %p54
      %p57 = scmp.ne.s32.totalorder %s40, %s56
      %p58 = scmp.eq.s32.totalorder %s32, 0
      %p59 = por %p57, %p58
      %s61 = sadd.s32 %s60, 1
      %p64 = scmp.eq.s32.totalorder %s26, 1
      %p65 = scmp.ne.s32.totalorder %s60, %s62
      %p66 = scmp.eq.s32.totalorder %s26, 0
      %p67 = por %p65, %p66
      %p68 = scmp.ne.s32.totalorder %s60, %s62
      %p69 = scmp.eq.s32.totalorder %s31, 1
      %p70 = por %p68, %p69
      %p71 = scmp.ne.s32.totalorder %s62, %s63
      %p72 = scmp.eq.s32.totalorder %s31, 0
      %p73 = por %p71, %p72
      %p74 = scmp.ne.s32.totalorder %s62, %s63
      %p75 = scmp.eq.s32.totalorder %s32, 1
      %p76 = por %p74, %p75
      %p78 = scmp.ne.s32.totalorder %s63, %s77
      %p79 = scmp.eq.s32.totalorder %s32, 0
      %p80 = por %p78, %p79
      %s82 = sadd.s32 %s81, 1
      %p85 = scmp.eq.s32.totalorder %s26, 1
      %p86 = scmp.ne.s32.totalorder %s81, %s83
      %p87 = scmp.eq.s32.totalorder %s26, 0
      %p88 = por %p86, %p87
      %p89 = scmp.ne.s32.totalorder %s81, %s83
      %p90 = scmp.eq.s32.totalorder %s31, 1
      %p91 = por %p89, %p90
      %p92 = scmp.ne.s32.totalorder %s83, %s84
      %p93 = scmp.eq.s32.totalorder %s31, 0
      %p94 = por %p92, %p93
      %p95 = scmp.ne.s32.totalorder %s83, %s84
      %p96 = scmp.eq.s32.totalorder %s32, 1
      %p97 = por %p95, %p96
      %p99 = scmp.ne.s32.totalorder %s84, %s98
      %p100 = scmp.eq.s32.totalorder %s32, 0
      %p101 = por %p99, %p100
      %s103 = sadd.s32 %s102, 1
      %p106 = scmp.eq.s32.totalorder %s26, 1
      %p107 = scmp.ne.s32.totalorder %s102, %s104
      %p108 = scmp.eq.s32.totalorder %s26, 0
      %p109 = por %p107, %p108
      %p110 = scmp.ne.s32.totalorder %s102, %s104
      %p111 = scmp.eq.s32.totalorder %s31, 1
      %p112 = por %p110, %p111
      %p113 = scmp.ne.s32.totalorder %s104, %s105
      %p114 = scmp.eq.s32.totalorder %s31, 0
      %p115 = por %p113, %p114
      %p116 = scmp.ne.s32.totalorder %s104, %s105
      %p117 = scmp.eq.s32.totalorder %s32, 1
      %p118 = por %p116, %p117
      %p120 = scmp.ne.s32.totalorder %s105, %s119
      %p121 = scmp.eq.s32.totalorder %s32, 0
      %p122 = por %p120, %p121
      %s124 = sadd.s32 %s123, 1
      %p127 = scmp.eq.s32.totalorder %s26, 1
      %p128 = scmp.ne.s32.totalorder %s123, %s125
      %p129 = scmp.eq.s32.totalorder %s26, 0
      %p130 = por %p128, %p129
      %p131 = scmp.ne.s32.totalorder %s123, %s125
      %p132 = scmp.eq.s32.totalorder %s31, 1
      %p133 = por %p131, %p132
      %p134 = scmp.ne.s32.totalorder %s125, %s126
      %p135 = scmp.eq.s32.totalorder %s31, 0
      %p136 = por %p134, %p135
      %p137 = scmp.ne.s32.totalorder %s125, %s126
      %p138 = scmp.eq.s32.totalorder %s32, 1
      %p139 = por %p137, %p138
      %p141 = scmp.ne.s32.totalorder %s126, %s140
      %p142 = scmp.eq.s32.totalorder %s32, 0
      %p143 = por %p141, %p142
      %s145 = sadd.s32 %s144, 1
      %p148 = scmp.eq.s32.totalorder %s26, 1
      %p149 = scmp.ne.s32.totalorder %s144, %s146
      %p150 = scmp.eq.s32.totalorder %s26, 0
      %p151 = por %p149, %p150
      %p152 = scmp.ne.s32.totalorder %s144, %s146
      %p153 = scmp.eq.s32.totalorder %s31, 1
      %p154 = por %p152, %p153
      %p155 = scmp.ne.s32.totalorder %s146, %s147
      %p156 = scmp.eq.s32.totalorder %s31, 0
      %p157 = por %p155, %p156
      %p158 = scmp.ne.s32.totalorder %s146, %s147
      %p159 = scmp.eq.s32.totalorder %s32, 1
      %p160 = por %p158, %p159
      %p162 = scmp.ne.s32.totalorder %s147, %s161
      %p163 = scmp.eq.s32.totalorder %s32, 0
      %p164 = por %p162, %p163
      %s166 = sadd.s32 %s165, 1
      %p169 = scmp.eq.s32.totalorder %s26, 1
      %p170 = scmp.ne.s32.totalorder %s165, %s167
      %p171 = scmp.eq.s32.totalorder %s26, 0
      %p172 = por %p170, %p171
      %p173 = scmp.ne.s32.totalorder %s165, %s167
      %p174 = scmp.eq.s32.totalorder %s31, 1
      %p175 = por %p173, %p174
      %p176 = scmp.ne.s32.totalorder %s167, %s168
      %p177 = scmp.eq.s32.totalorder %s31, 0
      %p178 = por %p176, %p177
      %p179 = scmp.ne.s32.totalorder %s167, %s168
      %p180 = scmp.eq.s32.totalorder %s32, 1
      %p181 = por %p179, %p180
      %p183 = scmp.ne.s32.totalorder %s168, %s182
      %p184 = scmp.eq.s32.totalorder %s32, 0
      %p185 = por %p183, %p184
      %s187 = sadd.s32 %s186, 1
      %p190 = scmp.eq.s32.totalorder %s26, 1
      %p191 = scmp.ne.s32.totalorder %s186, %s188
      %p192 = scmp.eq.s32.totalorder %s26, 0
      %p193 = por %p191, %p192
      %p194 = scmp.ne.s32.totalorder %s186, %s188
      %p195 = scmp.eq.s32.totalorder %s31, 1
      %p196 = por %p194, %p195
      %p197 = scmp.ne.s32.totalorder %s188, %s189
      %p198 = scmp.eq.s32.totalorder %s31, 0
      %p199 = por %p197, %p198
      %p200 = scmp.ne.s32.totalorder %s188, %s189
      %p201 = scmp.eq.s32.totalorder %s32, 1
      %p202 = por %p200, %p201
      %p204 = scmp.ne.s32.totalorder %s189, %s203
      %p205 = scmp.eq.s32.totalorder %s32, 0
      %p206 = por %p204, %p205
      %s208 = sadd.s32 %s207, 1
      %p211 = scmp.eq.s32.totalorder %s26, 1
      %p212 = scmp.ne.s32.totalorder %s207, %s209
      %p213 = scmp.eq.s32.totalorder %s26, 0
      %p214 = por %p212, %p213
      %p215 = scmp.ne.s32.totalorder %s207, %s209
      %p216 = scmp.eq.s32.totalorder %s31, 1
      %p217 = por %p215, %p216
      %p218 = scmp.ne.s32.totalorder %s209, %s210
      %p219 = scmp.eq.s32.totalorder %s31, 0
      %p220 = por %p218, %p219
      %p221 = scmp.ne.s32.totalorder %s209, %s210
      %p222 = scmp.eq.s32.totalorder %s32, 1
      %p223 = por %p221, %p222
      %p225 = scmp.ne.s32.totalorder %s210, %s224
      %p226 = scmp.eq.s32.totalorder %s32, 0
      %p227 = por %p225, %p226
      %s229 = sadd.s32 %s228, 1
      %p232 = scmp.eq.s32.totalorder %s26, 1
      %p233 = scmp.ne.s32.totalorder %s228, %s230
      %p234 = scmp.eq.s32.totalorder %s26, 0
      %p235 = por %p233, %p234
      %p236 = scmp.ne.s32.totalorder %s228, %s230
      %p237 = scmp.eq.s32.totalorder %s31, 1
      %p238 = por %p236, %p237
      %p239 = scmp.ne.s32.totalorder %s230, %s231
      %p240 = scmp.eq.s32.totalorder %s31, 0
      %p241 = por %p239, %p240
      %p242 = scmp.ne.s32.totalorder %s230, %s231
      %p243 = scmp.eq.s32.totalorder %s32, 1
      %p244 = por %p242, %p243
      %p246 = scmp.ne.s32.totalorder %s231, %s245
      %p247 = scmp.eq.s32.totalorder %s32, 0
      %p248 = por %p246, %p247
      %s250 = sadd.s32 %s249, 1
      %p253 = scmp.eq.s32.totalorder %s26, 1
      %p254 = scmp.ne.s32.totalorder %s249, %s251
      %p255 = scmp.eq.s32.totalorder %s26, 0
      %p256 = por %p254, %p255
      %p257 = scmp.ne.s32.totalorder %s249, %s251
      %p258 = scmp.eq.s32.totalorder %s31, 1
      %p259 = por %p257, %p258
      %p260 = scmp.ne.s32.totalorder %s251, %s252
      %p261 = scmp.eq.s32.totalorder %s31, 0
      %p262 = por %p260, %p261
      %p263 = scmp.ne.s32.totalorder %s251, %s252
      %p264 = scmp.eq.s32.totalorder %s32, 1
      %p265 = por %p263, %p264
      %p267 = scmp.ne.s32.totalorder %s252, %s266
      %p268 = scmp.eq.s32.totalorder %s32, 0
      %p269 = por %p267, %p268
      %s271 = sadd.s32 %s270, 1
      %p274 = scmp.eq.s32.totalorder %s26, 1
      %p275 = scmp.ne.s32.totalorder %s270, %s272
      %p276 = scmp.eq.s32.totalorder %s26, 0
      %p277 = por %p275, %p276
      %p278 = scmp.ne.s32.totalorder %s270, %s272
      %p279 = scmp.eq.s32.totalorder %s31, 1
      %p280 = por %p278, %p279
      %p281 = scmp.ne.s32.totalorder %s272, %s273
      %p282 = scmp.eq.s32.totalorder %s31, 0
      %p283 = por %p281, %p282
      %p284 = scmp.ne.s32.totalorder %s272, %s273
      %p285 = scmp.eq.s32.totalorder %s32, 1
      %p286 = por %p284, %p285
      %p288 = scmp.ne.s32.totalorder %s273, %s287
      %p289 = scmp.eq.s32.totalorder %s32, 0
      %p290 = por %p288, %p289
      %s292 = sadd.s32 %s291, 1
      %p295 = scmp.eq.s32.totalorder %s26, 1
      %p296 = scmp.ne.s32.totalorder %s291, %s293
      %p297 = scmp.eq.s32.totalorder %s26, 0
      %p298 = por %p296, %p297
      %p299 = scmp.ne.s32.totalorder %s291, %s293
      %p300 = scmp.eq.s32.totalorder %s31, 1
      %p301 = por %p299, %p300
      %p302 = scmp.ne.s32.totalorder %s293, %s294
      %p303 = scmp.eq.s32.totalorder %s31, 0
      %p304 = por %p302, %p303
      %p305 = scmp.ne.s32.totalorder %s293, %s294
      %p306 = scmp.eq.s32.totalorder %s32, 1
      %p307 = por %p305, %p306
      %p309 = scmp.ne.s32.totalorder %s294, %s308
      %p310 = scmp.eq.s32.totalorder %s32, 0
      %p311 = por %p309, %p310
      %s312 = ssub.s32 %s26, %s33
      %p313 = scmp.eq.s32.totalorder %s312, 0
      %s315 = sadd.s32 %s314, 1
      %s316 = scalar_select %p313, %s314, %s315
      %p319 = pneg %p313
      %p320 = scmp.eq.s32.totalorder %s26, 1
      %p321 = por %p319, %p320
      %p322 = scmp.ne.s32.totalorder %s314, %s317
      %p323 = scmp.eq.s32.totalorder %s26, 0
      %p324 = por %p322, %p323
      %p325 = scmp.ne.s32.totalorder %s314, %s317
      %p326 = scmp.eq.s32.totalorder %s31, 1
      %p327 = por %p325, %p326
      %p328 = scmp.ne.s32.totalorder %s317, %s318
      %p329 = scmp.eq.s32.totalorder %s31, 0
      %p330 = por %p328, %p329
      %p331 = scmp.ne.s32.totalorder %s317, %s318
      %p332 = scmp.eq.s32.totalorder %s32, 1
      %p333 = por %p331, %p332
      %p335 = scmp.ne.s32.totalorder %s318, %s334
      %p336 = scmp.eq.s32.totalorder %s32, 0
      %p337 = por %p335, %p336
      %p338 = scmp.le.s32.totalorder 1, %s26
      %p339 = scmp.lt.s32.totalorder %s26, 3
      %p340 = pnand %p338, %p339
      %p341 = pneg %p340
      // Predicated region
      $region9: #{net_forward.1} parent=5 // pred_check
        _
      $region10: #{net_forward.1} parent=5 // pred_check_branch
        %343 = sbr.rel (%p340) target = $region12
      $region11: #{net_forward.1} parent=5 // pred_region
        %s344 = ssub.s32 %s26, 1
        // Predicated region
        $region13: #{net_forward.1} parent=11 // pred_check
          %p345 = pneg %p73
        $region14: #{net_forward.1} parent=11 // pred_check_branch
          %347 = sbr.rel (%p345) target = $region16
        $region15: #{net_forward.1} parent=11 // pred_region
          %s349 = ssub.s32 10240, 10240
          %350 = vsyncadd [#allocation3], %s349
          %s351 = sshll.u32 [#allocation2], 4
          %s352 = int_to_ptr.vmem [resolvable:$true] %s351
          %357 = dma.hbm_to_vmem [thread:$0]  %s1, 10240, %s352, [#allocation3], 256, 256, 16
        $region16: #{net_forward.1} parent=11 // pred_fallthru
          _
        // Predicated region
        $region17: #{net_forward.1} parent=11 // pred_check
          %p358 = pneg %p94
        $region18: #{net_forward.1} parent=11 // pred_check_branch
          %360 = sbr.rel (%p358) target = $region20
        $region19: #{net_forward.1} parent=11 // pred_region
          %s362 = ssub.s32 32, 32
          %363 = vsyncadd [#allocation5], %s362
          %s365 = sshll.u32 [#allocation4], 4
          %s366 = int_to_ptr.vmem [resolvable:$true] %s365
          %368 = dma.hbm_to_vmem [thread:$0]  %s2, 32, %s366, [#allocation5]
        $region20: #{net_forward.1} parent=11 // pred_fallthru
          _
        // Predicated region
        $region21: #{net_forward.1} parent=11 // pred_check
          %p369 = pneg %p115
        $region22: #{net_forward.1} parent=11 // pred_check_branch
          %371 = sbr.rel (%p369) target = $region24
        $region23: #{net_forward.1} parent=11 // pred_region
          %s373 = ssub.s32 256, 256
          %374 = vsyncadd [#allocation5], %s373
          %s375 = sshll.u32 [#allocation6], 4
          %s376 = int_to_ptr.vmem [resolvable:$true] %s375
          %381 = dma.hbm_to_vmem [thread:$0]  %s3, 256, %s376, [#allocation5], 128, 128, 8
        $region24: #{net_forward.1} parent=11 // pred_fallthru
          _
        // Predicated region
        $region25: #{net_forward.1} parent=11 // pred_check
          %p382 = pneg %p136
        $region26: #{net_forward.1} parent=11 // pred_check_branch
          %384 = sbr.rel (%p382) target = $region28
        $region27: #{net_forward.1} parent=11 // pred_region
          %s386 = ssub.s32 256, 256
          %387 = vsyncadd [#allocation8], %s386
          %s388 = sshll.u32 [#allocation7], 4
          %s389 = int_to_ptr.vmem [resolvable:$true] %s388
          %394 = dma.hbm_to_vmem [thread:$0]  %s4, 256, %s389, [#allocation8], 128, 128, 8
        $region28: #{net_forward.1} parent=11 // pred_fallthru
          _
        // Predicated region
        $region29: #{net_forward.1} parent=11 // pred_check
          %p395 = pneg %p157
        $region30: #{net_forward.1} parent=11 // pred_check_branch
          %397 = sbr.rel (%p395) target = $region32
        $region31: #{net_forward.1} parent=11 // pred_region
          %s399 = ssub.s32 122880, 122880
          %400 = vsyncadd [#allocation8], %s399
          %s401 = sshll.u32 [#allocation9], 4
          %s402 = int_to_ptr.vmem [resolvable:$true] %s401
          %407 = dma.hbm_to_vmem [thread:$0]  %s5, 122880, %s402, [#allocation8], 512, 512, 32
        $region32: #{net_forward.1} parent=11 // pred_fallthru
          _
        // Predicated region
        $region33: #{net_forward.1} parent=11 // pred_check
          %p408 = pneg %p178
        $region34: #{net_forward.1} parent=11 // pred_check_branch
          %410 = sbr.rel (%p408) target = $region36
        $region35: #{net_forward.1} parent=11 // pred_region
          %s412 = ssub.s32 64, 64
          %413 = vsyncadd [#allocation11], %s412
          %s415 = sshll.u32 [#allocation10], 4
          %s416 = int_to_ptr.vmem [resolvable:$true] %s415
          %418 = dma.hbm_to_vmem [thread:$0]  %s6, 64, %s416, [#allocation11]
        $region36: #{net_forward.1} parent=11 // pred_fallthru
          _
        // Predicated region
        $region37: #{net_forward.1} parent=11 // pred_check
          %p419 = pneg %p199
        $region38: #{net_forward.1} parent=11 // pred_check_branch
          %421 = sbr.rel (%p419) target = $region40
        $region39: #{net_forward.1} parent=11 // pred_region
          %s423 = ssub.s32 64, 64
          %424 = vsyncadd [#allocation11], %s423
          %s426 = sshll.u32 [#allocation12], 4
          %s427 = int_to_ptr.vmem [resolvable:$true] %s426
          %429 = dma.hbm_to_vmem [thread:$0]  %s7, 64, %s427, [#allocation11]
        $region40: #{net_forward.1} parent=11 // pred_fallthru
          _
        // Predicated region
        $region41: #{net_forward.1} parent=11 // pred_check
          %p430 = pneg %p220
        $region42: #{net_forward.1} parent=11 // pred_check_branch
          %432 = sbr.rel (%p430) target = $region44
        $region43: #{net_forward.1} parent=11 // pred_region
          %s434 = ssub.s32 64, 64
          %435 = vsyncadd [#allocation14], %s434
          %s437 = sshll.u32 [#allocation13], 4
          %s438 = int_to_ptr.vmem [resolvable:$true] %s437
          %440 = dma.hbm_to_vmem [thread:$0]  %s8, 64, %s438, [#allocation14]
        $region44: #{net_forward.1} parent=11 // pred_fallthru
          _
        // Predicated region
        $region45: #{net_forward.1} parent=11 // pred_check
          %p441 = pneg %p241
        $region46: #{net_forward.1} parent=11 // pred_check_branch
          %443 = sbr.rel (%p441) target = $region48
        $region47: #{net_forward.1} parent=11 // pred_region
          %s445 = ssub.s32 32768, 32768
          %446 = vsyncadd [#allocation14], %s445
          %s447 = sshll.u32 [#allocation15], 4
          %s448 = int_to_ptr.vmem [resolvable:$true] %s447
          %453 = dma.hbm_to_vmem [thread:$0]  %s9, 32768, %s448, [#allocation14], 128, 128, 8
        $region48: #{net_forward.1} parent=11 // pred_fallthru
          _
        // Predicated region
        $region49: #{net_forward.1} parent=11 // pred_check
          %p454 = pneg %p262
        $region50: #{net_forward.1} parent=11 // pred_check_branch
          %456 = sbr.rel (%p454) target = $region52
        $region51: #{net_forward.1} parent=11 // pred_region
          %s458 = ssub.s32 16, 16
          %459 = vsyncadd [#allocation17], %s458
          %s461 = sshll.u32 [#allocation16], 4
          %s462 = int_to_ptr.vmem [resolvable:$true] %s461
          %464 = dma.hbm_to_vmem [thread:$0]  %s10, 16, %s462, [#allocation17]
        $region52: #{net_forward.1} parent=11 // pred_fallthru
          _
        // Predicated region
        $region53: #{net_forward.1} parent=11 // pred_check
          %p465 = pneg %p283
        $region54: #{net_forward.1} parent=11 // pred_check_branch
          %467 = sbr.rel (%p465) target = $region56
        $region55: #{net_forward.1} parent=11 // pred_region
          %s469 = ssub.s32 2048, 2048
          %470 = vsyncadd [#allocation17], %s469
          %s471 = sshll.u32 [#allocation18], 4
          %s472 = int_to_ptr.vmem [resolvable:$true] %s471
          %477 = dma.hbm_to_vmem [thread:$0]  %s11, 2048, %s472, [#allocation17], 128, 128, 8
        $region56: #{net_forward.1} parent=11 // pred_fallthru
          _
        // Predicated region
        $region57: #{net_forward.1} parent=11 // pred_check
          %p478 = pneg %p304
        $region58: #{net_forward.1} parent=11 // pred_check_branch
          %480 = sbr.rel (%p478) target = $region60
        $region59: #{net_forward.1} parent=11 // pred_region
          %s482 = ssub.s32 16, 16
          %483 = vsyncadd [#allocation20], %s482
          %s485 = sshll.u32 [#allocation19], 4
          %s486 = int_to_ptr.vmem [resolvable:$true] %s485
          %488 = dma.hbm_to_vmem [thread:$0]  %s12, 16, %s486, [#allocation20]
        $region60: #{net_forward.1} parent=11 // pred_fallthru
          _
      $region12: #{net_forward.1} parent=5 // pred_fallthru
        _
      %p489 = scmp.lt.s32.totalorder %s26, 2
      // Predicated region
      $region61: #{net_forward.1} parent=5 // pred_check
        %p490 = pneg %p489
      $region62: #{net_forward.1} parent=5 // pred_check_branch
        %492 = sbr.rel (%p490) target = $region64
      $region63: #{net_forward.1} parent=5 // pred_region
        // Predicated region
        $region65: #{net_forward.1} parent=63 // pred_check
          %p493 = pneg %p46
        $region66: #{net_forward.1} parent=63 // pred_check_branch
          %495 = sbr.rel (%p493) target = $region68
        $region67: #{net_forward.1} parent=63 // pred_region
          %p496 = scmp.lt.s32.totalorder %s26, 1
          %s497 = scalar_select %p496, %s26, 1
          %s498 = smul.addr %s497, 4
          %s499 = smul.addr %s498, 8
          %s500 = scalar_lea.vmem %s0, %s499
        $region68: #{net_forward.1} parent=63 // pred_fallthru
          _
      $region64: #{net_forward.1} parent=5 // pred_fallthru
        _
      %p501 = scmp.le.s32.totalorder 1, %s26
      %p502 = scmp.lt.s32.totalorder %s26, 3
      %p503 = pnand %p501, %p502
      %p504 = pneg %p503
      // Predicated region
      $region69: #{net_forward.1} parent=5 // pred_check
        _
      $region70: #{net_forward.1} parent=5 // pred_check_branch
        %506 = sbr.rel (%p503) target = $region72
      $region71: #{net_forward.1} parent=5 // pred_region
        %s507 = ssub.s32 %s26, 1
        // Predicated region
        $region73: #{net_forward.1} parent=71 // pred_check
          %p508 = pneg %p73
        $region74: #{net_forward.1} parent=71 // pred_check_branch
          %510 = sbr.rel (%p508) target = $region76
        $region75: #{net_forward.1} parent=71 // pred_region
          %511 = dma.done [#allocation3], 10240
        $region76: #{net_forward.1} parent=71 // pred_fallthru
          _
        // Predicated region
        $region77: #{net_forward.1} parent=71 // pred_check
          %p512 = pneg %p94
        $region78: #{net_forward.1} parent=71 // pred_check_branch
          %514 = sbr.rel (%p512) target = $region80
        $region79: #{net_forward.1} parent=71 // pred_region
          %515 = dma.done [#allocation5], 32
        $region80: #{net_forward.1} parent=71 // pred_fallthru
          _
        // Predicated region
        $region81: #{net_forward.1} parent=71 // pred_check
          %p516 = pneg %p115
        $region82: #{net_forward.1} parent=71 // pred_check_branch
          %518 = sbr.rel (%p516) target = $region84
        $region83: #{net_forward.1} parent=71 // pred_region
          %519 = dma.done [#allocation5], 256
        $region84: #{net_forward.1} parent=71 // pred_fallthru
          _
        // Predicated region
        $region85: #{net_forward.1} parent=71 // pred_check
          %p520 = pneg %p136
        $region86: #{net_forward.1} parent=71 // pred_check_branch
          %522 = sbr.rel (%p520) target = $region88
        $region87: #{net_forward.1} parent=71 // pred_region
          %523 = dma.done [#allocation8], 256
        $region88: #{net_forward.1} parent=71 // pred_fallthru
          _
        // Predicated region
        $region89: #{net_forward.1} parent=71 // pred_check
          %p524 = pneg %p157
        $region90: #{net_forward.1} parent=71 // pred_check_branch
          %526 = sbr.rel (%p524) target = $region92
        $region91: #{net_forward.1} parent=71 // pred_region
          %527 = dma.done [#allocation8], 122880
        $region92: #{net_forward.1} parent=71 // pred_fallthru
          _
        // Predicated region
        $region93: #{net_forward.1} parent=71 // pred_check
          %p528 = pneg %p178
        $region94: #{net_forward.1} parent=71 // pred_check_branch
          %530 = sbr.rel (%p528) target = $region96
        $region95: #{net_forward.1} parent=71 // pred_region
          %531 = dma.done [#allocation11], 64
        $region96: #{net_forward.1} parent=71 // pred_fallthru
          _
        // Predicated region
        $region97: #{net_forward.1} parent=71 // pred_check
          %p532 = pneg %p199
        $region98: #{net_forward.1} parent=71 // pred_check_branch
          %534 = sbr.rel (%p532) target = $region100
        $region99: #{net_forward.1} parent=71 // pred_region
          %535 = dma.done [#allocation11], 64
        $region100: #{net_forward.1} parent=71 // pred_fallthru
          _
        // Predicated region
        $region101: #{net_forward.1} parent=71 // pred_check
          %p536 = pneg %p220
        $region102: #{net_forward.1} parent=71 // pred_check_branch
          %538 = sbr.rel (%p536) target = $region104
        $region103: #{net_forward.1} parent=71 // pred_region
          %539 = dma.done [#allocation14], 64
        $region104: #{net_forward.1} parent=71 // pred_fallthru
          _
        // Predicated region
        $region105: #{net_forward.1} parent=71 // pred_check
          %p540 = pneg %p241
        $region106: #{net_forward.1} parent=71 // pred_check_branch
          %542 = sbr.rel (%p540) target = $region108
        $region107: #{net_forward.1} parent=71 // pred_region
          %543 = dma.done [#allocation14], 32768
        $region108: #{net_forward.1} parent=71 // pred_fallthru
          _
        // Predicated region
        $region109: #{net_forward.1} parent=71 // pred_check
          %p544 = pneg %p262
        $region110: #{net_forward.1} parent=71 // pred_check_branch
          %546 = sbr.rel (%p544) target = $region112
        $region111: #{net_forward.1} parent=71 // pred_region
          %547 = dma.done [#allocation17], 16
        $region112: #{net_forward.1} parent=71 // pred_fallthru
          _
        // Predicated region
        $region113: #{net_forward.1} parent=71 // pred_check
          %p548 = pneg %p283
        $region114: #{net_forward.1} parent=71 // pred_check_branch
          %550 = sbr.rel (%p548) target = $region116
        $region115: #{net_forward.1} parent=71 // pred_region
          %551 = dma.done [#allocation17], 2048
        $region116: #{net_forward.1} parent=71 // pred_fallthru
          _
        // Predicated region
        $region117: #{net_forward.1} parent=71 // pred_check
          %p552 = pneg %p304
        $region118: #{net_forward.1} parent=71 // pred_check_branch
          %554 = sbr.rel (%p552) target = $region120
        $region119: #{net_forward.1} parent=71 // pred_region
          %555 = dma.done [#allocation20], 16
        $region120: #{net_forward.1} parent=71 // pred_fallthru
          _
        %p556 = scmp.lt.s32.totalorder %s31, 1
        %s557 = scalar_select %p556, %s31, 1
        %s558 = smul.addr %s557, 4
        %s559 = smul.addr %s558, 8
        %s560 = scalar_lea.vmem %s0, %s559
        %p561 = pneg %p52
        %p562 = pneg %p49
        %p563 = pneg %p73
        %p564 = pneg %p70
        %p565 = pneg %p94
        %p566 = pneg %p91
        %p567 = pneg %p115
        %p568 = pneg %p112
        %p569 = pneg %p136
        %p570 = pneg %p133
        %p571 = pneg %p157
        %p572 = pneg %p154
        %p573 = pneg %p178
        %p574 = pneg %p175
        %p575 = pneg %p199
        %p576 = pneg %p196
        %p577 = pneg %p220
        %p578 = pneg %p217
        %p579 = pneg %p241
        %p580 = pneg %p238
        %p581 = pneg %p262
        %p582 = pneg %p259
        %p583 = pneg %p283
        %p584 = pneg %p280
        %p585 = pneg %p304
        %p586 = pneg %p301
        %p587 = pneg %p330
        %p588 = pneg %p327
        %p589 = scmp.lt.s32.totalorder %s31, 1
        %s590 = scalar_select %p589, %s31, 1
        %s591 = smul.addr %s590, 8
        %s592 = scalar_lea.vmem %s13, %s591
        %p593 = scmp.lt.s32.totalorder %s31, 1
        %s594 = scalar_select %p593, %s31, 1
        %s595 = smul.addr %s594, 4
        %s596 = smul.addr %s595, 8
        %s597 = scalar_lea.vmem %s0, %s596
        %p598 = scmp.lt.s32.totalorder %s31, 1
        %s599 = scalar_select %p598, %s31, 1
        %s600 = smul.addr %s599, 8
        %s601 = scalar_lea.vmem %s13, %s600
        %v602 = vld [vmem:[%s597] sm:$0xff]
        %v603 = vld [vmem:[%s597 + $0x8] sm:$0xff]
        %v604 = vld [vmem:[%s597 + $0x10] sm:$0xff]
        %v605 = vld [vmem:[%s597 + $0x18] sm:$0xf]
        %v606 = vld [vmem:[#allocation2] sm:$0xff]
        %v607 = vld [vmem:[#allocation2 + $0x8] sm:$0xff]
        %v608 = vld [vmem:[#allocation2 + $0x10] sm:$0xff]
        %v609 = vld [vmem:[#allocation2 + $0x18] sm:$0xff]
        %v610 = vld [vmem:[#allocation2 + $0x20] sm:$0xff]
        %v611 = vld [vmem:[#allocation2 + $0x28] sm:$0xff]
        %v612 = vld [vmem:[#allocation2 + $0x30] sm:$0xf]
        %v613 = vld [vmem:[#allocation2 + $0x38] sm:$0xf]
        %s614 = scalar_lea.vmem [#allocation2], 320
        %v615 = vld [vmem:[%s614] sm:$0xff]
        %v616 = vld [vmem:[%s614 + $0x8] sm:$0xff]
        %v617 = vld [vmem:[%s614 + $0x10] sm:$0xff]
        %v618 = vld [vmem:[%s614 + $0x18] sm:$0xff]
        %v619 = vld [vmem:[%s614 + $0x20] sm:$0xff]
        %v620 = vld [vmem:[%s614 + $0x28] sm:$0xff]
        %v621 = vld [vmem:[%s614 + $0x30] sm:$0xf]
        %v622 = vld [vmem:[%s614 + $0x38] sm:$0xf]
        %s623 = scalar_lea.vmem [#allocation2], 64
        %v624 = vld [vmem:[%s623] sm:$0xff]
        %v625 = vld [vmem:[%s623 + $0x8] sm:$0xff]
        %v626 = vld [vmem:[%s623 + $0x10] sm:$0xff]
        %v627 = vld [vmem:[%s623 + $0x18] sm:$0xff]
        %v628 = vld [vmem:[%s623 + $0x20] sm:$0xff]
        %v629 = vld [vmem:[%s623 + $0x28] sm:$0xff]
        %v630 = vld [vmem:[%s623 + $0x30] sm:$0xf]
        %v631 = vld [vmem:[%s623 + $0x38] sm:$0xf]
        %vm636 = vcmask 1046528
        %v637 = vrot.slane %v602, 1
        %v638 = vrot.slane %v603, 1
        %v639 = vsel %vm636, %v637, %v638
        %v640 = vrot.slane %v604, 1
        %v641 = vsel %vm636, %v638, %v640
        %v642 = vrot.slane %v605, 1
        %v643 = vsel %vm636, %v640, %v642
        %vm644 = vcmask 228352
        %v645 = vsel %vm644, %v639, 0
        %v647 = vsel %vm644, %v641, 0
        %v649 = vsel %vm644, %v643, 0
        %vm651 = vcmask 1043456
        %v653 = vsel %vm651, %v630, 0
        %v656 = vsel %vm651, %v631, 0
        %658 = vmatprep.subr.mxu0 0.0
        %659 = vmatpush1.msra.mxu0 0.0
        %660 = vmatprep.subr.mxu0 0.0
        %661 = vmatpush1.msra.mxu0 0.0
        %662 = vmatprep.subr.mxu0 0.0
        %663 = vmatpush1.msra.mxu0 0.0
        %664 = vmatprep.subr.mxu0 0.0
        %665 = vmatpush1.msra.mxu0 0.0
        %666 = vmatprep.subr.mxu0 0.0
        %667 = vmatpush1.msra.mxu0 0.0
        %668 = vmatprep.subr.mxu0 0.0
        %669 = vmatpush1.msra.mxu0 0.0
        %670 = vmatprep.subr.mxu0 0.0
        %671 = vmatpush1.msra.mxu0 0.0
        %672 = vmatprep.subr.mxu0 0.0
        %673 = vmatpush1.msra.mxu0 0.0
        %674 = vmatprep.subr.mxu0 0.0
        %675 = vmatpush1.msra.mxu0 0.0
        %676 = vmatprep.subr.mxu0 0.0
        %677 = vmatpush1.msra.mxu0 0.0
        %678 = vmatprep.subr.mxu0 0.0
        %679 = vmatpush1.msra.mxu0 0.0
        %680 = vmatprep.subr.mxu0 0.0
        %681 = vmatpush1.msra.mxu0 0.0
        %682 = vmatprep.subr.mxu0 %v656
        %683 = vmatpush1.msra.mxu0 %v653
        %684 = vmatprep.subr.mxu0 %v629
        %685 = vmatpush1.msra.mxu0 %v628
        %686 = vmatprep.subr.mxu0 %v627
        %687 = vmatpush1.msra.mxu0 %v626
        %688 = vmatprep.subr.mxu0 %v625
        %689 = vmatpush1.msra.mxu0 %v624
        %690 = vmatprep.subr.mxu0 0.0
        %691 = vmatpush2.msra.mxu0 0.0
        %692 = vmatprep.subr.mxu0 0.0
        %693 = vmatpush2.msra.mxu0 0.0
        %694 = vmatprep.subr.mxu0 0.0
        %695 = vmatpush2.msra.mxu0 0.0
        %696 = vmatprep.subr.mxu0 0.0
        %697 = vmatpush2.msra.mxu0 0.0
        %698 = vmatprep.subr.mxu0 0.0
        %699 = vmatpush2.msra.mxu0 0.0
        %700 = vmatprep.subr.mxu0 0.0
        %701 = vmatpush2.msra.mxu0 0.0
        %702 = vmatprep.subr.mxu0 0.0
        %703 = vmatpush2.msra.mxu0 0.0
        %704 = vmatprep.subr.mxu0 0.0
        %705 = vmatpush2.msra.mxu0 0.0
        %706 = vmatprep.subr.mxu0 0.0
        %707 = vmatpush2.msra.mxu0 0.0
        %708 = vmatprep.subr.mxu0 0.0
        %709 = vmatpush2.msra.mxu0 0.0
        %710 = vmatprep.subr.mxu0 0.0
        %711 = vmatpush2.msra.mxu0 0.0
        %712 = vmatprep.subr.mxu0 0.0
        %713 = vmatpush2.msra.mxu0 0.0
        %714 = vmatprep.subr.mxu0 0.0
        %715 = vmatpush2.msra.mxu0 0.0
        %716 = vmatprep.subr.mxu0 0.0
        %717 = vmatpush2.msra.mxu0 0.0
        %718 = vmatprep.subr.mxu0 0.0
        %719 = vmatpush2.msra.mxu0 0.0
        %720 = vmatprep.subr.mxu0 0.0
        %721 = vmatpush2.msra.mxu0 0.0
        %722 = vmatprep.mubr.f32.mxu0 0.0
        %723 = vmatmul.mubr.f32.gmra.mxu0 %v645
        %v724 = vpop.f32.mrf.mxu0
        %v725 = vadd.f32 0.0, %v724
        %v726 = vpop.f32.mrf.mxu0
        %v727 = vadd.f32 0.0, %v726
        %728 = vmatprep.mubr.f32.mxu0 0.0
        %729 = vmatmul.mubr.f32.gmra.mxu0 %v647
        %v730 = vpop.f32.mrf.mxu0
        %v731 = vadd.f32 0.0, %v730
        %v732 = vpop.f32.mrf.mxu0
        %v733 = vadd.f32 0.0, %v732
        %734 = vmatprep.mubr.f32.mxu0 0.0
        %735 = vmatmul.mubr.f32.gmra.mxu0 %v649
        %v736 = vpop.f32.mrf.mxu0
        %v737 = vadd.f32 0.0, %v736
        %v738 = vpop.f32.mrf.mxu0
        %v739 = vadd.f32 0.0, %v738
        %740 = vdwg.mxu0
        %s741 = scalar_lea.vmem [#allocation2], 384
        %v742 = vld [vmem:[%s741] sm:$0xff]
        %v743 = vld [vmem:[%s741 + $0x8] sm:$0xff]
        %v744 = vld [vmem:[%s741 + $0x10] sm:$0xff]
        %v745 = vld [vmem:[%s741 + $0x18] sm:$0xff]
        %v746 = vld [vmem:[%s741 + $0x20] sm:$0xff]
        %v747 = vld [vmem:[%s741 + $0x28] sm:$0xff]
        %v748 = vld [vmem:[%s741 + $0x30] sm:$0xf]
        %v749 = vld [vmem:[%s741 + $0x38] sm:$0xf]
        %v751 = vsel %vm651, %v748, 0
        %v754 = vsel %vm651, %v749, 0
        %756 = vmatprep.subr.mxu0 0.0
        %757 = vmatpush1.msra.mxu0 0.0
        %758 = vmatprep.subr.mxu0 0.0
        %759 = vmatpush1.msra.mxu0 0.0
        %760 = vmatprep.subr.mxu0 0.0
        %761 = vmatpush1.msra.mxu0 0.0
        %762 = vmatprep.subr.mxu0 0.0
        %763 = vmatpush1.msra.mxu0 0.0
        %764 = vmatprep.subr.mxu0 0.0
        %765 = vmatpush1.msra.mxu0 0.0
        %766 = vmatprep.subr.mxu0 0.0
        %767 = vmatpush1.msra.mxu0 0.0
        %768 = vmatprep.subr.mxu0 0.0
        %769 = vmatpush1.msra.mxu0 0.0
        %770 = vmatprep.subr.mxu0 0.0
        %771 = vmatpush1.msra.mxu0 0.0
        %772 = vmatprep.subr.mxu0 0.0
        %773 = vmatpush1.msra.mxu0 0.0
        %774 = vmatprep.subr.mxu0 0.0
        %775 = vmatpush1.msra.mxu0 0.0
        %776 = vmatprep.subr.mxu0 0.0
        %777 = vmatpush1.msra.mxu0 0.0
        %778 = vmatprep.subr.mxu0 0.0
        %779 = vmatpush1.msra.mxu0 0.0
        %780 = vmatprep.subr.mxu0 %v754
        %781 = vmatpush1.msra.mxu0 %v751
        %782 = vmatprep.subr.mxu0 %v747
        %783 = vmatpush1.msra.mxu0 %v746
        %784 = vmatprep.subr.mxu0 %v745
        %785 = vmatpush1.msra.mxu0 %v744
        %786 = vmatprep.subr.mxu0 %v743
        %787 = vmatpush1.msra.mxu0 %v742
        %788 = vmatprep.subr.mxu0 0.0
        %789 = vmatpush2.msra.mxu0 0.0
        %790 = vmatprep.subr.mxu0 0.0
        %791 = vmatpush2.msra.mxu0 0.0
        %792 = vmatprep.subr.mxu0 0.0
        %793 = vmatpush2.msra.mxu0 0.0
        %794 = vmatprep.subr.mxu0 0.0
        %795 = vmatpush2.msra.mxu0 0.0
        %796 = vmatprep.subr.mxu0 0.0
        %797 = vmatpush2.msra.mxu0 0.0
        %798 = vmatprep.subr.mxu0 0.0
        %799 = vmatpush2.msra.mxu0 0.0
        %800 = vmatprep.subr.mxu0 0.0
        %801 = vmatpush2.msra.mxu0 0.0
        %802 = vmatprep.subr.mxu0 0.0
        %803 = vmatpush2.msra.mxu0 0.0
        %804 = vmatprep.subr.mxu0 0.0
        %805 = vmatpush2.msra.mxu0 0.0
        %806 = vmatprep.subr.mxu0 0.0
        %807 = vmatpush2.msra.mxu0 0.0
        %808 = vmatprep.subr.mxu0 0.0
        %809 = vmatpush2.msra.mxu0 0.0
        %810 = vmatprep.subr.mxu0 0.0
        %811 = vmatpush2.msra.mxu0 0.0
        %812 = vmatprep.subr.mxu0 0.0
        %813 = vmatpush2.msra.mxu0 0.0
        %814 = vmatprep.subr.mxu0 0.0
        %815 = vmatpush2.msra.mxu0 0.0
        %816 = vmatprep.subr.mxu0 0.0
        %817 = vmatpush2.msra.mxu0 0.0
        %818 = vmatprep.subr.mxu0 0.0
        %819 = vmatpush2.msra.mxu0 0.0
        %820 = vmatprep.mubr.f32.mxu0 0.0
        %821 = vmatmul.mubr.f32.gmra.mxu0 %v645
        %v822 = vpop.f32.mrf.mxu0
        %v823 = vadd.f32 0.0, %v822
        %v824 = vpop.f32.mrf.mxu0
        %v825 = vadd.f32 0.0, %v824
        %826 = vmatprep.mubr.f32.mxu0 0.0
        %827 = vmatmul.mubr.f32.gmra.mxu0 %v647
        %v828 = vpop.f32.mrf.mxu0
        %v829 = vadd.f32 0.0, %v828
        %v830 = vpop.f32.mrf.mxu0
        %v831 = vadd.f32 0.0, %v830
        %832 = vmatprep.mubr.f32.mxu0 0.0
        %833 = vmatmul.mubr.f32.gmra.mxu0 %v649
        %v834 = vpop.f32.mrf.mxu0
        %v835 = vadd.f32 0.0, %v834
        %v836 = vpop.f32.mrf.mxu0
        %v837 = vadd.f32 0.0, %v836
        %838 = vdwg.mxu0
        %v839 = vsel %vm644, %v602, 0
        %v841 = vsel %vm644, %v603, 0
        %v843 = vsel %vm644, %v604, 0
        %v846 = vsel %vm651, %v612, 0
        %v849 = vsel %vm651, %v613, 0
        %851 = vmatprep.subr.mxu0 0.0
        %852 = vmatpush1.msra.mxu0 0.0
        %853 = vmatprep.subr.mxu0 0.0
        %854 = vmatpush1.msra.mxu0 0.0
        %855 = vmatprep.subr.mxu0 0.0
        %856 = vmatpush1.msra.mxu0 0.0
        %857 = vmatprep.subr.mxu0 0.0
        %858 = vmatpush1.msra.mxu0 0.0
        %859 = vmatprep.subr.mxu0 0.0
        %860 = vmatpush1.msra.mxu0 0.0
        %861 = vmatprep.subr.mxu0 0.0
        %862 = vmatpush1.msra.mxu0 0.0
        %863 = vmatprep.subr.mxu0 0.0
        %864 = vmatpush1.msra.mxu0 0.0
        %865 = vmatprep.subr.mxu0 0.0
        %866 = vmatpush1.msra.mxu0 0.0
        %867 = vmatprep.subr.mxu0 0.0
        %868 = vmatpush1.msra.mxu0 0.0
        %869 = vmatprep.subr.mxu0 0.0
        %870 = vmatpush1.msra.mxu0 0.0
        %871 = vmatprep.subr.mxu0 0.0
        %872 = vmatpush1.msra.mxu0 0.0
        %873 = vmatprep.subr.mxu0 0.0
        %874 = vmatpush1.msra.mxu0 0.0
        %875 = vmatprep.subr.mxu0 %v849
        %876 = vmatpush1.msra.mxu0 %v846
        %877 = vmatprep.subr.mxu0 %v611
        %878 = vmatpush1.msra.mxu0 %v610
        %879 = vmatprep.subr.mxu0 %v609
        %880 = vmatpush1.msra.mxu0 %v608
        %881 = vmatprep.subr.mxu0 %v607
        %882 = vmatpush1.msra.mxu0 %v606
        %883 = vmatprep.subr.mxu0 0.0
        %884 = vmatpush2.msra.mxu0 0.0
        %885 = vmatprep.subr.mxu0 0.0
        %886 = vmatpush2.msra.mxu0 0.0
        %887 = vmatprep.subr.mxu0 0.0
        %888 = vmatpush2.msra.mxu0 0.0
        %889 = vmatprep.subr.mxu0 0.0
        %890 = vmatpush2.msra.mxu0 0.0
        %891 = vmatprep.subr.mxu0 0.0
        %892 = vmatpush2.msra.mxu0 0.0
        %893 = vmatprep.subr.mxu0 0.0
        %894 = vmatpush2.msra.mxu0 0.0
        %895 = vmatprep.subr.mxu0 0.0
        %896 = vmatpush2.msra.mxu0 0.0
        %897 = vmatprep.subr.mxu0 0.0
        %898 = vmatpush2.msra.mxu0 0.0
        %899 = vmatprep.subr.mxu0 0.0
        %900 = vmatpush2.msra.mxu0 0.0
        %901 = vmatprep.subr.mxu0 0.0
        %902 = vmatpush2.msra.mxu0 0.0
        %903 = vmatprep.subr.mxu0 0.0
        %904 = vmatpush2.msra.mxu0 0.0
        %905 = vmatprep.subr.mxu0 0.0
        %906 = vmatpush2.msra.mxu0 0.0
        %907 = vmatprep.subr.mxu0 0.0
        %908 = vmatpush2.msra.mxu0 0.0
        %909 = vmatprep.subr.mxu0 0.0
        %910 = vmatpush2.msra.mxu0 0.0
        %911 = vmatprep.subr.mxu0 0.0
        %912 = vmatpush2.msra.mxu0 0.0
        %913 = vmatprep.subr.mxu0 0.0
        %914 = vmatpush2.msra.mxu0 0.0
        %915 = vmatprep.mubr.f32.mxu0 0.0
        %916 = vmatmul.mubr.f32.gmra.mxu0 %v839
        %v917 = vpop.f32.mrf.mxu0
        %v918 = vadd.f32 %v725, %v917
        %v919 = vpop.f32.mrf.mxu0
        %v920 = vadd.f32 %v727, %v919
        %921 = vmatprep.mubr.f32.mxu0 0.0
        %922 = vmatmul.mubr.f32.gmra.mxu0 %v841
        %v923 = vpop.f32.mrf.mxu0
        %v924 = vadd.f32 %v731, %v923
        %v925 = vpop.f32.mrf.mxu0
        %v926 = vadd.f32 %v733, %v925
        %927 = vmatprep.mubr.f32.mxu0 0.0
        %928 = vmatmul.mubr.f32.gmra.mxu0 %v843
        %v929 = vpop.f32.mrf.mxu0
        %v930 = vadd.f32 %v737, %v929
        %v931 = vpop.f32.mrf.mxu0
        %v932 = vadd.f32 %v739, %v931
        %933 = vdwg.mxu0
        %v935 = vsel %vm651, %v621, 0
        %v938 = vsel %vm651, %v622, 0
        %940 = vmatprep.subr.mxu0 0.0
        %941 = vmatpush1.msra.mxu0 0.0
        %942 = vmatprep.subr.mxu0 0.0
        %943 = vmatpush1.msra.mxu0 0.0
        %944 = vmatprep.subr.mxu0 0.0
        %945 = vmatpush1.msra.mxu0 0.0
        %946 = vmatprep.subr.mxu0 0.0
        %947 = vmatpush1.msra.mxu0 0.0
        %948 = vmatprep.subr.mxu0 0.0
        %949 = vmatpush1.msra.mxu0 0.0
        %950 = vmatprep.subr.mxu0 0.0
        %951 = vmatpush1.msra.mxu0 0.0
        %952 = vmatprep.subr.mxu0 0.0
        %953 = vmatpush1.msra.mxu0 0.0
        %954 = vmatprep.subr.mxu0 0.0
        %955 = vmatpush1.msra.mxu0 0.0
        %956 = vmatprep.subr.mxu0 0.0
        %957 = vmatpush1.msra.mxu0 0.0
        %958 = vmatprep.subr.mxu0 0.0
        %959 = vmatpush1.msra.mxu0 0.0
        %960 = vmatprep.subr.mxu0 0.0
        %961 = vmatpush1.msra.mxu0 0.0
        %962 = vmatprep.subr.mxu0 0.0
        %963 = vmatpush1.msra.mxu0 0.0
        %964 = vmatprep.subr.mxu0 %v938
        %965 = vmatpush1.msra.mxu0 %v935
        %966 = vmatprep.subr.mxu0 %v620
        %967 = vmatpush1.msra.mxu0 %v619
        %968 = vmatprep.subr.mxu0 %v618
        %969 = vmatpush1.msra.mxu0 %v617
        %970 = vmatprep.subr.mxu0 %v616
        %971 = vmatpush1.msra.mxu0 %v615
        %972 = vmatprep.subr.mxu0 0.0
        %973 = vmatpush2.msra.mxu0 0.0
        %974 = vmatprep.subr.mxu0 0.0
        %975 = vmatpush2.msra.mxu0 0.0
        %976 = vmatprep.subr.mxu0 0.0
        %977 = vmatpush2.msra.mxu0 0.0
        %978 = vmatprep.subr.mxu0 0.0
        %979 = vmatpush2.msra.mxu0 0.0
        %980 = vmatprep.subr.mxu0 0.0
        %981 = vmatpush2.msra.mxu0 0.0
        %982 = vmatprep.subr.mxu0 0.0
        %983 = vmatpush2.msra.mxu0 0.0
        %984 = vmatprep.subr.mxu0 0.0
        %985 = vmatpush2.msra.mxu0 0.0
        %986 = vmatprep.subr.mxu0 0.0
        %987 = vmatpush2.msra.mxu0 0.0
        %988 = vmatprep.subr.mxu0 0.0
        %989 = vmatpush2.msra.mxu0 0.0
        %990 = vmatprep.subr.mxu0 0.0
        %991 = vmatpush2.msra.mxu0 0.0
        %992 = vmatprep.subr.mxu0 0.0
        %993 = vmatpush2.msra.mxu0 0.0
        %994 = vmatprep.subr.mxu0 0.0
        %995 = vmatpush2.msra.mxu0 0.0
        %996 = vmatprep.subr.mxu0 0.0
        %997 = vmatpush2.msra.mxu0 0.0
        %998 = vmatprep.subr.mxu0 0.0
        %999 = vmatpush2.msra.mxu0 0.0
        %1000 = vmatprep.subr.mxu0 0.0
        %1001 = vmatpush2.msra.mxu0 0.0
        %1002 = vmatprep.subr.mxu0 0.0
        %1003 = vmatpush2.msra.mxu0 0.0
        %1004 = vmatprep.mubr.f32.mxu0 0.0
        %1005 = vmatmul.mubr.f32.gmra.mxu0 %v839
        %v1006 = vpop.f32.mrf.mxu0
        %v1007 = vadd.f32 %v823, %v1006
        %v1008 = vpop.f32.mrf.mxu0
        %v1009 = vadd.f32 %v825, %v1008
        %1010 = vmatprep.mubr.f32.mxu0 0.0
        %1011 = vmatmul.mubr.f32.gmra.mxu0 %v841
        %v1012 = vpop.f32.mrf.mxu0
        %v1013 = vadd.f32 %v829, %v1012
        %v1014 = vpop.f32.mrf.mxu0
        %v1015 = vadd.f32 %v831, %v1014
        %1016 = vmatprep.mubr.f32.mxu0 0.0
        %1017 = vmatmul.mubr.f32.gmra.mxu0 %v843
        %v1018 = vpop.f32.mrf.mxu0
        %v1019 = vadd.f32 %v835, %v1018
        %v1020 = vpop.f32.mrf.mxu0
        %v1021 = vadd.f32 %v837, %v1020
        %1022 = vdwg.mxu0
        %s1023 = scalar_lea.vmem [#allocation2], 128
        %v1024 = vld [vmem:[%s1023] sm:$0xff]
        %v1025 = vld [vmem:[%s1023 + $0x8] sm:$0xff]
        %v1026 = vld [vmem:[%s1023 + $0x10] sm:$0xff]
        %v1027 = vld [vmem:[%s1023 + $0x18] sm:$0xff]
        %v1028 = vld [vmem:[%s1023 + $0x20] sm:$0xff]
        %v1029 = vld [vmem:[%s1023 + $0x28] sm:$0xff]
        %v1030 = vld [vmem:[%s1023 + $0x30] sm:$0xf]
        %v1031 = vld [vmem:[%s1023 + $0x38] sm:$0xf]
        %vm1032 = vcmask 1045504
        %v1033 = vrot.slane %v602, 2
        %v1034 = vrot.slane %v603, 2
        %v1035 = vsel %vm1032, %v1033, %v1034
        %v1036 = vrot.slane %v604, 2
        %v1037 = vsel %vm1032, %v1034, %v1036
        %v1038 = vrot.slane %v605, 2
        %v1039 = vsel %vm1032, %v1036, %v1038
        %v1040 = vsel %vm644, %v1035, 0
        %v1042 = vsel %vm644, %v1037, 0
        %v1044 = vsel %vm644, %v1039, 0
        %v1047 = vsel %vm651, %v1030, 0
        %v1050 = vsel %vm651, %v1031, 0
        %1052 = vmatprep.subr.mxu0 0.0
        %1053 = vmatpush1.msra.mxu0 0.0
        %1054 = vmatprep.subr.mxu0 0.0
        %1055 = vmatpush1.msra.mxu0 0.0
        %1056 = vmatprep.subr.mxu0 0.0
        %1057 = vmatpush1.msra.mxu0 0.0
        %1058 = vmatprep.subr.mxu0 0.0
        %1059 = vmatpush1.msra.mxu0 0.0
        %1060 = vmatprep.subr.mxu0 0.0
        %1061 = vmatpush1.msra.mxu0 0.0
        %1062 = vmatprep.subr.mxu0 0.0
        %1063 = vmatpush1.msra.mxu0 0.0
        %1064 = vmatprep.subr.mxu0 0.0
        %1065 = vmatpush1.msra.mxu0 0.0
        %1066 = vmatprep.subr.mxu0 0.0
        %1067 = vmatpush1.msra.mxu0 0.0
        %1068 = vmatprep.subr.mxu0 0.0
        %1069 = vmatpush1.msra.mxu0 0.0
        %1070 = vmatprep.subr.mxu0 0.0
        %1071 = vmatpush1.msra.mxu0 0.0
        %1072 = vmatprep.subr.mxu0 0.0
        %1073 = vmatpush1.msra.mxu0 0.0
        %1074 = vmatprep.subr.mxu0 0.0
        %1075 = vmatpush1.msra.mxu0 0.0
        %1076 = vmatprep.subr.mxu0 %v1050
        %1077 = vmatpush1.msra.mxu0 %v1047
        %1078 = vmatprep.subr.mxu0 %v1029
        %1079 = vmatpush1.msra.mxu0 %v1028
        %1080 = vmatprep.subr.mxu0 %v1027
        %1081 = vmatpush1.msra.mxu0 %v1026
        %1082 = vmatprep.subr.mxu0 %v1025
        %1083 = vmatpush1.msra.mxu0 %v1024
        %1084 = vmatprep.subr.mxu0 0.0
        %1085 = vmatpush2.msra.mxu0 0.0
        %1086 = vmatprep.subr.mxu0 0.0
        %1087 = vmatpush2.msra.mxu0 0.0
        %1088 = vmatprep.subr.mxu0 0.0
        %1089 = vmatpush2.msra.mxu0 0.0
        %1090 = vmatprep.subr.mxu0 0.0
        %1091 = vmatpush2.msra.mxu0 0.0
        %1092 = vmatprep.subr.mxu0 0.0
        %1093 = vmatpush2.msra.mxu0 0.0
        %1094 = vmatprep.subr.mxu0 0.0
        %1095 = vmatpush2.msra.mxu0 0.0
        %1096 = vmatprep.subr.mxu0 0.0
        %1097 = vmatpush2.msra.mxu0 0.0
        %1098 = vmatprep.subr.mxu0 0.0
        %1099 = vmatpush2.msra.mxu0 0.0
        %1100 = vmatprep.subr.mxu0 0.0
        %1101 = vmatpush2.msra.mxu0 0.0
        %1102 = vmatprep.subr.mxu0 0.0
        %1103 = vmatpush2.msra.mxu0 0.0
        %1104 = vmatprep.subr.mxu0 0.0
        %1105 = vmatpush2.msra.mxu0 0.0
        %1106 = vmatprep.subr.mxu0 0.0
        %1107 = vmatpush2.msra.mxu0 0.0
        %1108 = vmatprep.subr.mxu0 0.0
        %1109 = vmatpush2.msra.mxu0 0.0
        %1110 = vmatprep.subr.mxu0 0.0
        %1111 = vmatpush2.msra.mxu0 0.0
        %1112 = vmatprep.subr.mxu0 0.0
        %1113 = vmatpush2.msra.mxu0 0.0
        %1114 = vmatprep.subr.mxu0 0.0
        %1115 = vmatpush2.msra.mxu0 0.0
        %1116 = vmatprep.mubr.f32.mxu0 0.0
        %1117 = vmatmul.mubr.f32.gmra.mxu0 %v1040
        %v1118 = vpop.f32.mrf.mxu0
        %v1119 = vadd.f32 0.0, %v1118
        %v1120 = vpop.f32.mrf.mxu0
        %v1121 = vadd.f32 0.0, %v1120
        %1122 = vmatprep.mubr.f32.mxu0 0.0
        %1123 = vmatmul.mubr.f32.gmra.mxu0 %v1042
        %v1124 = vpop.f32.mrf.mxu0
        %v1125 = vadd.f32 0.0, %v1124
        %v1126 = vpop.f32.mrf.mxu0
        %v1127 = vadd.f32 0.0, %v1126
        %1128 = vmatprep.mubr.f32.mxu0 0.0
        %1129 = vmatmul.mubr.f32.gmra.mxu0 %v1044
        %v1130 = vpop.f32.mrf.mxu0
        %v1131 = vadd.f32 0.0, %v1130
        %v1132 = vpop.f32.mrf.mxu0
        %v1133 = vadd.f32 0.0, %v1132
        %1134 = vdwg.mxu0
        %s1135 = scalar_lea.vmem [#allocation2], 448
        %v1136 = vld [vmem:[%s1135] sm:$0xff]
        %v1137 = vld [vmem:[%s1135 + $0x8] sm:$0xff]
        %v1138 = vld [vmem:[%s1135 + $0x10] sm:$0xff]
        %v1139 = vld [vmem:[%s1135 + $0x18] sm:$0xff]
        %v1140 = vld [vmem:[%s1135 + $0x20] sm:$0xff]
        %v1141 = vld [vmem:[%s1135 + $0x28] sm:$0xff]
        %v1142 = vld [vmem:[%s1135 + $0x30] sm:$0xf]
        %v1143 = vld [vmem:[%s1135 + $0x38] sm:$0xf]
        %v1145 = vsel %vm651, %v1142, 0
        %v1148 = vsel %vm651, %v1143, 0
        %1150 = vmatprep.subr.mxu0 0.0
        %1151 = vmatpush1.msra.mxu0 0.0
        %1152 = vmatprep.subr.mxu0 0.0
        %1153 = vmatpush1.msra.mxu0 0.0
        %1154 = vmatprep.subr.mxu0 0.0
        %1155 = vmatpush1.msra.mxu0 0.0
        %1156 = vmatprep.subr.mxu0 0.0
        %1157 = vmatpush1.msra.mxu0 0.0
        %1158 = vmatprep.subr.mxu0 0.0
        %1159 = vmatpush1.msra.mxu0 0.0
        %1160 = vmatprep.subr.mxu0 0.0
        %1161 = vmatpush1.msra.mxu0 0.0
        %1162 = vmatprep.subr.mxu0 0.0
        %1163 = vmatpush1.msra.mxu0 0.0
        %1164 = vmatprep.subr.mxu0 0.0
        %1165 = vmatpush1.msra.mxu0 0.0
        %1166 = vmatprep.subr.mxu0 0.0
        %1167 = vmatpush1.msra.mxu0 0.0
        %1168 = vmatprep.subr.mxu0 0.0
        %1169 = vmatpush1.msra.mxu0 0.0
        %1170 = vmatprep.subr.mxu0 0.0
        %1171 = vmatpush1.msra.mxu0 0.0
        %1172 = vmatprep.subr.mxu0 0.0
        %1173 = vmatpush1.msra.mxu0 0.0
        %1174 = vmatprep.subr.mxu0 %v1148
        %1175 = vmatpush1.msra.mxu0 %v1145
        %1176 = vmatprep.subr.mxu0 %v1141
        %1177 = vmatpush1.msra.mxu0 %v1140
        %1178 = vmatprep.subr.mxu0 %v1139
        %1179 = vmatpush1.msra.mxu0 %v1138
        %1180 = vmatprep.subr.mxu0 %v1137
        %1181 = vmatpush1.msra.mxu0 %v1136
        %1182 = vmatprep.subr.mxu0 0.0
        %1183 = vmatpush2.msra.mxu0 0.0
        %1184 = vmatprep.subr.mxu0 0.0
        %1185 = vmatpush2.msra.mxu0 0.0
        %1186 = vmatprep.subr.mxu0 0.0
        %1187 = vmatpush2.msra.mxu0 0.0
        %1188 = vmatprep.subr.mxu0 0.0
        %1189 = vmatpush2.msra.mxu0 0.0
        %1190 = vmatprep.subr.mxu0 0.0
        %1191 = vmatpush2.msra.mxu0 0.0
        %1192 = vmatprep.subr.mxu0 0.0
        %1193 = vmatpush2.msra.mxu0 0.0
        %1194 = vmatprep.subr.mxu0 0.0
        %1195 = vmatpush2.msra.mxu0 0.0
        %1196 = vmatprep.subr.mxu0 0.0
        %1197 = vmatpush2.msra.mxu0 0.0
        %1198 = vmatprep.subr.mxu0 0.0
        %1199 = vmatpush2.msra.mxu0 0.0
        %1200 = vmatprep.subr.mxu0 0.0
        %1201 = vmatpush2.msra.mxu0 0.0
        %1202 = vmatprep.subr.mxu0 0.0
        %1203 = vmatpush2.msra.mxu0 0.0
        %1204 = vmatprep.subr.mxu0 0.0
        %1205 = vmatpush2.msra.mxu0 0.0
        %1206 = vmatprep.subr.mxu0 0.0
        %1207 = vmatpush2.msra.mxu0 0.0
        %1208 = vmatprep.subr.mxu0 0.0
        %1209 = vmatpush2.msra.mxu0 0.0
        %1210 = vmatprep.subr.mxu0 0.0
        %1211 = vmatpush2.msra.mxu0 0.0
        %1212 = vmatprep.subr.mxu0 0.0
        %1213 = vmatpush2.msra.mxu0 0.0
        %1214 = vmatprep.mubr.f32.mxu0 0.0
        %1215 = vmatmul.mubr.f32.gmra.mxu0 %v1040
        %v1216 = vpop.f32.mrf.mxu0
        %v1217 = vadd.f32 0.0, %v1216
        %v1218 = vpop.f32.mrf.mxu0
        %v1219 = vadd.f32 0.0, %v1218
        %1220 = vmatprep.mubr.f32.mxu0 0.0
        %1221 = vmatmul.mubr.f32.gmra.mxu0 %v1042
        %v1222 = vpop.f32.mrf.mxu0
        %v1223 = vadd.f32 0.0, %v1222
        %v1224 = vpop.f32.mrf.mxu0
        %v1225 = vadd.f32 0.0, %v1224
        %1226 = vmatprep.mubr.f32.mxu0 0.0
        %1227 = vmatmul.mubr.f32.gmra.mxu0 %v1044
        %v1228 = vpop.f32.mrf.mxu0
        %v1229 = vadd.f32 0.0, %v1228
        %v1230 = vpop.f32.mrf.mxu0
        %v1231 = vadd.f32 0.0, %v1230
        %1232 = vdwg.mxu0
        %v1233 = vadd.f32 %v918, %v1119
        %v1234 = vadd.f32 %v920, %v1121
        %v1235 = vadd.f32 %v924, %v1125
        %v1236 = vadd.f32 %v926, %v1127
        %v1237 = vadd.f32 %v930, %v1131
        %v1238 = vadd.f32 %v932, %v1133
        %v1239 = vadd.f32 %v1007, %v1217
        %v1240 = vadd.f32 %v1009, %v1219
        %v1241 = vadd.f32 %v1013, %v1223
        %v1242 = vadd.f32 %v1015, %v1225
        %v1243 = vadd.f32 %v1019, %v1229
        %v1244 = vadd.f32 %v1021, %v1231
        %s1245 = scalar_lea.vmem [#allocation2], 192
        %v1246 = vld [vmem:[%s1245] sm:$0xff]
        %v1247 = vld [vmem:[%s1245 + $0x8] sm:$0xff]
        %v1248 = vld [vmem:[%s1245 + $0x10] sm:$0xff]
        %v1249 = vld [vmem:[%s1245 + $0x18] sm:$0xff]
        %v1250 = vld [vmem:[%s1245 + $0x20] sm:$0xff]
        %v1251 = vld [vmem:[%s1245 + $0x28] sm:$0xff]
        %v1252 = vld [vmem:[%s1245 + $0x30] sm:$0xf]
        %v1253 = vld [vmem:[%s1245 + $0x38] sm:$0xf]
        %vm1254 = vcmask 1044480
        %v1255 = vrot.slane %v602, 3
        %v1256 = vrot.slane %v603, 3
        %v1257 = vsel %vm1254, %v1255, %v1256
        %v1258 = vrot.slane %v604, 3
        %v1259 = vsel %vm1254, %v1256, %v1258
        %v1260 = vrot.slane %v605, 3
        %v1261 = vsel %vm1254, %v1258, %v1260
        %v1262 = vsel %vm644, %v1257, 0
        %v1264 = vsel %vm644, %v1259, 0
        %v1266 = vsel %vm644, %v1261, 0
        %v1269 = vsel %vm651, %v1252, 0
        %v1272 = vsel %vm651, %v1253, 0
        %1274 = vmatprep.subr.mxu0 0.0
        %1275 = vmatpush1.msra.mxu0 0.0
        %1276 = vmatprep.subr.mxu0 0.0
        %1277 = vmatpush1.msra.mxu0 0.0
        %1278 = vmatprep.subr.mxu0 0.0
        %1279 = vmatpush1.msra.mxu0 0.0
        %1280 = vmatprep.subr.mxu0 0.0
        %1281 = vmatpush1.msra.mxu0 0.0
        %1282 = vmatprep.subr.mxu0 0.0
        %1283 = vmatpush1.msra.mxu0 0.0
        %1284 = vmatprep.subr.mxu0 0.0
        %1285 = vmatpush1.msra.mxu0 0.0
        %1286 = vmatprep.subr.mxu0 0.0
        %1287 = vmatpush1.msra.mxu0 0.0
        %1288 = vmatprep.subr.mxu0 0.0
        %1289 = vmatpush1.msra.mxu0 0.0
        %1290 = vmatprep.subr.mxu0 0.0
        %1291 = vmatpush1.msra.mxu0 0.0
        %1292 = vmatprep.subr.mxu0 0.0
        %1293 = vmatpush1.msra.mxu0 0.0
        %1294 = vmatprep.subr.mxu0 0.0
        %1295 = vmatpush1.msra.mxu0 0.0
        %1296 = vmatprep.subr.mxu0 0.0
        %1297 = vmatpush1.msra.mxu0 0.0
        %1298 = vmatprep.subr.mxu0 %v1272
        %1299 = vmatpush1.msra.mxu0 %v1269
        %1300 = vmatprep.subr.mxu0 %v1251
        %1301 = vmatpush1.msra.mxu0 %v1250
        %1302 = vmatprep.subr.mxu0 %v1249
        %1303 = vmatpush1.msra.mxu0 %v1248
        %1304 = vmatprep.subr.mxu0 %v1247
        %1305 = vmatpush1.msra.mxu0 %v1246
        %1306 = vmatprep.subr.mxu0 0.0
        %1307 = vmatpush2.msra.mxu0 0.0
        %1308 = vmatprep.subr.mxu0 0.0
        %1309 = vmatpush2.msra.mxu0 0.0
        %1310 = vmatprep.subr.mxu0 0.0
        %1311 = vmatpush2.msra.mxu0 0.0
        %1312 = vmatprep.subr.mxu0 0.0
        %1313 = vmatpush2.msra.mxu0 0.0
        %1314 = vmatprep.subr.mxu0 0.0
        %1315 = vmatpush2.msra.mxu0 0.0
        %1316 = vmatprep.subr.mxu0 0.0
        %1317 = vmatpush2.msra.mxu0 0.0
        %1318 = vmatprep.subr.mxu0 0.0
        %1319 = vmatpush2.msra.mxu0 0.0
        %1320 = vmatprep.subr.mxu0 0.0
        %1321 = vmatpush2.msra.mxu0 0.0
        %1322 = vmatprep.subr.mxu0 0.0
        %1323 = vmatpush2.msra.mxu0 0.0
        %1324 = vmatprep.subr.mxu0 0.0
        %1325 = vmatpush2.msra.mxu0 0.0
        %1326 = vmatprep.subr.mxu0 0.0
        %1327 = vmatpush2.msra.mxu0 0.0
        %1328 = vmatprep.subr.mxu0 0.0
        %1329 = vmatpush2.msra.mxu0 0.0
        %1330 = vmatprep.subr.mxu0 0.0
        %1331 = vmatpush2.msra.mxu0 0.0
        %1332 = vmatprep.subr.mxu0 0.0
        %1333 = vmatpush2.msra.mxu0 0.0
        %1334 = vmatprep.subr.mxu0 0.0
        %1335 = vmatpush2.msra.mxu0 0.0
        %1336 = vmatprep.subr.mxu0 0.0
        %1337 = vmatpush2.msra.mxu0 0.0
        %1338 = vmatprep.mubr.f32.mxu0 0.0
        %1339 = vmatmul.mubr.f32.gmra.mxu0 %v1262
        %v1340 = vpop.f32.mrf.mxu0
        %v1341 = vadd.f32 0.0, %v1340
        %v1342 = vpop.f32.mrf.mxu0
        %v1343 = vadd.f32 0.0, %v1342
        %1344 = vmatprep.mubr.f32.mxu0 0.0
        %1345 = vmatmul.mubr.f32.gmra.mxu0 %v1264
        %v1346 = vpop.f32.mrf.mxu0
        %v1347 = vadd.f32 0.0, %v1346
        %v1348 = vpop.f32.mrf.mxu0
        %v1349 = vadd.f32 0.0, %v1348
        %1350 = vmatprep.mubr.f32.mxu0 0.0
        %1351 = vmatmul.mubr.f32.gmra.mxu0 %v1266
        %v1352 = vpop.f32.mrf.mxu0
        %v1353 = vadd.f32 0.0, %v1352
        %v1354 = vpop.f32.mrf.mxu0
        %v1355 = vadd.f32 0.0, %v1354
        %1356 = vdwg.mxu0
        %s1357 = scalar_lea.vmem [#allocation2], 512
        %v1358 = vld [vmem:[%s1357] sm:$0xff]
        %v1359 = vld [vmem:[%s1357 + $0x8] sm:$0xff]
        %v1360 = vld [vmem:[%s1357 + $0x10] sm:$0xff]
        %v1361 = vld [vmem:[%s1357 + $0x18] sm:$0xff]
        %v1362 = vld [vmem:[%s1357 + $0x20] sm:$0xff]
        %v1363 = vld [vmem:[%s1357 + $0x28] sm:$0xff]
        %v1364 = vld [vmem:[%s1357 + $0x30] sm:$0xf]
        %v1365 = vld [vmem:[%s1357 + $0x38] sm:$0xf]
        %v1367 = vsel %vm651, %v1364, 0
        %v1370 = vsel %vm651, %v1365, 0
        %1372 = vmatprep.subr.mxu0 0.0
        %1373 = vmatpush1.msra.mxu0 0.0
        %1374 = vmatprep.subr.mxu0 0.0
        %1375 = vmatpush1.msra.mxu0 0.0
        %1376 = vmatprep.subr.mxu0 0.0
        %1377 = vmatpush1.msra.mxu0 0.0
        %1378 = vmatprep.subr.mxu0 0.0
        %1379 = vmatpush1.msra.mxu0 0.0
        %1380 = vmatprep.subr.mxu0 0.0
        %1381 = vmatpush1.msra.mxu0 0.0
        %1382 = vmatprep.subr.mxu0 0.0
        %1383 = vmatpush1.msra.mxu0 0.0
        %1384 = vmatprep.subr.mxu0 0.0
        %1385 = vmatpush1.msra.mxu0 0.0
        %1386 = vmatprep.subr.mxu0 0.0
        %1387 = vmatpush1.msra.mxu0 0.0
        %1388 = vmatprep.subr.mxu0 0.0
        %1389 = vmatpush1.msra.mxu0 0.0
        %1390 = vmatprep.subr.mxu0 0.0
        %1391 = vmatpush1.msra.mxu0 0.0
        %1392 = vmatprep.subr.mxu0 0.0
        %1393 = vmatpush1.msra.mxu0 0.0
        %1394 = vmatprep.subr.mxu0 0.0
        %1395 = vmatpush1.msra.mxu0 0.0
        %1396 = vmatprep.subr.mxu0 %v1370
        %1397 = vmatpush1.msra.mxu0 %v1367
        %1398 = vmatprep.subr.mxu0 %v1363
        %1399 = vmatpush1.msra.mxu0 %v1362
        %1400 = vmatprep.subr.mxu0 %v1361
        %1401 = vmatpush1.msra.mxu0 %v1360
        %1402 = vmatprep.subr.mxu0 %v1359
        %1403 = vmatpush1.msra.mxu0 %v1358
        %1404 = vmatprep.subr.mxu0 0.0
        %1405 = vmatpush2.msra.mxu0 0.0
        %1406 = vmatprep.subr.mxu0 0.0
        %1407 = vmatpush2.msra.mxu0 0.0
        %1408 = vmatprep.subr.mxu0 0.0
        %1409 = vmatpush2.msra.mxu0 0.0
        %1410 = vmatprep.subr.mxu0 0.0
        %1411 = vmatpush2.msra.mxu0 0.0
        %1412 = vmatprep.subr.mxu0 0.0
        %1413 = vmatpush2.msra.mxu0 0.0
        %1414 = vmatprep.subr.mxu0 0.0
        %1415 = vmatpush2.msra.mxu0 0.0
        %1416 = vmatprep.subr.mxu0 0.0
        %1417 = vmatpush2.msra.mxu0 0.0
        %1418 = vmatprep.subr.mxu0 0.0
        %1419 = vmatpush2.msra.mxu0 0.0
        %1420 = vmatprep.subr.mxu0 0.0
        %1421 = vmatpush2.msra.mxu0 0.0
        %1422 = vmatprep.subr.mxu0 0.0
        %1423 = vmatpush2.msra.mxu0 0.0
        %1424 = vmatprep.subr.mxu0 0.0
        %1425 = vmatpush2.msra.mxu0 0.0
        %1426 = vmatprep.subr.mxu0 0.0
        %1427 = vmatpush2.msra.mxu0 0.0
        %1428 = vmatprep.subr.mxu0 0.0
        %1429 = vmatpush2.msra.mxu0 0.0
        %1430 = vmatprep.subr.mxu0 0.0
        %1431 = vmatpush2.msra.mxu0 0.0
        %1432 = vmatprep.subr.mxu0 0.0
        %1433 = vmatpush2.msra.mxu0 0.0
        %1434 = vmatprep.subr.mxu0 0.0
        %1435 = vmatpush2.msra.mxu0 0.0
        %1436 = vmatprep.mubr.f32.mxu0 0.0
        %1437 = vmatmul.mubr.f32.gmra.mxu0 %v1262
        %v1438 = vpop.f32.mrf.mxu0
        %v1439 = vadd.f32 0.0, %v1438
        %v1440 = vpop.f32.mrf.mxu0
        %v1441 = vadd.f32 0.0, %v1440
        %1442 = vmatprep.mubr.f32.mxu0 0.0
        %1443 = vmatmul.mubr.f32.gmra.mxu0 %v1264
        %v1444 = vpop.f32.mrf.mxu0
        %v1445 = vadd.f32 0.0, %v1444
        %v1446 = vpop.f32.mrf.mxu0
        %v1447 = vadd.f32 0.0, %v1446
        %1448 = vmatprep.mubr.f32.mxu0 0.0
        %1449 = vmatmul.mubr.f32.gmra.mxu0 %v1266
        %v1450 = vpop.f32.mrf.mxu0
        %v1451 = vadd.f32 0.0, %v1450
        %v1452 = vpop.f32.mrf.mxu0
        %v1453 = vadd.f32 0.0, %v1452
        %1454 = vdwg.mxu0
        %v1455 = vadd.f32 %v1233, %v1341
        %v1456 = vadd.f32 %v1234, %v1343
        %v1457 = vadd.f32 %v1235, %v1347
        %v1458 = vadd.f32 %v1236, %v1349
        %v1459 = vadd.f32 %v1237, %v1353
        %v1460 = vadd.f32 %v1238, %v1355
        %v1461 = vadd.f32 %v1239, %v1439
        %v1462 = vadd.f32 %v1240, %v1441
        %v1463 = vadd.f32 %v1241, %v1445
        %v1464 = vadd.f32 %v1242, %v1447
        %v1465 = vadd.f32 %v1243, %v1451
        %v1466 = vadd.f32 %v1244, %v1453
        %s1467 = scalar_lea.vmem [#allocation2], 256
        %v1468 = vld [vmem:[%s1467] sm:$0xff]
        %v1469 = vld [vmem:[%s1467 + $0x8] sm:$0xff]
        %v1470 = vld [vmem:[%s1467 + $0x10] sm:$0xff]
        %v1471 = vld [vmem:[%s1467 + $0x18] sm:$0xff]
        %v1472 = vld [vmem:[%s1467 + $0x20] sm:$0xff]
        %v1473 = vld [vmem:[%s1467 + $0x28] sm:$0xff]
        %v1474 = vld [vmem:[%s1467 + $0x30] sm:$0xf]
        %v1475 = vld [vmem:[%s1467 + $0x38] sm:$0xf]
        %v1476 = vrot.slane %v602, 4
        %v1477 = vrot.slane %v603, 4
        %v1478 = vsel %vm651, %v1476, %v1477
        %v1479 = vrot.slane %v604, 4
        %v1480 = vsel %vm651, %v1477, %v1479
        %v1481 = vrot.slane %v605, 4
        %v1482 = vsel %vm651, %v1479, %v1481
        %v1483 = vsel %vm644, %v1478, 0
        %v1485 = vsel %vm644, %v1480, 0
        %v1487 = vsel %vm644, %v1482, 0
        %v1490 = vsel %vm651, %v1474, 0
        %v1493 = vsel %vm651, %v1475, 0
        %1495 = vmatprep.subr.mxu0 0.0
        %1496 = vmatpush1.msra.mxu0 0.0
        %1497 = vmatprep.subr.mxu0 0.0
        %1498 = vmatpush1.msra.mxu0 0.0
        %1499 = vmatprep.subr.mxu0 0.0
        %1500 = vmatpush1.msra.mxu0 0.0
        %1501 = vmatprep.subr.mxu0 0.0
        %1502 = vmatpush1.msra.mxu0 0.0
        %1503 = vmatprep.subr.mxu0 0.0
        %1504 = vmatpush1.msra.mxu0 0.0
        %1505 = vmatprep.subr.mxu0 0.0
        %1506 = vmatpush1.msra.mxu0 0.0
        %1507 = vmatprep.subr.mxu0 0.0
        %1508 = vmatpush1.msra.mxu0 0.0
        %1509 = vmatprep.subr.mxu0 0.0
        %1510 = vmatpush1.msra.mxu0 0.0
        %1511 = vmatprep.subr.mxu0 0.0
        %1512 = vmatpush1.msra.mxu0 0.0
        %1513 = vmatprep.subr.mxu0 0.0
        %1514 = vmatpush1.msra.mxu0 0.0
        %1515 = vmatprep.subr.mxu0 0.0
        %1516 = vmatpush1.msra.mxu0 0.0
        %1517 = vmatprep.subr.mxu0 0.0
        %1518 = vmatpush1.msra.mxu0 0.0
        %1519 = vmatprep.subr.mxu0 %v1493
        %1520 = vmatpush1.msra.mxu0 %v1490
        %1521 = vmatprep.subr.mxu0 %v1473
        %1522 = vmatpush1.msra.mxu0 %v1472
        %1523 = vmatprep.subr.mxu0 %v1471
        %1524 = vmatpush1.msra.mxu0 %v1470
        %1525 = vmatprep.subr.mxu0 %v1469
        %1526 = vmatpush1.msra.mxu0 %v1468
        %1527 = vmatprep.subr.mxu0 0.0
        %1528 = vmatpush2.msra.mxu0 0.0
        %1529 = vmatprep.subr.mxu0 0.0
        %1530 = vmatpush2.msra.mxu0 0.0
        %1531 = vmatprep.subr.mxu0 0.0
        %1532 = vmatpush2.msra.mxu0 0.0
        %1533 = vmatprep.subr.mxu0 0.0
        %1534 = vmatpush2.msra.mxu0 0.0
        %1535 = vmatprep.subr.mxu0 0.0
        %1536 = vmatpush2.msra.mxu0 0.0
        %1537 = vmatprep.subr.mxu0 0.0
        %1538 = vmatpush2.msra.mxu0 0.0
        %1539 = vmatprep.subr.mxu0 0.0
        %1540 = vmatpush2.msra.mxu0 0.0
        %1541 = vmatprep.subr.mxu0 0.0
        %1542 = vmatpush2.msra.mxu0 0.0
        %1543 = vmatprep.subr.mxu0 0.0
        %1544 = vmatpush2.msra.mxu0 0.0
        %1545 = vmatprep.subr.mxu0 0.0
        %1546 = vmatpush2.msra.mxu0 0.0
        %1547 = vmatprep.subr.mxu0 0.0
        %1548 = vmatpush2.msra.mxu0 0.0
        %1549 = vmatprep.subr.mxu0 0.0
        %1550 = vmatpush2.msra.mxu0 0.0
        %1551 = vmatprep.subr.mxu0 0.0
        %1552 = vmatpush2.msra.mxu0 0.0
        %1553 = vmatprep.subr.mxu0 0.0
        %1554 = vmatpush2.msra.mxu0 0.0
        %1555 = vmatprep.subr.mxu0 0.0
        %1556 = vmatpush2.msra.mxu0 0.0
        %1557 = vmatprep.subr.mxu0 0.0
        %1558 = vmatpush2.msra.mxu0 0.0
        %1559 = vmatprep.mubr.f32.mxu0 0.0
        %1560 = vmatmul.mubr.f32.gmra.mxu0 %v1483
        %v1561 = vpop.f32.mrf.mxu0
        %v1562 = vadd.f32 0.0, %v1561
        %v1563 = vpop.f32.mrf.mxu0
        %v1564 = vadd.f32 0.0, %v1563
        %1565 = vmatprep.mubr.f32.mxu0 0.0
        %1566 = vmatmul.mubr.f32.gmra.mxu0 %v1485
        %v1567 = vpop.f32.mrf.mxu0
        %v1568 = vadd.f32 0.0, %v1567
        %v1569 = vpop.f32.mrf.mxu0
        %v1570 = vadd.f32 0.0, %v1569
        %1571 = vmatprep.mubr.f32.mxu0 0.0
        %1572 = vmatmul.mubr.f32.gmra.mxu0 %v1487
        %v1573 = vpop.f32.mrf.mxu0
        %v1574 = vadd.f32 0.0, %v1573
        %v1575 = vpop.f32.mrf.mxu0
        %v1576 = vadd.f32 0.0, %v1575
        %1577 = vdwg.mxu0
        %s1578 = scalar_lea.vmem [#allocation2], 576
        %v1579 = vld [vmem:[%s1578] sm:$0xff]
        %v1580 = vld [vmem:[%s1578 + $0x8] sm:$0xff]
        %v1581 = vld [vmem:[%s1578 + $0x10] sm:$0xff]
        %v1582 = vld [vmem:[%s1578 + $0x18] sm:$0xff]
        %v1583 = vld [vmem:[%s1578 + $0x20] sm:$0xff]
        %v1584 = vld [vmem:[%s1578 + $0x28] sm:$0xff]
        %v1585 = vld [vmem:[%s1578 + $0x30] sm:$0xf]
        %v1586 = vld [vmem:[%s1578 + $0x38] sm:$0xf]
        %v1588 = vsel %vm651, %v1585, 0
        %v1591 = vsel %vm651, %v1586, 0
        %1593 = vmatprep.subr.mxu0 0.0
        %1594 = vmatpush1.msra.mxu0 0.0
        %1595 = vmatprep.subr.mxu0 0.0
        %1596 = vmatpush1.msra.mxu0 0.0
        %1597 = vmatprep.subr.mxu0 0.0
        %1598 = vmatpush1.msra.mxu0 0.0
        %1599 = vmatprep.subr.mxu0 0.0
        %1600 = vmatpush1.msra.mxu0 0.0
        %1601 = vmatprep.subr.mxu0 0.0
        %1602 = vmatpush1.msra.mxu0 0.0
        %1603 = vmatprep.subr.mxu0 0.0
        %1604 = vmatpush1.msra.mxu0 0.0
        %1605 = vmatprep.subr.mxu0 0.0
        %1606 = vmatpush1.msra.mxu0 0.0
        %1607 = vmatprep.subr.mxu0 0.0
        %1608 = vmatpush1.msra.mxu0 0.0
        %1609 = vmatprep.subr.mxu0 0.0
        %1610 = vmatpush1.msra.mxu0 0.0
        %1611 = vmatprep.subr.mxu0 0.0
        %1612 = vmatpush1.msra.mxu0 0.0
        %1613 = vmatprep.subr.mxu0 0.0
        %1614 = vmatpush1.msra.mxu0 0.0
        %1615 = vmatprep.subr.mxu0 0.0
        %1616 = vmatpush1.msra.mxu0 0.0
        %1617 = vmatprep.subr.mxu0 %v1591
        %1618 = vmatpush1.msra.mxu0 %v1588
        %1619 = vmatprep.subr.mxu0 %v1584
        %1620 = vmatpush1.msra.mxu0 %v1583
        %1621 = vmatprep.subr.mxu0 %v1582
        %1622 = vmatpush1.msra.mxu0 %v1581
        %1623 = vmatprep.subr.mxu0 %v1580
        %1624 = vmatpush1.msra.mxu0 %v1579
        %1625 = vmatprep.subr.mxu0 0.0
        %1626 = vmatpush2.msra.mxu0 0.0
        %1627 = vmatprep.subr.mxu0 0.0
        %1628 = vmatpush2.msra.mxu0 0.0
        %1629 = vmatprep.subr.mxu0 0.0
        %1630 = vmatpush2.msra.mxu0 0.0
        %1631 = vmatprep.subr.mxu0 0.0
        %1632 = vmatpush2.msra.mxu0 0.0
        %1633 = vmatprep.subr.mxu0 0.0
        %1634 = vmatpush2.msra.mxu0 0.0
        %1635 = vmatprep.subr.mxu0 0.0
        %1636 = vmatpush2.msra.mxu0 0.0
        %1637 = vmatprep.subr.mxu0 0.0
        %1638 = vmatpush2.msra.mxu0 0.0
        %1639 = vmatprep.subr.mxu0 0.0
        %1640 = vmatpush2.msra.mxu0 0.0
        %1641 = vmatprep.subr.mxu0 0.0
        %1642 = vmatpush2.msra.mxu0 0.0
        %1643 = vmatprep.subr.mxu0 0.0
        %1644 = vmatpush2.msra.mxu0 0.0
        %1645 = vmatprep.subr.mxu0 0.0
        %1646 = vmatpush2.msra.mxu0 0.0
        %1647 = vmatprep.subr.mxu0 0.0
        %1648 = vmatpush2.msra.mxu0 0.0
        %1649 = vmatprep.subr.mxu0 0.0
        %1650 = vmatpush2.msra.mxu0 0.0
        %1651 = vmatprep.subr.mxu0 0.0
        %1652 = vmatpush2.msra.mxu0 0.0
        %1653 = vmatprep.subr.mxu0 0.0
        %1654 = vmatpush2.msra.mxu0 0.0
        %1655 = vmatprep.subr.mxu0 0.0
        %1656 = vmatpush2.msra.mxu0 0.0
        %1657 = vmatprep.mubr.f32.mxu0 0.0
        %1658 = vmatmul.mubr.f32.gmra.mxu0 %v1483
        %v1659 = vpop.f32.mrf.mxu0
        %v1660 = vadd.f32 0.0, %v1659
        %v1661 = vpop.f32.mrf.mxu0
        %v1662 = vadd.f32 0.0, %v1661
        %1663 = vmatprep.mubr.f32.mxu0 0.0
        %1664 = vmatmul.mubr.f32.gmra.mxu0 %v1485
        %v1665 = vpop.f32.mrf.mxu0
        %v1666 = vadd.f32 0.0, %v1665
        %v1667 = vpop.f32.mrf.mxu0
        %v1668 = vadd.f32 0.0, %v1667
        %1669 = vmatprep.mubr.f32.mxu0 0.0
        %1670 = vmatmul.mubr.f32.gmra.mxu0 %v1487
        %v1671 = vpop.f32.mrf.mxu0
        %v1672 = vadd.f32 0.0, %v1671
        %v1673 = vpop.f32.mrf.mxu0
        %v1674 = vadd.f32 0.0, %v1673
        %1675 = vdwg.mxu0
        %v1676 = vadd.f32 %v1455, %v1562
        %v1677 = vadd.f32 %v1456, %v1564
        %v1678 = vadd.f32 %v1457, %v1568
        %v1679 = vadd.f32 %v1458, %v1570
        %v1680 = vadd.f32 %v1459, %v1574
        %v1681 = vadd.f32 %v1460, %v1576
        %v1682 = vadd.f32 %v1461, %v1660
        %v1683 = vadd.f32 %v1462, %v1662
        %v1684 = vadd.f32 %v1463, %v1666
        %v1685 = vadd.f32 %v1464, %v1668
        %v1686 = vadd.f32 %v1465, %v1672
        %v1687 = vadd.f32 %v1466, %v1674
        %v1688 = vmax.f32 %v1676, %v1682
        %v1689 = vmax.f32 %v1677, %v1683
        %v1690 = vmax.f32 %v1678, %v1684
        %v1691 = vmax.f32 %v1679, %v1685
        %v1692 = vmax.f32 %v1680, %v1686
        %v1693 = vmax.f32 %v1681, %v1687
        %v1694 = vld [vmem:[#allocation4] sm:$0x3]
        %v1696 = vlaneseq
        %v1697 = vshrl.u32 %v1696, 7
        %v1698 = vsub.s32 0, %v1697
        %v1699 = vrot.slane %v1694, %v1698
        %v1700 = vlaneseq
        %v1701 = vshrl.u32 %v1700, 7
        %v1702 = vsub.s32 1, %v1701
        %v1703 = vrot.slane %v1694, %v1702
        %v1706 = vadd.f32 %v1688, %v1699
        %v1707 = vadd.f32 %v1689, %v1703
        %v1708 = vadd.f32 %v1690, %v1699
        %v1709 = vadd.f32 %v1691, %v1703
        %v1710 = vadd.f32 %v1692, %v1699
        %v1711 = vadd.f32 %v1693, %v1703
        %v1712 = vld [vmem:[#allocation6] sm:$0xff]
        %v1713 = vld [vmem:[#allocation6 + $0x8] sm:$0xf]
        %vm1714 = vcmask 195584
        %v1716 = vsel %vm1714, %v1712, 0
        %v1719 = vsel %vm1714, %v1713, 0
        %1721 = vmatprep.subr.mxu0 0.0
        %1722 = vmatpush1.msra.mxu0 0.0
        %1723 = vmatprep.subr.mxu0 0.0
        %1724 = vmatpush1.msra.mxu0 0.0
        %1725 = vmatprep.subr.mxu0 0.0
        %1726 = vmatpush1.msra.mxu0 0.0
        %1727 = vmatprep.subr.mxu0 0.0
        %1728 = vmatpush1.msra.mxu0 0.0
        %1729 = vmatprep.subr.mxu0 0.0
        %1730 = vmatpush1.msra.mxu0 0.0
        %1731 = vmatprep.subr.mxu0 0.0
        %1732 = vmatpush1.msra.mxu0 0.0
        %1733 = vmatprep.subr.mxu0 0.0
        %1734 = vmatpush1.msra.mxu0 0.0
        %1735 = vmatprep.subr.mxu0 0.0
        %1736 = vmatpush1.msra.mxu0 0.0
        %1737 = vmatprep.subr.mxu0 0.0
        %1738 = vmatpush1.msra.mxu0 0.0
        %1739 = vmatprep.subr.mxu0 0.0
        %1740 = vmatpush1.msra.mxu0 0.0
        %1741 = vmatprep.subr.mxu0 0.0
        %1742 = vmatpush1.msra.mxu0 0.0
        %1743 = vmatprep.subr.mxu0 0.0
        %1744 = vmatpush1.msra.mxu0 0.0
        %1745 = vmatprep.subr.mxu0 0.0
        %1746 = vmatpush1.msra.mxu0 0.0
        %1747 = vmatprep.subr.mxu0 %v1711
        %1748 = vmatpush1.msra.mxu0 %v1710
        %1749 = vmatprep.subr.mxu0 %v1709
        %1750 = vmatpush1.msra.mxu0 %v1708
        %1751 = vmatprep.subr.mxu0 %v1707
        %1752 = vmatpush1.msra.mxu0 %v1706
        %1753 = vmatprep.subr.mxu0 0.0
        %1754 = vmatpush2.msra.mxu0 0.0
        %1755 = vmatprep.subr.mxu0 0.0
        %1756 = vmatpush2.msra.mxu0 0.0
        %1757 = vmatprep.subr.mxu0 0.0
        %1758 = vmatpush2.msra.mxu0 0.0
        %1759 = vmatprep.subr.mxu0 0.0
        %1760 = vmatpush2.msra.mxu0 0.0
        %1761 = vmatprep.subr.mxu0 0.0
        %1762 = vmatpush2.msra.mxu0 0.0
        %1763 = vmatprep.subr.mxu0 0.0
        %1764 = vmatpush2.msra.mxu0 0.0
        %1765 = vmatprep.subr.mxu0 0.0
        %1766 = vmatpush2.msra.mxu0 0.0
        %1767 = vmatprep.subr.mxu0 0.0
        %1768 = vmatpush2.msra.mxu0 0.0
        %1769 = vmatprep.subr.mxu0 0.0
        %1770 = vmatpush2.msra.mxu0 0.0
        %1771 = vmatprep.subr.mxu0 0.0
        %1772 = vmatpush2.msra.mxu0 0.0
        %1773 = vmatprep.subr.mxu0 0.0
        %1774 = vmatpush2.msra.mxu0 0.0
        %1775 = vmatprep.subr.mxu0 0.0
        %1776 = vmatpush2.msra.mxu0 0.0
        %1777 = vmatprep.subr.mxu0 0.0
        %1778 = vmatpush2.msra.mxu0 0.0
        %1779 = vmatprep.subr.mxu0 0.0
        %1780 = vmatpush2.msra.mxu0 0.0
        %1781 = vmatprep.subr.mxu0 0.0
        %1782 = vmatpush2.msra.mxu0 0.0
        %1783 = vmatprep.subr.mxu0 0.0
        %1784 = vmatpush2.msra.mxu0 0.0
        %1785 = vmatprep.mubr.f32.mxu0 0.0
        %1786 = vmatmul.mubr.f32.gmra.mxu0 %v1716
        %v1787 = vpop.f32.mrf.mxu0
        %v1788 = vadd.f32 0.0, %v1787
        %v1789 = vpop.f32.mrf.mxu0
        %v1790 = vadd.f32 0.0, %v1789
        %1791 = vmatprep.mubr.f32.mxu0 0.0
        %1792 = vmatmul.mubr.f32.gmra.mxu0 %v1719
        %v1793 = vpop.f32.mrf.mxu0
        %v1794 = vadd.f32 0.0, %v1793
        %v1795 = vpop.f32.mrf.mxu0
        %v1796 = vadd.f32 0.0, %v1795
        %1797 = vdwg.mxu0
        %v1798 = vld [vmem:[#allocation7] sm:$0xff]
        %v1799 = vld [vmem:[#allocation7 + $0x8] sm:$0xf]
        %v1801 = vsel %vm1714, %v1798, 0
        %v1804 = vsel %vm1714, %v1799, 0
        %1806 = vmatprep.subr.mxu0 0.0
        %1807 = vmatpush1.msra.mxu0 0.0
        %1808 = vmatprep.subr.mxu0 0.0
        %1809 = vmatpush1.msra.mxu0 0.0
        %1810 = vmatprep.subr.mxu0 0.0
        %1811 = vmatpush1.msra.mxu0 0.0
        %1812 = vmatprep.subr.mxu0 0.0
        %1813 = vmatpush1.msra.mxu0 0.0
        %1814 = vmatprep.subr.mxu0 0.0
        %1815 = vmatpush1.msra.mxu0 0.0
        %1816 = vmatprep.subr.mxu0 0.0
        %1817 = vmatpush1.msra.mxu0 0.0
        %1818 = vmatprep.subr.mxu0 0.0
        %1819 = vmatpush1.msra.mxu0 0.0
        %1820 = vmatprep.subr.mxu0 0.0
        %1821 = vmatpush1.msra.mxu0 0.0
        %1822 = vmatprep.subr.mxu0 0.0
        %1823 = vmatpush1.msra.mxu0 0.0
        %1824 = vmatprep.subr.mxu0 0.0
        %1825 = vmatpush1.msra.mxu0 0.0
        %1826 = vmatprep.subr.mxu0 0.0
        %1827 = vmatpush1.msra.mxu0 0.0
        %1828 = vmatprep.subr.mxu0 0.0
        %1829 = vmatpush1.msra.mxu0 0.0
        %1830 = vmatprep.subr.mxu0 0.0
        %1831 = vmatpush1.msra.mxu0 0.0
        %1832 = vmatprep.subr.mxu0 %v1711
        %1833 = vmatpush1.msra.mxu0 %v1710
        %1834 = vmatprep.subr.mxu0 %v1709
        %1835 = vmatpush1.msra.mxu0 %v1708
        %1836 = vmatprep.subr.mxu0 %v1707
        %1837 = vmatpush1.msra.mxu0 %v1706
        %1838 = vmatprep.subr.mxu0 0.0
        %1839 = vmatpush2.msra.mxu0 0.0
        %1840 = vmatprep.subr.mxu0 0.0
        %1841 = vmatpush2.msra.mxu0 0.0
        %1842 = vmatprep.subr.mxu0 0.0
        %1843 = vmatpush2.msra.mxu0 0.0
        %1844 = vmatprep.subr.mxu0 0.0
        %1845 = vmatpush2.msra.mxu0 0.0
        %1846 = vmatprep.subr.mxu0 0.0
        %1847 = vmatpush2.msra.mxu0 0.0
        %1848 = vmatprep.subr.mxu0 0.0
        %1849 = vmatpush2.msra.mxu0 0.0
        %1850 = vmatprep.subr.mxu0 0.0
        %1851 = vmatpush2.msra.mxu0 0.0
        %1852 = vmatprep.subr.mxu0 0.0
        %1853 = vmatpush2.msra.mxu0 0.0
        %1854 = vmatprep.subr.mxu0 0.0
        %1855 = vmatpush2.msra.mxu0 0.0
        %1856 = vmatprep.subr.mxu0 0.0
        %1857 = vmatpush2.msra.mxu0 0.0
        %1858 = vmatprep.subr.mxu0 0.0
        %1859 = vmatpush2.msra.mxu0 0.0
        %1860 = vmatprep.subr.mxu0 0.0
        %1861 = vmatpush2.msra.mxu0 0.0
        %1862 = vmatprep.subr.mxu0 0.0
        %1863 = vmatpush2.msra.mxu0 0.0
        %1864 = vmatprep.subr.mxu0 0.0
        %1865 = vmatpush2.msra.mxu0 0.0
        %1866 = vmatprep.subr.mxu0 0.0
        %1867 = vmatpush2.msra.mxu0 0.0
        %1868 = vmatprep.subr.mxu0 0.0
        %1869 = vmatpush2.msra.mxu0 0.0
        %1870 = vmatprep.mubr.f32.mxu0 0.0
        %1871 = vmatmul.mubr.f32.gmra.mxu0 %v1801
        %v1872 = vpop.f32.mrf.mxu0
        %v1873 = vadd.f32 0.0, %v1872
        %v1874 = vpop.f32.mrf.mxu0
        %v1875 = vadd.f32 0.0, %v1874
        %1876 = vmatprep.mubr.f32.mxu0 0.0
        %1877 = vmatmul.mubr.f32.gmra.mxu0 %v1804
        %v1878 = vpop.f32.mrf.mxu0
        %v1879 = vadd.f32 0.0, %v1878
        %v1880 = vpop.f32.mrf.mxu0
        %v1881 = vadd.f32 0.0, %v1880
        %1882 = vdwg.mxu0
        %v1883 = vmax.f32 %v1788, %v1873
        %v1884 = vmax.f32 %v1790, %v1875
        %v1885 = vmax.f32 %v1794, %v1879
        %v1886 = vmax.f32 %v1796, %v1881
        %v1887 = vmax.f32 %v1883, 0.0
        %v1888 = vmax.f32 %v1884, 0.0
        %v1889 = vmax.f32 %v1885, 0.0
        %v1890 = vmax.f32 %v1886, 0.0
        %v1891 = vld [vmem:[#allocation9] sm:$0xff]
        %v1892 = vld [vmem:[#allocation9 + $0x8] sm:$0xff]
        %v1893 = vld [vmem:[#allocation9 + $0x10] sm:$0xff]
        %v1894 = vld [vmem:[#allocation9 + $0x18] sm:$0xff]
        %v1895 = vld [vmem:[#allocation9 + $0x20] sm:$0xff]
        %v1896 = vld [vmem:[#allocation9 + $0x28] sm:$0xff]
        %v1897 = vld [vmem:[#allocation9 + $0x30] sm:$0xff]
        %v1898 = vld [vmem:[#allocation9 + $0x38] sm:$0xff]
        %v1899 = vld [vmem:[#allocation9 + $0x40] sm:$0xff]
        %v1900 = vld [vmem:[#allocation9 + $0x48] sm:$0xff]
        %v1901 = vld [vmem:[#allocation9 + $0x50] sm:$0xff]
        %v1902 = vld [vmem:[#allocation9 + $0x58] sm:$0xff]
        %v1903 = vld [vmem:[#allocation9 + $0x60] sm:$0xff]
        %v1904 = vld [vmem:[#allocation9 + $0x68] sm:$0xff]
        %v1905 = vld [vmem:[#allocation9 + $0x70] sm:$0xff]
        %v1906 = vld [vmem:[#allocation9 + $0x78] sm:$0xff]
        %v1907 = vld [vmem:[#allocation9 + $0x80] sm:$0xff]
        %v1908 = vld [vmem:[#allocation9 + $0x88] sm:$0xff]
        %v1909 = vld [vmem:[#allocation9 + $0x90] sm:$0xff]
        %v1910 = vld [vmem:[#allocation9 + $0x98] sm:$0xff]
        %v1911 = vld [vmem:[#allocation9 + $0xa0] sm:$0xff]
        %v1912 = vld [vmem:[#allocation9 + $0xa8] sm:$0xff]
        %v1913 = vld [vmem:[#allocation9 + $0xb0] sm:$0xff]
        %v1914 = vld [vmem:[#allocation9 + $0xb8] sm:$0xff]
        %v1915 = vld [vmem:[#allocation9 + $0xc0] sm:$0xff]
        %v1916 = vld [vmem:[#allocation9 + $0xc8] sm:$0xff]
        %v1917 = vld [vmem:[#allocation9 + $0xd0] sm:$0xff]
        %v1918 = vld [vmem:[#allocation9 + $0xd8] sm:$0xff]
        %v1919 = vld [vmem:[#allocation9 + $0xe0] sm:$0xff]
        %v1920 = vld [vmem:[#allocation9 + $0xe8] sm:$0xff]
        %v1921 = vld [vmem:[#allocation9 + $0xf0] sm:$0xff]
        %v1922 = vld [vmem:[#allocation9 + $0xf8] sm:$0xff]
        %v1923 = vld [vmem:[#allocation9 + $0x100] sm:$0xff]
        %v1924 = vld [vmem:[#allocation9 + $0x108] sm:$0xff]
        %v1925 = vld [vmem:[#allocation9 + $0x110] sm:$0xff]
        %v1926 = vld [vmem:[#allocation9 + $0x118] sm:$0xff]
        %v1927 = vld [vmem:[#allocation9 + $0x120] sm:$0xff]
        %v1928 = vld [vmem:[#allocation9 + $0x128] sm:$0xff]
        %v1929 = vld [vmem:[#allocation9 + $0x130] sm:$0xff]
        %v1930 = vld [vmem:[#allocation9 + $0x138] sm:$0xff]
        %v1931 = vld [vmem:[#allocation9 + $0x140] sm:$0xff]
        %v1932 = vld [vmem:[#allocation9 + $0x148] sm:$0xff]
        %v1933 = vld [vmem:[#allocation9 + $0x150] sm:$0xff]
        %v1934 = vld [vmem:[#allocation9 + $0x158] sm:$0xff]
        %v1935 = vld [vmem:[#allocation9 + $0x160] sm:$0xff]
        %v1936 = vld [vmem:[#allocation9 + $0x168] sm:$0xff]
        %v1937 = vld [vmem:[#allocation9 + $0x170] sm:$0xff]
        %v1938 = vld [vmem:[#allocation9 + $0x178] sm:$0xff]
        %v1939 = vld [vmem:[#allocation9 + $0x180] sm:$0xff]
        %v1940 = vld [vmem:[#allocation9 + $0x188] sm:$0xff]
        %v1941 = vld [vmem:[#allocation9 + $0x190] sm:$0xff]
        %v1942 = vld [vmem:[#allocation9 + $0x198] sm:$0xff]
        %v1943 = vld [vmem:[#allocation9 + $0x1a0] sm:$0xff]
        %v1944 = vld [vmem:[#allocation9 + $0x1a8] sm:$0xff]
        %v1945 = vld [vmem:[#allocation9 + $0x1b0] sm:$0xff]
        %v1946 = vld [vmem:[#allocation9 + $0x1b8] sm:$0xff]
        %v1947 = vld [vmem:[#allocation9 + $0x1c0] sm:$0xff]
        %v1948 = vld [vmem:[#allocation9 + $0x1c8] sm:$0xff]
        %v1949 = vld [vmem:[#allocation9 + $0x1d0] sm:$0xff]
        %v1950 = vld [vmem:[#allocation9 + $0x1d8] sm:$0xff]
        %v1951 = vld [vmem:[#allocation9 + $0x1e0] sm:$0xff]
        %v1952 = vld [vmem:[#allocation9 + $0x1e8] sm:$0xff]
        %v1953 = vld [vmem:[#allocation9 + $0x1f0] sm:$0xff]
        %v1954 = vld [vmem:[#allocation9 + $0x1f8] sm:$0xff]
        %v1955 = vld [vmem:[#allocation9 + $0x200] sm:$0xff]
        %v1956 = vld [vmem:[#allocation9 + $0x208] sm:$0xff]
        %v1957 = vld [vmem:[#allocation9 + $0x210] sm:$0xff]
        %v1958 = vld [vmem:[#allocation9 + $0x218] sm:$0xff]
        %v1959 = vld [vmem:[#allocation9 + $0x220] sm:$0xff]
        %v1960 = vld [vmem:[#allocation9 + $0x228] sm:$0xff]
        %v1961 = vld [vmem:[#allocation9 + $0x230] sm:$0xff]
        %v1962 = vld [vmem:[#allocation9 + $0x238] sm:$0xff]
        %v1963 = vld [vmem:[#allocation9 + $0x240] sm:$0xff]
        %v1964 = vld [vmem:[#allocation9 + $0x248] sm:$0xff]
        %v1965 = vld [vmem:[#allocation9 + $0x250] sm:$0xff]
        %v1966 = vld [vmem:[#allocation9 + $0x258] sm:$0xff]
        %v1967 = vld [vmem:[#allocation9 + $0x260] sm:$0xff]
        %v1968 = vld [vmem:[#allocation9 + $0x268] sm:$0xff]
        %v1969 = vld [vmem:[#allocation9 + $0x270] sm:$0xff]
        %v1970 = vld [vmem:[#allocation9 + $0x278] sm:$0xff]
        %v1971 = vld [vmem:[#allocation9 + $0x280] sm:$0xff]
        %v1972 = vld [vmem:[#allocation9 + $0x288] sm:$0xff]
        %v1973 = vld [vmem:[#allocation9 + $0x290] sm:$0xff]
        %v1974 = vld [vmem:[#allocation9 + $0x298] sm:$0xff]
        %v1975 = vld [vmem:[#allocation9 + $0x2a0] sm:$0xff]
        %v1976 = vld [vmem:[#allocation9 + $0x2a8] sm:$0xff]
        %v1977 = vld [vmem:[#allocation9 + $0x2b0] sm:$0xff]
        %v1978 = vld [vmem:[#allocation9 + $0x2b8] sm:$0xff]
        %v1979 = vld [vmem:[#allocation9 + $0x2c0] sm:$0xff]
        %v1980 = vld [vmem:[#allocation9 + $0x2c8] sm:$0xff]
        %v1981 = vld [vmem:[#allocation9 + $0x2d0] sm:$0xff]
        %v1982 = vld [vmem:[#allocation9 + $0x2d8] sm:$0xff]
        %v1983 = vld [vmem:[#allocation9 + $0x2e0] sm:$0xff]
        %v1984 = vld [vmem:[#allocation9 + $0x2e8] sm:$0xff]
        %v1985 = vld [vmem:[#allocation9 + $0x2f0] sm:$0xff]
        %v1986 = vld [vmem:[#allocation9 + $0x2f8] sm:$0xff]
        %s1987 = scalar_lea.vmem [#allocation9], 3840
        %v1988 = vld [vmem:[%s1987] sm:$0xff]
        %v1989 = vld [vmem:[%s1987 + $0x8] sm:$0xff]
        %v1990 = vld [vmem:[%s1987 + $0x10] sm:$0xff]
        %v1991 = vld [vmem:[%s1987 + $0x18] sm:$0xff]
        %v1992 = vld [vmem:[%s1987 + $0x20] sm:$0xff]
        %v1993 = vld [vmem:[%s1987 + $0x28] sm:$0xff]
        %v1994 = vld [vmem:[%s1987 + $0x30] sm:$0xff]
        %v1995 = vld [vmem:[%s1987 + $0x38] sm:$0xff]
        %v1996 = vld [vmem:[%s1987 + $0x40] sm:$0xff]
        %v1997 = vld [vmem:[%s1987 + $0x48] sm:$0xff]
        %v1998 = vld [vmem:[%s1987 + $0x50] sm:$0xff]
        %v1999 = vld [vmem:[%s1987 + $0x58] sm:$0xff]
        %v2000 = vld [vmem:[%s1987 + $0x60] sm:$0xff]
        %v2001 = vld [vmem:[%s1987 + $0x68] sm:$0xff]
        %v2002 = vld [vmem:[%s1987 + $0x70] sm:$0xff]
        %v2003 = vld [vmem:[%s1987 + $0x78] sm:$0xff]
        %v2004 = vld [vmem:[%s1987 + $0x80] sm:$0xff]
        %v2005 = vld [vmem:[%s1987 + $0x88] sm:$0xff]
        %v2006 = vld [vmem:[%s1987 + $0x90] sm:$0xff]
        %v2007 = vld [vmem:[%s1987 + $0x98] sm:$0xff]
        %v2008 = vld [vmem:[%s1987 + $0xa0] sm:$0xff]
        %v2009 = vld [vmem:[%s1987 + $0xa8] sm:$0xff]
        %v2010 = vld [vmem:[%s1987 + $0xb0] sm:$0xff]
        %v2011 = vld [vmem:[%s1987 + $0xb8] sm:$0xff]
        %v2012 = vld [vmem:[%s1987 + $0xc0] sm:$0xff]
        %v2013 = vld [vmem:[%s1987 + $0xc8] sm:$0xff]
        %v2014 = vld [vmem:[%s1987 + $0xd0] sm:$0xff]
        %v2015 = vld [vmem:[%s1987 + $0xd8] sm:$0xff]
        %v2016 = vld [vmem:[%s1987 + $0xe0] sm:$0xff]
        %v2017 = vld [vmem:[%s1987 + $0xe8] sm:$0xff]
        %v2018 = vld [vmem:[%s1987 + $0xf0] sm:$0xff]
        %v2019 = vld [vmem:[%s1987 + $0xf8] sm:$0xff]
        %v2020 = vld [vmem:[%s1987 + $0x100] sm:$0xff]
        %v2021 = vld [vmem:[%s1987 + $0x108] sm:$0xff]
        %v2022 = vld [vmem:[%s1987 + $0x110] sm:$0xff]
        %v2023 = vld [vmem:[%s1987 + $0x118] sm:$0xff]
        %v2024 = vld [vmem:[%s1987 + $0x120] sm:$0xff]
        %v2025 = vld [vmem:[%s1987 + $0x128] sm:$0xff]
        %v2026 = vld [vmem:[%s1987 + $0x130] sm:$0xff]
        %v2027 = vld [vmem:[%s1987 + $0x138] sm:$0xff]
        %v2028 = vld [vmem:[%s1987 + $0x140] sm:$0xff]
        %v2029 = vld [vmem:[%s1987 + $0x148] sm:$0xff]
        %v2030 = vld [vmem:[%s1987 + $0x150] sm:$0xff]
        %v2031 = vld [vmem:[%s1987 + $0x158] sm:$0xff]
        %v2032 = vld [vmem:[%s1987 + $0x160] sm:$0xff]
        %v2033 = vld [vmem:[%s1987 + $0x168] sm:$0xff]
        %v2034 = vld [vmem:[%s1987 + $0x170] sm:$0xff]
        %v2035 = vld [vmem:[%s1987 + $0x178] sm:$0xff]
        %v2036 = vld [vmem:[%s1987 + $0x180] sm:$0xff]
        %v2037 = vld [vmem:[%s1987 + $0x188] sm:$0xff]
        %v2038 = vld [vmem:[%s1987 + $0x190] sm:$0xff]
        %v2039 = vld [vmem:[%s1987 + $0x198] sm:$0xff]
        %v2040 = vld [vmem:[%s1987 + $0x1a0] sm:$0xff]
        %v2041 = vld [vmem:[%s1987 + $0x1a8] sm:$0xff]
        %v2042 = vld [vmem:[%s1987 + $0x1b0] sm:$0xff]
        %v2043 = vld [vmem:[%s1987 + $0x1b8] sm:$0xff]
        %v2044 = vld [vmem:[%s1987 + $0x1c0] sm:$0xff]
        %v2045 = vld [vmem:[%s1987 + $0x1c8] sm:$0xff]
        %v2046 = vld [vmem:[%s1987 + $0x1d0] sm:$0xff]
        %v2047 = vld [vmem:[%s1987 + $0x1d8] sm:$0xff]
        %v2048 = vld [vmem:[%s1987 + $0x1e0] sm:$0xff]
        %v2049 = vld [vmem:[%s1987 + $0x1e8] sm:$0xff]
        %v2050 = vld [vmem:[%s1987 + $0x1f0] sm:$0xff]
        %v2051 = vld [vmem:[%s1987 + $0x1f8] sm:$0xff]
        %v2052 = vld [vmem:[%s1987 + $0x200] sm:$0xff]
        %v2053 = vld [vmem:[%s1987 + $0x208] sm:$0xff]
        %v2054 = vld [vmem:[%s1987 + $0x210] sm:$0xff]
        %v2055 = vld [vmem:[%s1987 + $0x218] sm:$0xff]
        %v2056 = vld [vmem:[%s1987 + $0x220] sm:$0xff]
        %v2057 = vld [vmem:[%s1987 + $0x228] sm:$0xff]
        %v2058 = vld [vmem:[%s1987 + $0x230] sm:$0xff]
        %v2059 = vld [vmem:[%s1987 + $0x238] sm:$0xff]
        %v2060 = vld [vmem:[%s1987 + $0x240] sm:$0xff]
        %v2061 = vld [vmem:[%s1987 + $0x248] sm:$0xff]
        %v2062 = vld [vmem:[%s1987 + $0x250] sm:$0xff]
        %v2063 = vld [vmem:[%s1987 + $0x258] sm:$0xff]
        %v2064 = vld [vmem:[%s1987 + $0x260] sm:$0xff]
        %v2065 = vld [vmem:[%s1987 + $0x268] sm:$0xff]
        %v2066 = vld [vmem:[%s1987 + $0x270] sm:$0xff]
        %v2067 = vld [vmem:[%s1987 + $0x278] sm:$0xff]
        %v2068 = vld [vmem:[%s1987 + $0x280] sm:$0xff]
        %v2069 = vld [vmem:[%s1987 + $0x288] sm:$0xff]
        %v2070 = vld [vmem:[%s1987 + $0x290] sm:$0xff]
        %v2071 = vld [vmem:[%s1987 + $0x298] sm:$0xff]
        %v2072 = vld [vmem:[%s1987 + $0x2a0] sm:$0xff]
        %v2073 = vld [vmem:[%s1987 + $0x2a8] sm:$0xff]
        %v2074 = vld [vmem:[%s1987 + $0x2b0] sm:$0xff]
        %v2075 = vld [vmem:[%s1987 + $0x2b8] sm:$0xff]
        %v2076 = vld [vmem:[%s1987 + $0x2c0] sm:$0xff]
        %v2077 = vld [vmem:[%s1987 + $0x2c8] sm:$0xff]
        %v2078 = vld [vmem:[%s1987 + $0x2d0] sm:$0xff]
        %v2079 = vld [vmem:[%s1987 + $0x2d8] sm:$0xff]
        %v2080 = vld [vmem:[%s1987 + $0x2e0] sm:$0xff]
        %v2081 = vld [vmem:[%s1987 + $0x2e8] sm:$0xff]
        %v2082 = vld [vmem:[%s1987 + $0x2f0] sm:$0xff]
        %v2083 = vld [vmem:[%s1987 + $0x2f8] sm:$0xff]
        %s2084 = scalar_lea.vmem [#allocation9], 768
        %v2085 = vld [vmem:[%s2084] sm:$0xff]
        %v2086 = vld [vmem:[%s2084 + $0x8] sm:$0xff]
        %v2087 = vld [vmem:[%s2084 + $0x10] sm:$0xff]
        %v2088 = vld [vmem:[%s2084 + $0x18] sm:$0xff]
        %v2089 = vld [vmem:[%s2084 + $0x20] sm:$0xff]
        %v2090 = vld [vmem:[%s2084 + $0x28] sm:$0xff]
        %v2091 = vld [vmem:[%s2084 + $0x30] sm:$0xff]
        %v2092 = vld [vmem:[%s2084 + $0x38] sm:$0xff]
        %v2093 = vld [vmem:[%s2084 + $0x40] sm:$0xff]
        %v2094 = vld [vmem:[%s2084 + $0x48] sm:$0xff]
        %v2095 = vld [vmem:[%s2084 + $0x50] sm:$0xff]
        %v2096 = vld [vmem:[%s2084 + $0x58] sm:$0xff]
        %v2097 = vld [vmem:[%s2084 + $0x60] sm:$0xff]
        %v2098 = vld [vmem:[%s2084 + $0x68] sm:$0xff]
        %v2099 = vld [vmem:[%s2084 + $0x70] sm:$0xff]
        %v2100 = vld [vmem:[%s2084 + $0x78] sm:$0xff]
        %v2101 = vld [vmem:[%s2084 + $0x80] sm:$0xff]
        %v2102 = vld [vmem:[%s2084 + $0x88] sm:$0xff]
        %v2103 = vld [vmem:[%s2084 + $0x90] sm:$0xff]
        %v2104 = vld [vmem:[%s2084 + $0x98] sm:$0xff]
        %v2105 = vld [vmem:[%s2084 + $0xa0] sm:$0xff]
        %v2106 = vld [vmem:[%s2084 + $0xa8] sm:$0xff]
        %v2107 = vld [vmem:[%s2084 + $0xb0] sm:$0xff]
        %v2108 = vld [vmem:[%s2084 + $0xb8] sm:$0xff]
        %v2109 = vld [vmem:[%s2084 + $0xc0] sm:$0xff]
        %v2110 = vld [vmem:[%s2084 + $0xc8] sm:$0xff]
        %v2111 = vld [vmem:[%s2084 + $0xd0] sm:$0xff]
        %v2112 = vld [vmem:[%s2084 + $0xd8] sm:$0xff]
        %v2113 = vld [vmem:[%s2084 + $0xe0] sm:$0xff]
        %v2114 = vld [vmem:[%s2084 + $0xe8] sm:$0xff]
        %v2115 = vld [vmem:[%s2084 + $0xf0] sm:$0xff]
        %v2116 = vld [vmem:[%s2084 + $0xf8] sm:$0xff]
        %v2117 = vld [vmem:[%s2084 + $0x100] sm:$0xff]
        %v2118 = vld [vmem:[%s2084 + $0x108] sm:$0xff]
        %v2119 = vld [vmem:[%s2084 + $0x110] sm:$0xff]
        %v2120 = vld [vmem:[%s2084 + $0x118] sm:$0xff]
        %v2121 = vld [vmem:[%s2084 + $0x120] sm:$0xff]
        %v2122 = vld [vmem:[%s2084 + $0x128] sm:$0xff]
        %v2123 = vld [vmem:[%s2084 + $0x130] sm:$0xff]
        %v2124 = vld [vmem:[%s2084 + $0x138] sm:$0xff]
        %v2125 = vld [vmem:[%s2084 + $0x140] sm:$0xff]
        %v2126 = vld [vmem:[%s2084 + $0x148] sm:$0xff]
        %v2127 = vld [vmem:[%s2084 + $0x150] sm:$0xff]
        %v2128 = vld [vmem:[%s2084 + $0x158] sm:$0xff]
        %v2129 = vld [vmem:[%s2084 + $0x160] sm:$0xff]
        %v2130 = vld [vmem:[%s2084 + $0x168] sm:$0xff]
        %v2131 = vld [vmem:[%s2084 + $0x170] sm:$0xff]
        %v2132 = vld [vmem:[%s2084 + $0x178] sm:$0xff]
        %v2133 = vld [vmem:[%s2084 + $0x180] sm:$0xff]
        %v2134 = vld [vmem:[%s2084 + $0x188] sm:$0xff]
        %v2135 = vld [vmem:[%s2084 + $0x190] sm:$0xff]
        %v2136 = vld [vmem:[%s2084 + $0x198] sm:$0xff]
        %v2137 = vld [vmem:[%s2084 + $0x1a0] sm:$0xff]
        %v2138 = vld [vmem:[%s2084 + $0x1a8] sm:$0xff]
        %v2139 = vld [vmem:[%s2084 + $0x1b0] sm:$0xff]
        %v2140 = vld [vmem:[%s2084 + $0x1b8] sm:$0xff]
        %v2141 = vld [vmem:[%s2084 + $0x1c0] sm:$0xff]
        %v2142 = vld [vmem:[%s2084 + $0x1c8] sm:$0xff]
        %v2143 = vld [vmem:[%s2084 + $0x1d0] sm:$0xff]
        %v2144 = vld [vmem:[%s2084 + $0x1d8] sm:$0xff]
        %v2145 = vld [vmem:[%s2084 + $0x1e0] sm:$0xff]
        %v2146 = vld [vmem:[%s2084 + $0x1e8] sm:$0xff]
        %v2147 = vld [vmem:[%s2084 + $0x1f0] sm:$0xff]
        %v2148 = vld [vmem:[%s2084 + $0x1f8] sm:$0xff]
        %v2149 = vld [vmem:[%s2084 + $0x200] sm:$0xff]
        %v2150 = vld [vmem:[%s2084 + $0x208] sm:$0xff]
        %v2151 = vld [vmem:[%s2084 + $0x210] sm:$0xff]
        %v2152 = vld [vmem:[%s2084 + $0x218] sm:$0xff]
        %v2153 = vld [vmem:[%s2084 + $0x220] sm:$0xff]
        %v2154 = vld [vmem:[%s2084 + $0x228] sm:$0xff]
        %v2155 = vld [vmem:[%s2084 + $0x230] sm:$0xff]
        %v2156 = vld [vmem:[%s2084 + $0x238] sm:$0xff]
        %v2157 = vld [vmem:[%s2084 + $0x240] sm:$0xff]
        %v2158 = vld [vmem:[%s2084 + $0x248] sm:$0xff]
        %v2159 = vld [vmem:[%s2084 + $0x250] sm:$0xff]
        %v2160 = vld [vmem:[%s2084 + $0x258] sm:$0xff]
        %v2161 = vld [vmem:[%s2084 + $0x260] sm:$0xff]
        %v2162 = vld [vmem:[%s2084 + $0x268] sm:$0xff]
        %v2163 = vld [vmem:[%s2084 + $0x270] sm:$0xff]
        %v2164 = vld [vmem:[%s2084 + $0x278] sm:$0xff]
        %v2165 = vld [vmem:[%s2084 + $0x280] sm:$0xff]
        %v2166 = vld [vmem:[%s2084 + $0x288] sm:$0xff]
        %v2167 = vld [vmem:[%s2084 + $0x290] sm:$0xff]
        %v2168 = vld [vmem:[%s2084 + $0x298] sm:$0xff]
        %v2169 = vld [vmem:[%s2084 + $0x2a0] sm:$0xff]
        %v2170 = vld [vmem:[%s2084 + $0x2a8] sm:$0xff]
        %v2171 = vld [vmem:[%s2084 + $0x2b0] sm:$0xff]
        %v2172 = vld [vmem:[%s2084 + $0x2b8] sm:$0xff]
        %v2173 = vld [vmem:[%s2084 + $0x2c0] sm:$0xff]
        %v2174 = vld [vmem:[%s2084 + $0x2c8] sm:$0xff]
        %v2175 = vld [vmem:[%s2084 + $0x2d0] sm:$0xff]
        %v2176 = vld [vmem:[%s2084 + $0x2d8] sm:$0xff]
        %v2177 = vld [vmem:[%s2084 + $0x2e0] sm:$0xff]
        %v2178 = vld [vmem:[%s2084 + $0x2e8] sm:$0xff]
        %v2179 = vld [vmem:[%s2084 + $0x2f0] sm:$0xff]
        %v2180 = vld [vmem:[%s2084 + $0x2f8] sm:$0xff]
        %v2185 = vrot.slane %v1887, 1
        %v2186 = vrot.slane %v1889, 1
        %v2187 = vsel %vm636, %v2185, %v2186
        %v2188 = vrot.slane %v1888, 1
        %v2189 = vrot.slane %v1890, 1
        %v2190 = vsel %vm636, %v2188, %v2189
        %vm2192 = vcmask 523264
        %v2193 = vsel %vm2192, %v2190, 0
        %2195 = vmatprep.subr.mxu0 %v2146
        %2196 = vmatpush1.msra.mxu0 %v2145
        %2197 = vmatprep.subr.mxu0 %v2142
        %2198 = vmatpush1.msra.mxu0 %v2141
        %2199 = vmatprep.subr.mxu0 %v2138
        %2200 = vmatpush1.msra.mxu0 %v2137
        %2201 = vmatprep.subr.mxu0 %v2134
        %2202 = vmatpush1.msra.mxu0 %v2133
        %2203 = vmatprep.subr.mxu0 %v2130
        %2204 = vmatpush1.msra.mxu0 %v2129
        %2205 = vmatprep.subr.mxu0 %v2126
        %2206 = vmatpush1.msra.mxu0 %v2125
        %2207 = vmatprep.subr.mxu0 %v2122
        %2208 = vmatpush1.msra.mxu0 %v2121
        %2209 = vmatprep.subr.mxu0 %v2118
        %2210 = vmatpush1.msra.mxu0 %v2117
        %2211 = vmatprep.subr.mxu0 %v2114
        %2212 = vmatpush1.msra.mxu0 %v2113
        %2213 = vmatprep.subr.mxu0 %v2110
        %2214 = vmatpush1.msra.mxu0 %v2109
        %2215 = vmatprep.subr.mxu0 %v2106
        %2216 = vmatpush1.msra.mxu0 %v2105
        %2217 = vmatprep.subr.mxu0 %v2102
        %2218 = vmatpush1.msra.mxu0 %v2101
        %2219 = vmatprep.subr.mxu0 %v2098
        %2220 = vmatpush1.msra.mxu0 %v2097
        %2221 = vmatprep.subr.mxu0 %v2094
        %2222 = vmatpush1.msra.mxu0 %v2093
        %2223 = vmatprep.subr.mxu0 %v2090
        %2224 = vmatpush1.msra.mxu0 %v2089
        %2225 = vmatprep.subr.mxu0 %v2086
        %2226 = vmatpush1.msra.mxu0 %v2085
        %2227 = vmatprep.subr.mxu0 0.0
        %2228 = vmatpush2.msra.mxu0 0.0
        %2229 = vmatprep.subr.mxu0 0.0
        %2230 = vmatpush2.msra.mxu0 0.0
        %2231 = vmatprep.subr.mxu0 0.0
        %2232 = vmatpush2.msra.mxu0 0.0
        %2233 = vmatprep.subr.mxu0 0.0
        %2234 = vmatpush2.msra.mxu0 0.0
        %2235 = vmatprep.subr.mxu0 0.0
        %2236 = vmatpush2.msra.mxu0 0.0
        %2237 = vmatprep.subr.mxu0 0.0
        %2238 = vmatpush2.msra.mxu0 0.0
        %2239 = vmatprep.subr.mxu0 0.0
        %2240 = vmatpush2.msra.mxu0 0.0
        %2241 = vmatprep.subr.mxu0 0.0
        %2242 = vmatpush2.msra.mxu0 0.0
        %2243 = vmatprep.subr.mxu0 %v2178
        %2244 = vmatpush2.msra.mxu0 %v2177
        %2245 = vmatprep.subr.mxu0 %v2174
        %2246 = vmatpush2.msra.mxu0 %v2173
        %2247 = vmatprep.subr.mxu0 %v2170
        %2248 = vmatpush2.msra.mxu0 %v2169
        %2249 = vmatprep.subr.mxu0 %v2166
        %2250 = vmatpush2.msra.mxu0 %v2165
        %2251 = vmatprep.subr.mxu0 %v2162
        %2252 = vmatpush2.msra.mxu0 %v2161
        %2253 = vmatprep.subr.mxu0 %v2158
        %2254 = vmatpush2.msra.mxu0 %v2157
        %2255 = vmatprep.subr.mxu0 %v2154
        %2256 = vmatpush2.msra.mxu0 %v2153
        %2257 = vmatprep.subr.mxu0 %v2150
        %2258 = vmatpush2.msra.mxu0 %v2149
        %2259 = vmatprep.mubr.f32.mxu0 %v2193
        %2260 = vmatmul.mubr.f32.gmra.mxu0 %v2187
        %v2261 = vpop.f32.mrf.mxu0
        %v2262 = vadd.f32 0.0, %v2261
        %v2263 = vpop.f32.mrf.mxu0
        %v2264 = vadd.f32 0.0, %v2263
        %2265 = vdwg.mxu0
        %2266 = vmatprep.subr.mxu0 %v2148
        %2267 = vmatpush1.msra.mxu0 %v2147
        %2268 = vmatprep.subr.mxu0 %v2144
        %2269 = vmatpush1.msra.mxu0 %v2143
        %2270 = vmatprep.subr.mxu0 %v2140
        %2271 = vmatpush1.msra.mxu0 %v2139
        %2272 = vmatprep.subr.mxu0 %v2136
        %2273 = vmatpush1.msra.mxu0 %v2135
        %2274 = vmatprep.subr.mxu0 %v2132
        %2275 = vmatpush1.msra.mxu0 %v2131
        %2276 = vmatprep.subr.mxu0 %v2128
        %2277 = vmatpush1.msra.mxu0 %v2127
        %2278 = vmatprep.subr.mxu0 %v2124
        %2279 = vmatpush1.msra.mxu0 %v2123
        %2280 = vmatprep.subr.mxu0 %v2120
        %2281 = vmatpush1.msra.mxu0 %v2119
        %2282 = vmatprep.subr.mxu0 %v2116
        %2283 = vmatpush1.msra.mxu0 %v2115
        %2284 = vmatprep.subr.mxu0 %v2112
        %2285 = vmatpush1.msra.mxu0 %v2111
        %2286 = vmatprep.subr.mxu0 %v2108
        %2287 = vmatpush1.msra.mxu0 %v2107
        %2288 = vmatprep.subr.mxu0 %v2104
        %2289 = vmatpush1.msra.mxu0 %v2103
        %2290 = vmatprep.subr.mxu0 %v2100
        %2291 = vmatpush1.msra.mxu0 %v2099
        %2292 = vmatprep.subr.mxu0 %v2096
        %2293 = vmatpush1.msra.mxu0 %v2095
        %2294 = vmatprep.subr.mxu0 %v2092
        %2295 = vmatpush1.msra.mxu0 %v2091
        %2296 = vmatprep.subr.mxu0 %v2088
        %2297 = vmatpush1.msra.mxu0 %v2087
        %2298 = vmatprep.subr.mxu0 0.0
        %2299 = vmatpush2.msra.mxu0 0.0
        %2300 = vmatprep.subr.mxu0 0.0
        %2301 = vmatpush2.msra.mxu0 0.0
        %2302 = vmatprep.subr.mxu0 0.0
        %2303 = vmatpush2.msra.mxu0 0.0
        %2304 = vmatprep.subr.mxu0 0.0
        %2305 = vmatpush2.msra.mxu0 0.0
        %2306 = vmatprep.subr.mxu0 0.0
        %2307 = vmatpush2.msra.mxu0 0.0
        %2308 = vmatprep.subr.mxu0 0.0
        %2309 = vmatpush2.msra.mxu0 0.0
        %2310 = vmatprep.subr.mxu0 0.0
        %2311 = vmatpush2.msra.mxu0 0.0
        %2312 = vmatprep.subr.mxu0 0.0
        %2313 = vmatpush2.msra.mxu0 0.0
        %2314 = vmatprep.subr.mxu0 %v2180
        %2315 = vmatpush2.msra.mxu0 %v2179
        %2316 = vmatprep.subr.mxu0 %v2176
        %2317 = vmatpush2.msra.mxu0 %v2175
        %2318 = vmatprep.subr.mxu0 %v2172
        %2319 = vmatpush2.msra.mxu0 %v2171
        %2320 = vmatprep.subr.mxu0 %v2168
        %2321 = vmatpush2.msra.mxu0 %v2167
        %2322 = vmatprep.subr.mxu0 %v2164
        %2323 = vmatpush2.msra.mxu0 %v2163
        %2324 = vmatprep.subr.mxu0 %v2160
        %2325 = vmatpush2.msra.mxu0 %v2159
        %2326 = vmatprep.subr.mxu0 %v2156
        %2327 = vmatpush2.msra.mxu0 %v2155
        %2328 = vmatprep.subr.mxu0 %v2152
        %2329 = vmatpush2.msra.mxu0 %v2151
        %2330 = vmatprep.mubr.f32.mxu0 %v2193
        %2331 = vmatmul.mubr.f32.gmra.mxu0 %v2187
        %v2332 = vpop.f32.mrf.mxu0
        %v2333 = vadd.f32 0.0, %v2332
        %v2334 = vpop.f32.mrf.mxu0
        %v2335 = vadd.f32 0.0, %v2334
        %2336 = vdwg.mxu0
        %s2337 = scalar_lea.vmem [#allocation9], 4608
        %v2338 = vld [vmem:[%s2337] sm:$0xff]
        %v2339 = vld [vmem:[%s2337 + $0x8] sm:$0xff]
        %v2340 = vld [vmem:[%s2337 + $0x10] sm:$0xff]
        %v2341 = vld [vmem:[%s2337 + $0x18] sm:$0xff]
        %v2342 = vld [vmem:[%s2337 + $0x20] sm:$0xff]
        %v2343 = vld [vmem:[%s2337 + $0x28] sm:$0xff]
        %v2344 = vld [vmem:[%s2337 + $0x30] sm:$0xff]
        %v2345 = vld [vmem:[%s2337 + $0x38] sm:$0xff]
        %v2346 = vld [vmem:[%s2337 + $0x40] sm:$0xff]
        %v2347 = vld [vmem:[%s2337 + $0x48] sm:$0xff]
        %v2348 = vld [vmem:[%s2337 + $0x50] sm:$0xff]
        %v2349 = vld [vmem:[%s2337 + $0x58] sm:$0xff]
        %v2350 = vld [vmem:[%s2337 + $0x60] sm:$0xff]
        %v2351 = vld [vmem:[%s2337 + $0x68] sm:$0xff]
        %v2352 = vld [vmem:[%s2337 + $0x70] sm:$0xff]
        %v2353 = vld [vmem:[%s2337 + $0x78] sm:$0xff]
        %v2354 = vld [vmem:[%s2337 + $0x80] sm:$0xff]
        %v2355 = vld [vmem:[%s2337 + $0x88] sm:$0xff]
        %v2356 = vld [vmem:[%s2337 + $0x90] sm:$0xff]
        %v2357 = vld [vmem:[%s2337 + $0x98] sm:$0xff]
        %v2358 = vld [vmem:[%s2337 + $0xa0] sm:$0xff]
        %v2359 = vld [vmem:[%s2337 + $0xa8] sm:$0xff]
        %v2360 = vld [vmem:[%s2337 + $0xb0] sm:$0xff]
        %v2361 = vld [vmem:[%s2337 + $0xb8] sm:$0xff]
        %v2362 = vld [vmem:[%s2337 + $0xc0] sm:$0xff]
        %v2363 = vld [vmem:[%s2337 + $0xc8] sm:$0xff]
        %v2364 = vld [vmem:[%s2337 + $0xd0] sm:$0xff]
        %v2365 = vld [vmem:[%s2337 + $0xd8] sm:$0xff]
        %v2366 = vld [vmem:[%s2337 + $0xe0] sm:$0xff]
        %v2367 = vld [vmem:[%s2337 + $0xe8] sm:$0xff]
        %v2368 = vld [vmem:[%s2337 + $0xf0] sm:$0xff]
        %v2369 = vld [vmem:[%s2337 + $0xf8] sm:$0xff]
        %v2370 = vld [vmem:[%s2337 + $0x100] sm:$0xff]
        %v2371 = vld [vmem:[%s2337 + $0x108] sm:$0xff]
        %v2372 = vld [vmem:[%s2337 + $0x110] sm:$0xff]
        %v2373 = vld [vmem:[%s2337 + $0x118] sm:$0xff]
        %v2374 = vld [vmem:[%s2337 + $0x120] sm:$0xff]
        %v2375 = vld [vmem:[%s2337 + $0x128] sm:$0xff]
        %v2376 = vld [vmem:[%s2337 + $0x130] sm:$0xff]
        %v2377 = vld [vmem:[%s2337 + $0x138] sm:$0xff]
        %v2378 = vld [vmem:[%s2337 + $0x140] sm:$0xff]
        %v2379 = vld [vmem:[%s2337 + $0x148] sm:$0xff]
        %v2380 = vld [vmem:[%s2337 + $0x150] sm:$0xff]
        %v2381 = vld [vmem:[%s2337 + $0x158] sm:$0xff]
        %v2382 = vld [vmem:[%s2337 + $0x160] sm:$0xff]
        %v2383 = vld [vmem:[%s2337 + $0x168] sm:$0xff]
        %v2384 = vld [vmem:[%s2337 + $0x170] sm:$0xff]
        %v2385 = vld [vmem:[%s2337 + $0x178] sm:$0xff]
        %v2386 = vld [vmem:[%s2337 + $0x180] sm:$0xff]
        %v2387 = vld [vmem:[%s2337 + $0x188] sm:$0xff]
        %v2388 = vld [vmem:[%s2337 + $0x190] sm:$0xff]
        %v2389 = vld [vmem:[%s2337 + $0x198] sm:$0xff]
        %v2390 = vld [vmem:[%s2337 + $0x1a0] sm:$0xff]
        %v2391 = vld [vmem:[%s2337 + $0x1a8] sm:$0xff]
        %v2392 = vld [vmem:[%s2337 + $0x1b0] sm:$0xff]
        %v2393 = vld [vmem:[%s2337 + $0x1b8] sm:$0xff]
        %v2394 = vld [vmem:[%s2337 + $0x1c0] sm:$0xff]
        %v2395 = vld [vmem:[%s2337 + $0x1c8] sm:$0xff]
        %v2396 = vld [vmem:[%s2337 + $0x1d0] sm:$0xff]
        %v2397 = vld [vmem:[%s2337 + $0x1d8] sm:$0xff]
        %v2398 = vld [vmem:[%s2337 + $0x1e0] sm:$0xff]
        %v2399 = vld [vmem:[%s2337 + $0x1e8] sm:$0xff]
        %v2400 = vld [vmem:[%s2337 + $0x1f0] sm:$0xff]
        %v2401 = vld [vmem:[%s2337 + $0x1f8] sm:$0xff]
        %v2402 = vld [vmem:[%s2337 + $0x200] sm:$0xff]
        %v2403 = vld [vmem:[%s2337 + $0x208] sm:$0xff]
        %v2404 = vld [vmem:[%s2337 + $0x210] sm:$0xff]
        %v2405 = vld [vmem:[%s2337 + $0x218] sm:$0xff]
        %v2406 = vld [vmem:[%s2337 + $0x220] sm:$0xff]
        %v2407 = vld [vmem:[%s2337 + $0x228] sm:$0xff]
        %v2408 = vld [vmem:[%s2337 + $0x230] sm:$0xff]
        %v2409 = vld [vmem:[%s2337 + $0x238] sm:$0xff]
        %v2410 = vld [vmem:[%s2337 + $0x240] sm:$0xff]
        %v2411 = vld [vmem:[%s2337 + $0x248] sm:$0xff]
        %v2412 = vld [vmem:[%s2337 + $0x250] sm:$0xff]
        %v2413 = vld [vmem:[%s2337 + $0x258] sm:$0xff]
        %v2414 = vld [vmem:[%s2337 + $0x260] sm:$0xff]
        %v2415 = vld [vmem:[%s2337 + $0x268] sm:$0xff]
        %v2416 = vld [vmem:[%s2337 + $0x270] sm:$0xff]
        %v2417 = vld [vmem:[%s2337 + $0x278] sm:$0xff]
        %v2418 = vld [vmem:[%s2337 + $0x280] sm:$0xff]
        %v2419 = vld [vmem:[%s2337 + $0x288] sm:$0xff]
        %v2420 = vld [vmem:[%s2337 + $0x290] sm:$0xff]
        %v2421 = vld [vmem:[%s2337 + $0x298] sm:$0xff]
        %v2422 = vld [vmem:[%s2337 + $0x2a0] sm:$0xff]
        %v2423 = vld [vmem:[%s2337 + $0x2a8] sm:$0xff]
        %v2424 = vld [vmem:[%s2337 + $0x2b0] sm:$0xff]
        %v2425 = vld [vmem:[%s2337 + $0x2b8] sm:$0xff]
        %v2426 = vld [vmem:[%s2337 + $0x2c0] sm:$0xff]
        %v2427 = vld [vmem:[%s2337 + $0x2c8] sm:$0xff]
        %v2428 = vld [vmem:[%s2337 + $0x2d0] sm:$0xff]
        %v2429 = vld [vmem:[%s2337 + $0x2d8] sm:$0xff]
        %v2430 = vld [vmem:[%s2337 + $0x2e0] sm:$0xff]
        %v2431 = vld [vmem:[%s2337 + $0x2e8] sm:$0xff]
        %v2432 = vld [vmem:[%s2337 + $0x2f0] sm:$0xff]
        %v2433 = vld [vmem:[%s2337 + $0x2f8] sm:$0xff]
        %2434 = vmatprep.subr.mxu0 %v2399
        %2435 = vmatpush1.msra.mxu0 %v2398
        %2436 = vmatprep.subr.mxu0 %v2395
        %2437 = vmatpush1.msra.mxu0 %v2394
        %2438 = vmatprep.subr.mxu0 %v2391
        %2439 = vmatpush1.msra.mxu0 %v2390
        %2440 = vmatprep.subr.mxu0 %v2387
        %2441 = vmatpush1.msra.mxu0 %v2386
        %2442 = vmatprep.subr.mxu0 %v2383
        %2443 = vmatpush1.msra.mxu0 %v2382
        %2444 = vmatprep.subr.mxu0 %v2379
        %2445 = vmatpush1.msra.mxu0 %v2378
        %2446 = vmatprep.subr.mxu0 %v2375
        %2447 = vmatpush1.msra.mxu0 %v2374
        %2448 = vmatprep.subr.mxu0 %v2371
        %2449 = vmatpush1.msra.mxu0 %v2370
        %2450 = vmatprep.subr.mxu0 %v2367
        %2451 = vmatpush1.msra.mxu0 %v2366
        %2452 = vmatprep.subr.mxu0 %v2363
        %2453 = vmatpush1.msra.mxu0 %v2362
        %2454 = vmatprep.subr.mxu0 %v2359
        %2455 = vmatpush1.msra.mxu0 %v2358
        %2456 = vmatprep.subr.mxu0 %v2355
        %2457 = vmatpush1.msra.mxu0 %v2354
        %2458 = vmatprep.subr.mxu0 %v2351
        %2459 = vmatpush1.msra.mxu0 %v2350
        %2460 = vmatprep.subr.mxu0 %v2347
        %2461 = vmatpush1.msra.mxu0 %v2346
        %2462 = vmatprep.subr.mxu0 %v2343
        %2463 = vmatpush1.msra.mxu0 %v2342
        %2464 = vmatprep.subr.mxu0 %v2339
        %2465 = vmatpush1.msra.mxu0 %v2338
        %2466 = vmatprep.subr.mxu0 0.0
        %2467 = vmatpush2.msra.mxu0 0.0
        %2468 = vmatprep.subr.mxu0 0.0
        %2469 = vmatpush2.msra.mxu0 0.0
        %2470 = vmatprep.subr.mxu0 0.0
        %2471 = vmatpush2.msra.mxu0 0.0
        %2472 = vmatprep.subr.mxu0 0.0
        %2473 = vmatpush2.msra.mxu0 0.0
        %2474 = vmatprep.subr.mxu0 0.0
        %2475 = vmatpush2.msra.mxu0 0.0
        %2476 = vmatprep.subr.mxu0 0.0
        %2477 = vmatpush2.msra.mxu0 0.0
        %2478 = vmatprep.subr.mxu0 0.0
        %2479 = vmatpush2.msra.mxu0 0.0
        %2480 = vmatprep.subr.mxu0 0.0
        %2481 = vmatpush2.msra.mxu0 0.0
        %2482 = vmatprep.subr.mxu0 %v2431
        %2483 = vmatpush2.msra.mxu0 %v2430
        %2484 = vmatprep.subr.mxu0 %v2427
        %2485 = vmatpush2.msra.mxu0 %v2426
        %2486 = vmatprep.subr.mxu0 %v2423
        %2487 = vmatpush2.msra.mxu0 %v2422
        %2488 = vmatprep.subr.mxu0 %v2419
        %2489 = vmatpush2.msra.mxu0 %v2418
        %2490 = vmatprep.subr.mxu0 %v2415
        %2491 = vmatpush2.msra.mxu0 %v2414
        %2492 = vmatprep.subr.mxu0 %v2411
        %2493 = vmatpush2.msra.mxu0 %v2410
        %2494 = vmatprep.subr.mxu0 %v2407
        %2495 = vmatpush2.msra.mxu0 %v2406
        %2496 = vmatprep.subr.mxu0 %v2403
        %2497 = vmatpush2.msra.mxu0 %v2402
        %2498 = vmatprep.mubr.f32.mxu0 %v2193
        %2499 = vmatmul.mubr.f32.gmra.mxu0 %v2187
        %v2500 = vpop.f32.mrf.mxu0
        %v2501 = vadd.f32 0.0, %v2500
        %v2502 = vpop.f32.mrf.mxu0
        %v2503 = vadd.f32 0.0, %v2502
        %2504 = vdwg.mxu0
        %2505 = vmatprep.subr.mxu0 %v2401
        %2506 = vmatpush1.msra.mxu0 %v2400
        %2507 = vmatprep.subr.mxu0 %v2397
        %2508 = vmatpush1.msra.mxu0 %v2396
        %2509 = vmatprep.subr.mxu0 %v2393
        %2510 = vmatpush1.msra.mxu0 %v2392
        %2511 = vmatprep.subr.mxu0 %v2389
        %2512 = vmatpush1.msra.mxu0 %v2388
        %2513 = vmatprep.subr.mxu0 %v2385
        %2514 = vmatpush1.msra.mxu0 %v2384
        %2515 = vmatprep.subr.mxu0 %v2381
        %2516 = vmatpush1.msra.mxu0 %v2380
        %2517 = vmatprep.subr.mxu0 %v2377
        %2518 = vmatpush1.msra.mxu0 %v2376
        %2519 = vmatprep.subr.mxu0 %v2373
        %2520 = vmatpush1.msra.mxu0 %v2372
        %2521 = vmatprep.subr.mxu0 %v2369
        %2522 = vmatpush1.msra.mxu0 %v2368
        %2523 = vmatprep.subr.mxu0 %v2365
        %2524 = vmatpush1.msra.mxu0 %v2364
        %2525 = vmatprep.subr.mxu0 %v2361
        %2526 = vmatpush1.msra.mxu0 %v2360
        %2527 = vmatprep.subr.mxu0 %v2357
        %2528 = vmatpush1.msra.mxu0 %v2356
        %2529 = vmatprep.subr.mxu0 %v2353
        %2530 = vmatpush1.msra.mxu0 %v2352
        %2531 = vmatprep.subr.mxu0 %v2349
        %2532 = vmatpush1.msra.mxu0 %v2348
        %2533 = vmatprep.subr.mxu0 %v2345
        %2534 = vmatpush1.msra.mxu0 %v2344
        %2535 = vmatprep.subr.mxu0 %v2341
        %2536 = vmatpush1.msra.mxu0 %v2340
        %2537 = vmatprep.subr.mxu0 0.0
        %2538 = vmatpush2.msra.mxu0 0.0
        %2539 = vmatprep.subr.mxu0 0.0
        %2540 = vmatpush2.msra.mxu0 0.0
        %2541 = vmatprep.subr.mxu0 0.0
        %2542 = vmatpush2.msra.mxu0 0.0
        %2543 = vmatprep.subr.mxu0 0.0
        %2544 = vmatpush2.msra.mxu0 0.0
        %2545 = vmatprep.subr.mxu0 0.0
        %2546 = vmatpush2.msra.mxu0 0.0
        %2547 = vmatprep.subr.mxu0 0.0
        %2548 = vmatpush2.msra.mxu0 0.0
        %2549 = vmatprep.subr.mxu0 0.0
        %2550 = vmatpush2.msra.mxu0 0.0
        %2551 = vmatprep.subr.mxu0 0.0
        %2552 = vmatpush2.msra.mxu0 0.0
        %2553 = vmatprep.subr.mxu0 %v2433
        %2554 = vmatpush2.msra.mxu0 %v2432
        %2555 = vmatprep.subr.mxu0 %v2429
        %2556 = vmatpush2.msra.mxu0 %v2428
        %2557 = vmatprep.subr.mxu0 %v2425
        %2558 = vmatpush2.msra.mxu0 %v2424
        %2559 = vmatprep.subr.mxu0 %v2421
        %2560 = vmatpush2.msra.mxu0 %v2420
        %2561 = vmatprep.subr.mxu0 %v2417
        %2562 = vmatpush2.msra.mxu0 %v2416
        %2563 = vmatprep.subr.mxu0 %v2413
        %2564 = vmatpush2.msra.mxu0 %v2412
        %2565 = vmatprep.subr.mxu0 %v2409
        %2566 = vmatpush2.msra.mxu0 %v2408
        %2567 = vmatprep.subr.mxu0 %v2405
        %2568 = vmatpush2.msra.mxu0 %v2404
        %2569 = vmatprep.mubr.f32.mxu0 %v2193
        %2570 = vmatmul.mubr.f32.gmra.mxu0 %v2187
        %v2571 = vpop.f32.mrf.mxu0
        %v2572 = vadd.f32 0.0, %v2571
        %v2573 = vpop.f32.mrf.mxu0
        %v2574 = vadd.f32 0.0, %v2573
        %2575 = vdwg.mxu0
        %v2576 = vsel %vm2192, %v1888, 0
        %2578 = vmatprep.subr.mxu0 %v1952
        %2579 = vmatpush1.msra.mxu0 %v1951
        %2580 = vmatprep.subr.mxu0 %v1948
        %2581 = vmatpush1.msra.mxu0 %v1947
        %2582 = vmatprep.subr.mxu0 %v1944
        %2583 = vmatpush1.msra.mxu0 %v1943
        %2584 = vmatprep.subr.mxu0 %v1940
        %2585 = vmatpush1.msra.mxu0 %v1939
        %2586 = vmatprep.subr.mxu0 %v1936
        %2587 = vmatpush1.msra.mxu0 %v1935
        %2588 = vmatprep.subr.mxu0 %v1932
        %2589 = vmatpush1.msra.mxu0 %v1931
        %2590 = vmatprep.subr.mxu0 %v1928
        %2591 = vmatpush1.msra.mxu0 %v1927
        %2592 = vmatprep.subr.mxu0 %v1924
        %2593 = vmatpush1.msra.mxu0 %v1923
        %2594 = vmatprep.subr.mxu0 %v1920
        %2595 = vmatpush1.msra.mxu0 %v1919
        %2596 = vmatprep.subr.mxu0 %v1916
        %2597 = vmatpush1.msra.mxu0 %v1915
        %2598 = vmatprep.subr.mxu0 %v1912
        %2599 = vmatpush1.msra.mxu0 %v1911
        %2600 = vmatprep.subr.mxu0 %v1908
        %2601 = vmatpush1.msra.mxu0 %v1907
        %2602 = vmatprep.subr.mxu0 %v1904
        %2603 = vmatpush1.msra.mxu0 %v1903
        %2604 = vmatprep.subr.mxu0 %v1900
        %2605 = vmatpush1.msra.mxu0 %v1899
        %2606 = vmatprep.subr.mxu0 %v1896
        %2607 = vmatpush1.msra.mxu0 %v1895
        %2608 = vmatprep.subr.mxu0 %v1892
        %2609 = vmatpush1.msra.mxu0 %v1891
        %2610 = vmatprep.subr.mxu0 0.0
        %2611 = vmatpush2.msra.mxu0 0.0
        %2612 = vmatprep.subr.mxu0 0.0
        %2613 = vmatpush2.msra.mxu0 0.0
        %2614 = vmatprep.subr.mxu0 0.0
        %2615 = vmatpush2.msra.mxu0 0.0
        %2616 = vmatprep.subr.mxu0 0.0
        %2617 = vmatpush2.msra.mxu0 0.0
        %2618 = vmatprep.subr.mxu0 0.0
        %2619 = vmatpush2.msra.mxu0 0.0
        %2620 = vmatprep.subr.mxu0 0.0
        %2621 = vmatpush2.msra.mxu0 0.0
        %2622 = vmatprep.subr.mxu0 0.0
        %2623 = vmatpush2.msra.mxu0 0.0
        %2624 = vmatprep.subr.mxu0 0.0
        %2625 = vmatpush2.msra.mxu0 0.0
        %2626 = vmatprep.subr.mxu0 %v1984
        %2627 = vmatpush2.msra.mxu0 %v1983
        %2628 = vmatprep.subr.mxu0 %v1980
        %2629 = vmatpush2.msra.mxu0 %v1979
        %2630 = vmatprep.subr.mxu0 %v1976
        %2631 = vmatpush2.msra.mxu0 %v1975
        %2632 = vmatprep.subr.mxu0 %v1972
        %2633 = vmatpush2.msra.mxu0 %v1971
        %2634 = vmatprep.subr.mxu0 %v1968
        %2635 = vmatpush2.msra.mxu0 %v1967
        %2636 = vmatprep.subr.mxu0 %v1964
        %2637 = vmatpush2.msra.mxu0 %v1963
        %2638 = vmatprep.subr.mxu0 %v1960
        %2639 = vmatpush2.msra.mxu0 %v1959
        %2640 = vmatprep.subr.mxu0 %v1956
        %2641 = vmatpush2.msra.mxu0 %v1955
        %2642 = vmatprep.mubr.f32.mxu0 %v2576
        %2643 = vmatmul.mubr.f32.gmra.mxu0 %v1887
        %v2644 = vpop.f32.mrf.mxu0
        %v2645 = vadd.f32 %v2262, %v2644
        %v2646 = vpop.f32.mrf.mxu0
        %v2647 = vadd.f32 %v2264, %v2646
        %2648 = vdwg.mxu0
        %2649 = vmatprep.subr.mxu0 %v1954
        %2650 = vmatpush1.msra.mxu0 %v1953
        %2651 = vmatprep.subr.mxu0 %v1950
        %2652 = vmatpush1.msra.mxu0 %v1949
        %2653 = vmatprep.subr.mxu0 %v1946
        %2654 = vmatpush1.msra.mxu0 %v1945
        %2655 = vmatprep.subr.mxu0 %v1942
        %2656 = vmatpush1.msra.mxu0 %v1941
        %2657 = vmatprep.subr.mxu0 %v1938
        %2658 = vmatpush1.msra.mxu0 %v1937
        %2659 = vmatprep.subr.mxu0 %v1934
        %2660 = vmatpush1.msra.mxu0 %v1933
        %2661 = vmatprep.subr.mxu0 %v1930
        %2662 = vmatpush1.msra.mxu0 %v1929
        %2663 = vmatprep.subr.mxu0 %v1926
        %2664 = vmatpush1.msra.mxu0 %v1925
        %2665 = vmatprep.subr.mxu0 %v1922
        %2666 = vmatpush1.msra.mxu0 %v1921
        %2667 = vmatprep.subr.mxu0 %v1918
        %2668 = vmatpush1.msra.mxu0 %v1917
        %2669 = vmatprep.subr.mxu0 %v1914
        %2670 = vmatpush1.msra.mxu0 %v1913
        %2671 = vmatprep.subr.mxu0 %v1910
        %2672 = vmatpush1.msra.mxu0 %v1909
        %2673 = vmatprep.subr.mxu0 %v1906
        %2674 = vmatpush1.msra.mxu0 %v1905
        %2675 = vmatprep.subr.mxu0 %v1902
        %2676 = vmatpush1.msra.mxu0 %v1901
        %2677 = vmatprep.subr.mxu0 %v1898
        %2678 = vmatpush1.msra.mxu0 %v1897
        %2679 = vmatprep.subr.mxu0 %v1894
        %2680 = vmatpush1.msra.mxu0 %v1893
        %2681 = vmatprep.subr.mxu0 0.0
        %2682 = vmatpush2.msra.mxu0 0.0
        %2683 = vmatprep.subr.mxu0 0.0
        %2684 = vmatpush2.msra.mxu0 0.0
        %2685 = vmatprep.subr.mxu0 0.0
        %2686 = vmatpush2.msra.mxu0 0.0
        %2687 = vmatprep.subr.mxu0 0.0
        %2688 = vmatpush2.msra.mxu0 0.0
        %2689 = vmatprep.subr.mxu0 0.0
        %2690 = vmatpush2.msra.mxu0 0.0
        %2691 = vmatprep.subr.mxu0 0.0
        %2692 = vmatpush2.msra.mxu0 0.0
        %2693 = vmatprep.subr.mxu0 0.0
        %2694 = vmatpush2.msra.mxu0 0.0
        %2695 = vmatprep.subr.mxu0 0.0
        %2696 = vmatpush2.msra.mxu0 0.0
        %2697 = vmatprep.subr.mxu0 %v1986
        %2698 = vmatpush2.msra.mxu0 %v1985
        %2699 = vmatprep.subr.mxu0 %v1982
        %2700 = vmatpush2.msra.mxu0 %v1981
        %2701 = vmatprep.subr.mxu0 %v1978
        %2702 = vmatpush2.msra.mxu0 %v1977
        %2703 = vmatprep.subr.mxu0 %v1974
        %2704 = vmatpush2.msra.mxu0 %v1973
        %2705 = vmatprep.subr.mxu0 %v1970
        %2706 = vmatpush2.msra.mxu0 %v1969
        %2707 = vmatprep.subr.mxu0 %v1966
        %2708 = vmatpush2.msra.mxu0 %v1965
        %2709 = vmatprep.subr.mxu0 %v1962
        %2710 = vmatpush2.msra.mxu0 %v1961
        %2711 = vmatprep.subr.mxu0 %v1958
        %2712 = vmatpush2.msra.mxu0 %v1957
        %2713 = vmatprep.mubr.f32.mxu0 %v2576
        %2714 = vmatmul.mubr.f32.gmra.mxu0 %v1887
        %v2715 = vpop.f32.mrf.mxu0
        %v2716 = vadd.f32 %v2333, %v2715
        %v2717 = vpop.f32.mrf.mxu0
        %v2718 = vadd.f32 %v2335, %v2717
        %2719 = vdwg.mxu0
        %2720 = vmatprep.subr.mxu0 %v2049
        %2721 = vmatpush1.msra.mxu0 %v2048
        %2722 = vmatprep.subr.mxu0 %v2045
        %2723 = vmatpush1.msra.mxu0 %v2044
        %2724 = vmatprep.subr.mxu0 %v2041
        %2725 = vmatpush1.msra.mxu0 %v2040
        %2726 = vmatprep.subr.mxu0 %v2037
        %2727 = vmatpush1.msra.mxu0 %v2036
        %2728 = vmatprep.subr.mxu0 %v2033
        %2729 = vmatpush1.msra.mxu0 %v2032
        %2730 = vmatprep.subr.mxu0 %v2029
        %2731 = vmatpush1.msra.mxu0 %v2028
        %2732 = vmatprep.subr.mxu0 %v2025
        %2733 = vmatpush1.msra.mxu0 %v2024
        %2734 = vmatprep.subr.mxu0 %v2021
        %2735 = vmatpush1.msra.mxu0 %v2020
        %2736 = vmatprep.subr.mxu0 %v2017
        %2737 = vmatpush1.msra.mxu0 %v2016
        %2738 = vmatprep.subr.mxu0 %v2013
        %2739 = vmatpush1.msra.mxu0 %v2012
        %2740 = vmatprep.subr.mxu0 %v2009
        %2741 = vmatpush1.msra.mxu0 %v2008
        %2742 = vmatprep.subr.mxu0 %v2005
        %2743 = vmatpush1.msra.mxu0 %v2004
        %2744 = vmatprep.subr.mxu0 %v2001
        %2745 = vmatpush1.msra.mxu0 %v2000
        %2746 = vmatprep.subr.mxu0 %v1997
        %2747 = vmatpush1.msra.mxu0 %v1996
        %2748 = vmatprep.subr.mxu0 %v1993
        %2749 = vmatpush1.msra.mxu0 %v1992
        %2750 = vmatprep.subr.mxu0 %v1989
        %2751 = vmatpush1.msra.mxu0 %v1988
        %2752 = vmatprep.subr.mxu0 0.0
        %2753 = vmatpush2.msra.mxu0 0.0
        %2754 = vmatprep.subr.mxu0 0.0
        %2755 = vmatpush2.msra.mxu0 0.0
        %2756 = vmatprep.subr.mxu0 0.0
        %2757 = vmatpush2.msra.mxu0 0.0
        %2758 = vmatprep.subr.mxu0 0.0
        %2759 = vmatpush2.msra.mxu0 0.0
        %2760 = vmatprep.subr.mxu0 0.0
        %2761 = vmatpush2.msra.mxu0 0.0
        %2762 = vmatprep.subr.mxu0 0.0
        %2763 = vmatpush2.msra.mxu0 0.0
        %2764 = vmatprep.subr.mxu0 0.0
        %2765 = vmatpush2.msra.mxu0 0.0
        %2766 = vmatprep.subr.mxu0 0.0
        %2767 = vmatpush2.msra.mxu0 0.0
        %2768 = vmatprep.subr.mxu0 %v2081
        %2769 = vmatpush2.msra.mxu0 %v2080
        %2770 = vmatprep.subr.mxu0 %v2077
        %2771 = vmatpush2.msra.mxu0 %v2076
        %2772 = vmatprep.subr.mxu0 %v2073
        %2773 = vmatpush2.msra.mxu0 %v2072
        %2774 = vmatprep.subr.mxu0 %v2069
        %2775 = vmatpush2.msra.mxu0 %v2068
        %2776 = vmatprep.subr.mxu0 %v2065
        %2777 = vmatpush2.msra.mxu0 %v2064
        %2778 = vmatprep.subr.mxu0 %v2061
        %2779 = vmatpush2.msra.mxu0 %v2060
        %2780 = vmatprep.subr.mxu0 %v2057
        %2781 = vmatpush2.msra.mxu0 %v2056
        %2782 = vmatprep.subr.mxu0 %v2053
        %2783 = vmatpush2.msra.mxu0 %v2052
        %2784 = vmatprep.mubr.f32.mxu0 %v2576
        %2785 = vmatmul.mubr.f32.gmra.mxu0 %v1887
        %v2786 = vpop.f32.mrf.mxu0
        %v2787 = vadd.f32 %v2501, %v2786
        %v2788 = vpop.f32.mrf.mxu0
        %v2789 = vadd.f32 %v2503, %v2788
        %2790 = vdwg.mxu0
        %2791 = vmatprep.subr.mxu0 %v2051
        %2792 = vmatpush1.msra.mxu0 %v2050
        %2793 = vmatprep.subr.mxu0 %v2047
        %2794 = vmatpush1.msra.mxu0 %v2046
        %2795 = vmatprep.subr.mxu0 %v2043
        %2796 = vmatpush1.msra.mxu0 %v2042
        %2797 = vmatprep.subr.mxu0 %v2039
        %2798 = vmatpush1.msra.mxu0 %v2038
        %2799 = vmatprep.subr.mxu0 %v2035
        %2800 = vmatpush1.msra.mxu0 %v2034
        %2801 = vmatprep.subr.mxu0 %v2031
        %2802 = vmatpush1.msra.mxu0 %v2030
        %2803 = vmatprep.subr.mxu0 %v2027
        %2804 = vmatpush1.msra.mxu0 %v2026
        %2805 = vmatprep.subr.mxu0 %v2023
        %2806 = vmatpush1.msra.mxu0 %v2022
        %2807 = vmatprep.subr.mxu0 %v2019
        %2808 = vmatpush1.msra.mxu0 %v2018
        %2809 = vmatprep.subr.mxu0 %v2015
        %2810 = vmatpush1.msra.mxu0 %v2014
        %2811 = vmatprep.subr.mxu0 %v2011
        %2812 = vmatpush1.msra.mxu0 %v2010
        %2813 = vmatprep.subr.mxu0 %v2007
        %2814 = vmatpush1.msra.mxu0 %v2006
        %2815 = vmatprep.subr.mxu0 %v2003
        %2816 = vmatpush1.msra.mxu0 %v2002
        %2817 = vmatprep.subr.mxu0 %v1999
        %2818 = vmatpush1.msra.mxu0 %v1998
        %2819 = vmatprep.subr.mxu0 %v1995
        %2820 = vmatpush1.msra.mxu0 %v1994
        %2821 = vmatprep.subr.mxu0 %v1991
        %2822 = vmatpush1.msra.mxu0 %v1990
        %2823 = vmatprep.subr.mxu0 0.0
        %2824 = vmatpush2.msra.mxu0 0.0
        %2825 = vmatprep.subr.mxu0 0.0
        %2826 = vmatpush2.msra.mxu0 0.0
        %2827 = vmatprep.subr.mxu0 0.0
        %2828 = vmatpush2.msra.mxu0 0.0
        %2829 = vmatprep.subr.mxu0 0.0
        %2830 = vmatpush2.msra.mxu0 0.0
        %2831 = vmatprep.subr.mxu0 0.0
        %2832 = vmatpush2.msra.mxu0 0.0
        %2833 = vmatprep.subr.mxu0 0.0
        %2834 = vmatpush2.msra.mxu0 0.0
        %2835 = vmatprep.subr.mxu0 0.0
        %2836 = vmatpush2.msra.mxu0 0.0
        %2837 = vmatprep.subr.mxu0 0.0
        %2838 = vmatpush2.msra.mxu0 0.0
        %2839 = vmatprep.subr.mxu0 %v2083
        %2840 = vmatpush2.msra.mxu0 %v2082
        %2841 = vmatprep.subr.mxu0 %v2079
        %2842 = vmatpush2.msra.mxu0 %v2078
        %2843 = vmatprep.subr.mxu0 %v2075
        %2844 = vmatpush2.msra.mxu0 %v2074
        %2845 = vmatprep.subr.mxu0 %v2071
        %2846 = vmatpush2.msra.mxu0 %v2070
        %2847 = vmatprep.subr.mxu0 %v2067
        %2848 = vmatpush2.msra.mxu0 %v2066
        %2849 = vmatprep.subr.mxu0 %v2063
        %2850 = vmatpush2.msra.mxu0 %v2062
        %2851 = vmatprep.subr.mxu0 %v2059
        %2852 = vmatpush2.msra.mxu0 %v2058
        %2853 = vmatprep.subr.mxu0 %v2055
        %2854 = vmatpush2.msra.mxu0 %v2054
        %2855 = vmatprep.mubr.f32.mxu0 %v2576
        %2856 = vmatmul.mubr.f32.gmra.mxu0 %v1887
        %v2857 = vpop.f32.mrf.mxu0
        %v2858 = vadd.f32 %v2572, %v2857
        %v2859 = vpop.f32.mrf.mxu0
        %v2860 = vadd.f32 %v2574, %v2859
        %2861 = vdwg.mxu0
        %s2862 = scalar_lea.vmem [#allocation9], 1536
        %v2863 = vld [vmem:[%s2862] sm:$0xff]
        %v2864 = vld [vmem:[%s2862 + $0x8] sm:$0xff]
        %v2865 = vld [vmem:[%s2862 + $0x10] sm:$0xff]
        %v2866 = vld [vmem:[%s2862 + $0x18] sm:$0xff]
        %v2867 = vld [vmem:[%s2862 + $0x20] sm:$0xff]
        %v2868 = vld [vmem:[%s2862 + $0x28] sm:$0xff]
        %v2869 = vld [vmem:[%s2862 + $0x30] sm:$0xff]
        %v2870 = vld [vmem:[%s2862 + $0x38] sm:$0xff]
        %v2871 = vld [vmem:[%s2862 + $0x40] sm:$0xff]
        %v2872 = vld [vmem:[%s2862 + $0x48] sm:$0xff]
        %v2873 = vld [vmem:[%s2862 + $0x50] sm:$0xff]
        %v2874 = vld [vmem:[%s2862 + $0x58] sm:$0xff]
        %v2875 = vld [vmem:[%s2862 + $0x60] sm:$0xff]
        %v2876 = vld [vmem:[%s2862 + $0x68] sm:$0xff]
        %v2877 = vld [vmem:[%s2862 + $0x70] sm:$0xff]
        %v2878 = vld [vmem:[%s2862 + $0x78] sm:$0xff]
        %v2879 = vld [vmem:[%s2862 + $0x80] sm:$0xff]
        %v2880 = vld [vmem:[%s2862 + $0x88] sm:$0xff]
        %v2881 = vld [vmem:[%s2862 + $0x90] sm:$0xff]
        %v2882 = vld [vmem:[%s2862 + $0x98] sm:$0xff]
        %v2883 = vld [vmem:[%s2862 + $0xa0] sm:$0xff]
        %v2884 = vld [vmem:[%s2862 + $0xa8] sm:$0xff]
        %v2885 = vld [vmem:[%s2862 + $0xb0] sm:$0xff]
        %v2886 = vld [vmem:[%s2862 + $0xb8] sm:$0xff]
        %v2887 = vld [vmem:[%s2862 + $0xc0] sm:$0xff]
        %v2888 = vld [vmem:[%s2862 + $0xc8] sm:$0xff]
        %v2889 = vld [vmem:[%s2862 + $0xd0] sm:$0xff]
        %v2890 = vld [vmem:[%s2862 + $0xd8] sm:$0xff]
        %v2891 = vld [vmem:[%s2862 + $0xe0] sm:$0xff]
        %v2892 = vld [vmem:[%s2862 + $0xe8] sm:$0xff]
        %v2893 = vld [vmem:[%s2862 + $0xf0] sm:$0xff]
        %v2894 = vld [vmem:[%s2862 + $0xf8] sm:$0xff]
        %v2895 = vld [vmem:[%s2862 + $0x100] sm:$0xff]
        %v2896 = vld [vmem:[%s2862 + $0x108] sm:$0xff]
        %v2897 = vld [vmem:[%s2862 + $0x110] sm:$0xff]
        %v2898 = vld [vmem:[%s2862 + $0x118] sm:$0xff]
        %v2899 = vld [vmem:[%s2862 + $0x120] sm:$0xff]
        %v2900 = vld [vmem:[%s2862 + $0x128] sm:$0xff]
        %v2901 = vld [vmem:[%s2862 + $0x130] sm:$0xff]
        %v2902 = vld [vmem:[%s2862 + $0x138] sm:$0xff]
        %v2903 = vld [vmem:[%s2862 + $0x140] sm:$0xff]
        %v2904 = vld [vmem:[%s2862 + $0x148] sm:$0xff]
        %v2905 = vld [vmem:[%s2862 + $0x150] sm:$0xff]
        %v2906 = vld [vmem:[%s2862 + $0x158] sm:$0xff]
        %v2907 = vld [vmem:[%s2862 + $0x160] sm:$0xff]
        %v2908 = vld [vmem:[%s2862 + $0x168] sm:$0xff]
        %v2909 = vld [vmem:[%s2862 + $0x170] sm:$0xff]
        %v2910 = vld [vmem:[%s2862 + $0x178] sm:$0xff]
        %v2911 = vld [vmem:[%s2862 + $0x180] sm:$0xff]
        %v2912 = vld [vmem:[%s2862 + $0x188] sm:$0xff]
        %v2913 = vld [vmem:[%s2862 + $0x190] sm:$0xff]
        %v2914 = vld [vmem:[%s2862 + $0x198] sm:$0xff]
        %v2915 = vld [vmem:[%s2862 + $0x1a0] sm:$0xff]
        %v2916 = vld [vmem:[%s2862 + $0x1a8] sm:$0xff]
        %v2917 = vld [vmem:[%s2862 + $0x1b0] sm:$0xff]
        %v2918 = vld [vmem:[%s2862 + $0x1b8] sm:$0xff]
        %v2919 = vld [vmem:[%s2862 + $0x1c0] sm:$0xff]
        %v2920 = vld [vmem:[%s2862 + $0x1c8] sm:$0xff]
        %v2921 = vld [vmem:[%s2862 + $0x1d0] sm:$0xff]
        %v2922 = vld [vmem:[%s2862 + $0x1d8] sm:$0xff]
        %v2923 = vld [vmem:[%s2862 + $0x1e0] sm:$0xff]
        %v2924 = vld [vmem:[%s2862 + $0x1e8] sm:$0xff]
        %v2925 = vld [vmem:[%s2862 + $0x1f0] sm:$0xff]
        %v2926 = vld [vmem:[%s2862 + $0x1f8] sm:$0xff]
        %v2927 = vld [vmem:[%s2862 + $0x200] sm:$0xff]
        %v2928 = vld [vmem:[%s2862 + $0x208] sm:$0xff]
        %v2929 = vld [vmem:[%s2862 + $0x210] sm:$0xff]
        %v2930 = vld [vmem:[%s2862 + $0x218] sm:$0xff]
        %v2931 = vld [vmem:[%s2862 + $0x220] sm:$0xff]
        %v2932 = vld [vmem:[%s2862 + $0x228] sm:$0xff]
        %v2933 = vld [vmem:[%s2862 + $0x230] sm:$0xff]
        %v2934 = vld [vmem:[%s2862 + $0x238] sm:$0xff]
        %v2935 = vld [vmem:[%s2862 + $0x240] sm:$0xff]
        %v2936 = vld [vmem:[%s2862 + $0x248] sm:$0xff]
        %v2937 = vld [vmem:[%s2862 + $0x250] sm:$0xff]
        %v2938 = vld [vmem:[%s2862 + $0x258] sm:$0xff]
        %v2939 = vld [vmem:[%s2862 + $0x260] sm:$0xff]
        %v2940 = vld [vmem:[%s2862 + $0x268] sm:$0xff]
        %v2941 = vld [vmem:[%s2862 + $0x270] sm:$0xff]
        %v2942 = vld [vmem:[%s2862 + $0x278] sm:$0xff]
        %v2943 = vld [vmem:[%s2862 + $0x280] sm:$0xff]
        %v2944 = vld [vmem:[%s2862 + $0x288] sm:$0xff]
        %v2945 = vld [vmem:[%s2862 + $0x290] sm:$0xff]
        %v2946 = vld [vmem:[%s2862 + $0x298] sm:$0xff]
        %v2947 = vld [vmem:[%s2862 + $0x2a0] sm:$0xff]
        %v2948 = vld [vmem:[%s2862 + $0x2a8] sm:$0xff]
        %v2949 = vld [vmem:[%s2862 + $0x2b0] sm:$0xff]
        %v2950 = vld [vmem:[%s2862 + $0x2b8] sm:$0xff]
        %v2951 = vld [vmem:[%s2862 + $0x2c0] sm:$0xff]
        %v2952 = vld [vmem:[%s2862 + $0x2c8] sm:$0xff]
        %v2953 = vld [vmem:[%s2862 + $0x2d0] sm:$0xff]
        %v2954 = vld [vmem:[%s2862 + $0x2d8] sm:$0xff]
        %v2955 = vld [vmem:[%s2862 + $0x2e0] sm:$0xff]
        %v2956 = vld [vmem:[%s2862 + $0x2e8] sm:$0xff]
        %v2957 = vld [vmem:[%s2862 + $0x2f0] sm:$0xff]
        %v2958 = vld [vmem:[%s2862 + $0x2f8] sm:$0xff]
        %v2959 = vrot.slane %v1887, 2
        %v2960 = vrot.slane %v1889, 2
        %v2961 = vsel %vm1032, %v2959, %v2960
        %v2962 = vrot.slane %v1888, 2
        %v2963 = vrot.slane %v1890, 2
        %v2964 = vsel %vm1032, %v2962, %v2963
        %v2966 = vsel %vm2192, %v2964, 0
        %2968 = vmatprep.subr.mxu0 %v2924
        %2969 = vmatpush1.msra.mxu0 %v2923
        %2970 = vmatprep.subr.mxu0 %v2920
        %2971 = vmatpush1.msra.mxu0 %v2919
        %2972 = vmatprep.subr.mxu0 %v2916
        %2973 = vmatpush1.msra.mxu0 %v2915
        %2974 = vmatprep.subr.mxu0 %v2912
        %2975 = vmatpush1.msra.mxu0 %v2911
        %2976 = vmatprep.subr.mxu0 %v2908
        %2977 = vmatpush1.msra.mxu0 %v2907
        %2978 = vmatprep.subr.mxu0 %v2904
        %2979 = vmatpush1.msra.mxu0 %v2903
        %2980 = vmatprep.subr.mxu0 %v2900
        %2981 = vmatpush1.msra.mxu0 %v2899
        %2982 = vmatprep.subr.mxu0 %v2896
        %2983 = vmatpush1.msra.mxu0 %v2895
        %2984 = vmatprep.subr.mxu0 %v2892
        %2985 = vmatpush1.msra.mxu0 %v2891
        %2986 = vmatprep.subr.mxu0 %v2888
        %2987 = vmatpush1.msra.mxu0 %v2887
        %2988 = vmatprep.subr.mxu0 %v2884
        %2989 = vmatpush1.msra.mxu0 %v2883
        %2990 = vmatprep.subr.mxu0 %v2880
        %2991 = vmatpush1.msra.mxu0 %v2879
        %2992 = vmatprep.subr.mxu0 %v2876
        %2993 = vmatpush1.msra.mxu0 %v2875
        %2994 = vmatprep.subr.mxu0 %v2872
        %2995 = vmatpush1.msra.mxu0 %v2871
        %2996 = vmatprep.subr.mxu0 %v2868
        %2997 = vmatpush1.msra.mxu0 %v2867
        %2998 = vmatprep.subr.mxu0 %v2864
        %2999 = vmatpush1.msra.mxu0 %v2863
        %3000 = vmatprep.subr.mxu0 0.0
        %3001 = vmatpush2.msra.mxu0 0.0
        %3002 = vmatprep.subr.mxu0 0.0
        %3003 = vmatpush2.msra.mxu0 0.0
        %3004 = vmatprep.subr.mxu0 0.0
        %3005 = vmatpush2.msra.mxu0 0.0
        %3006 = vmatprep.subr.mxu0 0.0
        %3007 = vmatpush2.msra.mxu0 0.0
        %3008 = vmatprep.subr.mxu0 0.0
        %3009 = vmatpush2.msra.mxu0 0.0
        %3010 = vmatprep.subr.mxu0 0.0
        %3011 = vmatpush2.msra.mxu0 0.0
        %3012 = vmatprep.subr.mxu0 0.0
        %3013 = vmatpush2.msra.mxu0 0.0
        %3014 = vmatprep.subr.mxu0 0.0
        %3015 = vmatpush2.msra.mxu0 0.0
        %3016 = vmatprep.subr.mxu0 %v2956
        %3017 = vmatpush2.msra.mxu0 %v2955
        %3018 = vmatprep.subr.mxu0 %v2952
        %3019 = vmatpush2.msra.mxu0 %v2951
        %3020 = vmatprep.subr.mxu0 %v2948
        %3021 = vmatpush2.msra.mxu0 %v2947
        %3022 = vmatprep.subr.mxu0 %v2944
        %3023 = vmatpush2.msra.mxu0 %v2943
        %3024 = vmatprep.subr.mxu0 %v2940
        %3025 = vmatpush2.msra.mxu0 %v2939
        %3026 = vmatprep.subr.mxu0 %v2936
        %3027 = vmatpush2.msra.mxu0 %v2935
        %3028 = vmatprep.subr.mxu0 %v2932
        %3029 = vmatpush2.msra.mxu0 %v2931
        %3030 = vmatprep.subr.mxu0 %v2928
        %3031 = vmatpush2.msra.mxu0 %v2927
        %3032 = vmatprep.mubr.f32.mxu0 %v2966
        %3033 = vmatmul.mubr.f32.gmra.mxu0 %v2961
        %v3034 = vpop.f32.mrf.mxu0
        %v3035 = vadd.f32 0.0, %v3034
        %v3036 = vpop.f32.mrf.mxu0
        %v3037 = vadd.f32 0.0, %v3036
        %3038 = vdwg.mxu0
        %3039 = vmatprep.subr.mxu0 %v2926
        %3040 = vmatpush1.msra.mxu0 %v2925
        %3041 = vmatprep.subr.mxu0 %v2922
        %3042 = vmatpush1.msra.mxu0 %v2921
        %3043 = vmatprep.subr.mxu0 %v2918
        %3044 = vmatpush1.msra.mxu0 %v2917
        %3045 = vmatprep.subr.mxu0 %v2914
        %3046 = vmatpush1.msra.mxu0 %v2913
        %3047 = vmatprep.subr.mxu0 %v2910
        %3048 = vmatpush1.msra.mxu0 %v2909
        %3049 = vmatprep.subr.mxu0 %v2906
        %3050 = vmatpush1.msra.mxu0 %v2905
        %3051 = vmatprep.subr.mxu0 %v2902
        %3052 = vmatpush1.msra.mxu0 %v2901
        %3053 = vmatprep.subr.mxu0 %v2898
        %3054 = vmatpush1.msra.mxu0 %v2897
        %3055 = vmatprep.subr.mxu0 %v2894
        %3056 = vmatpush1.msra.mxu0 %v2893
        %3057 = vmatprep.subr.mxu0 %v2890
        %3058 = vmatpush1.msra.mxu0 %v2889
        %3059 = vmatprep.subr.mxu0 %v2886
        %3060 = vmatpush1.msra.mxu0 %v2885
        %3061 = vmatprep.subr.mxu0 %v2882
        %3062 = vmatpush1.msra.mxu0 %v2881
        %3063 = vmatprep.subr.mxu0 %v2878
        %3064 = vmatpush1.msra.mxu0 %v2877
        %3065 = vmatprep.subr.mxu0 %v2874
        %3066 = vmatpush1.msra.mxu0 %v2873
        %3067 = vmatprep.subr.mxu0 %v2870
        %3068 = vmatpush1.msra.mxu0 %v2869
        %3069 = vmatprep.subr.mxu0 %v2866
        %3070 = vmatpush1.msra.mxu0 %v2865
        %3071 = vmatprep.subr.mxu0 0.0
        %3072 = vmatpush2.msra.mxu0 0.0
        %3073 = vmatprep.subr.mxu0 0.0
        %3074 = vmatpush2.msra.mxu0 0.0
        %3075 = vmatprep.subr.mxu0 0.0
        %3076 = vmatpush2.msra.mxu0 0.0
        %3077 = vmatprep.subr.mxu0 0.0
        %3078 = vmatpush2.msra.mxu0 0.0
        %3079 = vmatprep.subr.mxu0 0.0
        %3080 = vmatpush2.msra.mxu0 0.0
        %3081 = vmatprep.subr.mxu0 0.0
        %3082 = vmatpush2.msra.mxu0 0.0
        %3083 = vmatprep.subr.mxu0 0.0
        %3084 = vmatpush2.msra.mxu0 0.0
        %3085 = vmatprep.subr.mxu0 0.0
        %3086 = vmatpush2.msra.mxu0 0.0
        %3087 = vmatprep.subr.mxu0 %v2958
        %3088 = vmatpush2.msra.mxu0 %v2957
        %3089 = vmatprep.subr.mxu0 %v2954
        %3090 = vmatpush2.msra.mxu0 %v2953
        %3091 = vmatprep.subr.mxu0 %v2950
        %3092 = vmatpush2.msra.mxu0 %v2949
        %3093 = vmatprep.subr.mxu0 %v2946
        %3094 = vmatpush2.msra.mxu0 %v2945
        %3095 = vmatprep.subr.mxu0 %v2942
        %3096 = vmatpush2.msra.mxu0 %v2941
        %3097 = vmatprep.subr.mxu0 %v2938
        %3098 = vmatpush2.msra.mxu0 %v2937
        %3099 = vmatprep.subr.mxu0 %v2934
        %3100 = vmatpush2.msra.mxu0 %v2933
        %3101 = vmatprep.subr.mxu0 %v2930
        %3102 = vmatpush2.msra.mxu0 %v2929
        %3103 = vmatprep.mubr.f32.mxu0 %v2966
        %3104 = vmatmul.mubr.f32.gmra.mxu0 %v2961
        %v3105 = vpop.f32.mrf.mxu0
        %v3106 = vadd.f32 0.0, %v3105
        %v3107 = vpop.f32.mrf.mxu0
        %v3108 = vadd.f32 0.0, %v3107
        %3109 = vdwg.mxu0
        %s3110 = scalar_lea.vmem [#allocation9], 5376
        %v3111 = vld [vmem:[%s3110] sm:$0xff]
        %v3112 = vld [vmem:[%s3110 + $0x8] sm:$0xff]
        %v3113 = vld [vmem:[%s3110 + $0x10] sm:$0xff]
        %v3114 = vld [vmem:[%s3110 + $0x18] sm:$0xff]
        %v3115 = vld [vmem:[%s3110 + $0x20] sm:$0xff]
        %v3116 = vld [vmem:[%s3110 + $0x28] sm:$0xff]
        %v3117 = vld [vmem:[%s3110 + $0x30] sm:$0xff]
        %v3118 = vld [vmem:[%s3110 + $0x38] sm:$0xff]
        %v3119 = vld [vmem:[%s3110 + $0x40] sm:$0xff]
        %v3120 = vld [vmem:[%s3110 + $0x48] sm:$0xff]
        %v3121 = vld [vmem:[%s3110 + $0x50] sm:$0xff]
        %v3122 = vld [vmem:[%s3110 + $0x58] sm:$0xff]
        %v3123 = vld [vmem:[%s3110 + $0x60] sm:$0xff]
        %v3124 = vld [vmem:[%s3110 + $0x68] sm:$0xff]
        %v3125 = vld [vmem:[%s3110 + $0x70] sm:$0xff]
        %v3126 = vld [vmem:[%s3110 + $0x78] sm:$0xff]
        %v3127 = vld [vmem:[%s3110 + $0x80] sm:$0xff]
        %v3128 = vld [vmem:[%s3110 + $0x88] sm:$0xff]
        %v3129 = vld [vmem:[%s3110 + $0x90] sm:$0xff]
        %v3130 = vld [vmem:[%s3110 + $0x98] sm:$0xff]
        %v3131 = vld [vmem:[%s3110 + $0xa0] sm:$0xff]
        %v3132 = vld [vmem:[%s3110 + $0xa8] sm:$0xff]
        %v3133 = vld [vmem:[%s3110 + $0xb0] sm:$0xff]
        %v3134 = vld [vmem:[%s3110 + $0xb8] sm:$0xff]
        %v3135 = vld [vmem:[%s3110 + $0xc0] sm:$0xff]
        %v3136 = vld [vmem:[%s3110 + $0xc8] sm:$0xff]
        %v3137 = vld [vmem:[%s3110 + $0xd0] sm:$0xff]
        %v3138 = vld [vmem:[%s3110 + $0xd8] sm:$0xff]
        %v3139 = vld [vmem:[%s3110 + $0xe0] sm:$0xff]
        %v3140 = vld [vmem:[%s3110 + $0xe8] sm:$0xff]
        %v3141 = vld [vmem:[%s3110 + $0xf0] sm:$0xff]
        %v3142 = vld [vmem:[%s3110 + $0xf8] sm:$0xff]
        %v3143 = vld [vmem:[%s3110 + $0x100] sm:$0xff]
        %v3144 = vld [vmem:[%s3110 + $0x108] sm:$0xff]
        %v3145 = vld [vmem:[%s3110 + $0x110] sm:$0xff]
        %v3146 = vld [vmem:[%s3110 + $0x118] sm:$0xff]
        %v3147 = vld [vmem:[%s3110 + $0x120] sm:$0xff]
        %v3148 = vld [vmem:[%s3110 + $0x128] sm:$0xff]
        %v3149 = vld [vmem:[%s3110 + $0x130] sm:$0xff]
        %v3150 = vld [vmem:[%s3110 + $0x138] sm:$0xff]
        %v3151 = vld [vmem:[%s3110 + $0x140] sm:$0xff]
        %v3152 = vld [vmem:[%s3110 + $0x148] sm:$0xff]
        %v3153 = vld [vmem:[%s3110 + $0x150] sm:$0xff]
        %v3154 = vld [vmem:[%s3110 + $0x158] sm:$0xff]
        %v3155 = vld [vmem:[%s3110 + $0x160] sm:$0xff]
        %v3156 = vld [vmem:[%s3110 + $0x168] sm:$0xff]
        %v3157 = vld [vmem:[%s3110 + $0x170] sm:$0xff]
        %v3158 = vld [vmem:[%s3110 + $0x178] sm:$0xff]
        %v3159 = vld [vmem:[%s3110 + $0x180] sm:$0xff]
        %v3160 = vld [vmem:[%s3110 + $0x188] sm:$0xff]
        %v3161 = vld [vmem:[%s3110 + $0x190] sm:$0xff]
        %v3162 = vld [vmem:[%s3110 + $0x198] sm:$0xff]
        %v3163 = vld [vmem:[%s3110 + $0x1a0] sm:$0xff]
        %v3164 = vld [vmem:[%s3110 + $0x1a8] sm:$0xff]
        %v3165 = vld [vmem:[%s3110 + $0x1b0] sm:$0xff]
        %v3166 = vld [vmem:[%s3110 + $0x1b8] sm:$0xff]
        %v3167 = vld [vmem:[%s3110 + $0x1c0] sm:$0xff]
        %v3168 = vld [vmem:[%s3110 + $0x1c8] sm:$0xff]
        %v3169 = vld [vmem:[%s3110 + $0x1d0] sm:$0xff]
        %v3170 = vld [vmem:[%s3110 + $0x1d8] sm:$0xff]
        %v3171 = vld [vmem:[%s3110 + $0x1e0] sm:$0xff]
        %v3172 = vld [vmem:[%s3110 + $0x1e8] sm:$0xff]
        %v3173 = vld [vmem:[%s3110 + $0x1f0] sm:$0xff]
        %v3174 = vld [vmem:[%s3110 + $0x1f8] sm:$0xff]
        %v3175 = vld [vmem:[%s3110 + $0x200] sm:$0xff]
        %v3176 = vld [vmem:[%s3110 + $0x208] sm:$0xff]
        %v3177 = vld [vmem:[%s3110 + $0x210] sm:$0xff]
        %v3178 = vld [vmem:[%s3110 + $0x218] sm:$0xff]
        %v3179 = vld [vmem:[%s3110 + $0x220] sm:$0xff]
        %v3180 = vld [vmem:[%s3110 + $0x228] sm:$0xff]
        %v3181 = vld [vmem:[%s3110 + $0x230] sm:$0xff]
        %v3182 = vld [vmem:[%s3110 + $0x238] sm:$0xff]
        %v3183 = vld [vmem:[%s3110 + $0x240] sm:$0xff]
        %v3184 = vld [vmem:[%s3110 + $0x248] sm:$0xff]
        %v3185 = vld [vmem:[%s3110 + $0x250] sm:$0xff]
        %v3186 = vld [vmem:[%s3110 + $0x258] sm:$0xff]
        %v3187 = vld [vmem:[%s3110 + $0x260] sm:$0xff]
        %v3188 = vld [vmem:[%s3110 + $0x268] sm:$0xff]
        %v3189 = vld [vmem:[%s3110 + $0x270] sm:$0xff]
        %v3190 = vld [vmem:[%s3110 + $0x278] sm:$0xff]
        %v3191 = vld [vmem:[%s3110 + $0x280] sm:$0xff]
        %v3192 = vld [vmem:[%s3110 + $0x288] sm:$0xff]
        %v3193 = vld [vmem:[%s3110 + $0x290] sm:$0xff]
        %v3194 = vld [vmem:[%s3110 + $0x298] sm:$0xff]
        %v3195 = vld [vmem:[%s3110 + $0x2a0] sm:$0xff]
        %v3196 = vld [vmem:[%s3110 + $0x2a8] sm:$0xff]
        %v3197 = vld [vmem:[%s3110 + $0x2b0] sm:$0xff]
        %v3198 = vld [vmem:[%s3110 + $0x2b8] sm:$0xff]
        %v3199 = vld [vmem:[%s3110 + $0x2c0] sm:$0xff]
        %v3200 = vld [vmem:[%s3110 + $0x2c8] sm:$0xff]
        %v3201 = vld [vmem:[%s3110 + $0x2d0] sm:$0xff]
        %v3202 = vld [vmem:[%s3110 + $0x2d8] sm:$0xff]
        %v3203 = vld [vmem:[%s3110 + $0x2e0] sm:$0xff]
        %v3204 = vld [vmem:[%s3110 + $0x2e8] sm:$0xff]
        %v3205 = vld [vmem:[%s3110 + $0x2f0] sm:$0xff]
        %v3206 = vld [vmem:[%s3110 + $0x2f8] sm:$0xff]
        %3207 = vmatprep.subr.mxu0 %v3172
        %3208 = vmatpush1.msra.mxu0 %v3171
        %3209 = vmatprep.subr.mxu0 %v3168
        %3210 = vmatpush1.msra.mxu0 %v3167
        %3211 = vmatprep.subr.mxu0 %v3164
        %3212 = vmatpush1.msra.mxu0 %v3163
        %3213 = vmatprep.subr.mxu0 %v3160
        %3214 = vmatpush1.msra.mxu0 %v3159
        %3215 = vmatprep.subr.mxu0 %v3156
        %3216 = vmatpush1.msra.mxu0 %v3155
        %3217 = vmatprep.subr.mxu0 %v3152
        %3218 = vmatpush1.msra.mxu0 %v3151
        %3219 = vmatprep.subr.mxu0 %v3148
        %3220 = vmatpush1.msra.mxu0 %v3147
        %3221 = vmatprep.subr.mxu0 %v3144
        %3222 = vmatpush1.msra.mxu0 %v3143
        %3223 = vmatprep.subr.mxu0 %v3140
        %3224 = vmatpush1.msra.mxu0 %v3139
        %3225 = vmatprep.subr.mxu0 %v3136
        %3226 = vmatpush1.msra.mxu0 %v3135
        %3227 = vmatprep.subr.mxu0 %v3132
        %3228 = vmatpush1.msra.mxu0 %v3131
        %3229 = vmatprep.subr.mxu0 %v3128
        %3230 = vmatpush1.msra.mxu0 %v3127
        %3231 = vmatprep.subr.mxu0 %v3124
        %3232 = vmatpush1.msra.mxu0 %v3123
        %3233 = vmatprep.subr.mxu0 %v3120
        %3234 = vmatpush1.msra.mxu0 %v3119
        %3235 = vmatprep.subr.mxu0 %v3116
        %3236 = vmatpush1.msra.mxu0 %v3115
        %3237 = vmatprep.subr.mxu0 %v3112
        %3238 = vmatpush1.msra.mxu0 %v3111
        %3239 = vmatprep.subr.mxu0 0.0
        %3240 = vmatpush2.msra.mxu0 0.0
        %3241 = vmatprep.subr.mxu0 0.0
        %3242 = vmatpush2.msra.mxu0 0.0
        %3243 = vmatprep.subr.mxu0 0.0
        %3244 = vmatpush2.msra.mxu0 0.0
        %3245 = vmatprep.subr.mxu0 0.0
        %3246 = vmatpush2.msra.mxu0 0.0
        %3247 = vmatprep.subr.mxu0 0.0
        %3248 = vmatpush2.msra.mxu0 0.0
        %3249 = vmatprep.subr.mxu0 0.0
        %3250 = vmatpush2.msra.mxu0 0.0
        %3251 = vmatprep.subr.mxu0 0.0
        %3252 = vmatpush2.msra.mxu0 0.0
        %3253 = vmatprep.subr.mxu0 0.0
        %3254 = vmatpush2.msra.mxu0 0.0
        %3255 = vmatprep.subr.mxu0 %v3204
        %3256 = vmatpush2.msra.mxu0 %v3203
        %3257 = vmatprep.subr.mxu0 %v3200
        %3258 = vmatpush2.msra.mxu0 %v3199
        %3259 = vmatprep.subr.mxu0 %v3196
        %3260 = vmatpush2.msra.mxu0 %v3195
        %3261 = vmatprep.subr.mxu0 %v3192
        %3262 = vmatpush2.msra.mxu0 %v3191
        %3263 = vmatprep.subr.mxu0 %v3188
        %3264 = vmatpush2.msra.mxu0 %v3187
        %3265 = vmatprep.subr.mxu0 %v3184
        %3266 = vmatpush2.msra.mxu0 %v3183
        %3267 = vmatprep.subr.mxu0 %v3180
        %3268 = vmatpush2.msra.mxu0 %v3179
        %3269 = vmatprep.subr.mxu0 %v3176
        %3270 = vmatpush2.msra.mxu0 %v3175
        %3271 = vmatprep.mubr.f32.mxu0 %v2966
        %3272 = vmatmul.mubr.f32.gmra.mxu0 %v2961
        %v3273 = vpop.f32.mrf.mxu0
        %v3274 = vadd.f32 0.0, %v3273
        %v3275 = vpop.f32.mrf.mxu0
        %v3276 = vadd.f32 0.0, %v3275
        %3277 = vdwg.mxu0
        %3278 = vmatprep.subr.mxu0 %v3174
        %3279 = vmatpush1.msra.mxu0 %v3173
        %3280 = vmatprep.subr.mxu0 %v3170
        %3281 = vmatpush1.msra.mxu0 %v3169
        %3282 = vmatprep.subr.mxu0 %v3166
        %3283 = vmatpush1.msra.mxu0 %v3165
        %3284 = vmatprep.subr.mxu0 %v3162
        %3285 = vmatpush1.msra.mxu0 %v3161
        %3286 = vmatprep.subr.mxu0 %v3158
        %3287 = vmatpush1.msra.mxu0 %v3157
        %3288 = vmatprep.subr.mxu0 %v3154
        %3289 = vmatpush1.msra.mxu0 %v3153
        %3290 = vmatprep.subr.mxu0 %v3150
        %3291 = vmatpush1.msra.mxu0 %v3149
        %3292 = vmatprep.subr.mxu0 %v3146
        %3293 = vmatpush1.msra.mxu0 %v3145
        %3294 = vmatprep.subr.mxu0 %v3142
        %3295 = vmatpush1.msra.mxu0 %v3141
        %3296 = vmatprep.subr.mxu0 %v3138
        %3297 = vmatpush1.msra.mxu0 %v3137
        %3298 = vmatprep.subr.mxu0 %v3134
        %3299 = vmatpush1.msra.mxu0 %v3133
        %3300 = vmatprep.subr.mxu0 %v3130
        %3301 = vmatpush1.msra.mxu0 %v3129
        %3302 = vmatprep.subr.mxu0 %v3126
        %3303 = vmatpush1.msra.mxu0 %v3125
        %3304 = vmatprep.subr.mxu0 %v3122
        %3305 = vmatpush1.msra.mxu0 %v3121
        %3306 = vmatprep.subr.mxu0 %v3118
        %3307 = vmatpush1.msra.mxu0 %v3117
        %3308 = vmatprep.subr.mxu0 %v3114
        %3309 = vmatpush1.msra.mxu0 %v3113
        %3310 = vmatprep.subr.mxu0 0.0
        %3311 = vmatpush2.msra.mxu0 0.0
        %3312 = vmatprep.subr.mxu0 0.0
        %3313 = vmatpush2.msra.mxu0 0.0
        %3314 = vmatprep.subr.mxu0 0.0
        %3315 = vmatpush2.msra.mxu0 0.0
        %3316 = vmatprep.subr.mxu0 0.0
        %3317 = vmatpush2.msra.mxu0 0.0
        %3318 = vmatprep.subr.mxu0 0.0
        %3319 = vmatpush2.msra.mxu0 0.0
        %3320 = vmatprep.subr.mxu0 0.0
        %3321 = vmatpush2.msra.mxu0 0.0
        %3322 = vmatprep.subr.mxu0 0.0
        %3323 = vmatpush2.msra.mxu0 0.0
        %3324 = vmatprep.subr.mxu0 0.0
        %3325 = vmatpush2.msra.mxu0 0.0
        %3326 = vmatprep.subr.mxu0 %v3206
        %3327 = vmatpush2.msra.mxu0 %v3205
        %3328 = vmatprep.subr.mxu0 %v3202
        %3329 = vmatpush2.msra.mxu0 %v3201
        %3330 = vmatprep.subr.mxu0 %v3198
        %3331 = vmatpush2.msra.mxu0 %v3197
        %3332 = vmatprep.subr.mxu0 %v3194
        %3333 = vmatpush2.msra.mxu0 %v3193
        %3334 = vmatprep.subr.mxu0 %v3190
        %3335 = vmatpush2.msra.mxu0 %v3189
        %3336 = vmatprep.subr.mxu0 %v3186
        %3337 = vmatpush2.msra.mxu0 %v3185
        %3338 = vmatprep.subr.mxu0 %v3182
        %3339 = vmatpush2.msra.mxu0 %v3181
        %3340 = vmatprep.subr.mxu0 %v3178
        %3341 = vmatpush2.msra.mxu0 %v3177
        %3342 = vmatprep.mubr.f32.mxu0 %v2966
        %3343 = vmatmul.mubr.f32.gmra.mxu0 %v2961
        %v3344 = vpop.f32.mrf.mxu0
        %v3345 = vadd.f32 0.0, %v3344
        %v3346 = vpop.f32.mrf.mxu0
        %v3347 = vadd.f32 0.0, %v3346
        %3348 = vdwg.mxu0
        %v3349 = vadd.f32 %v2645, %v3035
        %v3350 = vadd.f32 %v2647, %v3037
        %v3351 = vadd.f32 %v2716, %v3106
        %v3352 = vadd.f32 %v2718, %v3108
        %v3353 = vadd.f32 %v2787, %v3274
        %v3354 = vadd.f32 %v2789, %v3276
        %v3355 = vadd.f32 %v2858, %v3345
        %v3356 = vadd.f32 %v2860, %v3347
        %s3357 = scalar_lea.vmem [#allocation9], 2304
        %v3358 = vld [vmem:[%s3357] sm:$0xff]
        %v3359 = vld [vmem:[%s3357 + $0x8] sm:$0xff]
        %v3360 = vld [vmem:[%s3357 + $0x10] sm:$0xff]
        %v3361 = vld [vmem:[%s3357 + $0x18] sm:$0xff]
        %v3362 = vld [vmem:[%s3357 + $0x20] sm:$0xff]
        %v3363 = vld [vmem:[%s3357 + $0x28] sm:$0xff]
        %v3364 = vld [vmem:[%s3357 + $0x30] sm:$0xff]
        %v3365 = vld [vmem:[%s3357 + $0x38] sm:$0xff]
        %v3366 = vld [vmem:[%s3357 + $0x40] sm:$0xff]
        %v3367 = vld [vmem:[%s3357 + $0x48] sm:$0xff]
        %v3368 = vld [vmem:[%s3357 + $0x50] sm:$0xff]
        %v3369 = vld [vmem:[%s3357 + $0x58] sm:$0xff]
        %v3370 = vld [vmem:[%s3357 + $0x60] sm:$0xff]
        %v3371 = vld [vmem:[%s3357 + $0x68] sm:$0xff]
        %v3372 = vld [vmem:[%s3357 + $0x70] sm:$0xff]
        %v3373 = vld [vmem:[%s3357 + $0x78] sm:$0xff]
        %v3374 = vld [vmem:[%s3357 + $0x80] sm:$0xff]
        %v3375 = vld [vmem:[%s3357 + $0x88] sm:$0xff]
        %v3376 = vld [vmem:[%s3357 + $0x90] sm:$0xff]
        %v3377 = vld [vmem:[%s3357 + $0x98] sm:$0xff]
        %v3378 = vld [vmem:[%s3357 + $0xa0] sm:$0xff]
        %v3379 = vld [vmem:[%s3357 + $0xa8] sm:$0xff]
        %v3380 = vld [vmem:[%s3357 + $0xb0] sm:$0xff]
        %v3381 = vld [vmem:[%s3357 + $0xb8] sm:$0xff]
        %v3382 = vld [vmem:[%s3357 + $0xc0] sm:$0xff]
        %v3383 = vld [vmem:[%s3357 + $0xc8] sm:$0xff]
        %v3384 = vld [vmem:[%s3357 + $0xd0] sm:$0xff]
        %v3385 = vld [vmem:[%s3357 + $0xd8] sm:$0xff]
        %v3386 = vld [vmem:[%s3357 + $0xe0] sm:$0xff]
        %v3387 = vld [vmem:[%s3357 + $0xe8] sm:$0xff]
        %v3388 = vld [vmem:[%s3357 + $0xf0] sm:$0xff]
        %v3389 = vld [vmem:[%s3357 + $0xf8] sm:$0xff]
        %v3390 = vld [vmem:[%s3357 + $0x100] sm:$0xff]
        %v3391 = vld [vmem:[%s3357 + $0x108] sm:$0xff]
        %v3392 = vld [vmem:[%s3357 + $0x110] sm:$0xff]
        %v3393 = vld [vmem:[%s3357 + $0x118] sm:$0xff]
        %v3394 = vld [vmem:[%s3357 + $0x120] sm:$0xff]
        %v3395 = vld [vmem:[%s3357 + $0x128] sm:$0xff]
        %v3396 = vld [vmem:[%s3357 + $0x130] sm:$0xff]
        %v3397 = vld [vmem:[%s3357 + $0x138] sm:$0xff]
        %v3398 = vld [vmem:[%s3357 + $0x140] sm:$0xff]
        %v3399 = vld [vmem:[%s3357 + $0x148] sm:$0xff]
        %v3400 = vld [vmem:[%s3357 + $0x150] sm:$0xff]
        %v3401 = vld [vmem:[%s3357 + $0x158] sm:$0xff]
        %v3402 = vld [vmem:[%s3357 + $0x160] sm:$0xff]
        %v3403 = vld [vmem:[%s3357 + $0x168] sm:$0xff]
        %v3404 = vld [vmem:[%s3357 + $0x170] sm:$0xff]
        %v3405 = vld [vmem:[%s3357 + $0x178] sm:$0xff]
        %v3406 = vld [vmem:[%s3357 + $0x180] sm:$0xff]
        %v3407 = vld [vmem:[%s3357 + $0x188] sm:$0xff]
        %v3408 = vld [vmem:[%s3357 + $0x190] sm:$0xff]
        %v3409 = vld [vmem:[%s3357 + $0x198] sm:$0xff]
        %v3410 = vld [vmem:[%s3357 + $0x1a0] sm:$0xff]
        %v3411 = vld [vmem:[%s3357 + $0x1a8] sm:$0xff]
        %v3412 = vld [vmem:[%s3357 + $0x1b0] sm:$0xff]
        %v3413 = vld [vmem:[%s3357 + $0x1b8] sm:$0xff]
        %v3414 = vld [vmem:[%s3357 + $0x1c0] sm:$0xff]
        %v3415 = vld [vmem:[%s3357 + $0x1c8] sm:$0xff]
        %v3416 = vld [vmem:[%s3357 + $0x1d0] sm:$0xff]
        %v3417 = vld [vmem:[%s3357 + $0x1d8] sm:$0xff]
        %v3418 = vld [vmem:[%s3357 + $0x1e0] sm:$0xff]
        %v3419 = vld [vmem:[%s3357 + $0x1e8] sm:$0xff]
        %v3420 = vld [vmem:[%s3357 + $0x1f0] sm:$0xff]
        %v3421 = vld [vmem:[%s3357 + $0x1f8] sm:$0xff]
        %v3422 = vld [vmem:[%s3357 + $0x200] sm:$0xff]
        %v3423 = vld [vmem:[%s3357 + $0x208] sm:$0xff]
        %v3424 = vld [vmem:[%s3357 + $0x210] sm:$0xff]
        %v3425 = vld [vmem:[%s3357 + $0x218] sm:$0xff]
        %v3426 = vld [vmem:[%s3357 + $0x220] sm:$0xff]
        %v3427 = vld [vmem:[%s3357 + $0x228] sm:$0xff]
        %v3428 = vld [vmem:[%s3357 + $0x230] sm:$0xff]
        %v3429 = vld [vmem:[%s3357 + $0x238] sm:$0xff]
        %v3430 = vld [vmem:[%s3357 + $0x240] sm:$0xff]
        %v3431 = vld [vmem:[%s3357 + $0x248] sm:$0xff]
        %v3432 = vld [vmem:[%s3357 + $0x250] sm:$0xff]
        %v3433 = vld [vmem:[%s3357 + $0x258] sm:$0xff]
        %v3434 = vld [vmem:[%s3357 + $0x260] sm:$0xff]
        %v3435 = vld [vmem:[%s3357 + $0x268] sm:$0xff]
        %v3436 = vld [vmem:[%s3357 + $0x270] sm:$0xff]
        %v3437 = vld [vmem:[%s3357 + $0x278] sm:$0xff]
        %v3438 = vld [vmem:[%s3357 + $0x280] sm:$0xff]
        %v3439 = vld [vmem:[%s3357 + $0x288] sm:$0xff]
        %v3440 = vld [vmem:[%s3357 + $0x290] sm:$0xff]
        %v3441 = vld [vmem:[%s3357 + $0x298] sm:$0xff]
        %v3442 = vld [vmem:[%s3357 + $0x2a0] sm:$0xff]
        %v3443 = vld [vmem:[%s3357 + $0x2a8] sm:$0xff]
        %v3444 = vld [vmem:[%s3357 + $0x2b0] sm:$0xff]
        %v3445 = vld [vmem:[%s3357 + $0x2b8] sm:$0xff]
        %v3446 = vld [vmem:[%s3357 + $0x2c0] sm:$0xff]
        %v3447 = vld [vmem:[%s3357 + $0x2c8] sm:$0xff]
        %v3448 = vld [vmem:[%s3357 + $0x2d0] sm:$0xff]
        %v3449 = vld [vmem:[%s3357 + $0x2d8] sm:$0xff]
        %v3450 = vld [vmem:[%s3357 + $0x2e0] sm:$0xff]
        %v3451 = vld [vmem:[%s3357 + $0x2e8] sm:$0xff]
        %v3452 = vld [vmem:[%s3357 + $0x2f0] sm:$0xff]
        %v3453 = vld [vmem:[%s3357 + $0x2f8] sm:$0xff]
        %v3454 = vrot.slane %v1887, 3
        %v3455 = vrot.slane %v1889, 3
        %v3456 = vsel %vm1254, %v3454, %v3455
        %v3457 = vrot.slane %v1888, 3
        %v3458 = vrot.slane %v1890, 3
        %v3459 = vsel %vm1254, %v3457, %v3458
        %v3461 = vsel %vm2192, %v3459, 0
        %3463 = vmatprep.subr.mxu0 %v3419
        %3464 = vmatpush1.msra.mxu0 %v3418
        %3465 = vmatprep.subr.mxu0 %v3415
        %3466 = vmatpush1.msra.mxu0 %v3414
        %3467 = vmatprep.subr.mxu0 %v3411
        %3468 = vmatpush1.msra.mxu0 %v3410
        %3469 = vmatprep.subr.mxu0 %v3407
        %3470 = vmatpush1.msra.mxu0 %v3406
        %3471 = vmatprep.subr.mxu0 %v3403
        %3472 = vmatpush1.msra.mxu0 %v3402
        %3473 = vmatprep.subr.mxu0 %v3399
        %3474 = vmatpush1.msra.mxu0 %v3398
        %3475 = vmatprep.subr.mxu0 %v3395
        %3476 = vmatpush1.msra.mxu0 %v3394
        %3477 = vmatprep.subr.mxu0 %v3391
        %3478 = vmatpush1.msra.mxu0 %v3390
        %3479 = vmatprep.subr.mxu0 %v3387
        %3480 = vmatpush1.msra.mxu0 %v3386
        %3481 = vmatprep.subr.mxu0 %v3383
        %3482 = vmatpush1.msra.mxu0 %v3382
        %3483 = vmatprep.subr.mxu0 %v3379
        %3484 = vmatpush1.msra.mxu0 %v3378
        %3485 = vmatprep.subr.mxu0 %v3375
        %3486 = vmatpush1.msra.mxu0 %v3374
        %3487 = vmatprep.subr.mxu0 %v3371
        %3488 = vmatpush1.msra.mxu0 %v3370
        %3489 = vmatprep.subr.mxu0 %v3367
        %3490 = vmatpush1.msra.mxu0 %v3366
        %3491 = vmatprep.subr.mxu0 %v3363
        %3492 = vmatpush1.msra.mxu0 %v3362
        %3493 = vmatprep.subr.mxu0 %v3359
        %3494 = vmatpush1.msra.mxu0 %v3358
        %3495 = vmatprep.subr.mxu0 0.0
        %3496 = vmatpush2.msra.mxu0 0.0
        %3497 = vmatprep.subr.mxu0 0.0
        %3498 = vmatpush2.msra.mxu0 0.0
        %3499 = vmatprep.subr.mxu0 0.0
        %3500 = vmatpush2.msra.mxu0 0.0
        %3501 = vmatprep.subr.mxu0 0.0
        %3502 = vmatpush2.msra.mxu0 0.0
        %3503 = vmatprep.subr.mxu0 0.0
        %3504 = vmatpush2.msra.mxu0 0.0
        %3505 = vmatprep.subr.mxu0 0.0
        %3506 = vmatpush2.msra.mxu0 0.0
        %3507 = vmatprep.subr.mxu0 0.0
        %3508 = vmatpush2.msra.mxu0 0.0
        %3509 = vmatprep.subr.mxu0 0.0
        %3510 = vmatpush2.msra.mxu0 0.0
        %3511 = vmatprep.subr.mxu0 %v3451
        %3512 = vmatpush2.msra.mxu0 %v3450
        %3513 = vmatprep.subr.mxu0 %v3447
        %3514 = vmatpush2.msra.mxu0 %v3446
        %3515 = vmatprep.subr.mxu0 %v3443
        %3516 = vmatpush2.msra.mxu0 %v3442
        %3517 = vmatprep.subr.mxu0 %v3439
        %3518 = vmatpush2.msra.mxu0 %v3438
        %3519 = vmatprep.subr.mxu0 %v3435
        %3520 = vmatpush2.msra.mxu0 %v3434
        %3521 = vmatprep.subr.mxu0 %v3431
        %3522 = vmatpush2.msra.mxu0 %v3430
        %3523 = vmatprep.subr.mxu0 %v3427
        %3524 = vmatpush2.msra.mxu0 %v3426
        %3525 = vmatprep.subr.mxu0 %v3423
        %3526 = vmatpush2.msra.mxu0 %v3422
        %3527 = vmatprep.mubr.f32.mxu0 %v3461
        %3528 = vmatmul.mubr.f32.gmra.mxu0 %v3456
        %v3529 = vpop.f32.mrf.mxu0
        %v3530 = vadd.f32 0.0, %v3529
        %v3531 = vpop.f32.mrf.mxu0
        %v3532 = vadd.f32 0.0, %v3531
        %3533 = vdwg.mxu0
        %3534 = vmatprep.subr.mxu0 %v3421
        %3535 = vmatpush1.msra.mxu0 %v3420
        %3536 = vmatprep.subr.mxu0 %v3417
        %3537 = vmatpush1.msra.mxu0 %v3416
        %3538 = vmatprep.subr.mxu0 %v3413
        %3539 = vmatpush1.msra.mxu0 %v3412
        %3540 = vmatprep.subr.mxu0 %v3409
        %3541 = vmatpush1.msra.mxu0 %v3408
        %3542 = vmatprep.subr.mxu0 %v3405
        %3543 = vmatpush1.msra.mxu0 %v3404
        %3544 = vmatprep.subr.mxu0 %v3401
        %3545 = vmatpush1.msra.mxu0 %v3400
        %3546 = vmatprep.subr.mxu0 %v3397
        %3547 = vmatpush1.msra.mxu0 %v3396
        %3548 = vmatprep.subr.mxu0 %v3393
        %3549 = vmatpush1.msra.mxu0 %v3392
        %3550 = vmatprep.subr.mxu0 %v3389
        %3551 = vmatpush1.msra.mxu0 %v3388
        %3552 = vmatprep.subr.mxu0 %v3385
        %3553 = vmatpush1.msra.mxu0 %v3384
        %3554 = vmatprep.subr.mxu0 %v3381
        %3555 = vmatpush1.msra.mxu0 %v3380
        %3556 = vmatprep.subr.mxu0 %v3377
        %3557 = vmatpush1.msra.mxu0 %v3376
        %3558 = vmatprep.subr.mxu0 %v3373
        %3559 = vmatpush1.msra.mxu0 %v3372
        %3560 = vmatprep.subr.mxu0 %v3369
        %3561 = vmatpush1.msra.mxu0 %v3368
        %3562 = vmatprep.subr.mxu0 %v3365
        %3563 = vmatpush1.msra.mxu0 %v3364
        %3564 = vmatprep.subr.mxu0 %v3361
        %3565 = vmatpush1.msra.mxu0 %v3360
        %3566 = vmatprep.subr.mxu0 0.0
        %3567 = vmatpush2.msra.mxu0 0.0
        %3568 = vmatprep.subr.mxu0 0.0
        %3569 = vmatpush2.msra.mxu0 0.0
        %3570 = vmatprep.subr.mxu0 0.0
        %3571 = vmatpush2.msra.mxu0 0.0
        %3572 = vmatprep.subr.mxu0 0.0
        %3573 = vmatpush2.msra.mxu0 0.0
        %3574 = vmatprep.subr.mxu0 0.0
        %3575 = vmatpush2.msra.mxu0 0.0
        %3576 = vmatprep.subr.mxu0 0.0
        %3577 = vmatpush2.msra.mxu0 0.0
        %3578 = vmatprep.subr.mxu0 0.0
        %3579 = vmatpush2.msra.mxu0 0.0
        %3580 = vmatprep.subr.mxu0 0.0
        %3581 = vmatpush2.msra.mxu0 0.0
        %3582 = vmatprep.subr.mxu0 %v3453
        %3583 = vmatpush2.msra.mxu0 %v3452
        %3584 = vmatprep.subr.mxu0 %v3449
        %3585 = vmatpush2.msra.mxu0 %v3448
        %3586 = vmatprep.subr.mxu0 %v3445
        %3587 = vmatpush2.msra.mxu0 %v3444
        %3588 = vmatprep.subr.mxu0 %v3441
        %3589 = vmatpush2.msra.mxu0 %v3440
        %3590 = vmatprep.subr.mxu0 %v3437
        %3591 = vmatpush2.msra.mxu0 %v3436
        %3592 = vmatprep.subr.mxu0 %v3433
        %3593 = vmatpush2.msra.mxu0 %v3432
        %3594 = vmatprep.subr.mxu0 %v3429
        %3595 = vmatpush2.msra.mxu0 %v3428
        %3596 = vmatprep.subr.mxu0 %v3425
        %3597 = vmatpush2.msra.mxu0 %v3424
        %3598 = vmatprep.mubr.f32.mxu0 %v3461
        %3599 = vmatmul.mubr.f32.gmra.mxu0 %v3456
        %v3600 = vpop.f32.mrf.mxu0
        %v3601 = vadd.f32 0.0, %v3600
        %v3602 = vpop.f32.mrf.mxu0
        %v3603 = vadd.f32 0.0, %v3602
        %3604 = vdwg.mxu0
        %s3605 = scalar_lea.vmem [#allocation9], 6144
        %v3606 = vld [vmem:[%s3605] sm:$0xff]
        %v3607 = vld [vmem:[%s3605 + $0x8] sm:$0xff]
        %v3608 = vld [vmem:[%s3605 + $0x10] sm:$0xff]
        %v3609 = vld [vmem:[%s3605 + $0x18] sm:$0xff]
        %v3610 = vld [vmem:[%s3605 + $0x20] sm:$0xff]
        %v3611 = vld [vmem:[%s3605 + $0x28] sm:$0xff]
        %v3612 = vld [vmem:[%s3605 + $0x30] sm:$0xff]
        %v3613 = vld [vmem:[%s3605 + $0x38] sm:$0xff]
        %v3614 = vld [vmem:[%s3605 + $0x40] sm:$0xff]
        %v3615 = vld [vmem:[%s3605 + $0x48] sm:$0xff]
        %v3616 = vld [vmem:[%s3605 + $0x50] sm:$0xff]
        %v3617 = vld [vmem:[%s3605 + $0x58] sm:$0xff]
        %v3618 = vld [vmem:[%s3605 + $0x60] sm:$0xff]
        %v3619 = vld [vmem:[%s3605 + $0x68] sm:$0xff]
        %v3620 = vld [vmem:[%s3605 + $0x70] sm:$0xff]
        %v3621 = vld [vmem:[%s3605 + $0x78] sm:$0xff]
        %v3622 = vld [vmem:[%s3605 + $0x80] sm:$0xff]
        %v3623 = vld [vmem:[%s3605 + $0x88] sm:$0xff]
        %v3624 = vld [vmem:[%s3605 + $0x90] sm:$0xff]
        %v3625 = vld [vmem:[%s3605 + $0x98] sm:$0xff]
        %v3626 = vld [vmem:[%s3605 + $0xa0] sm:$0xff]
        %v3627 = vld [vmem:[%s3605 + $0xa8] sm:$0xff]
        %v3628 = vld [vmem:[%s3605 + $0xb0] sm:$0xff]
        %v3629 = vld [vmem:[%s3605 + $0xb8] sm:$0xff]
        %v3630 = vld [vmem:[%s3605 + $0xc0] sm:$0xff]
        %v3631 = vld [vmem:[%s3605 + $0xc8] sm:$0xff]
        %v3632 = vld [vmem:[%s3605 + $0xd0] sm:$0xff]
        %v3633 = vld [vmem:[%s3605 + $0xd8] sm:$0xff]
        %v3634 = vld [vmem:[%s3605 + $0xe0] sm:$0xff]
        %v3635 = vld [vmem:[%s3605 + $0xe8] sm:$0xff]
        %v3636 = vld [vmem:[%s3605 + $0xf0] sm:$0xff]
        %v3637 = vld [vmem:[%s3605 + $0xf8] sm:$0xff]
        %v3638 = vld [vmem:[%s3605 + $0x100] sm:$0xff]
        %v3639 = vld [vmem:[%s3605 + $0x108] sm:$0xff]
        %v3640 = vld [vmem:[%s3605 + $0x110] sm:$0xff]
        %v3641 = vld [vmem:[%s3605 + $0x118] sm:$0xff]
        %v3642 = vld [vmem:[%s3605 + $0x120] sm:$0xff]
        %v3643 = vld [vmem:[%s3605 + $0x128] sm:$0xff]
        %v3644 = vld [vmem:[%s3605 + $0x130] sm:$0xff]
        %v3645 = vld [vmem:[%s3605 + $0x138] sm:$0xff]
        %v3646 = vld [vmem:[%s3605 + $0x140] sm:$0xff]
        %v3647 = vld [vmem:[%s3605 + $0x148] sm:$0xff]
        %v3648 = vld [vmem:[%s3605 + $0x150] sm:$0xff]
        %v3649 = vld [vmem:[%s3605 + $0x158] sm:$0xff]
        %v3650 = vld [vmem:[%s3605 + $0x160] sm:$0xff]
        %v3651 = vld [vmem:[%s3605 + $0x168] sm:$0xff]
        %v3652 = vld [vmem:[%s3605 + $0x170] sm:$0xff]
        %v3653 = vld [vmem:[%s3605 + $0x178] sm:$0xff]
        %v3654 = vld [vmem:[%s3605 + $0x180] sm:$0xff]
        %v3655 = vld [vmem:[%s3605 + $0x188] sm:$0xff]
        %v3656 = vld [vmem:[%s3605 + $0x190] sm:$0xff]
        %v3657 = vld [vmem:[%s3605 + $0x198] sm:$0xff]
        %v3658 = vld [vmem:[%s3605 + $0x1a0] sm:$0xff]
        %v3659 = vld [vmem:[%s3605 + $0x1a8] sm:$0xff]
        %v3660 = vld [vmem:[%s3605 + $0x1b0] sm:$0xff]
        %v3661 = vld [vmem:[%s3605 + $0x1b8] sm:$0xff]
        %v3662 = vld [vmem:[%s3605 + $0x1c0] sm:$0xff]
        %v3663 = vld [vmem:[%s3605 + $0x1c8] sm:$0xff]
        %v3664 = vld [vmem:[%s3605 + $0x1d0] sm:$0xff]
        %v3665 = vld [vmem:[%s3605 + $0x1d8] sm:$0xff]
        %v3666 = vld [vmem:[%s3605 + $0x1e0] sm:$0xff]
        %v3667 = vld [vmem:[%s3605 + $0x1e8] sm:$0xff]
        %v3668 = vld [vmem:[%s3605 + $0x1f0] sm:$0xff]
        %v3669 = vld [vmem:[%s3605 + $0x1f8] sm:$0xff]
        %v3670 = vld [vmem:[%s3605 + $0x200] sm:$0xff]
        %v3671 = vld [vmem:[%s3605 + $0x208] sm:$0xff]
        %v3672 = vld [vmem:[%s3605 + $0x210] sm:$0xff]
        %v3673 = vld [vmem:[%s3605 + $0x218] sm:$0xff]
        %v3674 = vld [vmem:[%s3605 + $0x220] sm:$0xff]
        %v3675 = vld [vmem:[%s3605 + $0x228] sm:$0xff]
        %v3676 = vld [vmem:[%s3605 + $0x230] sm:$0xff]
        %v3677 = vld [vmem:[%s3605 + $0x238] sm:$0xff]
        %v3678 = vld [vmem:[%s3605 + $0x240] sm:$0xff]
        %v3679 = vld [vmem:[%s3605 + $0x248] sm:$0xff]
        %v3680 = vld [vmem:[%s3605 + $0x250] sm:$0xff]
        %v3681 = vld [vmem:[%s3605 + $0x258] sm:$0xff]
        %v3682 = vld [vmem:[%s3605 + $0x260] sm:$0xff]
        %v3683 = vld [vmem:[%s3605 + $0x268] sm:$0xff]
        %v3684 = vld [vmem:[%s3605 + $0x270] sm:$0xff]
        %v3685 = vld [vmem:[%s3605 + $0x278] sm:$0xff]
        %v3686 = vld [vmem:[%s3605 + $0x280] sm:$0xff]
        %v3687 = vld [vmem:[%s3605 + $0x288] sm:$0xff]
        %v3688 = vld [vmem:[%s3605 + $0x290] sm:$0xff]
        %v3689 = vld [vmem:[%s3605 + $0x298] sm:$0xff]
        %v3690 = vld [vmem:[%s3605 + $0x2a0] sm:$0xff]
        %v3691 = vld [vmem:[%s3605 + $0x2a8] sm:$0xff]
        %v3692 = vld [vmem:[%s3605 + $0x2b0] sm:$0xff]
        %v3693 = vld [vmem:[%s3605 + $0x2b8] sm:$0xff]
        %v3694 = vld [vmem:[%s3605 + $0x2c0] sm:$0xff]
        %v3695 = vld [vmem:[%s3605 + $0x2c8] sm:$0xff]
        %v3696 = vld [vmem:[%s3605 + $0x2d0] sm:$0xff]
        %v3697 = vld [vmem:[%s3605 + $0x2d8] sm:$0xff]
        %v3698 = vld [vmem:[%s3605 + $0x2e0] sm:$0xff]
        %v3699 = vld [vmem:[%s3605 + $0x2e8] sm:$0xff]
        %v3700 = vld [vmem:[%s3605 + $0x2f0] sm:$0xff]
        %v3701 = vld [vmem:[%s3605 + $0x2f8] sm:$0xff]
        %3702 = vmatprep.subr.mxu0 %v3667
        %3703 = vmatpush1.msra.mxu0 %v3666
        %3704 = vmatprep.subr.mxu0 %v3663
        %3705 = vmatpush1.msra.mxu0 %v3662
        %3706 = vmatprep.subr.mxu0 %v3659
        %3707 = vmatpush1.msra.mxu0 %v3658
        %3708 = vmatprep.subr.mxu0 %v3655
        %3709 = vmatpush1.msra.mxu0 %v3654
        %3710 = vmatprep.subr.mxu0 %v3651
        %3711 = vmatpush1.msra.mxu0 %v3650
        %3712 = vmatprep.subr.mxu0 %v3647
        %3713 = vmatpush1.msra.mxu0 %v3646
        %3714 = vmatprep.subr.mxu0 %v3643
        %3715 = vmatpush1.msra.mxu0 %v3642
        %3716 = vmatprep.subr.mxu0 %v3639
        %3717 = vmatpush1.msra.mxu0 %v3638
        %3718 = vmatprep.subr.mxu0 %v3635
        %3719 = vmatpush1.msra.mxu0 %v3634
        %3720 = vmatprep.subr.mxu0 %v3631
        %3721 = vmatpush1.msra.mxu0 %v3630
        %3722 = vmatprep.subr.mxu0 %v3627
        %3723 = vmatpush1.msra.mxu0 %v3626
        %3724 = vmatprep.subr.mxu0 %v3623
        %3725 = vmatpush1.msra.mxu0 %v3622
        %3726 = vmatprep.subr.mxu0 %v3619
        %3727 = vmatpush1.msra.mxu0 %v3618
        %3728 = vmatprep.subr.mxu0 %v3615
        %3729 = vmatpush1.msra.mxu0 %v3614
        %3730 = vmatprep.subr.mxu0 %v3611
        %3731 = vmatpush1.msra.mxu0 %v3610
        %3732 = vmatprep.subr.mxu0 %v3607
        %3733 = vmatpush1.msra.mxu0 %v3606
        %3734 = vmatprep.subr.mxu0 0.0
        %3735 = vmatpush2.msra.mxu0 0.0
        %3736 = vmatprep.subr.mxu0 0.0
        %3737 = vmatpush2.msra.mxu0 0.0
        %3738 = vmatprep.subr.mxu0 0.0
        %3739 = vmatpush2.msra.mxu0 0.0
        %3740 = vmatprep.subr.mxu0 0.0
        %3741 = vmatpush2.msra.mxu0 0.0
        %3742 = vmatprep.subr.mxu0 0.0
        %3743 = vmatpush2.msra.mxu0 0.0
        %3744 = vmatprep.subr.mxu0 0.0
        %3745 = vmatpush2.msra.mxu0 0.0
        %3746 = vmatprep.subr.mxu0 0.0
        %3747 = vmatpush2.msra.mxu0 0.0
        %3748 = vmatprep.subr.mxu0 0.0
        %3749 = vmatpush2.msra.mxu0 0.0
        %3750 = vmatprep.subr.mxu0 %v3699
        %3751 = vmatpush2.msra.mxu0 %v3698
        %3752 = vmatprep.subr.mxu0 %v3695
        %3753 = vmatpush2.msra.mxu0 %v3694
        %3754 = vmatprep.subr.mxu0 %v3691
        %3755 = vmatpush2.msra.mxu0 %v3690
        %3756 = vmatprep.subr.mxu0 %v3687
        %3757 = vmatpush2.msra.mxu0 %v3686
        %3758 = vmatprep.subr.mxu0 %v3683
        %3759 = vmatpush2.msra.mxu0 %v3682
        %3760 = vmatprep.subr.mxu0 %v3679
        %3761 = vmatpush2.msra.mxu0 %v3678
        %3762 = vmatprep.subr.mxu0 %v3675
        %3763 = vmatpush2.msra.mxu0 %v3674
        %3764 = vmatprep.subr.mxu0 %v3671
        %3765 = vmatpush2.msra.mxu0 %v3670
        %3766 = vmatprep.mubr.f32.mxu0 %v3461
        %3767 = vmatmul.mubr.f32.gmra.mxu0 %v3456
        %v3768 = vpop.f32.mrf.mxu0
        %v3769 = vadd.f32 0.0, %v3768
        %v3770 = vpop.f32.mrf.mxu0
        %v3771 = vadd.f32 0.0, %v3770
        %3772 = vdwg.mxu0
        %3773 = vmatprep.subr.mxu0 %v3669
        %3774 = vmatpush1.msra.mxu0 %v3668
        %3775 = vmatprep.subr.mxu0 %v3665
        %3776 = vmatpush1.msra.mxu0 %v3664
        %3777 = vmatprep.subr.mxu0 %v3661
        %3778 = vmatpush1.msra.mxu0 %v3660
        %3779 = vmatprep.subr.mxu0 %v3657
        %3780 = vmatpush1.msra.mxu0 %v3656
        %3781 = vmatprep.subr.mxu0 %v3653
        %3782 = vmatpush1.msra.mxu0 %v3652
        %3783 = vmatprep.subr.mxu0 %v3649
        %3784 = vmatpush1.msra.mxu0 %v3648
        %3785 = vmatprep.subr.mxu0 %v3645
        %3786 = vmatpush1.msra.mxu0 %v3644
        %3787 = vmatprep.subr.mxu0 %v3641
        %3788 = vmatpush1.msra.mxu0 %v3640
        %3789 = vmatprep.subr.mxu0 %v3637
        %3790 = vmatpush1.msra.mxu0 %v3636
        %3791 = vmatprep.subr.mxu0 %v3633
        %3792 = vmatpush1.msra.mxu0 %v3632
        %3793 = vmatprep.subr.mxu0 %v3629
        %3794 = vmatpush1.msra.mxu0 %v3628
        %3795 = vmatprep.subr.mxu0 %v3625
        %3796 = vmatpush1.msra.mxu0 %v3624
        %3797 = vmatprep.subr.mxu0 %v3621
        %3798 = vmatpush1.msra.mxu0 %v3620
        %3799 = vmatprep.subr.mxu0 %v3617
        %3800 = vmatpush1.msra.mxu0 %v3616
        %3801 = vmatprep.subr.mxu0 %v3613
        %3802 = vmatpush1.msra.mxu0 %v3612
        %3803 = vmatprep.subr.mxu0 %v3609
        %3804 = vmatpush1.msra.mxu0 %v3608
        %3805 = vmatprep.subr.mxu0 0.0
        %3806 = vmatpush2.msra.mxu0 0.0
        %3807 = vmatprep.subr.mxu0 0.0
        %3808 = vmatpush2.msra.mxu0 0.0
        %3809 = vmatprep.subr.mxu0 0.0
        %3810 = vmatpush2.msra.mxu0 0.0
        %3811 = vmatprep.subr.mxu0 0.0
        %3812 = vmatpush2.msra.mxu0 0.0
        %3813 = vmatprep.subr.mxu0 0.0
        %3814 = vmatpush2.msra.mxu0 0.0
        %3815 = vmatprep.subr.mxu0 0.0
        %3816 = vmatpush2.msra.mxu0 0.0
        %3817 = vmatprep.subr.mxu0 0.0
        %3818 = vmatpush2.msra.mxu0 0.0
        %3819 = vmatprep.subr.mxu0 0.0
        %3820 = vmatpush2.msra.mxu0 0.0
        %3821 = vmatprep.subr.mxu0 %v3701
        %3822 = vmatpush2.msra.mxu0 %v3700
        %3823 = vmatprep.subr.mxu0 %v3697
        %3824 = vmatpush2.msra.mxu0 %v3696
        %3825 = vmatprep.subr.mxu0 %v3693
        %3826 = vmatpush2.msra.mxu0 %v3692
        %3827 = vmatprep.subr.mxu0 %v3689
        %3828 = vmatpush2.msra.mxu0 %v3688
        %3829 = vmatprep.subr.mxu0 %v3685
        %3830 = vmatpush2.msra.mxu0 %v3684
        %3831 = vmatprep.subr.mxu0 %v3681
        %3832 = vmatpush2.msra.mxu0 %v3680
        %3833 = vmatprep.subr.mxu0 %v3677
        %3834 = vmatpush2.msra.mxu0 %v3676
        %3835 = vmatprep.subr.mxu0 %v3673
        %3836 = vmatpush2.msra.mxu0 %v3672
        %3837 = vmatprep.mubr.f32.mxu0 %v3461
        %3838 = vmatmul.mubr.f32.gmra.mxu0 %v3456
        %v3839 = vpop.f32.mrf.mxu0
        %v3840 = vadd.f32 0.0, %v3839
        %v3841 = vpop.f32.mrf.mxu0
        %v3842 = vadd.f32 0.0, %v3841
        %3843 = vdwg.mxu0
        %v3844 = vadd.f32 %v3349, %v3530
        %v3845 = vadd.f32 %v3350, %v3532
        %v3846 = vadd.f32 %v3351, %v3601
        %v3847 = vadd.f32 %v3352, %v3603
        %v3848 = vadd.f32 %v3353, %v3769
        %v3849 = vadd.f32 %v3354, %v3771
        %v3850 = vadd.f32 %v3355, %v3840
        %v3851 = vadd.f32 %v3356, %v3842
        %s3852 = scalar_lea.vmem [#allocation9], 3072
        %v3853 = vld [vmem:[%s3852] sm:$0xff]
        %v3854 = vld [vmem:[%s3852 + $0x8] sm:$0xff]
        %v3855 = vld [vmem:[%s3852 + $0x10] sm:$0xff]
        %v3856 = vld [vmem:[%s3852 + $0x18] sm:$0xff]
        %v3857 = vld [vmem:[%s3852 + $0x20] sm:$0xff]
        %v3858 = vld [vmem:[%s3852 + $0x28] sm:$0xff]
        %v3859 = vld [vmem:[%s3852 + $0x30] sm:$0xff]
        %v3860 = vld [vmem:[%s3852 + $0x38] sm:$0xff]
        %v3861 = vld [vmem:[%s3852 + $0x40] sm:$0xff]
        %v3862 = vld [vmem:[%s3852 + $0x48] sm:$0xff]
        %v3863 = vld [vmem:[%s3852 + $0x50] sm:$0xff]
        %v3864 = vld [vmem:[%s3852 + $0x58] sm:$0xff]
        %v3865 = vld [vmem:[%s3852 + $0x60] sm:$0xff]
        %v3866 = vld [vmem:[%s3852 + $0x68] sm:$0xff]
        %v3867 = vld [vmem:[%s3852 + $0x70] sm:$0xff]
        %v3868 = vld [vmem:[%s3852 + $0x78] sm:$0xff]
        %v3869 = vld [vmem:[%s3852 + $0x80] sm:$0xff]
        %v3870 = vld [vmem:[%s3852 + $0x88] sm:$0xff]
        %v3871 = vld [vmem:[%s3852 + $0x90] sm:$0xff]
        %v3872 = vld [vmem:[%s3852 + $0x98] sm:$0xff]
        %v3873 = vld [vmem:[%s3852 + $0xa0] sm:$0xff]
        %v3874 = vld [vmem:[%s3852 + $0xa8] sm:$0xff]
        %v3875 = vld [vmem:[%s3852 + $0xb0] sm:$0xff]
        %v3876 = vld [vmem:[%s3852 + $0xb8] sm:$0xff]
        %v3877 = vld [vmem:[%s3852 + $0xc0] sm:$0xff]
        %v3878 = vld [vmem:[%s3852 + $0xc8] sm:$0xff]
        %v3879 = vld [vmem:[%s3852 + $0xd0] sm:$0xff]
        %v3880 = vld [vmem:[%s3852 + $0xd8] sm:$0xff]
        %v3881 = vld [vmem:[%s3852 + $0xe0] sm:$0xff]
        %v3882 = vld [vmem:[%s3852 + $0xe8] sm:$0xff]
        %v3883 = vld [vmem:[%s3852 + $0xf0] sm:$0xff]
        %v3884 = vld [vmem:[%s3852 + $0xf8] sm:$0xff]
        %v3885 = vld [vmem:[%s3852 + $0x100] sm:$0xff]
        %v3886 = vld [vmem:[%s3852 + $0x108] sm:$0xff]
        %v3887 = vld [vmem:[%s3852 + $0x110] sm:$0xff]
        %v3888 = vld [vmem:[%s3852 + $0x118] sm:$0xff]
        %v3889 = vld [vmem:[%s3852 + $0x120] sm:$0xff]
        %v3890 = vld [vmem:[%s3852 + $0x128] sm:$0xff]
        %v3891 = vld [vmem:[%s3852 + $0x130] sm:$0xff]
        %v3892 = vld [vmem:[%s3852 + $0x138] sm:$0xff]
        %v3893 = vld [vmem:[%s3852 + $0x140] sm:$0xff]
        %v3894 = vld [vmem:[%s3852 + $0x148] sm:$0xff]
        %v3895 = vld [vmem:[%s3852 + $0x150] sm:$0xff]
        %v3896 = vld [vmem:[%s3852 + $0x158] sm:$0xff]
        %v3897 = vld [vmem:[%s3852 + $0x160] sm:$0xff]
        %v3898 = vld [vmem:[%s3852 + $0x168] sm:$0xff]
        %v3899 = vld [vmem:[%s3852 + $0x170] sm:$0xff]
        %v3900 = vld [vmem:[%s3852 + $0x178] sm:$0xff]
        %v3901 = vld [vmem:[%s3852 + $0x180] sm:$0xff]
        %v3902 = vld [vmem:[%s3852 + $0x188] sm:$0xff]
        %v3903 = vld [vmem:[%s3852 + $0x190] sm:$0xff]
        %v3904 = vld [vmem:[%s3852 + $0x198] sm:$0xff]
        %v3905 = vld [vmem:[%s3852 + $0x1a0] sm:$0xff]
        %v3906 = vld [vmem:[%s3852 + $0x1a8] sm:$0xff]
        %v3907 = vld [vmem:[%s3852 + $0x1b0] sm:$0xff]
        %v3908 = vld [vmem:[%s3852 + $0x1b8] sm:$0xff]
        %v3909 = vld [vmem:[%s3852 + $0x1c0] sm:$0xff]
        %v3910 = vld [vmem:[%s3852 + $0x1c8] sm:$0xff]
        %v3911 = vld [vmem:[%s3852 + $0x1d0] sm:$0xff]
        %v3912 = vld [vmem:[%s3852 + $0x1d8] sm:$0xff]
        %v3913 = vld [vmem:[%s3852 + $0x1e0] sm:$0xff]
        %v3914 = vld [vmem:[%s3852 + $0x1e8] sm:$0xff]
        %v3915 = vld [vmem:[%s3852 + $0x1f0] sm:$0xff]
        %v3916 = vld [vmem:[%s3852 + $0x1f8] sm:$0xff]
        %v3917 = vld [vmem:[%s3852 + $0x200] sm:$0xff]
        %v3918 = vld [vmem:[%s3852 + $0x208] sm:$0xff]
        %v3919 = vld [vmem:[%s3852 + $0x210] sm:$0xff]
        %v3920 = vld [vmem:[%s3852 + $0x218] sm:$0xff]
        %v3921 = vld [vmem:[%s3852 + $0x220] sm:$0xff]
        %v3922 = vld [vmem:[%s3852 + $0x228] sm:$0xff]
        %v3923 = vld [vmem:[%s3852 + $0x230] sm:$0xff]
        %v3924 = vld [vmem:[%s3852 + $0x238] sm:$0xff]
        %v3925 = vld [vmem:[%s3852 + $0x240] sm:$0xff]
        %v3926 = vld [vmem:[%s3852 + $0x248] sm:$0xff]
        %v3927 = vld [vmem:[%s3852 + $0x250] sm:$0xff]
        %v3928 = vld [vmem:[%s3852 + $0x258] sm:$0xff]
        %v3929 = vld [vmem:[%s3852 + $0x260] sm:$0xff]
        %v3930 = vld [vmem:[%s3852 + $0x268] sm:$0xff]
        %v3931 = vld [vmem:[%s3852 + $0x270] sm:$0xff]
        %v3932 = vld [vmem:[%s3852 + $0x278] sm:$0xff]
        %v3933 = vld [vmem:[%s3852 + $0x280] sm:$0xff]
        %v3934 = vld [vmem:[%s3852 + $0x288] sm:$0xff]
        %v3935 = vld [vmem:[%s3852 + $0x290] sm:$0xff]
        %v3936 = vld [vmem:[%s3852 + $0x298] sm:$0xff]
        %v3937 = vld [vmem:[%s3852 + $0x2a0] sm:$0xff]
        %v3938 = vld [vmem:[%s3852 + $0x2a8] sm:$0xff]
        %v3939 = vld [vmem:[%s3852 + $0x2b0] sm:$0xff]
        %v3940 = vld [vmem:[%s3852 + $0x2b8] sm:$0xff]
        %v3941 = vld [vmem:[%s3852 + $0x2c0] sm:$0xff]
        %v3942 = vld [vmem:[%s3852 + $0x2c8] sm:$0xff]
        %v3943 = vld [vmem:[%s3852 + $0x2d0] sm:$0xff]
        %v3944 = vld [vmem:[%s3852 + $0x2d8] sm:$0xff]
        %v3945 = vld [vmem:[%s3852 + $0x2e0] sm:$0xff]
        %v3946 = vld [vmem:[%s3852 + $0x2e8] sm:$0xff]
        %v3947 = vld [vmem:[%s3852 + $0x2f0] sm:$0xff]
        %v3948 = vld [vmem:[%s3852 + $0x2f8] sm:$0xff]
        %v3949 = vrot.slane %v1887, 4
        %v3950 = vrot.slane %v1889, 4
        %v3951 = vsel %vm651, %v3949, %v3950
        %v3952 = vrot.slane %v1888, 4
        %v3953 = vrot.slane %v1890, 4
        %v3954 = vsel %vm651, %v3952, %v3953
        %v3956 = vsel %vm2192, %v3954, 0
        %3958 = vmatprep.subr.mxu0 %v3914
        %3959 = vmatpush1.msra.mxu0 %v3913
        %3960 = vmatprep.subr.mxu0 %v3910
        %3961 = vmatpush1.msra.mxu0 %v3909
        %3962 = vmatprep.subr.mxu0 %v3906
        %3963 = vmatpush1.msra.mxu0 %v3905
        %3964 = vmatprep.subr.mxu0 %v3902
        %3965 = vmatpush1.msra.mxu0 %v3901
        %3966 = vmatprep.subr.mxu0 %v3898
        %3967 = vmatpush1.msra.mxu0 %v3897
        %3968 = vmatprep.subr.mxu0 %v3894
        %3969 = vmatpush1.msra.mxu0 %v3893
        %3970 = vmatprep.subr.mxu0 %v3890
        %3971 = vmatpush1.msra.mxu0 %v3889
        %3972 = vmatprep.subr.mxu0 %v3886
        %3973 = vmatpush1.msra.mxu0 %v3885
        %3974 = vmatprep.subr.mxu0 %v3882
        %3975 = vmatpush1.msra.mxu0 %v3881
        %3976 = vmatprep.subr.mxu0 %v3878
        %3977 = vmatpush1.msra.mxu0 %v3877
        %3978 = vmatprep.subr.mxu0 %v3874
        %3979 = vmatpush1.msra.mxu0 %v3873
        %3980 = vmatprep.subr.mxu0 %v3870
        %3981 = vmatpush1.msra.mxu0 %v3869
        %3982 = vmatprep.subr.mxu0 %v3866
        %3983 = vmatpush1.msra.mxu0 %v3865
        %3984 = vmatprep.subr.mxu0 %v3862
        %3985 = vmatpush1.msra.mxu0 %v3861
        %3986 = vmatprep.subr.mxu0 %v3858
        %3987 = vmatpush1.msra.mxu0 %v3857
        %3988 = vmatprep.subr.mxu0 %v3854
        %3989 = vmatpush1.msra.mxu0 %v3853
        %3990 = vmatprep.subr.mxu0 0.0
        %3991 = vmatpush2.msra.mxu0 0.0
        %3992 = vmatprep.subr.mxu0 0.0
        %3993 = vmatpush2.msra.mxu0 0.0
        %3994 = vmatprep.subr.mxu0 0.0
        %3995 = vmatpush2.msra.mxu0 0.0
        %3996 = vmatprep.subr.mxu0 0.0
        %3997 = vmatpush2.msra.mxu0 0.0
        %3998 = vmatprep.subr.mxu0 0.0
        %3999 = vmatpush2.msra.mxu0 0.0
        %4000 = vmatprep.subr.mxu0 0.0
        %4001 = vmatpush2.msra.mxu0 0.0
        %4002 = vmatprep.subr.mxu0 0.0
        %4003 = vmatpush2.msra.mxu0 0.0
        %4004 = vmatprep.subr.mxu0 0.0
        %4005 = vmatpush2.msra.mxu0 0.0
        %4006 = vmatprep.subr.mxu0 %v3946
        %4007 = vmatpush2.msra.mxu0 %v3945
        %4008 = vmatprep.subr.mxu0 %v3942
        %4009 = vmatpush2.msra.mxu0 %v3941
        %4010 = vmatprep.subr.mxu0 %v3938
        %4011 = vmatpush2.msra.mxu0 %v3937
        %4012 = vmatprep.subr.mxu0 %v3934
        %4013 = vmatpush2.msra.mxu0 %v3933
        %4014 = vmatprep.subr.mxu0 %v3930
        %4015 = vmatpush2.msra.mxu0 %v3929
        %4016 = vmatprep.subr.mxu0 %v3926
        %4017 = vmatpush2.msra.mxu0 %v3925
        %4018 = vmatprep.subr.mxu0 %v3922
        %4019 = vmatpush2.msra.mxu0 %v3921
        %4020 = vmatprep.subr.mxu0 %v3918
        %4021 = vmatpush2.msra.mxu0 %v3917
        %4022 = vmatprep.mubr.f32.mxu0 %v3956
        %4023 = vmatmul.mubr.f32.gmra.mxu0 %v3951
        %v4024 = vpop.f32.mrf.mxu0
        %v4025 = vadd.f32 0.0, %v4024
        %v4026 = vpop.f32.mrf.mxu0
        %v4027 = vadd.f32 0.0, %v4026
        %4028 = vdwg.mxu0
        %4029 = vmatprep.subr.mxu0 %v3916
        %4030 = vmatpush1.msra.mxu0 %v3915
        %4031 = vmatprep.subr.mxu0 %v3912
        %4032 = vmatpush1.msra.mxu0 %v3911
        %4033 = vmatprep.subr.mxu0 %v3908
        %4034 = vmatpush1.msra.mxu0 %v3907
        %4035 = vmatprep.subr.mxu0 %v3904
        %4036 = vmatpush1.msra.mxu0 %v3903
        %4037 = vmatprep.subr.mxu0 %v3900
        %4038 = vmatpush1.msra.mxu0 %v3899
        %4039 = vmatprep.subr.mxu0 %v3896
        %4040 = vmatpush1.msra.mxu0 %v3895
        %4041 = vmatprep.subr.mxu0 %v3892
        %4042 = vmatpush1.msra.mxu0 %v3891
        %4043 = vmatprep.subr.mxu0 %v3888
        %4044 = vmatpush1.msra.mxu0 %v3887
        %4045 = vmatprep.subr.mxu0 %v3884
        %4046 = vmatpush1.msra.mxu0 %v3883
        %4047 = vmatprep.subr.mxu0 %v3880
        %4048 = vmatpush1.msra.mxu0 %v3879
        %4049 = vmatprep.subr.mxu0 %v3876
        %4050 = vmatpush1.msra.mxu0 %v3875
        %4051 = vmatprep.subr.mxu0 %v3872
        %4052 = vmatpush1.msra.mxu0 %v3871
        %4053 = vmatprep.subr.mxu0 %v3868
        %4054 = vmatpush1.msra.mxu0 %v3867
        %4055 = vmatprep.subr.mxu0 %v3864
        %4056 = vmatpush1.msra.mxu0 %v3863
        %4057 = vmatprep.subr.mxu0 %v3860
        %4058 = vmatpush1.msra.mxu0 %v3859
        %4059 = vmatprep.subr.mxu0 %v3856
        %4060 = vmatpush1.msra.mxu0 %v3855
        %4061 = vmatprep.subr.mxu0 0.0
        %4062 = vmatpush2.msra.mxu0 0.0
        %4063 = vmatprep.subr.mxu0 0.0
        %4064 = vmatpush2.msra.mxu0 0.0
        %4065 = vmatprep.subr.mxu0 0.0
        %4066 = vmatpush2.msra.mxu0 0.0
        %4067 = vmatprep.subr.mxu0 0.0
        %4068 = vmatpush2.msra.mxu0 0.0
        %4069 = vmatprep.subr.mxu0 0.0
        %4070 = vmatpush2.msra.mxu0 0.0
        %4071 = vmatprep.subr.mxu0 0.0
        %4072 = vmatpush2.msra.mxu0 0.0
        %4073 = vmatprep.subr.mxu0 0.0
        %4074 = vmatpush2.msra.mxu0 0.0
        %4075 = vmatprep.subr.mxu0 0.0
        %4076 = vmatpush2.msra.mxu0 0.0
        %4077 = vmatprep.subr.mxu0 %v3948
        %4078 = vmatpush2.msra.mxu0 %v3947
        %4079 = vmatprep.subr.mxu0 %v3944
        %4080 = vmatpush2.msra.mxu0 %v3943
        %4081 = vmatprep.subr.mxu0 %v3940
        %4082 = vmatpush2.msra.mxu0 %v3939
        %4083 = vmatprep.subr.mxu0 %v3936
        %4084 = vmatpush2.msra.mxu0 %v3935
        %4085 = vmatprep.subr.mxu0 %v3932
        %4086 = vmatpush2.msra.mxu0 %v3931
        %4087 = vmatprep.subr.mxu0 %v3928
        %4088 = vmatpush2.msra.mxu0 %v3927
        %4089 = vmatprep.subr.mxu0 %v3924
        %4090 = vmatpush2.msra.mxu0 %v3923
        %4091 = vmatprep.subr.mxu0 %v3920
        %4092 = vmatpush2.msra.mxu0 %v3919
        %4093 = vmatprep.mubr.f32.mxu0 %v3956
        %4094 = vmatmul.mubr.f32.gmra.mxu0 %v3951
        %v4095 = vpop.f32.mrf.mxu0
        %v4096 = vadd.f32 0.0, %v4095
        %v4097 = vpop.f32.mrf.mxu0
        %v4098 = vadd.f32 0.0, %v4097
        %4099 = vdwg.mxu0
        %s4100 = scalar_lea.vmem [#allocation9], 6912
        %v4101 = vld [vmem:[%s4100] sm:$0xff]
        %v4102 = vld [vmem:[%s4100 + $0x8] sm:$0xff]
        %v4103 = vld [vmem:[%s4100 + $0x10] sm:$0xff]
        %v4104 = vld [vmem:[%s4100 + $0x18] sm:$0xff]
        %v4105 = vld [vmem:[%s4100 + $0x20] sm:$0xff]
        %v4106 = vld [vmem:[%s4100 + $0x28] sm:$0xff]
        %v4107 = vld [vmem:[%s4100 + $0x30] sm:$0xff]
        %v4108 = vld [vmem:[%s4100 + $0x38] sm:$0xff]
        %v4109 = vld [vmem:[%s4100 + $0x40] sm:$0xff]
        %v4110 = vld [vmem:[%s4100 + $0x48] sm:$0xff]
        %v4111 = vld [vmem:[%s4100 + $0x50] sm:$0xff]
        %v4112 = vld [vmem:[%s4100 + $0x58] sm:$0xff]
        %v4113 = vld [vmem:[%s4100 + $0x60] sm:$0xff]
        %v4114 = vld [vmem:[%s4100 + $0x68] sm:$0xff]
        %v4115 = vld [vmem:[%s4100 + $0x70] sm:$0xff]
        %v4116 = vld [vmem:[%s4100 + $0x78] sm:$0xff]
        %v4117 = vld [vmem:[%s4100 + $0x80] sm:$0xff]
        %v4118 = vld [vmem:[%s4100 + $0x88] sm:$0xff]
        %v4119 = vld [vmem:[%s4100 + $0x90] sm:$0xff]
        %v4120 = vld [vmem:[%s4100 + $0x98] sm:$0xff]
        %v4121 = vld [vmem:[%s4100 + $0xa0] sm:$0xff]
        %v4122 = vld [vmem:[%s4100 + $0xa8] sm:$0xff]
        %v4123 = vld [vmem:[%s4100 + $0xb0] sm:$0xff]
        %v4124 = vld [vmem:[%s4100 + $0xb8] sm:$0xff]
        %v4125 = vld [vmem:[%s4100 + $0xc0] sm:$0xff]
        %v4126 = vld [vmem:[%s4100 + $0xc8] sm:$0xff]
        %v4127 = vld [vmem:[%s4100 + $0xd0] sm:$0xff]
        %v4128 = vld [vmem:[%s4100 + $0xd8] sm:$0xff]
        %v4129 = vld [vmem:[%s4100 + $0xe0] sm:$0xff]
        %v4130 = vld [vmem:[%s4100 + $0xe8] sm:$0xff]
        %v4131 = vld [vmem:[%s4100 + $0xf0] sm:$0xff]
        %v4132 = vld [vmem:[%s4100 + $0xf8] sm:$0xff]
        %v4133 = vld [vmem:[%s4100 + $0x100] sm:$0xff]
        %v4134 = vld [vmem:[%s4100 + $0x108] sm:$0xff]
        %v4135 = vld [vmem:[%s4100 + $0x110] sm:$0xff]
        %v4136 = vld [vmem:[%s4100 + $0x118] sm:$0xff]
        %v4137 = vld [vmem:[%s4100 + $0x120] sm:$0xff]
        %v4138 = vld [vmem:[%s4100 + $0x128] sm:$0xff]
        %v4139 = vld [vmem:[%s4100 + $0x130] sm:$0xff]
        %v4140 = vld [vmem:[%s4100 + $0x138] sm:$0xff]
        %v4141 = vld [vmem:[%s4100 + $0x140] sm:$0xff]
        %v4142 = vld [vmem:[%s4100 + $0x148] sm:$0xff]
        %v4143 = vld [vmem:[%s4100 + $0x150] sm:$0xff]
        %v4144 = vld [vmem:[%s4100 + $0x158] sm:$0xff]
        %v4145 = vld [vmem:[%s4100 + $0x160] sm:$0xff]
        %v4146 = vld [vmem:[%s4100 + $0x168] sm:$0xff]
        %v4147 = vld [vmem:[%s4100 + $0x170] sm:$0xff]
        %v4148 = vld [vmem:[%s4100 + $0x178] sm:$0xff]
        %v4149 = vld [vmem:[%s4100 + $0x180] sm:$0xff]
        %v4150 = vld [vmem:[%s4100 + $0x188] sm:$0xff]
        %v4151 = vld [vmem:[%s4100 + $0x190] sm:$0xff]
        %v4152 = vld [vmem:[%s4100 + $0x198] sm:$0xff]
        %v4153 = vld [vmem:[%s4100 + $0x1a0] sm:$0xff]
        %v4154 = vld [vmem:[%s4100 + $0x1a8] sm:$0xff]
        %v4155 = vld [vmem:[%s4100 + $0x1b0] sm:$0xff]
        %v4156 = vld [vmem:[%s4100 + $0x1b8] sm:$0xff]
        %v4157 = vld [vmem:[%s4100 + $0x1c0] sm:$0xff]
        %v4158 = vld [vmem:[%s4100 + $0x1c8] sm:$0xff]
        %v4159 = vld [vmem:[%s4100 + $0x1d0] sm:$0xff]
        %v4160 = vld [vmem:[%s4100 + $0x1d8] sm:$0xff]
        %v4161 = vld [vmem:[%s4100 + $0x1e0] sm:$0xff]
        %v4162 = vld [vmem:[%s4100 + $0x1e8] sm:$0xff]
        %v4163 = vld [vmem:[%s4100 + $0x1f0] sm:$0xff]
        %v4164 = vld [vmem:[%s4100 + $0x1f8] sm:$0xff]
        %v4165 = vld [vmem:[%s4100 + $0x200] sm:$0xff]
        %v4166 = vld [vmem:[%s4100 + $0x208] sm:$0xff]
        %v4167 = vld [vmem:[%s4100 + $0x210] sm:$0xff]
        %v4168 = vld [vmem:[%s4100 + $0x218] sm:$0xff]
        %v4169 = vld [vmem:[%s4100 + $0x220] sm:$0xff]
        %v4170 = vld [vmem:[%s4100 + $0x228] sm:$0xff]
        %v4171 = vld [vmem:[%s4100 + $0x230] sm:$0xff]
        %v4172 = vld [vmem:[%s4100 + $0x238] sm:$0xff]
        %v4173 = vld [vmem:[%s4100 + $0x240] sm:$0xff]
        %v4174 = vld [vmem:[%s4100 + $0x248] sm:$0xff]
        %v4175 = vld [vmem:[%s4100 + $0x250] sm:$0xff]
        %v4176 = vld [vmem:[%s4100 + $0x258] sm:$0xff]
        %v4177 = vld [vmem:[%s4100 + $0x260] sm:$0xff]
        %v4178 = vld [vmem:[%s4100 + $0x268] sm:$0xff]
        %v4179 = vld [vmem:[%s4100 + $0x270] sm:$0xff]
        %v4180 = vld [vmem:[%s4100 + $0x278] sm:$0xff]
        %v4181 = vld [vmem:[%s4100 + $0x280] sm:$0xff]
        %v4182 = vld [vmem:[%s4100 + $0x288] sm:$0xff]
        %v4183 = vld [vmem:[%s4100 + $0x290] sm:$0xff]
        %v4184 = vld [vmem:[%s4100 + $0x298] sm:$0xff]
        %v4185 = vld [vmem:[%s4100 + $0x2a0] sm:$0xff]
        %v4186 = vld [vmem:[%s4100 + $0x2a8] sm:$0xff]
        %v4187 = vld [vmem:[%s4100 + $0x2b0] sm:$0xff]
        %v4188 = vld [vmem:[%s4100 + $0x2b8] sm:$0xff]
        %v4189 = vld [vmem:[%s4100 + $0x2c0] sm:$0xff]
        %v4190 = vld [vmem:[%s4100 + $0x2c8] sm:$0xff]
        %v4191 = vld [vmem:[%s4100 + $0x2d0] sm:$0xff]
        %v4192 = vld [vmem:[%s4100 + $0x2d8] sm:$0xff]
        %v4193 = vld [vmem:[%s4100 + $0x2e0] sm:$0xff]
        %v4194 = vld [vmem:[%s4100 + $0x2e8] sm:$0xff]
        %v4195 = vld [vmem:[%s4100 + $0x2f0] sm:$0xff]
        %v4196 = vld [vmem:[%s4100 + $0x2f8] sm:$0xff]
        %4197 = vmatprep.subr.mxu0 %v4162
        %4198 = vmatpush1.msra.mxu0 %v4161
        %4199 = vmatprep.subr.mxu0 %v4158
        %4200 = vmatpush1.msra.mxu0 %v4157
        %4201 = vmatprep.subr.mxu0 %v4154
        %4202 = vmatpush1.msra.mxu0 %v4153
        %4203 = vmatprep.subr.mxu0 %v4150
        %4204 = vmatpush1.msra.mxu0 %v4149
        %4205 = vmatprep.subr.mxu0 %v4146
        %4206 = vmatpush1.msra.mxu0 %v4145
        %4207 = vmatprep.subr.mxu0 %v4142
        %4208 = vmatpush1.msra.mxu0 %v4141
        %4209 = vmatprep.subr.mxu0 %v4138
        %4210 = vmatpush1.msra.mxu0 %v4137
        %4211 = vmatprep.subr.mxu0 %v4134
        %4212 = vmatpush1.msra.mxu0 %v4133
        %4213 = vmatprep.subr.mxu0 %v4130
        %4214 = vmatpush1.msra.mxu0 %v4129
        %4215 = vmatprep.subr.mxu0 %v4126
        %4216 = vmatpush1.msra.mxu0 %v4125
        %4217 = vmatprep.subr.mxu0 %v4122
        %4218 = vmatpush1.msra.mxu0 %v4121
        %4219 = vmatprep.subr.mxu0 %v4118
        %4220 = vmatpush1.msra.mxu0 %v4117
        %4221 = vmatprep.subr.mxu0 %v4114
        %4222 = vmatpush1.msra.mxu0 %v4113
        %4223 = vmatprep.subr.mxu0 %v4110
        %4224 = vmatpush1.msra.mxu0 %v4109
        %4225 = vmatprep.subr.mxu0 %v4106
        %4226 = vmatpush1.msra.mxu0 %v4105
        %4227 = vmatprep.subr.mxu0 %v4102
        %4228 = vmatpush1.msra.mxu0 %v4101
        %4229 = vmatprep.subr.mxu0 0.0
        %4230 = vmatpush2.msra.mxu0 0.0
        %4231 = vmatprep.subr.mxu0 0.0
        %4232 = vmatpush2.msra.mxu0 0.0
        %4233 = vmatprep.subr.mxu0 0.0
        %4234 = vmatpush2.msra.mxu0 0.0
        %4235 = vmatprep.subr.mxu0 0.0
        %4236 = vmatpush2.msra.mxu0 0.0
        %4237 = vmatprep.subr.mxu0 0.0
        %4238 = vmatpush2.msra.mxu0 0.0
        %4239 = vmatprep.subr.mxu0 0.0
        %4240 = vmatpush2.msra.mxu0 0.0
        %4241 = vmatprep.subr.mxu0 0.0
        %4242 = vmatpush2.msra.mxu0 0.0
        %4243 = vmatprep.subr.mxu0 0.0
        %4244 = vmatpush2.msra.mxu0 0.0
        %4245 = vmatprep.subr.mxu0 %v4194
        %4246 = vmatpush2.msra.mxu0 %v4193
        %4247 = vmatprep.subr.mxu0 %v4190
        %4248 = vmatpush2.msra.mxu0 %v4189
        %4249 = vmatprep.subr.mxu0 %v4186
        %4250 = vmatpush2.msra.mxu0 %v4185
        %4251 = vmatprep.subr.mxu0 %v4182
        %4252 = vmatpush2.msra.mxu0 %v4181
        %4253 = vmatprep.subr.mxu0 %v4178
        %4254 = vmatpush2.msra.mxu0 %v4177
        %4255 = vmatprep.subr.mxu0 %v4174
        %4256 = vmatpush2.msra.mxu0 %v4173
        %4257 = vmatprep.subr.mxu0 %v4170
        %4258 = vmatpush2.msra.mxu0 %v4169
        %4259 = vmatprep.subr.mxu0 %v4166
        %4260 = vmatpush2.msra.mxu0 %v4165
        %4261 = vmatprep.mubr.f32.mxu0 %v3956
        %4262 = vmatmul.mubr.f32.gmra.mxu0 %v3951
        %v4263 = vpop.f32.mrf.mxu0
        %v4264 = vadd.f32 0.0, %v4263
        %v4265 = vpop.f32.mrf.mxu0
        %v4266 = vadd.f32 0.0, %v4265
        %4267 = vdwg.mxu0
        %4268 = vmatprep.subr.mxu0 %v4164
        %4269 = vmatpush1.msra.mxu0 %v4163
        %4270 = vmatprep.subr.mxu0 %v4160
        %4271 = vmatpush1.msra.mxu0 %v4159
        %4272 = vmatprep.subr.mxu0 %v4156
        %4273 = vmatpush1.msra.mxu0 %v4155
        %4274 = vmatprep.subr.mxu0 %v4152
        %4275 = vmatpush1.msra.mxu0 %v4151
        %4276 = vmatprep.subr.mxu0 %v4148
        %4277 = vmatpush1.msra.mxu0 %v4147
        %4278 = vmatprep.subr.mxu0 %v4144
        %4279 = vmatpush1.msra.mxu0 %v4143
        %4280 = vmatprep.subr.mxu0 %v4140
        %4281 = vmatpush1.msra.mxu0 %v4139
        %4282 = vmatprep.subr.mxu0 %v4136
        %4283 = vmatpush1.msra.mxu0 %v4135
        %4284 = vmatprep.subr.mxu0 %v4132
        %4285 = vmatpush1.msra.mxu0 %v4131
        %4286 = vmatprep.subr.mxu0 %v4128
        %4287 = vmatpush1.msra.mxu0 %v4127
        %4288 = vmatprep.subr.mxu0 %v4124
        %4289 = vmatpush1.msra.mxu0 %v4123
        %4290 = vmatprep.subr.mxu0 %v4120
        %4291 = vmatpush1.msra.mxu0 %v4119
        %4292 = vmatprep.subr.mxu0 %v4116
        %4293 = vmatpush1.msra.mxu0 %v4115
        %4294 = vmatprep.subr.mxu0 %v4112
        %4295 = vmatpush1.msra.mxu0 %v4111
        %4296 = vmatprep.subr.mxu0 %v4108
        %4297 = vmatpush1.msra.mxu0 %v4107
        %4298 = vmatprep.subr.mxu0 %v4104
        %4299 = vmatpush1.msra.mxu0 %v4103
        %4300 = vmatprep.subr.mxu0 0.0
        %4301 = vmatpush2.msra.mxu0 0.0
        %4302 = vmatprep.subr.mxu0 0.0
        %4303 = vmatpush2.msra.mxu0 0.0
        %4304 = vmatprep.subr.mxu0 0.0
        %4305 = vmatpush2.msra.mxu0 0.0
        %4306 = vmatprep.subr.mxu0 0.0
        %4307 = vmatpush2.msra.mxu0 0.0
        %4308 = vmatprep.subr.mxu0 0.0
        %4309 = vmatpush2.msra.mxu0 0.0
        %4310 = vmatprep.subr.mxu0 0.0
        %4311 = vmatpush2.msra.mxu0 0.0
        %4312 = vmatprep.subr.mxu0 0.0
        %4313 = vmatpush2.msra.mxu0 0.0
        %4314 = vmatprep.subr.mxu0 0.0
        %4315 = vmatpush2.msra.mxu0 0.0
        %4316 = vmatprep.subr.mxu0 %v4196
        %4317 = vmatpush2.msra.mxu0 %v4195
        %4318 = vmatprep.subr.mxu0 %v4192
        %4319 = vmatpush2.msra.mxu0 %v4191
        %4320 = vmatprep.subr.mxu0 %v4188
        %4321 = vmatpush2.msra.mxu0 %v4187
        %4322 = vmatprep.subr.mxu0 %v4184
        %4323 = vmatpush2.msra.mxu0 %v4183
        %4324 = vmatprep.subr.mxu0 %v4180
        %4325 = vmatpush2.msra.mxu0 %v4179
        %4326 = vmatprep.subr.mxu0 %v4176
        %4327 = vmatpush2.msra.mxu0 %v4175
        %4328 = vmatprep.subr.mxu0 %v4172
        %4329 = vmatpush2.msra.mxu0 %v4171
        %4330 = vmatprep.subr.mxu0 %v4168
        %4331 = vmatpush2.msra.mxu0 %v4167
        %4332 = vmatprep.mubr.f32.mxu0 %v3956
        %4333 = vmatmul.mubr.f32.gmra.mxu0 %v3951
        %v4334 = vpop.f32.mrf.mxu0
        %v4335 = vadd.f32 0.0, %v4334
        %v4336 = vpop.f32.mrf.mxu0
        %v4337 = vadd.f32 0.0, %v4336
        %4338 = vdwg.mxu0
        %v4339 = vadd.f32 %v3844, %v4025
        %v4340 = vadd.f32 %v3845, %v4027
        %v4341 = vadd.f32 %v3846, %v4096
        %v4342 = vadd.f32 %v3847, %v4098
        %v4343 = vadd.f32 %v3848, %v4264
        %v4344 = vadd.f32 %v3849, %v4266
        %v4345 = vadd.f32 %v3850, %v4335
        %v4346 = vadd.f32 %v3851, %v4337
        %v4347 = vmax.f32 %v4339, %v4343
        %v4348 = vmax.f32 %v4340, %v4344
        %v4349 = vmax.f32 %v4341, %v4345
        %v4350 = vmax.f32 %v4342, %v4346
        %v4351 = vld [vmem:[#allocation10] sm:$0xf]
        %v4353 = vlaneseq
        %v4354 = vshrl.u32 %v4353, 7
        %v4355 = vsub.s32 0, %v4354
        %v4356 = vrot.slane %v4351, %v4355
        %v4357 = vlaneseq
        %v4358 = vshrl.u32 %v4357, 7
        %v4359 = vsub.s32 1, %v4358
        %v4360 = vrot.slane %v4351, %v4359
        %v4361 = vlaneseq
        %v4362 = vshrl.u32 %v4361, 7
        %v4363 = vsub.s32 2, %v4362
        %v4364 = vrot.slane %v4351, %v4363
        %v4365 = vlaneseq
        %v4366 = vshrl.u32 %v4365, 7
        %v4367 = vsub.s32 3, %v4366
        %v4368 = vrot.slane %v4351, %v4367
        %v4373 = vadd.f32 %v4347, %v4356
        %v4374 = vadd.f32 %v4348, %v4360
        %v4375 = vadd.f32 %v4349, %v4364
        %v4376 = vadd.f32 %v4350, %v4368
        %v4377 = vld [vmem:[#allocation12] sm:$0xf]
        %vm4378 = vcmask 64512
        %v4380 = vsel %vm4378, %v4377, 0
        %4382 = vmatprep.subr.mxu0 0.0
        %4383 = vmatpush1.msra.mxu0 0.0
        %4384 = vmatprep.subr.mxu0 0.0
        %4385 = vmatpush1.msra.mxu0 0.0
        %4386 = vmatprep.subr.mxu0 0.0
        %4387 = vmatpush1.msra.mxu0 0.0
        %4388 = vmatprep.subr.mxu0 0.0
        %4389 = vmatpush1.msra.mxu0 0.0
        %4390 = vmatprep.subr.mxu0 0.0
        %4391 = vmatpush1.msra.mxu0 0.0
        %4392 = vmatprep.subr.mxu0 0.0
        %4393 = vmatpush1.msra.mxu0 0.0
        %4394 = vmatprep.subr.mxu0 0.0
        %4395 = vmatpush1.msra.mxu0 0.0
        %4396 = vmatprep.subr.mxu0 0.0
        %4397 = vmatpush1.msra.mxu0 0.0
        %4398 = vmatprep.subr.mxu0 0.0
        %4399 = vmatpush1.msra.mxu0 0.0
        %4400 = vmatprep.subr.mxu0 0.0
        %4401 = vmatpush1.msra.mxu0 0.0
        %4402 = vmatprep.subr.mxu0 0.0
        %4403 = vmatpush1.msra.mxu0 0.0
        %4404 = vmatprep.subr.mxu0 0.0
        %4405 = vmatpush1.msra.mxu0 0.0
        %4406 = vmatprep.subr.mxu0 0.0
        %4407 = vmatpush1.msra.mxu0 0.0
        %4408 = vmatprep.subr.mxu0 0.0
        %4409 = vmatpush1.msra.mxu0 0.0
        %4410 = vmatprep.subr.mxu0 0.0
        %4411 = vmatpush1.msra.mxu0 0.0
        %4412 = vmatprep.subr.mxu0 %v4374
        %4413 = vmatpush1.msra.mxu0 %v4373
        %4414 = vmatprep.subr.mxu0 0.0
        %4415 = vmatpush2.msra.mxu0 0.0
        %4416 = vmatprep.subr.mxu0 0.0
        %4417 = vmatpush2.msra.mxu0 0.0
        %4418 = vmatprep.subr.mxu0 0.0
        %4419 = vmatpush2.msra.mxu0 0.0
        %4420 = vmatprep.subr.mxu0 0.0
        %4421 = vmatpush2.msra.mxu0 0.0
        %4422 = vmatprep.subr.mxu0 0.0
        %4423 = vmatpush2.msra.mxu0 0.0
        %4424 = vmatprep.subr.mxu0 0.0
        %4425 = vmatpush2.msra.mxu0 0.0
        %4426 = vmatprep.subr.mxu0 0.0
        %4427 = vmatpush2.msra.mxu0 0.0
        %4428 = vmatprep.subr.mxu0 0.0
        %4429 = vmatpush2.msra.mxu0 0.0
        %4430 = vmatprep.subr.mxu0 0.0
        %4431 = vmatpush2.msra.mxu0 0.0
        %4432 = vmatprep.subr.mxu0 0.0
        %4433 = vmatpush2.msra.mxu0 0.0
        %4434 = vmatprep.subr.mxu0 0.0
        %4435 = vmatpush2.msra.mxu0 0.0
        %4436 = vmatprep.subr.mxu0 0.0
        %4437 = vmatpush2.msra.mxu0 0.0
        %4438 = vmatprep.subr.mxu0 0.0
        %4439 = vmatpush2.msra.mxu0 0.0
        %4440 = vmatprep.subr.mxu0 0.0
        %4441 = vmatpush2.msra.mxu0 0.0
        %4442 = vmatprep.subr.mxu0 0.0
        %4443 = vmatpush2.msra.mxu0 0.0
        %4444 = vmatprep.subr.mxu0 0.0
        %4445 = vmatpush2.msra.mxu0 0.0
        %4446 = vmatprep.mubr.f32.mxu0 0.0
        %4447 = vmatmul.mubr.f32.gmra.mxu0 %v4380
        %v4448 = vpop.f32.mrf.mxu0
        %v4449 = vadd.f32 0.0, %v4448
        %v4450 = vpop.f32.mrf.mxu0
        %v4451 = vadd.f32 0.0, %v4450
        %4452 = vdwg.mxu0
        %4453 = vmatprep.subr.mxu0 0.0
        %4454 = vmatpush1.msra.mxu0 0.0
        %4455 = vmatprep.subr.mxu0 0.0
        %4456 = vmatpush1.msra.mxu0 0.0
        %4457 = vmatprep.subr.mxu0 0.0
        %4458 = vmatpush1.msra.mxu0 0.0
        %4459 = vmatprep.subr.mxu0 0.0
        %4460 = vmatpush1.msra.mxu0 0.0
        %4461 = vmatprep.subr.mxu0 0.0
        %4462 = vmatpush1.msra.mxu0 0.0
        %4463 = vmatprep.subr.mxu0 0.0
        %4464 = vmatpush1.msra.mxu0 0.0
        %4465 = vmatprep.subr.mxu0 0.0
        %4466 = vmatpush1.msra.mxu0 0.0
        %4467 = vmatprep.subr.mxu0 0.0
        %4468 = vmatpush1.msra.mxu0 0.0
        %4469 = vmatprep.subr.mxu0 0.0
        %4470 = vmatpush1.msra.mxu0 0.0
        %4471 = vmatprep.subr.mxu0 0.0
        %4472 = vmatpush1.msra.mxu0 0.0
        %4473 = vmatprep.subr.mxu0 0.0
        %4474 = vmatpush1.msra.mxu0 0.0
        %4475 = vmatprep.subr.mxu0 0.0
        %4476 = vmatpush1.msra.mxu0 0.0
        %4477 = vmatprep.subr.mxu0 0.0
        %4478 = vmatpush1.msra.mxu0 0.0
        %4479 = vmatprep.subr.mxu0 0.0
        %4480 = vmatpush1.msra.mxu0 0.0
        %4481 = vmatprep.subr.mxu0 0.0
        %4482 = vmatpush1.msra.mxu0 0.0
        %4483 = vmatprep.subr.mxu0 %v4376
        %4484 = vmatpush1.msra.mxu0 %v4375
        %4485 = vmatprep.subr.mxu0 0.0
        %4486 = vmatpush2.msra.mxu0 0.0
        %4487 = vmatprep.subr.mxu0 0.0
        %4488 = vmatpush2.msra.mxu0 0.0
        %4489 = vmatprep.subr.mxu0 0.0
        %4490 = vmatpush2.msra.mxu0 0.0
        %4491 = vmatprep.subr.mxu0 0.0
        %4492 = vmatpush2.msra.mxu0 0.0
        %4493 = vmatprep.subr.mxu0 0.0
        %4494 = vmatpush2.msra.mxu0 0.0
        %4495 = vmatprep.subr.mxu0 0.0
        %4496 = vmatpush2.msra.mxu0 0.0
        %4497 = vmatprep.subr.mxu0 0.0
        %4498 = vmatpush2.msra.mxu0 0.0
        %4499 = vmatprep.subr.mxu0 0.0
        %4500 = vmatpush2.msra.mxu0 0.0
        %4501 = vmatprep.subr.mxu0 0.0
        %4502 = vmatpush2.msra.mxu0 0.0
        %4503 = vmatprep.subr.mxu0 0.0
        %4504 = vmatpush2.msra.mxu0 0.0
        %4505 = vmatprep.subr.mxu0 0.0
        %4506 = vmatpush2.msra.mxu0 0.0
        %4507 = vmatprep.subr.mxu0 0.0
        %4508 = vmatpush2.msra.mxu0 0.0
        %4509 = vmatprep.subr.mxu0 0.0
        %4510 = vmatpush2.msra.mxu0 0.0
        %4511 = vmatprep.subr.mxu0 0.0
        %4512 = vmatpush2.msra.mxu0 0.0
        %4513 = vmatprep.subr.mxu0 0.0
        %4514 = vmatpush2.msra.mxu0 0.0
        %4515 = vmatprep.subr.mxu0 0.0
        %4516 = vmatpush2.msra.mxu0 0.0
        %4517 = vmatprep.mubr.f32.mxu0 0.0
        %4518 = vmatmul.mubr.f32.gmra.mxu0 %v4380
        %v4519 = vpop.f32.mrf.mxu0
        %v4520 = vadd.f32 0.0, %v4519
        %v4521 = vpop.f32.mrf.mxu0
        %v4522 = vadd.f32 0.0, %v4521
        %4523 = vdwg.mxu0
        %v4524 = vld [vmem:[#allocation13] sm:$0xf]
        %v4526 = vsel %vm4378, %v4524, 0
        %4528 = vmatprep.subr.mxu0 0.0
        %4529 = vmatpush1.msra.mxu0 0.0
        %4530 = vmatprep.subr.mxu0 0.0
        %4531 = vmatpush1.msra.mxu0 0.0
        %4532 = vmatprep.subr.mxu0 0.0
        %4533 = vmatpush1.msra.mxu0 0.0
        %4534 = vmatprep.subr.mxu0 0.0
        %4535 = vmatpush1.msra.mxu0 0.0
        %4536 = vmatprep.subr.mxu0 0.0
        %4537 = vmatpush1.msra.mxu0 0.0
        %4538 = vmatprep.subr.mxu0 0.0
        %4539 = vmatpush1.msra.mxu0 0.0
        %4540 = vmatprep.subr.mxu0 0.0
        %4541 = vmatpush1.msra.mxu0 0.0
        %4542 = vmatprep.subr.mxu0 0.0
        %4543 = vmatpush1.msra.mxu0 0.0
        %4544 = vmatprep.subr.mxu0 0.0
        %4545 = vmatpush1.msra.mxu0 0.0
        %4546 = vmatprep.subr.mxu0 0.0
        %4547 = vmatpush1.msra.mxu0 0.0
        %4548 = vmatprep.subr.mxu0 0.0
        %4549 = vmatpush1.msra.mxu0 0.0
        %4550 = vmatprep.subr.mxu0 0.0
        %4551 = vmatpush1.msra.mxu0 0.0
        %4552 = vmatprep.subr.mxu0 0.0
        %4553 = vmatpush1.msra.mxu0 0.0
        %4554 = vmatprep.subr.mxu0 0.0
        %4555 = vmatpush1.msra.mxu0 0.0
        %4556 = vmatprep.subr.mxu0 0.0
        %4557 = vmatpush1.msra.mxu0 0.0
        %4558 = vmatprep.subr.mxu0 %v4374
        %4559 = vmatpush1.msra.mxu0 %v4373
        %4560 = vmatprep.subr.mxu0 0.0
        %4561 = vmatpush2.msra.mxu0 0.0
        %4562 = vmatprep.subr.mxu0 0.0
        %4563 = vmatpush2.msra.mxu0 0.0
        %4564 = vmatprep.subr.mxu0 0.0
        %4565 = vmatpush2.msra.mxu0 0.0
        %4566 = vmatprep.subr.mxu0 0.0
        %4567 = vmatpush2.msra.mxu0 0.0
        %4568 = vmatprep.subr.mxu0 0.0
        %4569 = vmatpush2.msra.mxu0 0.0
        %4570 = vmatprep.subr.mxu0 0.0
        %4571 = vmatpush2.msra.mxu0 0.0
        %4572 = vmatprep.subr.mxu0 0.0
        %4573 = vmatpush2.msra.mxu0 0.0
        %4574 = vmatprep.subr.mxu0 0.0
        %4575 = vmatpush2.msra.mxu0 0.0
        %4576 = vmatprep.subr.mxu0 0.0
        %4577 = vmatpush2.msra.mxu0 0.0
        %4578 = vmatprep.subr.mxu0 0.0
        %4579 = vmatpush2.msra.mxu0 0.0
        %4580 = vmatprep.subr.mxu0 0.0
        %4581 = vmatpush2.msra.mxu0 0.0
        %4582 = vmatprep.subr.mxu0 0.0
        %4583 = vmatpush2.msra.mxu0 0.0
        %4584 = vmatprep.subr.mxu0 0.0
        %4585 = vmatpush2.msra.mxu0 0.0
        %4586 = vmatprep.subr.mxu0 0.0
        %4587 = vmatpush2.msra.mxu0 0.0
        %4588 = vmatprep.subr.mxu0 0.0
        %4589 = vmatpush2.msra.mxu0 0.0
        %4590 = vmatprep.subr.mxu0 0.0
        %4591 = vmatpush2.msra.mxu0 0.0
        %4592 = vmatprep.mubr.f32.mxu0 0.0
        %4593 = vmatmul.mubr.f32.gmra.mxu0 %v4526
        %v4594 = vpop.f32.mrf.mxu0
        %v4595 = vadd.f32 0.0, %v4594
        %v4596 = vpop.f32.mrf.mxu0
        %v4597 = vadd.f32 0.0, %v4596
        %4598 = vdwg.mxu0
        %4599 = vmatprep.subr.mxu0 0.0
        %4600 = vmatpush1.msra.mxu0 0.0
        %4601 = vmatprep.subr.mxu0 0.0
        %4602 = vmatpush1.msra.mxu0 0.0
        %4603 = vmatprep.subr.mxu0 0.0
        %4604 = vmatpush1.msra.mxu0 0.0
        %4605 = vmatprep.subr.mxu0 0.0
        %4606 = vmatpush1.msra.mxu0 0.0
        %4607 = vmatprep.subr.mxu0 0.0
        %4608 = vmatpush1.msra.mxu0 0.0
        %4609 = vmatprep.subr.mxu0 0.0
        %4610 = vmatpush1.msra.mxu0 0.0
        %4611 = vmatprep.subr.mxu0 0.0
        %4612 = vmatpush1.msra.mxu0 0.0
        %4613 = vmatprep.subr.mxu0 0.0
        %4614 = vmatpush1.msra.mxu0 0.0
        %4615 = vmatprep.subr.mxu0 0.0
        %4616 = vmatpush1.msra.mxu0 0.0
        %4617 = vmatprep.subr.mxu0 0.0
        %4618 = vmatpush1.msra.mxu0 0.0
        %4619 = vmatprep.subr.mxu0 0.0
        %4620 = vmatpush1.msra.mxu0 0.0
        %4621 = vmatprep.subr.mxu0 0.0
        %4622 = vmatpush1.msra.mxu0 0.0
        %4623 = vmatprep.subr.mxu0 0.0
        %4624 = vmatpush1.msra.mxu0 0.0
        %4625 = vmatprep.subr.mxu0 0.0
        %4626 = vmatpush1.msra.mxu0 0.0
        %4627 = vmatprep.subr.mxu0 0.0
        %4628 = vmatpush1.msra.mxu0 0.0
        %4629 = vmatprep.subr.mxu0 %v4376
        %4630 = vmatpush1.msra.mxu0 %v4375
        %4631 = vmatprep.subr.mxu0 0.0
        %4632 = vmatpush2.msra.mxu0 0.0
        %4633 = vmatprep.subr.mxu0 0.0
        %4634 = vmatpush2.msra.mxu0 0.0
        %4635 = vmatprep.subr.mxu0 0.0
        %4636 = vmatpush2.msra.mxu0 0.0
        %4637 = vmatprep.subr.mxu0 0.0
        %4638 = vmatpush2.msra.mxu0 0.0
        %4639 = vmatprep.subr.mxu0 0.0
        %4640 = vmatpush2.msra.mxu0 0.0
        %4641 = vmatprep.subr.mxu0 0.0
        %4642 = vmatpush2.msra.mxu0 0.0
        %4643 = vmatprep.subr.mxu0 0.0
        %4644 = vmatpush2.msra.mxu0 0.0
        %4645 = vmatprep.subr.mxu0 0.0
        %4646 = vmatpush2.msra.mxu0 0.0
        %4647 = vmatprep.subr.mxu0 0.0
        %4648 = vmatpush2.msra.mxu0 0.0
        %4649 = vmatprep.subr.mxu0 0.0
        %4650 = vmatpush2.msra.mxu0 0.0
        %4651 = vmatprep.subr.mxu0 0.0
        %4652 = vmatpush2.msra.mxu0 0.0
        %4653 = vmatprep.subr.mxu0 0.0
        %4654 = vmatpush2.msra.mxu0 0.0
        %4655 = vmatprep.subr.mxu0 0.0
        %4656 = vmatpush2.msra.mxu0 0.0
        %4657 = vmatprep.subr.mxu0 0.0
        %4658 = vmatpush2.msra.mxu0 0.0
        %4659 = vmatprep.subr.mxu0 0.0
        %4660 = vmatpush2.msra.mxu0 0.0
        %4661 = vmatprep.subr.mxu0 0.0
        %4662 = vmatpush2.msra.mxu0 0.0
        %4663 = vmatprep.mubr.f32.mxu0 0.0
        %4664 = vmatmul.mubr.f32.gmra.mxu0 %v4526
        %v4665 = vpop.f32.mrf.mxu0
        %v4666 = vadd.f32 0.0, %v4665
        %v4667 = vpop.f32.mrf.mxu0
        %v4668 = vadd.f32 0.0, %v4667
        %4669 = vdwg.mxu0
        %v4670 = vmax.f32 %v4449, %v4595
        %v4671 = vmax.f32 %v4451, %v4597
        %v4672 = vmax.f32 %v4520, %v4666
        %v4673 = vmax.f32 %v4522, %v4668
        %v4674 = vmax.f32 %v4670, 0.0
        %v4675 = vmax.f32 %v4671, 0.0
        %v4676 = vmax.f32 %v4672, 0.0
        %v4677 = vmax.f32 %v4673, 0.0
        %v4682 = vrot.slane %v4674, 1
        %v4683 = vrot.slane %v4675, 1
        %v4684 = vrot.slane %v4676, 1
        %v4685 = vrot.slane %v4677, 1
        %v4690 = vrot.slane %v4674, 2
        %v4691 = vrot.slane %v4675, 2
        %v4692 = vrot.slane %v4676, 2
        %v4693 = vrot.slane %v4677, 2
        %v4698 = vrot.slane %v4674, 3
        %v4699 = vrot.slane %v4675, 3
        %v4700 = vrot.slane %v4676, 3
        %v4701 = vrot.slane %v4677, 3
        %v4706 = vld [vmem:[#allocation15] sm:$0xff]
        %v4707 = vld [vmem:[#allocation15 + $0x8] sm:$0xff]
        %v4708 = vld [vmem:[#allocation15 + $0x10] sm:$0xff]
        %v4709 = vld [vmem:[#allocation15 + $0x18] sm:$0xff]
        %v4710 = vld [vmem:[#allocation15 + $0x20] sm:$0xff]
        %v4711 = vld [vmem:[#allocation15 + $0x28] sm:$0xff]
        %v4712 = vld [vmem:[#allocation15 + $0x30] sm:$0xff]
        %v4713 = vld [vmem:[#allocation15 + $0x38] sm:$0xff]
        %v4714 = vld [vmem:[#allocation15 + $0x40] sm:$0xff]
        %v4715 = vld [vmem:[#allocation15 + $0x48] sm:$0xff]
        %v4716 = vld [vmem:[#allocation15 + $0x50] sm:$0xff]
        %v4717 = vld [vmem:[#allocation15 + $0x58] sm:$0xff]
        %v4718 = vld [vmem:[#allocation15 + $0x60] sm:$0xff]
        %v4719 = vld [vmem:[#allocation15 + $0x68] sm:$0xff]
        %v4720 = vld [vmem:[#allocation15 + $0x70] sm:$0xff]
        %v4721 = vld [vmem:[#allocation15 + $0x78] sm:$0xff]
        %v4722 = vld [vmem:[#allocation15 + $0x80] sm:$0xff]
        %v4723 = vld [vmem:[#allocation15 + $0x88] sm:$0xff]
        %v4724 = vld [vmem:[#allocation15 + $0x90] sm:$0xff]
        %v4725 = vld [vmem:[#allocation15 + $0x98] sm:$0xff]
        %v4726 = vld [vmem:[#allocation15 + $0xa0] sm:$0xff]
        %v4727 = vld [vmem:[#allocation15 + $0xa8] sm:$0xff]
        %v4728 = vld [vmem:[#allocation15 + $0xb0] sm:$0xff]
        %v4729 = vld [vmem:[#allocation15 + $0xb8] sm:$0xff]
        %v4730 = vld [vmem:[#allocation15 + $0xc0] sm:$0xff]
        %v4731 = vld [vmem:[#allocation15 + $0xc8] sm:$0xff]
        %v4732 = vld [vmem:[#allocation15 + $0xd0] sm:$0xff]
        %v4733 = vld [vmem:[#allocation15 + $0xd8] sm:$0xff]
        %v4734 = vld [vmem:[#allocation15 + $0xe0] sm:$0xff]
        %v4735 = vld [vmem:[#allocation15 + $0xe8] sm:$0xff]
        %v4736 = vld [vmem:[#allocation15 + $0xf0] sm:$0xff]
        %v4737 = vld [vmem:[#allocation15 + $0xf8] sm:$0xff]
        %v4738 = vld [vmem:[#allocation15 + $0x100] sm:$0xff]
        %v4739 = vld [vmem:[#allocation15 + $0x108] sm:$0xff]
        %v4740 = vld [vmem:[#allocation15 + $0x110] sm:$0xff]
        %v4741 = vld [vmem:[#allocation15 + $0x118] sm:$0xff]
        %v4742 = vld [vmem:[#allocation15 + $0x120] sm:$0xff]
        %v4743 = vld [vmem:[#allocation15 + $0x128] sm:$0xff]
        %v4744 = vld [vmem:[#allocation15 + $0x130] sm:$0xff]
        %v4745 = vld [vmem:[#allocation15 + $0x138] sm:$0xff]
        %v4746 = vld [vmem:[#allocation15 + $0x140] sm:$0xff]
        %v4747 = vld [vmem:[#allocation15 + $0x148] sm:$0xff]
        %v4748 = vld [vmem:[#allocation15 + $0x150] sm:$0xff]
        %v4749 = vld [vmem:[#allocation15 + $0x158] sm:$0xff]
        %v4750 = vld [vmem:[#allocation15 + $0x160] sm:$0xff]
        %v4751 = vld [vmem:[#allocation15 + $0x168] sm:$0xff]
        %v4752 = vld [vmem:[#allocation15 + $0x170] sm:$0xff]
        %v4753 = vld [vmem:[#allocation15 + $0x178] sm:$0xff]
        %v4754 = vld [vmem:[#allocation15 + $0x180] sm:$0xff]
        %v4755 = vld [vmem:[#allocation15 + $0x188] sm:$0xff]
        %v4756 = vld [vmem:[#allocation15 + $0x190] sm:$0xff]
        %v4757 = vld [vmem:[#allocation15 + $0x198] sm:$0xff]
        %v4758 = vld [vmem:[#allocation15 + $0x1a0] sm:$0xff]
        %v4759 = vld [vmem:[#allocation15 + $0x1a8] sm:$0xff]
        %v4760 = vld [vmem:[#allocation15 + $0x1b0] sm:$0xff]
        %v4761 = vld [vmem:[#allocation15 + $0x1b8] sm:$0xff]
        %v4762 = vld [vmem:[#allocation15 + $0x1c0] sm:$0xff]
        %v4763 = vld [vmem:[#allocation15 + $0x1c8] sm:$0xff]
        %v4764 = vld [vmem:[#allocation15 + $0x1d0] sm:$0xff]
        %v4765 = vld [vmem:[#allocation15 + $0x1d8] sm:$0xff]
        %v4766 = vld [vmem:[#allocation15 + $0x1e0] sm:$0xff]
        %v4767 = vld [vmem:[#allocation15 + $0x1e8] sm:$0xff]
        %v4768 = vld [vmem:[#allocation15 + $0x1f0] sm:$0xff]
        %v4769 = vld [vmem:[#allocation15 + $0x1f8] sm:$0xff]
        %v4770 = vld [vmem:[#allocation15 + $0x200] sm:$0xff]
        %v4771 = vld [vmem:[#allocation15 + $0x208] sm:$0xff]
        %v4772 = vld [vmem:[#allocation15 + $0x210] sm:$0xff]
        %v4773 = vld [vmem:[#allocation15 + $0x218] sm:$0xff]
        %v4774 = vld [vmem:[#allocation15 + $0x220] sm:$0xff]
        %v4775 = vld [vmem:[#allocation15 + $0x228] sm:$0xff]
        %v4776 = vld [vmem:[#allocation15 + $0x230] sm:$0xff]
        %v4777 = vld [vmem:[#allocation15 + $0x238] sm:$0xff]
        %v4778 = vld [vmem:[#allocation15 + $0x240] sm:$0xff]
        %v4779 = vld [vmem:[#allocation15 + $0x248] sm:$0xff]
        %v4780 = vld [vmem:[#allocation15 + $0x250] sm:$0xff]
        %v4781 = vld [vmem:[#allocation15 + $0x258] sm:$0xff]
        %v4782 = vld [vmem:[#allocation15 + $0x260] sm:$0xff]
        %v4783 = vld [vmem:[#allocation15 + $0x268] sm:$0xff]
        %v4784 = vld [vmem:[#allocation15 + $0x270] sm:$0xff]
        %v4785 = vld [vmem:[#allocation15 + $0x278] sm:$0xff]
        %v4786 = vld [vmem:[#allocation15 + $0x280] sm:$0xff]
        %v4787 = vld [vmem:[#allocation15 + $0x288] sm:$0xff]
        %v4788 = vld [vmem:[#allocation15 + $0x290] sm:$0xff]
        %v4789 = vld [vmem:[#allocation15 + $0x298] sm:$0xff]
        %v4790 = vld [vmem:[#allocation15 + $0x2a0] sm:$0xff]
        %v4791 = vld [vmem:[#allocation15 + $0x2a8] sm:$0xff]
        %v4792 = vld [vmem:[#allocation15 + $0x2b0] sm:$0xff]
        %v4793 = vld [vmem:[#allocation15 + $0x2b8] sm:$0xff]
        %v4794 = vld [vmem:[#allocation15 + $0x2c0] sm:$0xff]
        %v4795 = vld [vmem:[#allocation15 + $0x2c8] sm:$0xff]
        %v4796 = vld [vmem:[#allocation15 + $0x2d0] sm:$0xff]
        %v4797 = vld [vmem:[#allocation15 + $0x2d8] sm:$0xff]
        %v4798 = vld [vmem:[#allocation15 + $0x2e0] sm:$0xff]
        %v4799 = vld [vmem:[#allocation15 + $0x2e8] sm:$0xff]
        %v4800 = vld [vmem:[#allocation15 + $0x2f0] sm:$0xff]
        %v4801 = vld [vmem:[#allocation15 + $0x2f8] sm:$0xff]
        %v4802 = vld [vmem:[#allocation15 + $0x300] sm:$0xff]
        %v4803 = vld [vmem:[#allocation15 + $0x308] sm:$0xff]
        %v4804 = vld [vmem:[#allocation15 + $0x310] sm:$0xff]
        %v4805 = vld [vmem:[#allocation15 + $0x318] sm:$0xff]
        %v4806 = vld [vmem:[#allocation15 + $0x320] sm:$0xff]
        %v4807 = vld [vmem:[#allocation15 + $0x328] sm:$0xff]
        %v4808 = vld [vmem:[#allocation15 + $0x330] sm:$0xff]
        %v4809 = vld [vmem:[#allocation15 + $0x338] sm:$0xff]
        %v4810 = vld [vmem:[#allocation15 + $0x340] sm:$0xff]
        %v4811 = vld [vmem:[#allocation15 + $0x348] sm:$0xff]
        %v4812 = vld [vmem:[#allocation15 + $0x350] sm:$0xff]
        %v4813 = vld [vmem:[#allocation15 + $0x358] sm:$0xff]
        %v4814 = vld [vmem:[#allocation15 + $0x360] sm:$0xff]
        %v4815 = vld [vmem:[#allocation15 + $0x368] sm:$0xff]
        %v4816 = vld [vmem:[#allocation15 + $0x370] sm:$0xff]
        %v4817 = vld [vmem:[#allocation15 + $0x378] sm:$0xff]
        %v4818 = vld [vmem:[#allocation15 + $0x380] sm:$0xff]
        %v4819 = vld [vmem:[#allocation15 + $0x388] sm:$0xff]
        %v4820 = vld [vmem:[#allocation15 + $0x390] sm:$0xff]
        %v4821 = vld [vmem:[#allocation15 + $0x398] sm:$0xff]
        %v4822 = vld [vmem:[#allocation15 + $0x3a0] sm:$0xff]
        %v4823 = vld [vmem:[#allocation15 + $0x3a8] sm:$0xff]
        %v4824 = vld [vmem:[#allocation15 + $0x3b0] sm:$0xff]
        %v4825 = vld [vmem:[#allocation15 + $0x3b8] sm:$0xff]
        %v4826 = vld [vmem:[#allocation15 + $0x3c0] sm:$0xff]
        %v4827 = vld [vmem:[#allocation15 + $0x3c8] sm:$0xff]
        %v4828 = vld [vmem:[#allocation15 + $0x3d0] sm:$0xff]
        %v4829 = vld [vmem:[#allocation15 + $0x3d8] sm:$0xff]
        %v4830 = vld [vmem:[#allocation15 + $0x3e0] sm:$0xff]
        %v4831 = vld [vmem:[#allocation15 + $0x3e8] sm:$0xff]
        %v4832 = vld [vmem:[#allocation15 + $0x3f0] sm:$0xff]
        %v4833 = vld [vmem:[#allocation15 + $0x3f8] sm:$0xff]
        %v4834 = vld [vmem:[#allocation15 + $0x400] sm:$0xff]
        %v4835 = vld [vmem:[#allocation15 + $0x408] sm:$0xff]
        %v4836 = vld [vmem:[#allocation15 + $0x410] sm:$0xff]
        %v4837 = vld [vmem:[#allocation15 + $0x418] sm:$0xff]
        %v4838 = vld [vmem:[#allocation15 + $0x420] sm:$0xff]
        %v4839 = vld [vmem:[#allocation15 + $0x428] sm:$0xff]
        %v4840 = vld [vmem:[#allocation15 + $0x430] sm:$0xff]
        %v4841 = vld [vmem:[#allocation15 + $0x438] sm:$0xff]
        %v4842 = vld [vmem:[#allocation15 + $0x440] sm:$0xff]
        %v4843 = vld [vmem:[#allocation15 + $0x448] sm:$0xff]
        %v4844 = vld [vmem:[#allocation15 + $0x450] sm:$0xff]
        %v4845 = vld [vmem:[#allocation15 + $0x458] sm:$0xff]
        %v4846 = vld [vmem:[#allocation15 + $0x460] sm:$0xff]
        %v4847 = vld [vmem:[#allocation15 + $0x468] sm:$0xff]
        %v4848 = vld [vmem:[#allocation15 + $0x470] sm:$0xff]
        %v4849 = vld [vmem:[#allocation15 + $0x478] sm:$0xff]
        %v4850 = vld [vmem:[#allocation15 + $0x480] sm:$0xff]
        %v4851 = vld [vmem:[#allocation15 + $0x488] sm:$0xff]
        %v4852 = vld [vmem:[#allocation15 + $0x490] sm:$0xff]
        %v4853 = vld [vmem:[#allocation15 + $0x498] sm:$0xff]
        %v4854 = vld [vmem:[#allocation15 + $0x4a0] sm:$0xff]
        %v4855 = vld [vmem:[#allocation15 + $0x4a8] sm:$0xff]
        %v4856 = vld [vmem:[#allocation15 + $0x4b0] sm:$0xff]
        %v4857 = vld [vmem:[#allocation15 + $0x4b8] sm:$0xff]
        %v4858 = vld [vmem:[#allocation15 + $0x4c0] sm:$0xff]
        %v4859 = vld [vmem:[#allocation15 + $0x4c8] sm:$0xff]
        %v4860 = vld [vmem:[#allocation15 + $0x4d0] sm:$0xff]
        %v4861 = vld [vmem:[#allocation15 + $0x4d8] sm:$0xff]
        %v4862 = vld [vmem:[#allocation15 + $0x4e0] sm:$0xff]
        %v4863 = vld [vmem:[#allocation15 + $0x4e8] sm:$0xff]
        %v4864 = vld [vmem:[#allocation15 + $0x4f0] sm:$0xff]
        %v4865 = vld [vmem:[#allocation15 + $0x4f8] sm:$0xff]
        %v4866 = vld [vmem:[#allocation15 + $0x500] sm:$0xff]
        %v4867 = vld [vmem:[#allocation15 + $0x508] sm:$0xff]
        %v4868 = vld [vmem:[#allocation15 + $0x510] sm:$0xff]
        %v4869 = vld [vmem:[#allocation15 + $0x518] sm:$0xff]
        %v4870 = vld [vmem:[#allocation15 + $0x520] sm:$0xff]
        %v4871 = vld [vmem:[#allocation15 + $0x528] sm:$0xff]
        %v4872 = vld [vmem:[#allocation15 + $0x530] sm:$0xff]
        %v4873 = vld [vmem:[#allocation15 + $0x538] sm:$0xff]
        %v4874 = vld [vmem:[#allocation15 + $0x540] sm:$0xff]
        %v4875 = vld [vmem:[#allocation15 + $0x548] sm:$0xff]
        %v4876 = vld [vmem:[#allocation15 + $0x550] sm:$0xff]
        %v4877 = vld [vmem:[#allocation15 + $0x558] sm:$0xff]
        %v4878 = vld [vmem:[#allocation15 + $0x560] sm:$0xff]
        %v4879 = vld [vmem:[#allocation15 + $0x568] sm:$0xff]
        %v4880 = vld [vmem:[#allocation15 + $0x570] sm:$0xff]
        %v4881 = vld [vmem:[#allocation15 + $0x578] sm:$0xff]
        %v4882 = vld [vmem:[#allocation15 + $0x580] sm:$0xff]
        %v4883 = vld [vmem:[#allocation15 + $0x588] sm:$0xff]
        %v4884 = vld [vmem:[#allocation15 + $0x590] sm:$0xff]
        %v4885 = vld [vmem:[#allocation15 + $0x598] sm:$0xff]
        %v4886 = vld [vmem:[#allocation15 + $0x5a0] sm:$0xff]
        %v4887 = vld [vmem:[#allocation15 + $0x5a8] sm:$0xff]
        %v4888 = vld [vmem:[#allocation15 + $0x5b0] sm:$0xff]
        %v4889 = vld [vmem:[#allocation15 + $0x5b8] sm:$0xff]
        %v4890 = vld [vmem:[#allocation15 + $0x5c0] sm:$0xff]
        %v4891 = vld [vmem:[#allocation15 + $0x5c8] sm:$0xff]
        %v4892 = vld [vmem:[#allocation15 + $0x5d0] sm:$0xff]
        %v4893 = vld [vmem:[#allocation15 + $0x5d8] sm:$0xff]
        %v4894 = vld [vmem:[#allocation15 + $0x5e0] sm:$0xff]
        %v4895 = vld [vmem:[#allocation15 + $0x5e8] sm:$0xff]
        %v4896 = vld [vmem:[#allocation15 + $0x5f0] sm:$0xff]
        %v4897 = vld [vmem:[#allocation15 + $0x5f8] sm:$0xff]
        %v4898 = vld [vmem:[#allocation15 + $0x600] sm:$0xff]
        %v4899 = vld [vmem:[#allocation15 + $0x608] sm:$0xff]
        %v4900 = vld [vmem:[#allocation15 + $0x610] sm:$0xff]
        %v4901 = vld [vmem:[#allocation15 + $0x618] sm:$0xff]
        %v4902 = vld [vmem:[#allocation15 + $0x620] sm:$0xff]
        %v4903 = vld [vmem:[#allocation15 + $0x628] sm:$0xff]
        %v4904 = vld [vmem:[#allocation15 + $0x630] sm:$0xff]
        %v4905 = vld [vmem:[#allocation15 + $0x638] sm:$0xff]
        %v4906 = vld [vmem:[#allocation15 + $0x640] sm:$0xff]
        %v4907 = vld [vmem:[#allocation15 + $0x648] sm:$0xff]
        %v4908 = vld [vmem:[#allocation15 + $0x650] sm:$0xff]
        %v4909 = vld [vmem:[#allocation15 + $0x658] sm:$0xff]
        %v4910 = vld [vmem:[#allocation15 + $0x660] sm:$0xff]
        %v4911 = vld [vmem:[#allocation15 + $0x668] sm:$0xff]
        %v4912 = vld [vmem:[#allocation15 + $0x670] sm:$0xff]
        %v4913 = vld [vmem:[#allocation15 + $0x678] sm:$0xff]
        %v4914 = vld [vmem:[#allocation15 + $0x680] sm:$0xff]
        %v4915 = vld [vmem:[#allocation15 + $0x688] sm:$0xff]
        %v4916 = vld [vmem:[#allocation15 + $0x690] sm:$0xff]
        %v4917 = vld [vmem:[#allocation15 + $0x698] sm:$0xff]
        %v4918 = vld [vmem:[#allocation15 + $0x6a0] sm:$0xff]
        %v4919 = vld [vmem:[#allocation15 + $0x6a8] sm:$0xff]
        %v4920 = vld [vmem:[#allocation15 + $0x6b0] sm:$0xff]
        %v4921 = vld [vmem:[#allocation15 + $0x6b8] sm:$0xff]
        %v4922 = vld [vmem:[#allocation15 + $0x6c0] sm:$0xff]
        %v4923 = vld [vmem:[#allocation15 + $0x6c8] sm:$0xff]
        %v4924 = vld [vmem:[#allocation15 + $0x6d0] sm:$0xff]
        %v4925 = vld [vmem:[#allocation15 + $0x6d8] sm:$0xff]
        %v4926 = vld [vmem:[#allocation15 + $0x6e0] sm:$0xff]
        %v4927 = vld [vmem:[#allocation15 + $0x6e8] sm:$0xff]
        %v4928 = vld [vmem:[#allocation15 + $0x6f0] sm:$0xff]
        %v4929 = vld [vmem:[#allocation15 + $0x6f8] sm:$0xff]
        %v4930 = vld [vmem:[#allocation15 + $0x700] sm:$0xff]
        %v4931 = vld [vmem:[#allocation15 + $0x708] sm:$0xff]
        %v4932 = vld [vmem:[#allocation15 + $0x710] sm:$0xff]
        %v4933 = vld [vmem:[#allocation15 + $0x718] sm:$0xff]
        %v4934 = vld [vmem:[#allocation15 + $0x720] sm:$0xff]
        %v4935 = vld [vmem:[#allocation15 + $0x728] sm:$0xff]
        %v4936 = vld [vmem:[#allocation15 + $0x730] sm:$0xff]
        %v4937 = vld [vmem:[#allocation15 + $0x738] sm:$0xff]
        %v4938 = vld [vmem:[#allocation15 + $0x740] sm:$0xff]
        %v4939 = vld [vmem:[#allocation15 + $0x748] sm:$0xff]
        %v4940 = vld [vmem:[#allocation15 + $0x750] sm:$0xff]
        %v4941 = vld [vmem:[#allocation15 + $0x758] sm:$0xff]
        %v4942 = vld [vmem:[#allocation15 + $0x760] sm:$0xff]
        %v4943 = vld [vmem:[#allocation15 + $0x768] sm:$0xff]
        %v4944 = vld [vmem:[#allocation15 + $0x770] sm:$0xff]
        %v4945 = vld [vmem:[#allocation15 + $0x778] sm:$0xff]
        %v4946 = vld [vmem:[#allocation15 + $0x780] sm:$0xff]
        %v4947 = vld [vmem:[#allocation15 + $0x788] sm:$0xff]
        %v4948 = vld [vmem:[#allocation15 + $0x790] sm:$0xff]
        %v4949 = vld [vmem:[#allocation15 + $0x798] sm:$0xff]
        %v4950 = vld [vmem:[#allocation15 + $0x7a0] sm:$0xff]
        %v4951 = vld [vmem:[#allocation15 + $0x7a8] sm:$0xff]
        %v4952 = vld [vmem:[#allocation15 + $0x7b0] sm:$0xff]
        %v4953 = vld [vmem:[#allocation15 + $0x7b8] sm:$0xff]
        %v4954 = vld [vmem:[#allocation15 + $0x7c0] sm:$0xff]
        %v4955 = vld [vmem:[#allocation15 + $0x7c8] sm:$0xff]
        %v4956 = vld [vmem:[#allocation15 + $0x7d0] sm:$0xff]
        %v4957 = vld [vmem:[#allocation15 + $0x7d8] sm:$0xff]
        %v4958 = vld [vmem:[#allocation15 + $0x7e0] sm:$0xff]
        %v4959 = vld [vmem:[#allocation15 + $0x7e8] sm:$0xff]
        %v4960 = vld [vmem:[#allocation15 + $0x7f0] sm:$0xff]
        %v4961 = vld [vmem:[#allocation15 + $0x7f8] sm:$0xff]
        %v4962 = vld [vmem:[#allocation16] sm:$0x1]
        %4963 = vmatprep.subr.mxu0 0.0
        %4964 = vmatpush1.msra.mxu0 %v4721
        %4965 = vmatprep.subr.mxu0 0.0
        %4966 = vmatpush1.msra.mxu0 %v4720
        %4967 = vmatprep.subr.mxu0 0.0
        %4968 = vmatpush1.msra.mxu0 %v4719
        %4969 = vmatprep.subr.mxu0 0.0
        %4970 = vmatpush1.msra.mxu0 %v4718
        %4971 = vmatprep.subr.mxu0 0.0
        %4972 = vmatpush1.msra.mxu0 %v4717
        %4973 = vmatprep.subr.mxu0 0.0
        %4974 = vmatpush1.msra.mxu0 %v4716
        %4975 = vmatprep.subr.mxu0 0.0
        %4976 = vmatpush1.msra.mxu0 %v4715
        %4977 = vmatprep.subr.mxu0 0.0
        %4978 = vmatpush1.msra.mxu0 %v4714
        %4979 = vmatprep.subr.mxu0 0.0
        %4980 = vmatpush1.msra.mxu0 %v4713
        %4981 = vmatprep.subr.mxu0 0.0
        %4982 = vmatpush1.msra.mxu0 %v4712
        %4983 = vmatprep.subr.mxu0 0.0
        %4984 = vmatpush1.msra.mxu0 %v4711
        %4985 = vmatprep.subr.mxu0 0.0
        %4986 = vmatpush1.msra.mxu0 %v4710
        %4987 = vmatprep.subr.mxu0 0.0
        %4988 = vmatpush1.msra.mxu0 %v4709
        %4989 = vmatprep.subr.mxu0 0.0
        %4990 = vmatpush1.msra.mxu0 %v4708
        %4991 = vmatprep.subr.mxu0 0.0
        %4992 = vmatpush1.msra.mxu0 %v4707
        %4993 = vmatprep.subr.mxu0 0.0
        %4994 = vmatpush1.msra.mxu0 %v4706
        %4995 = vmatprep.subr.mxu0 0.0
        %4996 = vmatpush2.msra.mxu0 %v4737
        %4997 = vmatprep.subr.mxu0 0.0
        %4998 = vmatpush2.msra.mxu0 %v4736
        %4999 = vmatprep.subr.mxu0 0.0
        %5000 = vmatpush2.msra.mxu0 %v4735
        %5001 = vmatprep.subr.mxu0 0.0
        %5002 = vmatpush2.msra.mxu0 %v4734
        %5003 = vmatprep.subr.mxu0 0.0
        %5004 = vmatpush2.msra.mxu0 %v4733
        %5005 = vmatprep.subr.mxu0 0.0
        %5006 = vmatpush2.msra.mxu0 %v4732
        %5007 = vmatprep.subr.mxu0 0.0
        %5008 = vmatpush2.msra.mxu0 %v4731
        %5009 = vmatprep.subr.mxu0 0.0
        %5010 = vmatpush2.msra.mxu0 %v4730
        %5011 = vmatprep.subr.mxu0 0.0
        %5012 = vmatpush2.msra.mxu0 %v4729
        %5013 = vmatprep.subr.mxu0 0.0
        %5014 = vmatpush2.msra.mxu0 %v4728
        %5015 = vmatprep.subr.mxu0 0.0
        %5016 = vmatpush2.msra.mxu0 %v4727
        %5017 = vmatprep.subr.mxu0 0.0
        %5018 = vmatpush2.msra.mxu0 %v4726
        %5019 = vmatprep.subr.mxu0 0.0
        %5020 = vmatpush2.msra.mxu0 %v4725
        %5021 = vmatprep.subr.mxu0 0.0
        %5022 = vmatpush2.msra.mxu0 %v4724
        %5023 = vmatprep.subr.mxu0 0.0
        %5024 = vmatpush2.msra.mxu0 %v4723
        %5025 = vmatprep.subr.mxu0 0.0
        %5026 = vmatpush2.msra.mxu0 %v4722
        %5027 = vmatprep.mubr.f32.mxu0 %v4675
        %5028 = vmatmul.mubr.f32.gmra.mxu0 %v4674
        %v5029 = vpop.f32.mrf.mxu0
        %v5030 = vadd.f32 %v4962, %v5029
        %v5031 = vpop.f32.mrf.mxu0
        %5032 = vdwg.mxu0
        %5033 = vmatprep.subr.mxu0 0.0
        %5034 = vmatpush1.msra.mxu0 %v4753
        %5035 = vmatprep.subr.mxu0 0.0
        %5036 = vmatpush1.msra.mxu0 %v4752
        %5037 = vmatprep.subr.mxu0 0.0
        %5038 = vmatpush1.msra.mxu0 %v4751
        %5039 = vmatprep.subr.mxu0 0.0
        %5040 = vmatpush1.msra.mxu0 %v4750
        %5041 = vmatprep.subr.mxu0 0.0
        %5042 = vmatpush1.msra.mxu0 %v4749
        %5043 = vmatprep.subr.mxu0 0.0
        %5044 = vmatpush1.msra.mxu0 %v4748
        %5045 = vmatprep.subr.mxu0 0.0
        %5046 = vmatpush1.msra.mxu0 %v4747
        %5047 = vmatprep.subr.mxu0 0.0
        %5048 = vmatpush1.msra.mxu0 %v4746
        %5049 = vmatprep.subr.mxu0 0.0
        %5050 = vmatpush1.msra.mxu0 %v4745
        %5051 = vmatprep.subr.mxu0 0.0
        %5052 = vmatpush1.msra.mxu0 %v4744
        %5053 = vmatprep.subr.mxu0 0.0
        %5054 = vmatpush1.msra.mxu0 %v4743
        %5055 = vmatprep.subr.mxu0 0.0
        %5056 = vmatpush1.msra.mxu0 %v4742
        %5057 = vmatprep.subr.mxu0 0.0
        %5058 = vmatpush1.msra.mxu0 %v4741
        %5059 = vmatprep.subr.mxu0 0.0
        %5060 = vmatpush1.msra.mxu0 %v4740
        %5061 = vmatprep.subr.mxu0 0.0
        %5062 = vmatpush1.msra.mxu0 %v4739
        %5063 = vmatprep.subr.mxu0 0.0
        %5064 = vmatpush1.msra.mxu0 %v4738
        %5065 = vmatprep.subr.mxu0 0.0
        %5066 = vmatpush2.msra.mxu0 %v4769
        %5067 = vmatprep.subr.mxu0 0.0
        %5068 = vmatpush2.msra.mxu0 %v4768
        %5069 = vmatprep.subr.mxu0 0.0
        %5070 = vmatpush2.msra.mxu0 %v4767
        %5071 = vmatprep.subr.mxu0 0.0
        %5072 = vmatpush2.msra.mxu0 %v4766
        %5073 = vmatprep.subr.mxu0 0.0
        %5074 = vmatpush2.msra.mxu0 %v4765
        %5075 = vmatprep.subr.mxu0 0.0
        %5076 = vmatpush2.msra.mxu0 %v4764
        %5077 = vmatprep.subr.mxu0 0.0
        %5078 = vmatpush2.msra.mxu0 %v4763
        %5079 = vmatprep.subr.mxu0 0.0
        %5080 = vmatpush2.msra.mxu0 %v4762
        %5081 = vmatprep.subr.mxu0 0.0
        %5082 = vmatpush2.msra.mxu0 %v4761
        %5083 = vmatprep.subr.mxu0 0.0
        %5084 = vmatpush2.msra.mxu0 %v4760
        %5085 = vmatprep.subr.mxu0 0.0
        %5086 = vmatpush2.msra.mxu0 %v4759
        %5087 = vmatprep.subr.mxu0 0.0
        %5088 = vmatpush2.msra.mxu0 %v4758
        %5089 = vmatprep.subr.mxu0 0.0
        %5090 = vmatpush2.msra.mxu0 %v4757
        %5091 = vmatprep.subr.mxu0 0.0
        %5092 = vmatpush2.msra.mxu0 %v4756
        %5093 = vmatprep.subr.mxu0 0.0
        %5094 = vmatpush2.msra.mxu0 %v4755
        %5095 = vmatprep.subr.mxu0 0.0
        %5096 = vmatpush2.msra.mxu0 %v4754
        %5097 = vmatprep.mubr.f32.mxu0 %v4677
        %5098 = vmatmul.mubr.f32.gmra.mxu0 %v4676
        %v5099 = vpop.f32.mrf.mxu0
        %v5100 = vadd.f32 %v5030, %v5099
        %v5101 = vpop.f32.mrf.mxu0
        %5102 = vdwg.mxu0
        %5103 = vmatprep.subr.mxu0 0.0
        %5104 = vmatpush1.msra.mxu0 %v4785
        %5105 = vmatprep.subr.mxu0 0.0
        %5106 = vmatpush1.msra.mxu0 %v4784
        %5107 = vmatprep.subr.mxu0 0.0
        %5108 = vmatpush1.msra.mxu0 %v4783
        %5109 = vmatprep.subr.mxu0 0.0
        %5110 = vmatpush1.msra.mxu0 %v4782
        %5111 = vmatprep.subr.mxu0 0.0
        %5112 = vmatpush1.msra.mxu0 %v4781
        %5113 = vmatprep.subr.mxu0 0.0
        %5114 = vmatpush1.msra.mxu0 %v4780
        %5115 = vmatprep.subr.mxu0 0.0
        %5116 = vmatpush1.msra.mxu0 %v4779
        %5117 = vmatprep.subr.mxu0 0.0
        %5118 = vmatpush1.msra.mxu0 %v4778
        %5119 = vmatprep.subr.mxu0 0.0
        %5120 = vmatpush1.msra.mxu0 %v4777
        %5121 = vmatprep.subr.mxu0 0.0
        %5122 = vmatpush1.msra.mxu0 %v4776
        %5123 = vmatprep.subr.mxu0 0.0
        %5124 = vmatpush1.msra.mxu0 %v4775
        %5125 = vmatprep.subr.mxu0 0.0
        %5126 = vmatpush1.msra.mxu0 %v4774
        %5127 = vmatprep.subr.mxu0 0.0
        %5128 = vmatpush1.msra.mxu0 %v4773
        %5129 = vmatprep.subr.mxu0 0.0
        %5130 = vmatpush1.msra.mxu0 %v4772
        %5131 = vmatprep.subr.mxu0 0.0
        %5132 = vmatpush1.msra.mxu0 %v4771
        %5133 = vmatprep.subr.mxu0 0.0
        %5134 = vmatpush1.msra.mxu0 %v4770
        %5135 = vmatprep.subr.mxu0 0.0
        %5136 = vmatpush2.msra.mxu0 %v4801
        %5137 = vmatprep.subr.mxu0 0.0
        %5138 = vmatpush2.msra.mxu0 %v4800
        %5139 = vmatprep.subr.mxu0 0.0
        %5140 = vmatpush2.msra.mxu0 %v4799
        %5141 = vmatprep.subr.mxu0 0.0
        %5142 = vmatpush2.msra.mxu0 %v4798
        %5143 = vmatprep.subr.mxu0 0.0
        %5144 = vmatpush2.msra.mxu0 %v4797
        %5145 = vmatprep.subr.mxu0 0.0
        %5146 = vmatpush2.msra.mxu0 %v4796
        %5147 = vmatprep.subr.mxu0 0.0
        %5148 = vmatpush2.msra.mxu0 %v4795
        %5149 = vmatprep.subr.mxu0 0.0
        %5150 = vmatpush2.msra.mxu0 %v4794
        %5151 = vmatprep.subr.mxu0 0.0
        %5152 = vmatpush2.msra.mxu0 %v4793
        %5153 = vmatprep.subr.mxu0 0.0
        %5154 = vmatpush2.msra.mxu0 %v4792
        %5155 = vmatprep.subr.mxu0 0.0
        %5156 = vmatpush2.msra.mxu0 %v4791
        %5157 = vmatprep.subr.mxu0 0.0
        %5158 = vmatpush2.msra.mxu0 %v4790
        %5159 = vmatprep.subr.mxu0 0.0
        %5160 = vmatpush2.msra.mxu0 %v4789
        %5161 = vmatprep.subr.mxu0 0.0
        %5162 = vmatpush2.msra.mxu0 %v4788
        %5163 = vmatprep.subr.mxu0 0.0
        %5164 = vmatpush2.msra.mxu0 %v4787
        %5165 = vmatprep.subr.mxu0 0.0
        %5166 = vmatpush2.msra.mxu0 %v4786
        %5167 = vmatprep.mubr.f32.mxu0 %v4683
        %5168 = vmatmul.mubr.f32.gmra.mxu0 %v4682
        %v5169 = vpop.f32.mrf.mxu0
        %v5170 = vadd.f32 %v5100, %v5169
        %v5171 = vpop.f32.mrf.mxu0
        %5172 = vdwg.mxu0
        %5173 = vmatprep.subr.mxu0 0.0
        %5174 = vmatpush1.msra.mxu0 %v4817
        %5175 = vmatprep.subr.mxu0 0.0
        %5176 = vmatpush1.msra.mxu0 %v4816
        %5177 = vmatprep.subr.mxu0 0.0
        %5178 = vmatpush1.msra.mxu0 %v4815
        %5179 = vmatprep.subr.mxu0 0.0
        %5180 = vmatpush1.msra.mxu0 %v4814
        %5181 = vmatprep.subr.mxu0 0.0
        %5182 = vmatpush1.msra.mxu0 %v4813
        %5183 = vmatprep.subr.mxu0 0.0
        %5184 = vmatpush1.msra.mxu0 %v4812
        %5185 = vmatprep.subr.mxu0 0.0
        %5186 = vmatpush1.msra.mxu0 %v4811
        %5187 = vmatprep.subr.mxu0 0.0
        %5188 = vmatpush1.msra.mxu0 %v4810
        %5189 = vmatprep.subr.mxu0 0.0
        %5190 = vmatpush1.msra.mxu0 %v4809
        %5191 = vmatprep.subr.mxu0 0.0
        %5192 = vmatpush1.msra.mxu0 %v4808
        %5193 = vmatprep.subr.mxu0 0.0
        %5194 = vmatpush1.msra.mxu0 %v4807
        %5195 = vmatprep.subr.mxu0 0.0
        %5196 = vmatpush1.msra.mxu0 %v4806
        %5197 = vmatprep.subr.mxu0 0.0
        %5198 = vmatpush1.msra.mxu0 %v4805
        %5199 = vmatprep.subr.mxu0 0.0
        %5200 = vmatpush1.msra.mxu0 %v4804
        %5201 = vmatprep.subr.mxu0 0.0
        %5202 = vmatpush1.msra.mxu0 %v4803
        %5203 = vmatprep.subr.mxu0 0.0
        %5204 = vmatpush1.msra.mxu0 %v4802
        %5205 = vmatprep.subr.mxu0 0.0
        %5206 = vmatpush2.msra.mxu0 %v4833
        %5207 = vmatprep.subr.mxu0 0.0
        %5208 = vmatpush2.msra.mxu0 %v4832
        %5209 = vmatprep.subr.mxu0 0.0
        %5210 = vmatpush2.msra.mxu0 %v4831
        %5211 = vmatprep.subr.mxu0 0.0
        %5212 = vmatpush2.msra.mxu0 %v4830
        %5213 = vmatprep.subr.mxu0 0.0
        %5214 = vmatpush2.msra.mxu0 %v4829
        %5215 = vmatprep.subr.mxu0 0.0
        %5216 = vmatpush2.msra.mxu0 %v4828
        %5217 = vmatprep.subr.mxu0 0.0
        %5218 = vmatpush2.msra.mxu0 %v4827
        %5219 = vmatprep.subr.mxu0 0.0
        %5220 = vmatpush2.msra.mxu0 %v4826
        %5221 = vmatprep.subr.mxu0 0.0
        %5222 = vmatpush2.msra.mxu0 %v4825
        %5223 = vmatprep.subr.mxu0 0.0
        %5224 = vmatpush2.msra.mxu0 %v4824
        %5225 = vmatprep.subr.mxu0 0.0
        %5226 = vmatpush2.msra.mxu0 %v4823
        %5227 = vmatprep.subr.mxu0 0.0
        %5228 = vmatpush2.msra.mxu0 %v4822
        %5229 = vmatprep.subr.mxu0 0.0
        %5230 = vmatpush2.msra.mxu0 %v4821
        %5231 = vmatprep.subr.mxu0 0.0
        %5232 = vmatpush2.msra.mxu0 %v4820
        %5233 = vmatprep.subr.mxu0 0.0
        %5234 = vmatpush2.msra.mxu0 %v4819
        %5235 = vmatprep.subr.mxu0 0.0
        %5236 = vmatpush2.msra.mxu0 %v4818
        %5237 = vmatprep.mubr.f32.mxu0 %v4685
        %5238 = vmatmul.mubr.f32.gmra.mxu0 %v4684
        %v5239 = vpop.f32.mrf.mxu0
        %v5240 = vadd.f32 %v5170, %v5239
        %v5241 = vpop.f32.mrf.mxu0
        %5242 = vdwg.mxu0
        %5243 = vmatprep.subr.mxu0 0.0
        %5244 = vmatpush1.msra.mxu0 %v4849
        %5245 = vmatprep.subr.mxu0 0.0
        %5246 = vmatpush1.msra.mxu0 %v4848
        %5247 = vmatprep.subr.mxu0 0.0
        %5248 = vmatpush1.msra.mxu0 %v4847
        %5249 = vmatprep.subr.mxu0 0.0
        %5250 = vmatpush1.msra.mxu0 %v4846
        %5251 = vmatprep.subr.mxu0 0.0
        %5252 = vmatpush1.msra.mxu0 %v4845
        %5253 = vmatprep.subr.mxu0 0.0
        %5254 = vmatpush1.msra.mxu0 %v4844
        %5255 = vmatprep.subr.mxu0 0.0
        %5256 = vmatpush1.msra.mxu0 %v4843
        %5257 = vmatprep.subr.mxu0 0.0
        %5258 = vmatpush1.msra.mxu0 %v4842
        %5259 = vmatprep.subr.mxu0 0.0
        %5260 = vmatpush1.msra.mxu0 %v4841
        %5261 = vmatprep.subr.mxu0 0.0
        %5262 = vmatpush1.msra.mxu0 %v4840
        %5263 = vmatprep.subr.mxu0 0.0
        %5264 = vmatpush1.msra.mxu0 %v4839
        %5265 = vmatprep.subr.mxu0 0.0
        %5266 = vmatpush1.msra.mxu0 %v4838
        %5267 = vmatprep.subr.mxu0 0.0
        %5268 = vmatpush1.msra.mxu0 %v4837
        %5269 = vmatprep.subr.mxu0 0.0
        %5270 = vmatpush1.msra.mxu0 %v4836
        %5271 = vmatprep.subr.mxu0 0.0
        %5272 = vmatpush1.msra.mxu0 %v4835
        %5273 = vmatprep.subr.mxu0 0.0
        %5274 = vmatpush1.msra.mxu0 %v4834
        %5275 = vmatprep.subr.mxu0 0.0
        %5276 = vmatpush2.msra.mxu0 %v4865
        %5277 = vmatprep.subr.mxu0 0.0
        %5278 = vmatpush2.msra.mxu0 %v4864
        %5279 = vmatprep.subr.mxu0 0.0
        %5280 = vmatpush2.msra.mxu0 %v4863
        %5281 = vmatprep.subr.mxu0 0.0
        %5282 = vmatpush2.msra.mxu0 %v4862
        %5283 = vmatprep.subr.mxu0 0.0
        %5284 = vmatpush2.msra.mxu0 %v4861
        %5285 = vmatprep.subr.mxu0 0.0
        %5286 = vmatpush2.msra.mxu0 %v4860
        %5287 = vmatprep.subr.mxu0 0.0
        %5288 = vmatpush2.msra.mxu0 %v4859
        %5289 = vmatprep.subr.mxu0 0.0
        %5290 = vmatpush2.msra.mxu0 %v4858
        %5291 = vmatprep.subr.mxu0 0.0
        %5292 = vmatpush2.msra.mxu0 %v4857
        %5293 = vmatprep.subr.mxu0 0.0
        %5294 = vmatpush2.msra.mxu0 %v4856
        %5295 = vmatprep.subr.mxu0 0.0
        %5296 = vmatpush2.msra.mxu0 %v4855
        %5297 = vmatprep.subr.mxu0 0.0
        %5298 = vmatpush2.msra.mxu0 %v4854
        %5299 = vmatprep.subr.mxu0 0.0
        %5300 = vmatpush2.msra.mxu0 %v4853
        %5301 = vmatprep.subr.mxu0 0.0
        %5302 = vmatpush2.msra.mxu0 %v4852
        %5303 = vmatprep.subr.mxu0 0.0
        %5304 = vmatpush2.msra.mxu0 %v4851
        %5305 = vmatprep.subr.mxu0 0.0
        %5306 = vmatpush2.msra.mxu0 %v4850
        %5307 = vmatprep.mubr.f32.mxu0 %v4691
        %5308 = vmatmul.mubr.f32.gmra.mxu0 %v4690
        %v5309 = vpop.f32.mrf.mxu0
        %v5310 = vadd.f32 %v5240, %v5309
        %v5311 = vpop.f32.mrf.mxu0
        %5312 = vdwg.mxu0
        %5313 = vmatprep.subr.mxu0 0.0
        %5314 = vmatpush1.msra.mxu0 %v4881
        %5315 = vmatprep.subr.mxu0 0.0
        %5316 = vmatpush1.msra.mxu0 %v4880
        %5317 = vmatprep.subr.mxu0 0.0
        %5318 = vmatpush1.msra.mxu0 %v4879
        %5319 = vmatprep.subr.mxu0 0.0
        %5320 = vmatpush1.msra.mxu0 %v4878
        %5321 = vmatprep.subr.mxu0 0.0
        %5322 = vmatpush1.msra.mxu0 %v4877
        %5323 = vmatprep.subr.mxu0 0.0
        %5324 = vmatpush1.msra.mxu0 %v4876
        %5325 = vmatprep.subr.mxu0 0.0
        %5326 = vmatpush1.msra.mxu0 %v4875
        %5327 = vmatprep.subr.mxu0 0.0
        %5328 = vmatpush1.msra.mxu0 %v4874
        %5329 = vmatprep.subr.mxu0 0.0
        %5330 = vmatpush1.msra.mxu0 %v4873
        %5331 = vmatprep.subr.mxu0 0.0
        %5332 = vmatpush1.msra.mxu0 %v4872
        %5333 = vmatprep.subr.mxu0 0.0
        %5334 = vmatpush1.msra.mxu0 %v4871
        %5335 = vmatprep.subr.mxu0 0.0
        %5336 = vmatpush1.msra.mxu0 %v4870
        %5337 = vmatprep.subr.mxu0 0.0
        %5338 = vmatpush1.msra.mxu0 %v4869
        %5339 = vmatprep.subr.mxu0 0.0
        %5340 = vmatpush1.msra.mxu0 %v4868
        %5341 = vmatprep.subr.mxu0 0.0
        %5342 = vmatpush1.msra.mxu0 %v4867
        %5343 = vmatprep.subr.mxu0 0.0
        %5344 = vmatpush1.msra.mxu0 %v4866
        %5345 = vmatprep.subr.mxu0 0.0
        %5346 = vmatpush2.msra.mxu0 %v4897
        %5347 = vmatprep.subr.mxu0 0.0
        %5348 = vmatpush2.msra.mxu0 %v4896
        %5349 = vmatprep.subr.mxu0 0.0
        %5350 = vmatpush2.msra.mxu0 %v4895
        %5351 = vmatprep.subr.mxu0 0.0
        %5352 = vmatpush2.msra.mxu0 %v4894
        %5353 = vmatprep.subr.mxu0 0.0
        %5354 = vmatpush2.msra.mxu0 %v4893
        %5355 = vmatprep.subr.mxu0 0.0
        %5356 = vmatpush2.msra.mxu0 %v4892
        %5357 = vmatprep.subr.mxu0 0.0
        %5358 = vmatpush2.msra.mxu0 %v4891
        %5359 = vmatprep.subr.mxu0 0.0
        %5360 = vmatpush2.msra.mxu0 %v4890
        %5361 = vmatprep.subr.mxu0 0.0
        %5362 = vmatpush2.msra.mxu0 %v4889
        %5363 = vmatprep.subr.mxu0 0.0
        %5364 = vmatpush2.msra.mxu0 %v4888
        %5365 = vmatprep.subr.mxu0 0.0
        %5366 = vmatpush2.msra.mxu0 %v4887
        %5367 = vmatprep.subr.mxu0 0.0
        %5368 = vmatpush2.msra.mxu0 %v4886
        %5369 = vmatprep.subr.mxu0 0.0
        %5370 = vmatpush2.msra.mxu0 %v4885
        %5371 = vmatprep.subr.mxu0 0.0
        %5372 = vmatpush2.msra.mxu0 %v4884
        %5373 = vmatprep.subr.mxu0 0.0
        %5374 = vmatpush2.msra.mxu0 %v4883
        %5375 = vmatprep.subr.mxu0 0.0
        %5376 = vmatpush2.msra.mxu0 %v4882
        %5377 = vmatprep.mubr.f32.mxu0 %v4693
        %5378 = vmatmul.mubr.f32.gmra.mxu0 %v4692
        %v5379 = vpop.f32.mrf.mxu0
        %v5380 = vadd.f32 %v5310, %v5379
        %v5381 = vpop.f32.mrf.mxu0
        %5382 = vdwg.mxu0
        %5383 = vmatprep.subr.mxu0 0.0
        %5384 = vmatpush1.msra.mxu0 %v4913
        %5385 = vmatprep.subr.mxu0 0.0
        %5386 = vmatpush1.msra.mxu0 %v4912
        %5387 = vmatprep.subr.mxu0 0.0
        %5388 = vmatpush1.msra.mxu0 %v4911
        %5389 = vmatprep.subr.mxu0 0.0
        %5390 = vmatpush1.msra.mxu0 %v4910
        %5391 = vmatprep.subr.mxu0 0.0
        %5392 = vmatpush1.msra.mxu0 %v4909
        %5393 = vmatprep.subr.mxu0 0.0
        %5394 = vmatpush1.msra.mxu0 %v4908
        %5395 = vmatprep.subr.mxu0 0.0
        %5396 = vmatpush1.msra.mxu0 %v4907
        %5397 = vmatprep.subr.mxu0 0.0
        %5398 = vmatpush1.msra.mxu0 %v4906
        %5399 = vmatprep.subr.mxu0 0.0
        %5400 = vmatpush1.msra.mxu0 %v4905
        %5401 = vmatprep.subr.mxu0 0.0
        %5402 = vmatpush1.msra.mxu0 %v4904
        %5403 = vmatprep.subr.mxu0 0.0
        %5404 = vmatpush1.msra.mxu0 %v4903
        %5405 = vmatprep.subr.mxu0 0.0
        %5406 = vmatpush1.msra.mxu0 %v4902
        %5407 = vmatprep.subr.mxu0 0.0
        %5408 = vmatpush1.msra.mxu0 %v4901
        %5409 = vmatprep.subr.mxu0 0.0
        %5410 = vmatpush1.msra.mxu0 %v4900
        %5411 = vmatprep.subr.mxu0 0.0
        %5412 = vmatpush1.msra.mxu0 %v4899
        %5413 = vmatprep.subr.mxu0 0.0
        %5414 = vmatpush1.msra.mxu0 %v4898
        %5415 = vmatprep.subr.mxu0 0.0
        %5416 = vmatpush2.msra.mxu0 %v4929
        %5417 = vmatprep.subr.mxu0 0.0
        %5418 = vmatpush2.msra.mxu0 %v4928
        %5419 = vmatprep.subr.mxu0 0.0
        %5420 = vmatpush2.msra.mxu0 %v4927
        %5421 = vmatprep.subr.mxu0 0.0
        %5422 = vmatpush2.msra.mxu0 %v4926
        %5423 = vmatprep.subr.mxu0 0.0
        %5424 = vmatpush2.msra.mxu0 %v4925
        %5425 = vmatprep.subr.mxu0 0.0
        %5426 = vmatpush2.msra.mxu0 %v4924
        %5427 = vmatprep.subr.mxu0 0.0
        %5428 = vmatpush2.msra.mxu0 %v4923
        %5429 = vmatprep.subr.mxu0 0.0
        %5430 = vmatpush2.msra.mxu0 %v4922
        %5431 = vmatprep.subr.mxu0 0.0
        %5432 = vmatpush2.msra.mxu0 %v4921
        %5433 = vmatprep.subr.mxu0 0.0
        %5434 = vmatpush2.msra.mxu0 %v4920
        %5435 = vmatprep.subr.mxu0 0.0
        %5436 = vmatpush2.msra.mxu0 %v4919
        %5437 = vmatprep.subr.mxu0 0.0
        %5438 = vmatpush2.msra.mxu0 %v4918
        %5439 = vmatprep.subr.mxu0 0.0
        %5440 = vmatpush2.msra.mxu0 %v4917
        %5441 = vmatprep.subr.mxu0 0.0
        %5442 = vmatpush2.msra.mxu0 %v4916
        %5443 = vmatprep.subr.mxu0 0.0
        %5444 = vmatpush2.msra.mxu0 %v4915
        %5445 = vmatprep.subr.mxu0 0.0
        %5446 = vmatpush2.msra.mxu0 %v4914
        %5447 = vmatprep.mubr.f32.mxu0 %v4699
        %5448 = vmatmul.mubr.f32.gmra.mxu0 %v4698
        %v5449 = vpop.f32.mrf.mxu0
        %v5450 = vadd.f32 %v5380, %v5449
        %v5451 = vpop.f32.mrf.mxu0
        %5452 = vdwg.mxu0
        %5453 = vmatprep.subr.mxu0 0.0
        %5454 = vmatpush1.msra.mxu0 %v4945
        %5455 = vmatprep.subr.mxu0 0.0
        %5456 = vmatpush1.msra.mxu0 %v4944
        %5457 = vmatprep.subr.mxu0 0.0
        %5458 = vmatpush1.msra.mxu0 %v4943
        %5459 = vmatprep.subr.mxu0 0.0
        %5460 = vmatpush1.msra.mxu0 %v4942
        %5461 = vmatprep.subr.mxu0 0.0
        %5462 = vmatpush1.msra.mxu0 %v4941
        %5463 = vmatprep.subr.mxu0 0.0
        %5464 = vmatpush1.msra.mxu0 %v4940
        %5465 = vmatprep.subr.mxu0 0.0
        %5466 = vmatpush1.msra.mxu0 %v4939
        %5467 = vmatprep.subr.mxu0 0.0
        %5468 = vmatpush1.msra.mxu0 %v4938
        %5469 = vmatprep.subr.mxu0 0.0
        %5470 = vmatpush1.msra.mxu0 %v4937
        %5471 = vmatprep.subr.mxu0 0.0
        %5472 = vmatpush1.msra.mxu0 %v4936
        %5473 = vmatprep.subr.mxu0 0.0
        %5474 = vmatpush1.msra.mxu0 %v4935
        %5475 = vmatprep.subr.mxu0 0.0
        %5476 = vmatpush1.msra.mxu0 %v4934
        %5477 = vmatprep.subr.mxu0 0.0
        %5478 = vmatpush1.msra.mxu0 %v4933
        %5479 = vmatprep.subr.mxu0 0.0
        %5480 = vmatpush1.msra.mxu0 %v4932
        %5481 = vmatprep.subr.mxu0 0.0
        %5482 = vmatpush1.msra.mxu0 %v4931
        %5483 = vmatprep.subr.mxu0 0.0
        %5484 = vmatpush1.msra.mxu0 %v4930
        %5485 = vmatprep.subr.mxu0 0.0
        %5486 = vmatpush2.msra.mxu0 %v4961
        %5487 = vmatprep.subr.mxu0 0.0
        %5488 = vmatpush2.msra.mxu0 %v4960
        %5489 = vmatprep.subr.mxu0 0.0
        %5490 = vmatpush2.msra.mxu0 %v4959
        %5491 = vmatprep.subr.mxu0 0.0
        %5492 = vmatpush2.msra.mxu0 %v4958
        %5493 = vmatprep.subr.mxu0 0.0
        %5494 = vmatpush2.msra.mxu0 %v4957
        %5495 = vmatprep.subr.mxu0 0.0
        %5496 = vmatpush2.msra.mxu0 %v4956
        %5497 = vmatprep.subr.mxu0 0.0
        %5498 = vmatpush2.msra.mxu0 %v4955
        %5499 = vmatprep.subr.mxu0 0.0
        %5500 = vmatpush2.msra.mxu0 %v4954
        %5501 = vmatprep.subr.mxu0 0.0
        %5502 = vmatpush2.msra.mxu0 %v4953
        %5503 = vmatprep.subr.mxu0 0.0
        %5504 = vmatpush2.msra.mxu0 %v4952
        %5505 = vmatprep.subr.mxu0 0.0
        %5506 = vmatpush2.msra.mxu0 %v4951
        %5507 = vmatprep.subr.mxu0 0.0
        %5508 = vmatpush2.msra.mxu0 %v4950
        %5509 = vmatprep.subr.mxu0 0.0
        %5510 = vmatpush2.msra.mxu0 %v4949
        %5511 = vmatprep.subr.mxu0 0.0
        %5512 = vmatpush2.msra.mxu0 %v4948
        %5513 = vmatprep.subr.mxu0 0.0
        %5514 = vmatpush2.msra.mxu0 %v4947
        %5515 = vmatprep.subr.mxu0 0.0
        %5516 = vmatpush2.msra.mxu0 %v4946
        %5517 = vmatprep.mubr.f32.mxu0 %v4701
        %5518 = vmatmul.mubr.f32.gmra.mxu0 %v4700
        %v5519 = vpop.f32.mrf.mxu0
        %v5520 = vadd.f32 %v5450, %v5519
        %v5521 = vpop.f32.mrf.mxu0
        %5522 = vdwg.mxu0
        %v5523 = vmax.f32 %v5520, 0.0
        %v5524 = vld [vmem:[#allocation18] sm:$0xff]
        %v5525 = vld [vmem:[#allocation18 + $0x8] sm:$0xff]
        %v5526 = vld [vmem:[#allocation18 + $0x10] sm:$0xff]
        %v5527 = vld [vmem:[#allocation18 + $0x18] sm:$0xff]
        %v5528 = vld [vmem:[#allocation18 + $0x20] sm:$0xff]
        %v5529 = vld [vmem:[#allocation18 + $0x28] sm:$0xff]
        %v5530 = vld [vmem:[#allocation18 + $0x30] sm:$0xff]
        %v5531 = vld [vmem:[#allocation18 + $0x38] sm:$0xff]
        %v5532 = vld [vmem:[#allocation18 + $0x40] sm:$0xff]
        %v5533 = vld [vmem:[#allocation18 + $0x48] sm:$0xff]
        %v5534 = vld [vmem:[#allocation18 + $0x50] sm:$0xff]
        %v5535 = vld [vmem:[#allocation18 + $0x58] sm:$0xff]
        %v5536 = vld [vmem:[#allocation18 + $0x60] sm:$0xff]
        %v5537 = vld [vmem:[#allocation18 + $0x68] sm:$0xff]
        %v5538 = vld [vmem:[#allocation18 + $0x70] sm:$0xff]
        %v5539 = vld [vmem:[#allocation18 + $0x78] sm:$0xff]
        %v5540 = vld [vmem:[#allocation19] sm:$0x1]
        %5541 = vmatprep.subr.mxu0 0.0
        %5542 = vmatpush1.msra.mxu0 %v5539
        %5543 = vmatprep.subr.mxu0 0.0
        %5544 = vmatpush1.msra.mxu0 %v5538
        %5545 = vmatprep.subr.mxu0 0.0
        %5546 = vmatpush1.msra.mxu0 %v5537
        %5547 = vmatprep.subr.mxu0 0.0
        %5548 = vmatpush1.msra.mxu0 %v5536
        %5549 = vmatprep.subr.mxu0 0.0
        %5550 = vmatpush1.msra.mxu0 %v5535
        %5551 = vmatprep.subr.mxu0 0.0
        %5552 = vmatpush1.msra.mxu0 %v5534
        %5553 = vmatprep.subr.mxu0 0.0
        %5554 = vmatpush1.msra.mxu0 %v5533
        %5555 = vmatprep.subr.mxu0 0.0
        %5556 = vmatpush1.msra.mxu0 %v5532
        %5557 = vmatprep.subr.mxu0 0.0
        %5558 = vmatpush1.msra.mxu0 %v5531
        %5559 = vmatprep.subr.mxu0 0.0
        %5560 = vmatpush1.msra.mxu0 %v5530
        %5561 = vmatprep.subr.mxu0 0.0
        %5562 = vmatpush1.msra.mxu0 %v5529
        %5563 = vmatprep.subr.mxu0 0.0
        %5564 = vmatpush1.msra.mxu0 %v5528
        %5565 = vmatprep.subr.mxu0 0.0
        %5566 = vmatpush1.msra.mxu0 %v5527
        %5567 = vmatprep.subr.mxu0 0.0
        %5568 = vmatpush1.msra.mxu0 %v5526
        %5569 = vmatprep.subr.mxu0 0.0
        %5570 = vmatpush1.msra.mxu0 %v5525
        %5571 = vmatprep.subr.mxu0 0.0
        %5572 = vmatpush1.msra.mxu0 %v5524
        %5573 = vmatprep.subr.mxu0 0.0
        %5574 = vmatpush2.msra.mxu0 0.0
        %5575 = vmatprep.subr.mxu0 0.0
        %5576 = vmatpush2.msra.mxu0 0.0
        %5577 = vmatprep.subr.mxu0 0.0
        %5578 = vmatpush2.msra.mxu0 0.0
        %5579 = vmatprep.subr.mxu0 0.0
        %5580 = vmatpush2.msra.mxu0 0.0
        %5581 = vmatprep.subr.mxu0 0.0
        %5582 = vmatpush2.msra.mxu0 0.0
        %5583 = vmatprep.subr.mxu0 0.0
        %5584 = vmatpush2.msra.mxu0 0.0
        %5585 = vmatprep.subr.mxu0 0.0
        %5586 = vmatpush2.msra.mxu0 0.0
        %5587 = vmatprep.subr.mxu0 0.0
        %5588 = vmatpush2.msra.mxu0 0.0
        %5589 = vmatprep.subr.mxu0 0.0
        %5590 = vmatpush2.msra.mxu0 0.0
        %5591 = vmatprep.subr.mxu0 0.0
        %5592 = vmatpush2.msra.mxu0 0.0
        %5593 = vmatprep.subr.mxu0 0.0
        %5594 = vmatpush2.msra.mxu0 0.0
        %5595 = vmatprep.subr.mxu0 0.0
        %5596 = vmatpush2.msra.mxu0 0.0
        %5597 = vmatprep.subr.mxu0 0.0
        %5598 = vmatpush2.msra.mxu0 0.0
        %5599 = vmatprep.subr.mxu0 0.0
        %5600 = vmatpush2.msra.mxu0 0.0
        %5601 = vmatprep.subr.mxu0 0.0
        %5602 = vmatpush2.msra.mxu0 0.0
        %5603 = vmatprep.subr.mxu0 0.0
        %5604 = vmatpush2.msra.mxu0 0.0
        %5605 = vmatprep.mubr.f32.mxu0 0.0
        %5606 = vmatmul.mubr.f32.gmra.mxu0 %v5523
        %v5607 = vpop.f32.mrf.mxu0
        %v5608 = vadd.f32 %v5540, %v5607
        %v5609 = vpop.f32.mrf.mxu0
        %5610 = vdwg.mxu0
        %v5611 = vlaneseq
        %v5612 = vand.u32 %v5611, 127
        %vm5613 = vcmp.lt.s32.totalorder %v5612, 2
        %v5614 = vsel %vm5613, %v5608, -1e+30
        %vm5615 = vcmask 1040384
        %v5616 = vsel %vm5615, %v5614, -inf
        %5617 = vmax.xlane.f32.xlu0 %v5616
        %v5618 = vpop.xlane.xlu0 %5617
        %v5619 = vsub.f32 %v5614, %v5618
        %v5620 = vmul.f32 %v5619, 1.442695
        %v5621 = vpow.pop %v5620
        %v5622 = vsel %vm5615, %v5621, 0.0
        %5623 = vadd.xlane.f32.xlu0 %v5622
        %v5624 = vpop.xlane.xlu0 %5623
        %v5625 = vlog2.pop %v5624
        %v5626 = vmul.f32 %v5625, 0.6931472
        %v5627 = vsub.f32 %v5619, %v5626
        %v5628 = vlaneseq
        %v5629 = vshrl.u32 %v5628, 7
        %v5630 = vsub.s32 0, %v5629
        %v5631 = vrot.slane %v5627, %v5630
        %5632 = vst [vmem:[%s601] sm:$0xff] %v5631
        %p5633 = scmp.lt.s32.totalorder %s31, 1
        %s5634 = scalar_select %p5633, %s31, 1
        %s5635 = smul.addr %s5634, 8
        %s5636 = scalar_lea.vmem %s13, %s5635
        // Predicated region
        $region121: #{net_forward.1} parent=71 // pred_check
          %p5637 = pneg %p327
        $region122: #{net_forward.1} parent=71 // pred_check_branch
          %5639 = sbr.rel (%p5637) target = $region124
        $region123: #{net_forward.1} parent=71 // pred_region
          _
        $region124: #{net_forward.1} parent=71 // pred_fallthru
          _
      $region72: #{net_forward.1} parent=5 // pred_fallthru
        _
      %p5640 = scmp.le.s32.totalorder 2, %s26
      // Predicated region
      $region125: #{net_forward.1} parent=5 // pred_check
        %p5641 = pneg %p5640
      $region126: #{net_forward.1} parent=5 // pred_check_branch
        %5643 = sbr.rel (%p5641) target = $region128
      $region127: #{net_forward.1} parent=5 // pred_region
        %s5644 = ssub.s32 %s26, 2
        // Predicated region
        $region129: #{net_forward.1} parent=127 // pred_check
          %p5645 = pneg %p333
        $region130: #{net_forward.1} parent=127 // pred_check_branch
          %5647 = sbr.rel (%p5645) target = $region132
        $region131: #{net_forward.1} parent=127 // pred_region
          %p5648 = scmp.lt.s32.totalorder %s32, 1
          %s5649 = scalar_select %p5648, %s32, 1
          %s5650 = smul.addr %s5649, 8
          %s5651 = scalar_lea.vmem %s13, %s5650
        $region132: #{net_forward.1} parent=127 // pred_fallthru
          _
      $region128: #{net_forward.1} parent=5 // pred_fallthru
        _
    $region6: #{net_forward.1} parent=1 // loop_footer
      %s30 = sadd.s32 1, %s26
    $region7: #{net_forward.1} parent=1 // loop_footer_branch
      %25 = sbr.rel target = $region3
    $region8: #{net_forward.1} parent=1 // loop_exit
      _
    %5652 = vsyncpa [#allocation3], 1
    %s5653 = scalar_lea.sflag [#allocation3], 1
    %5654 = vsyncpa %s5653, 1
    %5655 = vsyncpa [#allocation5], 1
    %5656 = vsyncpa [#allocation8], 1
    %5657 = vsyncpa [#allocation11], 1
    %5658 = vsyncpa [#allocation14], 1
    %5659 = vsyncpa [#allocation17], 1
    %5660 = vsyncpa [#allocation20], 1

</llo_original>
